<compile_context>
chip_gen: v7x
topology: tpu7x:2x2x1
jax: 0.10.0
libtpu: 0.0.40
codegen_flags: <defaults>
</compile_context>

<pallas_src>
import functools

import jax
import jax.numpy as jnp
from jax import lax
from jax.experimental import pallas as pl
from jax.experimental.pallas import tpu as pltpu

NEG_SLOPE = 0.01  # LeakyReLU slope used by the Discriminator


# ---------------------------------------------------------------------------
# In-kernel stride-2 4x4 conv via 16 shifted matmuls on space-to-depth data
# ---------------------------------------------------------------------------
def _conv_taps(x_ref, w_ref, b_ref, m_ref, OW):
    """Returns LeakyReLU(conv4x4_stride2(x) + b) with shape (P, Cout).

    x_ref : (1, 4, P, Cin)  space-to-depth input, s = 2*sy + sx, p = by*OW + bx
    w_ref : (16, Cin, Cout) tap-major weights, k = ky*4 + kx
    b_ref : (1, Cout)
    m_ref : (P, 2)  column masks: [:,0] keeps ox>0, [:,1] keeps ox<OW-1
    """
    P, cin = x_ref.shape[2], x_ref.shape[3]
    cout = w_ref.shape[2]

    subs = [x_ref[0, s] for s in range(4)]          # four (P, Cin) sub-grids
    m_left = m_ref[:, 0:1]                          # valid when ox > 0
    m_right = m_ref[:, 1:2]                         # valid when ox < OW-1

    # kernel-tap index -> (block shift d, sub-grid parity s):
    #   tap 0 -> (-1, 1), 1 -> (0, 0), 2 -> (0, 1), 3 -> (+1, 0)
    offs = ((-1, 1), (0, 0), (0, 1), (1, 0))

    acc = jnp.zeros((P, cout), jnp.float32)
    for ky in range(4):
        dy, sy = offs[ky]
        for kx in range(4):
            dx, sx = offs[kx]
            xs = subs[sy * 2 + sx]                  # (P, Cin)
            k = dy * OW + dx                        # flattened row shift
            if k > 0:
                xs = jnp.concatenate(
                    [xs[k:], jnp.zeros((k, cin), xs.dtype)], axis=0)
            elif k < 0:
                xs = jnp.concatenate(
                    [jnp.zeros((-k, cin), xs.dtype), xs[:k]], axis=0)
            # Mask columns that wrapped across a spatial row (padding=1 zeros).
            if dx == 1:
                xs = xs * m_right
            elif dx == -1:
                xs = xs * m_left
            acc = acc + jnp.dot(xs, w_ref[ky * 4 + kx],
                                preferred_element_type=jnp.float32)

    y = acc + b_ref[...]
    return jnp.where(y > 0, y, NEG_SLOPE * y)       # LeakyReLU(0.01)


def _conv_s2_kernel(x_ref, w_ref, b_ref, m_ref, o_ref, *, OW):
    o_ref[0] = _conv_taps(x_ref, w_ref, b_ref, m_ref, OW)


def _conv_s2_head_kernel(x_ref, w_ref, b_ref, m_ref, w1_ref, o_ref, *, OW):
    # Last conv layer fused with the final kernel_size x kernel_size conv
    # (curr_dim -> 1, valid padding, no bias): a weighted global sum.
    y = _conv_taps(x_ref, w_ref, b_ref, m_ref, OW)  # (P, C) with P = ks*ks
    v = y * w1_ref[...]                             # (P, C)
    s = jnp.sum(v, axis=0, keepdims=True)           # (1, C)
    o_ref[0] = jnp.sum(s, axis=1, keepdims=True)    # (1, 1)


# ---------------------------------------------------------------------------
# Host glue: one pallas_call per layer, space-to-depth (bijective) in between
# ---------------------------------------------------------------------------
def conv_layer_apply(x, w, b, head_w=None):
    """x: (N, H, W, Cin) NHWC. w: (Cout, Cin, 4, 4) torch layout. b: (Cout,).

    Returns (N, H/2, W/2, Cout), or (N, 1, 1) if head_w (= (P, Cout)) is given.
    """
    N, H, W, Cin = x.shape
    OH, OW, Cout = H // 2, W // 2, w.shape[0]
    P = OH * OW

    # space-to-depth: x_s2d[n, 2*sy+sx, by*OW+bx, c] = x[n, 2*by+sy, 2*bx+sx, c]
    x_s2d = (x.reshape(N, OH, 2, OW, 2, Cin)
              .transpose(0, 2, 4, 1, 3, 5)
              .reshape(N, 4, P, Cin))

    # w_taps[ky*4+kx, ci, co] = w[co, ci, ky, kx]
    w_taps = jnp.transpose(w, (2, 3, 1, 0)).reshape(16, Cin, Cout)
    b2 = b.reshape(1, Cout)

    cols = jnp.arange(P, dtype=jnp.int32) % OW
    colmask = jnp.stack([cols > 0, cols < OW - 1], axis=1).astype(jnp.float32)

    in_specs = [
        pl.BlockSpec((1, 4, P, Cin), lambda n: (n, 0, 0, 0)),
        pl.BlockSpec((16, Cin, Cout), lambda n: (0, 0, 0)),
        pl.BlockSpec((1, Cout), lambda n: (0, 0)),
        pl.BlockSpec((P, 2), lambda n: (0, 0)),
    ]
    cp = pltpu.CompilerParams(dimension_semantics=("parallel",))

    if head_w is None:
        y = pl.pallas_call(
            functools.partial(_conv_s2_kernel, OW=OW),
            out_shape=jax.ShapeDtypeStruct((N, P, Cout), jnp.float32),
            grid=(N,),
            in_specs=in_specs,
            out_specs=pl.BlockSpec((1, P, Cout), lambda n: (n, 0, 0)),
            compiler_params=cp,
        )(x_s2d, w_taps, b2, colmask)
        return y.reshape(N, OH, OW, Cout)

    y = pl.pallas_call(
        functools.partial(_conv_s2_head_kernel, OW=OW),
        out_shape=jax.ShapeDtypeStruct((N, 1, 1), jnp.float32),
        grid=(N,),
        in_specs=in_specs + [pl.BlockSpec((P, Cout), lambda n: (0, 0))],
        out_specs=pl.BlockSpec((1, 1, 1), lambda n: (n, 0, 0)),
        compiler_params=cp,
    )(x_s2d, w_taps, b2, colmask, head_w)
    return y


def discriminator_forward(x_nchw, convs, w1):
    """x_nchw: (N, 3, H, W).  convs: list of (w, b).  w1: (1, C_last, ks, ks)."""
    x = jnp.transpose(x_nchw, (0, 2, 3, 1))
    n_layers = len(convs)
    ks = x.shape[1] // (2 ** n_layers)
    # head weight in (P, C) layout: w1m[ky*ks+kx, ci] = w1[0, ci, ky, kx]
    w1m = jnp.transpose(w1[0], (1, 2, 0)).reshape(ks * ks, w1.shape[1])

    out = None
    for i, (w, b) in enumerate(convs):
        if i < n_layers - 1:
            x = conv_layer_apply(x, w, b)
        else:
            out = conv_layer_apply(x, w, b, head_w=w1m)   # (N, 1, 1)
    return jnp.squeeze(out)                               # matches out.squeeze()


# ---------------------------------------------------------------------------
# Parameters (spectral norm applied as host-side preparation)
# ---------------------------------------------------------------------------
def _spectral_normalize(w, n_iter=30):
    cout = w.shape[0]
    wm = w.reshape(cout, -1)
    u = jnp.full((cout,), 1.0 / jnp.sqrt(cout), jnp.float32)
    v = None
    for _ in range(n_iter):
        v = wm.T @ u
        v = v / (jnp.linalg.norm(v) + 1e-12)
        u = wm @ v
        u = u / (jnp.linalg.norm(u) + 1e-12)
    sigma = u @ (wm @ v)
    return w / sigma


def init_discriminator_params(key, image_size=32, conv_dim=16, repeat_num=3):
    convs = []
    cin = 3
    for i in range(repeat_num):
        cout = conv_dim if i == 0 else cin * 2
        key, kw, kb = jax.random.split(key, 3)
        w = jax.random.normal(kw, (cout, cin, 4, 4), jnp.float32) / jnp.sqrt(cin * 16.0)
        w = _spectral_normalize(w)
        b = 0.05 * jax.random.normal(kb, (cout,), jnp.float32)
        convs.append((w, b))
        cin = cout
    ks = image_size // (2 ** repeat_num)
    key, kw = jax.random.split(key)
    w1 = jax.random.normal(kw, (1, cin, ks, ks), jnp.float32) / jnp.sqrt(cin * ks * ks)
    w1 = _spectral_normalize(w1)
    return convs, w1, ks, cin


# ---------------------------------------------------------------------------
# Pure-JAX reference (same prepared weights) for correctness checking
# ---------------------------------------------------------------------------
def discriminator_ref(x_nchw, convs, w1):
    x = jnp.transpose(x_nchw, (0, 2, 3, 1))
    for (w, b) in convs:
        x = lax.conv_general_dilated(
            x, jnp.transpose(w, (2, 3, 1, 0)), window_strides=(2, 2),
            padding=((1, 1), (1, 1)), dimension_numbers=("NHWC", "HWIO", "NHWC"),
            precision=lax.Precision.HIGHEST) + b
        x = jnp.where(x > 0, x, NEG_SLOPE * x)
    y = lax.conv_general_dilated(
        x, jnp.transpose(w1, (2, 3, 1, 0)), window_strides=(1, 1),
        padding=((0, 0), (0, 0)), dimension_numbers=("NHWC", "HWIO", "NHWC"),
        precision=lax.Precision.HIGHEST)
    return jnp.squeeze(y)


# ---------------------------------------------------------------------------
if __name__ == "__main__":
    key = jax.random.PRNGKey(0)
    image_size, conv_dim, repeat_num = 32, 16, 3   # small config, same structure
    N = 2

    key, kp, kx = jax.random.split(key, 3)
    convs, w1, ks, c_last = init_discriminator_params(kp, image_size, conv_dim, repeat_num)
    x = jax.random.normal(kx, (N, 3, image_size, image_size), jnp.float32)

    fwd = jax.jit(discriminator_forward)
    ref_fn = jax.jit(discriminator_ref)

    out = jax.block_until_ready(fwd(x, convs, w1))
    ref = jax.block_until_ready(ref_fn(x, convs, w1))

    assert out.shape == (N,), out.shape
    max_err = float(jnp.max(jnp.abs(out - ref)))
    assert max_err < 1e-3, f"max abs err vs reference: {max_err}"
    print("KERNEL_OK")
</pallas_src>

<mosaic_0001>
module attributes {stable_mosaic.version = 11 : i64} {
  func.func @_conv_s2_kernel(%arg0: i32, %arg1: memref<1x4x256x3xf32, #tpu.memory_space<vmem>>, %arg2: memref<16x3x16xf32, #tpu.memory_space<vmem>>, %arg3: memref<1x16xf32, #tpu.memory_space<vmem>>, %arg4: memref<256x2xf32, #tpu.memory_space<vmem>>, %arg5: memref<1x256x16xf32, #tpu.memory_space<vmem>>) attributes {dimension_semantics = [#tpu.dimension_semantics<parallel>], iteration_bounds = array<i64: 2>, scalar_prefetch = 0 : i64, scratch_operands = 0 : i64, tpu.core_type = #tpu.core_type<tc>, window_params = [{transform_indices = @transform_0, window_bounds = array<i64: 1, 4, 256, 3>}, {pipeline_mode = #tpu.pipeline_mode<synchronous>, transform_indices = @transform_1, window_bounds = array<i64: 16, 3, 16>}, {pipeline_mode = #tpu.pipeline_mode<synchronous>, transform_indices = @transform_2, window_bounds = array<i64: 1, 16>}, {pipeline_mode = #tpu.pipeline_mode<synchronous>, transform_indices = @transform_3, window_bounds = array<i64: 256, 2>}, {transform_indices = @transform_4, window_bounds = array<i64: 1, 256, 16>}]} {
    %c0 = arith.constant 0 : index
    %c0_0 = arith.constant 0 : index
    %c0_1 = arith.constant 0 : index
    %c0_2 = arith.constant 0 : index
    %0 = vector.load %arg1[%c0, %c0_0, %c0_1, %c0_2] : memref<1x4x256x3xf32, #tpu.memory_space<vmem>>, vector<1x1x256x3xf32>
    %1 = vector.shape_cast %0 : vector<1x1x256x3xf32> to vector<256x3xf32>
    %c0_3 = arith.constant 0 : index
    %c1 = arith.constant 1 : index
    %c0_4 = arith.constant 0 : index
    %c0_5 = arith.constant 0 : index
    %2 = vector.load %arg1[%c0_3, %c1, %c0_4, %c0_5] : memref<1x4x256x3xf32, #tpu.memory_space<vmem>>, vector<1x1x256x3xf32>
    %3 = vector.shape_cast %2 : vector<1x1x256x3xf32> to vector<256x3xf32>
    %c0_6 = arith.constant 0 : index
    %c2 = arith.constant 2 : index
    %c0_7 = arith.constant 0 : index
    %c0_8 = arith.constant 0 : index
    %4 = vector.load %arg1[%c0_6, %c2, %c0_7, %c0_8] : memref<1x4x256x3xf32, #tpu.memory_space<vmem>>, vector<1x1x256x3xf32>
    %5 = vector.shape_cast %4 : vector<1x1x256x3xf32> to vector<256x3xf32>
    %c0_9 = arith.constant 0 : index
    %c3 = arith.constant 3 : index
    %c0_10 = arith.constant 0 : index
    %c0_11 = arith.constant 0 : index
    %6 = vector.load %arg1[%c0_9, %c3, %c0_10, %c0_11] : memref<1x4x256x3xf32, #tpu.memory_space<vmem>>, vector<1x1x256x3xf32>
    %7 = vector.shape_cast %6 : vector<1x1x256x3xf32> to vector<256x3xf32>
    %c0_12 = arith.constant 0 : index
    %c0_13 = arith.constant 0 : index
    %8 = vector.load %arg4[%c0_12, %c0_13] : memref<256x2xf32, #tpu.memory_space<vmem>>, vector<256x1xf32>
    %c0_14 = arith.constant 0 : index
    %c1_15 = arith.constant 1 : index
    %9 = vector.load %arg4[%c0_14, %c1_15] : memref<256x2xf32, #tpu.memory_space<vmem>>, vector<256x1xf32>
    %cst = arith.constant 0.000000e+00 : f32
    %10 = vector.broadcast %cst : f32 to vector<256x16xf32>
    %cst_16 = arith.constant 0.000000e+00 : f32
    %11 = vector.broadcast %cst_16 : f32 to vector<17x3xf32>
    %12 = vector.extract_strided_slice %7 {offsets = [0, 0], sizes = [239, 3], strides = [1, 1]} : vector<256x3xf32> to vector<239x3xf32>
    %13 = tpu.concatenate %11, %12 in 0 : vector<17x3xf32>, vector<239x3xf32> -> vector<256x3xf32>
    %14 = vector.broadcast %8 : vector<256x1xf32> to vector<256x3xf32>
    %15 = arith.mulf %13, %14 : vector<256x3xf32>
    %c0_17 = arith.constant 0 : index
    %c0_18 = arith.constant 0 : index
    %c0_19 = arith.constant 0 : index
    %16 = vector.load %arg2[%c0_17, %c0_18, %c0_19] : memref<16x3x16xf32, #tpu.memory_space<vmem>>, vector<1x3x16xf32>
    %17 = vector.shape_cast %16 : vector<1x3x16xf32> to vector<3x16xf32>
    %cst_20 = arith.constant dense<0.000000e+00> : vector<256x16xf32>
    %18 = tpu.matmul %15, %17, %cst_20 {dimension_numbers = #tpu.dot_dimension_numbers<[1], [0], [0], [1], [0, 0, 1, 1], [], []>} : vector<256x3xf32>, vector<3x16xf32>, vector<256x16xf32> -> vector<256x16xf32>
    %19 = arith.addf %10, %18 : vector<256x16xf32>
    %cst_21 = arith.constant 0.000000e+00 : f32
    %20 = vector.broadcast %cst_21 : f32 to vector<16x3xf32>
    %21 = vector.extract_strided_slice %5 {offsets = [0, 0], sizes = [240, 3], strides = [1, 1]} : vector<256x3xf32> to vector<240x3xf32>
    %22 = tpu.concatenate %20, %21 in 0 : vector<16x3xf32>, vector<240x3xf32> -> vector<256x3xf32>
    %c1_22 = arith.constant 1 : index
    %c0_23 = arith.constant 0 : index
    %c0_24 = arith.constant 0 : index
    %23 = vector.load %arg2[%c1_22, %c0_23, %c0_24] : memref<16x3x16xf32, #tpu.memory_space<vmem>>, vector<1x3x16xf32>
    %24 = vector.shape_cast %23 : vector<1x3x16xf32> to vector<3x16xf32>
    %cst_25 = arith.constant dense<0.000000e+00> : vector<256x16xf32>
    %25 = tpu.matmul %22, %24, %cst_25 {dimension_numbers = #tpu.dot_dimension_numbers<[1], [0], [0], [1], [0, 0, 1, 1], [], []>} : vector<256x3xf32>, vector<3x16xf32>, vector<256x16xf32> -> vector<256x16xf32>
    %26 = arith.addf %19, %25 : vector<256x16xf32>
    %cst_26 = arith.constant 0.000000e+00 : f32
    %27 = vector.broadcast %cst_26 : f32 to vector<16x3xf32>
    %28 = vector.extract_strided_slice %7 {offsets = [0, 0], sizes = [240, 3], strides = [1, 1]} : vector<256x3xf32> to vector<240x3xf32>
    %29 = tpu.concatenate %27, %28 in 0 : vector<16x3xf32>, vector<240x3xf32> -> vector<256x3xf32>
    %c2_27 = arith.constant 2 : index
    %c0_28 = arith.constant 0 : index
    %c0_29 = arith.constant 0 : index
    %30 = vector.load %arg2[%c2_27, %c0_28, %c0_29] : memref<16x3x16xf32, #tpu.memory_space<vmem>>, vector<1x3x16xf32>
    %31 = vector.shape_cast %30 : vector<1x3x16xf32> to vector<3x16xf32>
    %cst_30 = arith.constant dense<0.000000e+00> : vector<256x16xf32>
    %32 = tpu.matmul %29, %31, %cst_30 {dimension_numbers = #tpu.dot_dimension_numbers<[1], [0], [0], [1], [0, 0, 1, 1], [], []>} : vector<256x3xf32>, vector<3x16xf32>, vector<256x16xf32> -> vector<256x16xf32>
    %33 = arith.addf %26, %32 : vector<256x16xf32>
    %cst_31 = arith.constant 0.000000e+00 : f32
    %34 = vector.broadcast %cst_31 : f32 to vector<15x3xf32>
    %35 = vector.extract_strided_slice %5 {offsets = [0, 0], sizes = [241, 3], strides = [1, 1]} : vector<256x3xf32> to vector<241x3xf32>
    %36 = tpu.concatenate %34, %35 in 0 : vector<15x3xf32>, vector<241x3xf32> -> vector<256x3xf32>
    %37 = vector.broadcast %9 : vector<256x1xf32> to vector<256x3xf32>
    %38 = arith.mulf %36, %37 : vector<256x3xf32>
    %c3_32 = arith.constant 3 : index
    %c0_33 = arith.constant 0 : index
    %c0_34 = arith.constant 0 : index
    %39 = vector.load %arg2[%c3_32, %c0_33, %c0_34] : memref<16x3x16xf32, #tpu.memory_space<vmem>>, vector<1x3x16xf32>
    %40 = vector.shape_cast %39 : vector<1x3x16xf32> to vector<3x16xf32>
    %cst_35 = arith.constant dense<0.000000e+00> : vector<256x16xf32>
    %41 = tpu.matmul %38, %40, %cst_35 {dimension_numbers = #tpu.dot_dimension_numbers<[1], [0], [0], [1], [0, 0, 1, 1], [], []>} : vector<256x3xf32>, vector<3x16xf32>, vector<256x16xf32> -> vector<256x16xf32>
    %42 = arith.addf %33, %41 : vector<256x16xf32>
    %cst_36 = arith.constant 0.000000e+00 : f32
    %43 = vector.broadcast %cst_36 : f32 to vector<1x3xf32>
    %44 = vector.extract_strided_slice %3 {offsets = [0, 0], sizes = [255, 3], strides = [1, 1]} : vector<256x3xf32> to vector<255x3xf32>
    %45 = tpu.concatenate %43, %44 in 0 : vector<1x3xf32>, vector<255x3xf32> -> vector<256x3xf32>
    %46 = vector.broadcast %8 : vector<256x1xf32> to vector<256x3xf32>
    %47 = arith.mulf %45, %46 : vector<256x3xf32>
    %c4 = arith.constant 4 : index
    %c0_37 = arith.constant 0 : index
    %c0_38 = arith.constant 0 : index
    %48 = vector.load %arg2[%c4, %c0_37, %c0_38] : memref<16x3x16xf32, #tpu.memory_space<vmem>>, vector<1x3x16xf32>
    %49 = vector.shape_cast %48 : vector<1x3x16xf32> to vector<3x16xf32>
    %cst_39 = arith.constant dense<0.000000e+00> : vector<256x16xf32>
    %50 = tpu.matmul %47, %49, %cst_39 {dimension_numbers = #tpu.dot_dimension_numbers<[1], [0], [0], [1], [0, 0, 1, 1], [], []>} : vector<256x3xf32>, vector<3x16xf32>, vector<256x16xf32> -> vector<256x16xf32>
    %51 = arith.addf %42, %50 : vector<256x16xf32>
    %c5 = arith.constant 5 : index
    %c0_40 = arith.constant 0 : index
    %c0_41 = arith.constant 0 : index
    %52 = vector.load %arg2[%c5, %c0_40, %c0_41] : memref<16x3x16xf32, #tpu.memory_space<vmem>>, vector<1x3x16xf32>
    %53 = vector.shape_cast %52 : vector<1x3x16xf32> to vector<3x16xf32>
    %cst_42 = arith.constant dense<0.000000e+00> : vector<256x16xf32>
    %54 = tpu.matmul %1, %53, %cst_42 {dimension_numbers = #tpu.dot_dimension_numbers<[1], [0], [0], [1], [0, 0, 1, 1], [], []>} : vector<256x3xf32>, vector<3x16xf32>, vector<256x16xf32> -> vector<256x16xf32>
    %55 = arith.addf %51, %54 : vector<256x16xf32>
    %c6 = arith.constant 6 : index
    %c0_43 = arith.constant 0 : index
    %c0_44 = arith.constant 0 : index
    %56 = vector.load %arg2[%c6, %c0_43, %c0_44] : memref<16x3x16xf32, #tpu.memory_space<vmem>>, vector<1x3x16xf32>
    %57 = vector.shape_cast %56 : vector<1x3x16xf32> to vector<3x16xf32>
    %cst_45 = arith.constant dense<0.000000e+00> : vector<256x16xf32>
    %58 = tpu.matmul %3, %57, %cst_45 {dimension_numbers = #tpu.dot_dimension_numbers<[1], [0], [0], [1], [0, 0, 1, 1], [], []>} : vector<256x3xf32>, vector<3x16xf32>, vector<256x16xf32> -> vector<256x16xf32>
    %59 = arith.addf %55, %58 : vector<256x16xf32>
    %60 = vector.extract_strided_slice %1 {offsets = [1, 0], sizes = [255, 3], strides = [1, 1]} : vector<256x3xf32> to vector<255x3xf32>
    %cst_46 = arith.constant 0.000000e+00 : f32
    %61 = vector.broadcast %cst_46 : f32 to vector<1x3xf32>
    %62 = tpu.concatenate %60, %61 in 0 : vector<255x3xf32>, vector<1x3xf32> -> vector<256x3xf32>
    %63 = vector.broadcast %9 : vector<256x1xf32> to vector<256x3xf32>
    %64 = arith.mulf %62, %63 : vector<256x3xf32>
    %c7 = arith.constant 7 : index
    %c0_47 = arith.constant 0 : index
    %c0_48 = arith.constant 0 : index
    %65 = vector.load %arg2[%c7, %c0_47, %c0_48] : memref<16x3x16xf32, #tpu.memory_space<vmem>>, vector<1x3x16xf32>
    %66 = vector.shape_cast %65 : vector<1x3x16xf32> to vector<3x16xf32>
    %cst_49 = arith.constant dense<0.000000e+00> : vector<256x16xf32>
    %67 = tpu.matmul %64, %66, %cst_49 {dimension_numbers = #tpu.dot_dimension_numbers<[1], [0], [0], [1], [0, 0, 1, 1], [], []>} : vector<256x3xf32>, vector<3x16xf32>, vector<256x16xf32> -> vector<256x16xf32>
    %68 = arith.addf %59, %67 : vector<256x16xf32>
    %cst_50 = arith.constant 0.000000e+00 : f32
    %69 = vector.broadcast %cst_50 : f32 to vector<1x3xf32>
    %70 = vector.extract_strided_slice %7 {offsets = [0, 0], sizes = [255, 3], strides = [1, 1]} : vector<256x3xf32> to vector<255x3xf32>
    %71 = tpu.concatenate %69, %70 in 0 : vector<1x3xf32>, vector<255x3xf32> -> vector<256x3xf32>
    %72 = vector.broadcast %8 : vector<256x1xf32> to vector<256x3xf32>
    %73 = arith.mulf %71, %72 : vector<256x3xf32>
    %c8 = arith.constant 8 : index
    %c0_51 = arith.constant 0 : index
    %c0_52 = arith.constant 0 : index
    %74 = vector.load %arg2[%c8, %c0_51, %c0_52] : memref<16x3x16xf32, #tpu.memory_space<vmem>>, vector<1x3x16xf32>
    %75 = vector.shape_cast %74 : vector<1x3x16xf32> to vector<3x16xf32>
    %cst_53 = arith.constant dense<0.000000e+00> : vector<256x16xf32>
    %76 = tpu.matmul %73, %75, %cst_53 {dimension_numbers = #tpu.dot_dimension_numbers<[1], [0], [0], [1], [0, 0, 1, 1], [], []>} : vector<256x3xf32>, vector<3x16xf32>, vector<256x16xf32> -> vector<256x16xf32>
    %77 = arith.addf %68, %76 : vector<256x16xf32>
    %c9 = arith.constant 9 : index
    %c0_54 = arith.constant 0 : index
    %c0_55 = arith.constant 0 : index
    %78 = vector.load %arg2[%c9, %c0_54, %c0_55] : memref<16x3x16xf32, #tpu.memory_space<vmem>>, vector<1x3x16xf32>
    %79 = vector.shape_cast %78 : vector<1x3x16xf32> to vector<3x16xf32>
    %cst_56 = arith.constant dense<0.000000e+00> : vector<256x16xf32>
    %80 = tpu.matmul %5, %79, %cst_56 {dimension_numbers = #tpu.dot_dimension_numbers<[1], [0], [0], [1], [0, 0, 1, 1], [], []>} : vector<256x3xf32>, vector<3x16xf32>, vector<256x16xf32> -> vector<256x16xf32>
    %81 = arith.addf %77, %80 : vector<256x16xf32>
    %c10 = arith.constant 10 : index
    %c0_57 = arith.constant 0 : index
    %c0_58 = arith.constant 0 : index
    %82 = vector.load %arg2[%c10, %c0_57, %c0_58] : memref<16x3x16xf32, #tpu.memory_space<vmem>>, vector<1x3x16xf32>
    %83 = vector.shape_cast %82 : vector<1x3x16xf32> to vector<3x16xf32>
    %cst_59 = arith.constant dense<0.000000e+00> : vector<256x16xf32>
    %84 = tpu.matmul %7, %83, %cst_59 {dimension_numbers = #tpu.dot_dimension_numbers<[1], [0], [0], [1], [0, 0, 1, 1], [], []>} : vector<256x3xf32>, vector<3x16xf32>, vector<256x16xf32> -> vector<256x16xf32>
    %85 = arith.addf %81, %84 : vector<256x16xf32>
    %86 = vector.extract_strided_slice %5 {offsets = [1, 0], sizes = [255, 3], strides = [1, 1]} : vector<256x3xf32> to vector<255x3xf32>
    %cst_60 = arith.constant 0.000000e+00 : f32
    %87 = vector.broadcast %cst_60 : f32 to vector<1x3xf32>
    %88 = tpu.concatenate %86, %87 in 0 : vector<255x3xf32>, vector<1x3xf32> -> vector<256x3xf32>
    %89 = vector.broadcast %9 : vector<256x1xf32> to vector<256x3xf32>
    %90 = arith.mulf %88, %89 : vector<256x3xf32>
    %c11 = arith.constant 11 : index
    %c0_61 = arith.constant 0 : index
    %c0_62 = arith.constant 0 : index
    %91 = vector.load %arg2[%c11, %c0_61, %c0_62] : memref<16x3x16xf32, #tpu.memory_space<vmem>>, vector<1x3x16xf32>
    %92 = vector.shape_cast %91 : vector<1x3x16xf32> to vector<3x16xf32>
    %cst_63 = arith.constant dense<0.000000e+00> : vector<256x16xf32>
    %93 = tpu.matmul %90, %92, %cst_63 {dimension_numbers = #tpu.dot_dimension_numbers<[1], [0], [0], [1], [0, 0, 1, 1], [], []>} : vector<256x3xf32>, vector<3x16xf32>, vector<256x16xf32> -> vector<256x16xf32>
    %94 = arith.addf %85, %93 : vector<256x16xf32>
    %95 = vector.extract_strided_slice %3 {offsets = [15, 0], sizes = [241, 3], strides = [1, 1]} : vector<256x3xf32> to vector<241x3xf32>
    %cst_64 = arith.constant 0.000000e+00 : f32
    %96 = vector.broadcast %cst_64 : f32 to vector<15x3xf32>
    %97 = tpu.concatenate %95, %96 in 0 : vector<241x3xf32>, vector<15x3xf32> -> vector<256x3xf32>
    %98 = vector.broadcast %8 : vector<256x1xf32> to vector<256x3xf32>
    %99 = arith.mulf %97, %98 : vector<256x3xf32>
    %c12 = arith.constant 12 : index
    %c0_65 = arith.constant 0 : index
    %c0_66 = arith.constant 0 : index
    %100 = vector.load %arg2[%c12, %c0_65, %c0_66] : memref<16x3x16xf32, #tpu.memory_space<vmem>>, vector<1x3x16xf32>
    %101 = vector.shape_cast %100 : vector<1x3x16xf32> to vector<3x16xf32>
    %cst_67 = arith.constant dense<0.000000e+00> : vector<256x16xf32>
    %102 = tpu.matmul %99, %101, %cst_67 {dimension_numbers = #tpu.dot_dimension_numbers<[1], [0], [0], [1], [0, 0, 1, 1], [], []>} : vector<256x3xf32>, vector<3x16xf32>, vector<256x16xf32> -> vector<256x16xf32>
    %103 = arith.addf %94, %102 : vector<256x16xf32>
    %104 = vector.extract_strided_slice %1 {offsets = [16, 0], sizes = [240, 3], strides = [1, 1]} : vector<256x3xf32> to vector<240x3xf32>
    %cst_68 = arith.constant 0.000000e+00 : f32
    %105 = vector.broadcast %cst_68 : f32 to vector<16x3xf32>
    %106 = tpu.concatenate %104, %105 in 0 : vector<240x3xf32>, vector<16x3xf32> -> vector<256x3xf32>
    %c13 = arith.constant 13 : index
    %c0_69 = arith.constant 0 : index
    %c0_70 = arith.constant 0 : index
    %107 = vector.load %arg2[%c13, %c0_69, %c0_70] : memref<16x3x16xf32, #tpu.memory_space<vmem>>, vector<1x3x16xf32>
    %108 = vector.shape_cast %107 : vector<1x3x16xf32> to vector<3x16xf32>
    %cst_71 = arith.constant dense<0.000000e+00> : vector<256x16xf32>
    %109 = tpu.matmul %106, %108, %cst_71 {dimension_numbers = #tpu.dot_dimension_numbers<[1], [0], [0], [1], [0, 0, 1, 1], [], []>} : vector<256x3xf32>, vector<3x16xf32>, vector<256x16xf32> -> vector<256x16xf32>
    %110 = arith.addf %103, %109 : vector<256x16xf32>
    %111 = vector.extract_strided_slice %3 {offsets = [16, 0], sizes = [240, 3], strides = [1, 1]} : vector<256x3xf32> to vector<240x3xf32>
    %cst_72 = arith.constant 0.000000e+00 : f32
    %112 = vector.broadcast %cst_72 : f32 to vector<16x3xf32>
    %113 = tpu.concatenate %111, %112 in 0 : vector<240x3xf32>, vector<16x3xf32> -> vector<256x3xf32>
    %c14 = arith.constant 14 : index
    %c0_73 = arith.constant 0 : index
    %c0_74 = arith.constant 0 : index
    %114 = vector.load %arg2[%c14, %c0_73, %c0_74] : memref<16x3x16xf32, #tpu.memory_space<vmem>>, vector<1x3x16xf32>
    %115 = vector.shape_cast %114 : vector<1x3x16xf32> to vector<3x16xf32>
    %cst_75 = arith.constant dense<0.000000e+00> : vector<256x16xf32>
    %116 = tpu.matmul %113, %115, %cst_75 {dimension_numbers = #tpu.dot_dimension_numbers<[1], [0], [0], [1], [0, 0, 1, 1], [], []>} : vector<256x3xf32>, vector<3x16xf32>, vector<256x16xf32> -> vector<256x16xf32>
    %117 = arith.addf %110, %116 : vector<256x16xf32>
    %118 = vector.extract_strided_slice %1 {offsets = [17, 0], sizes = [239, 3], strides = [1, 1]} : vector<256x3xf32> to vector<239x3xf32>
    %cst_76 = arith.constant 0.000000e+00 : f32
    %119 = vector.broadcast %cst_76 : f32 to vector<17x3xf32>
    %120 = tpu.concatenate %118, %119 in 0 : vector<239x3xf32>, vector<17x3xf32> -> vector<256x3xf32>
    %121 = vector.broadcast %9 : vector<256x1xf32> to vector<256x3xf32>
    %122 = arith.mulf %120, %121 : vector<256x3xf32>
    %c15 = arith.constant 15 : index
    %c0_77 = arith.constant 0 : index
    %c0_78 = arith.constant 0 : index
    %123 = vector.load %arg2[%c15, %c0_77, %c0_78] : memref<16x3x16xf32, #tpu.memory_space<vmem>>, vector<1x3x16xf32>
    %124 = vector.shape_cast %123 : vector<1x3x16xf32> to vector<3x16xf32>
    %cst_79 = arith.constant dense<0.000000e+00> : vector<256x16xf32>
    %125 = tpu.matmul %122, %124, %cst_79 {dimension_numbers = #tpu.dot_dimension_numbers<[1], [0], [0], [1], [0, 0, 1, 1], [], []>} : vector<256x3xf32>, vector<3x16xf32>, vector<256x16xf32> -> vector<256x16xf32>
    %126 = arith.addf %117, %125 : vector<256x16xf32>
    %c0_80 = arith.constant 0 : index
    %c0_81 = arith.constant 0 : index
    %127 = vector.load %arg3[%c0_80, %c0_81] : memref<1x16xf32, #tpu.memory_space<vmem>>, vector<1x16xf32>
    %128 = vector.broadcast %127 : vector<1x16xf32> to vector<256x16xf32>
    %129 = arith.addf %126, %128 : vector<256x16xf32>
    %cst_82 = arith.constant 0.000000e+00 : f32
    %130 = vector.broadcast %cst_82 : f32 to vector<256x16xf32>
    %131 = arith.cmpf ogt, %129, %130 : vector<256x16xf32>
    %cst_83 = arith.constant 0.00999999977 : f32
    %132 = vector.broadcast %cst_83 : f32 to vector<256x16xf32>
    %133 = arith.mulf %132, %129 : vector<256x16xf32>
    %134 = arith.select %131, %129, %133 : vector<256x16xi1>, vector<256x16xf32>
    %c0_84 = arith.constant 0 : index
    %c0_85 = arith.constant 0 : index
    %c0_86 = arith.constant 0 : index
    %135 = vector.load %arg5[%c0_84, %c0_85, %c0_86] : memref<1x256x16xf32, #tpu.memory_space<vmem>>, vector<1x256x16xf32>
    %136 = vector.shape_cast %135 : vector<1x256x16xf32> to vector<256x16xf32>
    %137 = vector.shape_cast %134 : vector<256x16xf32> to vector<1x256x16xf32>
    tpu.vector_store %arg5[%c0_84, %c0_85, %c0_86], %137 {strides = array<i32>} : memref<1x256x16xf32, #tpu.memory_space<vmem>>, vector<1x256x16xf32>,
    return
  }
  func.func @transform_0(%arg0: i32) -> (i32, i32, i32, i32) {
    %c0_i32 = arith.constant 0 : i32
    %c0_i32_0 = arith.constant 0 : i32
    %c0_i32_1 = arith.constant 0 : i32
    %c0_i32_2 = arith.constant 0 : i32
    return %arg0, %c0_i32, %c0_i32_0, %c0_i32_1 : i32, i32, i32, i32
  }
  func.func @transform_1(%arg0: i32) -> (i32, i32, i32) {
    %c0_i32 = arith.constant 0 : i32
    %c0_i32_0 = arith.constant 0 : i32
    %c0_i32_1 = arith.constant 0 : i32
    %c0_i32_2 = arith.constant 0 : i32
    return %c0_i32, %c0_i32_0, %c0_i32_1 : i32, i32, i32
  }
  func.func @transform_2(%arg0: i32) -> (i32, i32) {
    %c0_i32 = arith.constant 0 : i32
    %c0_i32_0 = arith.constant 0 : i32
    %c0_i32_1 = arith.constant 0 : i32
    return %c0_i32, %c0_i32_0 : i32, i32
  }
  func.func @transform_3(%arg0: i32) -> (i32, i32) {
    %c0_i32 = arith.constant 0 : i32
    %c0_i32_0 = arith.constant 0 : i32
    %c0_i32_1 = arith.constant 0 : i32
    return %c0_i32, %c0_i32_0 : i32, i32
  }
  func.func @transform_4(%arg0: i32) -> (i32, i32, i32) {
    %c0_i32 = arith.constant 0 : i32
    %c0_i32_0 = arith.constant 0 : i32
    %c0_i32_1 = arith.constant 0 : i32
    return %arg0, %c0_i32, %c0_i32_0 : i32, i32, i32
  }
}

module attributes {stable_mosaic.version = 11 : i64} {
  func.func @_conv_s2_kernel(%arg0: i32, %arg1: memref<1x4x64x16xf32, #tpu.memory_space<vmem>>, %arg2: memref<16x16x32xf32, #tpu.memory_space<vmem>>, %arg3: memref<1x32xf32, #tpu.memory_space<vmem>>, %arg4: memref<64x2xf32, #tpu.memory_space<vmem>>, %arg5: memref<1x64x32xf32, #tpu.memory_space<vmem>>) attributes {dimension_semantics = [#tpu.dimension_semantics<parallel>], iteration_bounds = array<i64: 2>, scalar_prefetch = 0 : i64, scratch_operands = 0 : i64, tpu.core_type = #tpu.core_type<tc>, window_params = [{transform_indices = @transform_0, window_bounds = array<i64: 1, 4, 64, 16>}, {pipeline_mode = #tpu.pipeline_mode<synchronous>, transform_indices = @transform_1, window_bounds = array<i64: 16, 16, 32>}, {pipeline_mode = #tpu.pipeline_mode<synchronous>, transform_indices = @transform_2, window_bounds = array<i64: 1, 32>}, {pipeline_mode = #tpu.pipeline_mode<synchronous>, transform_indices = @transform_3, window_bounds = array<i64: 64, 2>}, {transform_indices = @transform_4, window_bounds = array<i64: 1, 64, 32>}]} {
    %c0 = arith.constant 0 : index
    %c0_0 = arith.constant 0 : index
    %c0_1 = arith.constant 0 : index
    %c0_2 = arith.constant 0 : index
    %0 = vector.load %arg1[%c0, %c0_0, %c0_1, %c0_2] : memref<1x4x64x16xf32, #tpu.memory_space<vmem>>, vector<1x1x64x16xf32>
    %1 = vector.shape_cast %0 : vector<1x1x64x16xf32> to vector<64x16xf32>
    %c0_3 = arith.constant 0 : index
    %c1 = arith.constant 1 : index
    %c0_4 = arith.constant 0 : index
    %c0_5 = arith.constant 0 : index
    %2 = vector.load %arg1[%c0_3, %c1, %c0_4, %c0_5] : memref<1x4x64x16xf32, #tpu.memory_space<vmem>>, vector<1x1x64x16xf32>
    %3 = vector.shape_cast %2 : vector<1x1x64x16xf32> to vector<64x16xf32>
    %c0_6 = arith.constant 0 : index
    %c2 = arith.constant 2 : index
    %c0_7 = arith.constant 0 : index
    %c0_8 = arith.constant 0 : index
    %4 = vector.load %arg1[%c0_6, %c2, %c0_7, %c0_8] : memref<1x4x64x16xf32, #tpu.memory_space<vmem>>, vector<1x1x64x16xf32>
    %5 = vector.shape_cast %4 : vector<1x1x64x16xf32> to vector<64x16xf32>
    %c0_9 = arith.constant 0 : index
    %c3 = arith.constant 3 : index
    %c0_10 = arith.constant 0 : index
    %c0_11 = arith.constant 0 : index
    %6 = vector.load %arg1[%c0_9, %c3, %c0_10, %c0_11] : memref<1x4x64x16xf32, #tpu.memory_space<vmem>>, vector<1x1x64x16xf32>
    %7 = vector.shape_cast %6 : vector<1x1x64x16xf32> to vector<64x16xf32>
    %c0_12 = arith.constant 0 : index
    %c0_13 = arith.constant 0 : index
    %8 = vector.load %arg4[%c0_12, %c0_13] : memref<64x2xf32, #tpu.memory_space<vmem>>, vector<64x1xf32>
    %c0_14 = arith.constant 0 : index
    %c1_15 = arith.constant 1 : index
    %9 = vector.load %arg4[%c0_14, %c1_15] : memref<64x2xf32, #tpu.memory_space<vmem>>, vector<64x1xf32>
    %cst = arith.constant 0.000000e+00 : f32
    %10 = vector.broadcast %cst : f32 to vector<64x32xf32>
    %cst_16 = arith.constant 0.000000e+00 : f32
    %11 = vector.broadcast %cst_16 : f32 to vector<9x16xf32>
    %12 = vector.extract_strided_slice %7 {offsets = [0, 0], sizes = [55, 16], strides = [1, 1]} : vector<64x16xf32> to vector<55x16xf32>
    %13 = tpu.concatenate %11, %12 in 0 : vector<9x16xf32>, vector<55x16xf32> -> vector<64x16xf32>
    %14 = vector.broadcast %8 : vector<64x1xf32> to vector<64x16xf32>
    %15 = arith.mulf %13, %14 : vector<64x16xf32>
    %c0_17 = arith.constant 0 : index
    %c0_18 = arith.constant 0 : index
    %c0_19 = arith.constant 0 : index
    %16 = vector.load %arg2[%c0_17, %c0_18, %c0_19] : memref<16x16x32xf32, #tpu.memory_space<vmem>>, vector<1x16x32xf32>
    %17 = vector.shape_cast %16 : vector<1x16x32xf32> to vector<16x32xf32>
    %cst_20 = arith.constant dense<0.000000e+00> : vector<64x32xf32>
    %18 = tpu.matmul %15, %17, %cst_20 {dimension_numbers = #tpu.dot_dimension_numbers<[1], [0], [0], [1], [0, 0, 1, 1], [], []>} : vector<64x16xf32>, vector<16x32xf32>, vector<64x32xf32> -> vector<64x32xf32>
    %19 = arith.addf %10, %18 : vector<64x32xf32>
    %cst_21 = arith.constant 0.000000e+00 : f32
    %20 = vector.broadcast %cst_21 : f32 to vector<8x16xf32>
    %21 = vector.extract_strided_slice %5 {offsets = [0, 0], sizes = [56, 16], strides = [1, 1]} : vector<64x16xf32> to vector<56x16xf32>
    %22 = tpu.concatenate %20, %21 in 0 : vector<8x16xf32>, vector<56x16xf32> -> vector<64x16xf32>
    %c1_22 = arith.constant 1 : index
    %c0_23 = arith.constant 0 : index
    %c0_24 = arith.constant 0 : index
    %23 = vector.load %arg2[%c1_22, %c0_23, %c0_24] : memref<16x16x32xf32, #tpu.memory_space<vmem>>, vector<1x16x32xf32>
    %24 = vector.shape_cast %23 : vector<1x16x32xf32> to vector<16x32xf32>
    %cst_25 = arith.constant dense<0.000000e+00> : vector<64x32xf32>
    %25 = tpu.matmul %22, %24, %cst_25 {dimension_numbers = #tpu.dot_dimension_numbers<[1], [0], [0], [1], [0, 0, 1, 1], [], []>} : vector<64x16xf32>, vector<16x32xf32>, vector<64x32xf32> -> vector<64x32xf32>
    %26 = arith.addf %19, %25 : vector<64x32xf32>
    %cst_26 = arith.constant 0.000000e+00 : f32
    %27 = vector.broadcast %cst_26 : f32 to vector<8x16xf32>
    %28 = vector.extract_strided_slice %7 {offsets = [0, 0], sizes = [56, 16], strides = [1, 1]} : vector<64x16xf32> to vector<56x16xf32>
    %29 = tpu.concatenate %27, %28 in 0 : vector<8x16xf32>, vector<56x16xf32> -> vector<64x16xf32>
    %c2_27 = arith.constant 2 : index
    %c0_28 = arith.constant 0 : index
    %c0_29 = arith.constant 0 : index
    %30 = vector.load %arg2[%c2_27, %c0_28, %c0_29] : memref<16x16x32xf32, #tpu.memory_space<vmem>>, vector<1x16x32xf32>
    %31 = vector.shape_cast %30 : vector<1x16x32xf32> to vector<16x32xf32>
    %cst_30 = arith.constant dense<0.000000e+00> : vector<64x32xf32>
    %32 = tpu.matmul %29, %31, %cst_30 {dimension_numbers = #tpu.dot_dimension_numbers<[1], [0], [0], [1], [0, 0, 1, 1], [], []>} : vector<64x16xf32>, vector<16x32xf32>, vector<64x32xf32> -> vector<64x32xf32>
    %33 = arith.addf %26, %32 : vector<64x32xf32>
    %cst_31 = arith.constant 0.000000e+00 : f32
    %34 = vector.broadcast %cst_31 : f32 to vector<7x16xf32>
    %35 = vector.extract_strided_slice %5 {offsets = [0, 0], sizes = [57, 16], strides = [1, 1]} : vector<64x16xf32> to vector<57x16xf32>
    %36 = tpu.concatenate %34, %35 in 0 : vector<7x16xf32>, vector<57x16xf32> -> vector<64x16xf32>
    %37 = vector.broadcast %9 : vector<64x1xf32> to vector<64x16xf32>
    %38 = arith.mulf %36, %37 : vector<64x16xf32>
    %c3_32 = arith.constant 3 : index
    %c0_33 = arith.constant 0 : index
    %c0_34 = arith.constant 0 : index
    %39 = vector.load %arg2[%c3_32, %c0_33, %c0_34] : memref<16x16x32xf32, #tpu.memory_space<vmem>>, vector<1x16x32xf32>
    %40 = vector.shape_cast %39 : vector<1x16x32xf32> to vector<16x32xf32>
    %cst_35 = arith.constant dense<0.000000e+00> : vector<64x32xf32>
    %41 = tpu.matmul %38, %40, %cst_35 {dimension_numbers = #tpu.dot_dimension_numbers<[1], [0], [0], [1], [0, 0, 1, 1], [], []>} : vector<64x16xf32>, vector<16x32xf32>, vector<64x32xf32> -> vector<64x32xf32>
    %42 = arith.addf %33, %41 : vector<64x32xf32>
    %cst_36 = arith.constant 0.000000e+00 : f32
    %43 = vector.broadcast %cst_36 : f32 to vector<1x16xf32>
    %44 = vector.extract_strided_slice %3 {offsets = [0, 0], sizes = [63, 16], strides = [1, 1]} : vector<64x16xf32> to vector<63x16xf32>
    %45 = tpu.concatenate %43, %44 in 0 : vector<1x16xf32>, vector<63x16xf32> -> vector<64x16xf32>
    %46 = vector.broadcast %8 : vector<64x1xf32> to vector<64x16xf32>
    %47 = arith.mulf %45, %46 : vector<64x16xf32>
    %c4 = arith.constant 4 : index
    %c0_37 = arith.constant 0 : index
    %c0_38 = arith.constant 0 : index
    %48 = vector.load %arg2[%c4, %c0_37, %c0_38] : memref<16x16x32xf32, #tpu.memory_space<vmem>>, vector<1x16x32xf32>
    %49 = vector.shape_cast %48 : vector<1x16x32xf32> to vector<16x32xf32>
    %cst_39 = arith.constant dense<0.000000e+00> : vector<64x32xf32>
    %50 = tpu.matmul %47, %49, %cst_39 {dimension_numbers = #tpu.dot_dimension_numbers<[1], [0], [0], [1], [0, 0, 1, 1], [], []>} : vector<64x16xf32>, vector<16x32xf32>, vector<64x32xf32> -> vector<64x32xf32>
    %51 = arith.addf %42, %50 : vector<64x32xf32>
    %c5 = arith.constant 5 : index
    %c0_40 = arith.constant 0 : index
    %c0_41 = arith.constant 0 : index
    %52 = vector.load %arg2[%c5, %c0_40, %c0_41] : memref<16x16x32xf32, #tpu.memory_space<vmem>>, vector<1x16x32xf32>
    %53 = vector.shape_cast %52 : vector<1x16x32xf32> to vector<16x32xf32>
    %cst_42 = arith.constant dense<0.000000e+00> : vector<64x32xf32>
    %54 = tpu.matmul %1, %53, %cst_42 {dimension_numbers = #tpu.dot_dimension_numbers<[1], [0], [0], [1], [0, 0, 1, 1], [], []>} : vector<64x16xf32>, vector<16x32xf32>, vector<64x32xf32> -> vector<64x32xf32>
    %55 = arith.addf %51, %54 : vector<64x32xf32>
    %c6 = arith.constant 6 : index
    %c0_43 = arith.constant 0 : index
    %c0_44 = arith.constant 0 : index
    %56 = vector.load %arg2[%c6, %c0_43, %c0_44] : memref<16x16x32xf32, #tpu.memory_space<vmem>>, vector<1x16x32xf32>
    %57 = vector.shape_cast %56 : vector<1x16x32xf32> to vector<16x32xf32>
    %cst_45 = arith.constant dense<0.000000e+00> : vector<64x32xf32>
    %58 = tpu.matmul %3, %57, %cst_45 {dimension_numbers = #tpu.dot_dimension_numbers<[1], [0], [0], [1], [0, 0, 1, 1], [], []>} : vector<64x16xf32>, vector<16x32xf32>, vector<64x32xf32> -> vector<64x32xf32>
    %59 = arith.addf %55, %58 : vector<64x32xf32>
    %60 = vector.extract_strided_slice %1 {offsets = [1, 0], sizes = [63, 16], strides = [1, 1]} : vector<64x16xf32> to vector<63x16xf32>
    %cst_46 = arith.constant 0.000000e+00 : f32
    %61 = vector.broadcast %cst_46 : f32 to vector<1x16xf32>
    %62 = tpu.concatenate %60, %61 in 0 : vector<63x16xf32>, vector<1x16xf32> -> vector<64x16xf32>
    %63 = vector.broadcast %9 : vector<64x1xf32> to vector<64x16xf32>
    %64 = arith.mulf %62, %63 : vector<64x16xf32>
    %c7 = arith.constant 7 : index
    %c0_47 = arith.constant 0 : index
    %c0_48 = arith.constant 0 : index
    %65 = vector.load %arg2[%c7, %c0_47, %c0_48] : memref<16x16x32xf32, #tpu.memory_space<vmem>>, vector<1x16x32xf32>
    %66 = vector.shape_cast %65 : vector<1x16x32xf32> to vector<16x32xf32>
    %cst_49 = arith.constant dense<0.000000e+00> : vector<64x32xf32>
    %67 = tpu.matmul %64, %66, %cst_49 {dimension_numbers = #tpu.dot_dimension_numbers<[1], [0], [0], [1], [0, 0, 1, 1], [], []>} : vector<64x16xf32>, vector<16x32xf32>, vector<64x32xf32> -> vector<64x32xf32>
    %68 = arith.addf %59, %67 : vector<64x32xf32>
    %cst_50 = arith.constant 0.000000e+00 : f32
    %69 = vector.broadcast %cst_50 : f32 to vector<1x16xf32>
    %70 = vector.extract_strided_slice %7 {offsets = [0, 0], sizes = [63, 16], strides = [1, 1]} : vector<64x16xf32> to vector<63x16xf32>
    %71 = tpu.concatenate %69, %70 in 0 : vector<1x16xf32>, vector<63x16xf32> -> vector<64x16xf32>
    %72 = vector.broadcast %8 : vector<64x1xf32> to vector<64x16xf32>
    %73 = arith.mulf %71, %72 : vector<64x16xf32>
    %c8 = arith.constant 8 : index
    %c0_51 = arith.constant 0 : index
    %c0_52 = arith.constant 0 : index
    %74 = vector.load %arg2[%c8, %c0_51, %c0_52] : memref<16x16x32xf32, #tpu.memory_space<vmem>>, vector<1x16x32xf32>
    %75 = vector.shape_cast %74 : vector<1x16x32xf32> to vector<16x32xf32>
    %cst_53 = arith.constant dense<0.000000e+00> : vector<64x32xf32>
    %76 = tpu.matmul %73, %75, %cst_53 {dimension_numbers = #tpu.dot_dimension_numbers<[1], [0], [0], [1], [0, 0, 1, 1], [], []>} : vector<64x16xf32>, vector<16x32xf32>, vector<64x32xf32> -> vector<64x32xf32>
    %77 = arith.addf %68, %76 : vector<64x32xf32>
    %c9 = arith.constant 9 : index
    %c0_54 = arith.constant 0 : index
    %c0_55 = arith.constant 0 : index
    %78 = vector.load %arg2[%c9, %c0_54, %c0_55] : memref<16x16x32xf32, #tpu.memory_space<vmem>>, vector<1x16x32xf32>
    %79 = vector.shape_cast %78 : vector<1x16x32xf32> to vector<16x32xf32>
    %cst_56 = arith.constant dense<0.000000e+00> : vector<64x32xf32>
    %80 = tpu.matmul %5, %79, %cst_56 {dimension_numbers = #tpu.dot_dimension_numbers<[1], [0], [0], [1], [0, 0, 1, 1], [], []>} : vector<64x16xf32>, vector<16x32xf32>, vector<64x32xf32> -> vector<64x32xf32>
    %81 = arith.addf %77, %80 : vector<64x32xf32>
    %c10 = arith.constant 10 : index
    %c0_57 = arith.constant 0 : index
    %c0_58 = arith.constant 0 : index
    %82 = vector.load %arg2[%c10, %c0_57, %c0_58] : memref<16x16x32xf32, #tpu.memory_space<vmem>>, vector<1x16x32xf32>
    %83 = vector.shape_cast %82 : vector<1x16x32xf32> to vector<16x32xf32>
    %cst_59 = arith.constant dense<0.000000e+00> : vector<64x32xf32>
    %84 = tpu.matmul %7, %83, %cst_59 {dimension_numbers = #tpu.dot_dimension_numbers<[1], [0], [0], [1], [0, 0, 1, 1], [], []>} : vector<64x16xf32>, vector<16x32xf32>, vector<64x32xf32> -> vector<64x32xf32>
    %85 = arith.addf %81, %84 : vector<64x32xf32>
    %86 = vector.extract_strided_slice %5 {offsets = [1, 0], sizes = [63, 16], strides = [1, 1]} : vector<64x16xf32> to vector<63x16xf32>
    %cst_60 = arith.constant 0.000000e+00 : f32
    %87 = vector.broadcast %cst_60 : f32 to vector<1x16xf32>
    %88 = tpu.concatenate %86, %87 in 0 : vector<63x16xf32>, vector<1x16xf32> -> vector<64x16xf32>
    %89 = vector.broadcast %9 : vector<64x1xf32> to vector<64x16xf32>
    %90 = arith.mulf %88, %89 : vector<64x16xf32>
    %c11 = arith.constant 11 : index
    %c0_61 = arith.constant 0 : index
    %c0_62 = arith.constant 0 : index
    %91 = vector.load %arg2[%c11, %c0_61, %c0_62] : memref<16x16x32xf32, #tpu.memory_space<vmem>>, vector<1x16x32xf32>
    %92 = vector.shape_cast %91 : vector<1x16x32xf32> to vector<16x32xf32>
    %cst_63 = arith.constant dense<0.000000e+00> : vector<64x32xf32>
    %93 = tpu.matmul %90, %92, %cst_63 {dimension_numbers = #tpu.dot_dimension_numbers<[1], [0], [0], [1], [0, 0, 1, 1], [], []>} : vector<64x16xf32>, vector<16x32xf32>, vector<64x32xf32> -> vector<64x32xf32>
    %94 = arith.addf %85, %93 : vector<64x32xf32>
    %95 = vector.extract_strided_slice %3 {offsets = [7, 0], sizes = [57, 16], strides = [1, 1]} : vector<64x16xf32> to vector<57x16xf32>
    %cst_64 = arith.constant 0.000000e+00 : f32
    %96 = vector.broadcast %cst_64 : f32 to vector<7x16xf32>
    %97 = tpu.concatenate %95, %96 in 0 : vector<57x16xf32>, vector<7x16xf32> -> vector<64x16xf32>
    %98 = vector.broadcast %8 : vector<64x1xf32> to vector<64x16xf32>
    %99 = arith.mulf %97, %98 : vector<64x16xf32>
    %c12 = arith.constant 12 : index
    %c0_65 = arith.constant 0 : index
    %c0_66 = arith.constant 0 : index
    %100 = vector.load %arg2[%c12, %c0_65, %c0_66] : memref<16x16x32xf32, #tpu.memory_space<vmem>>, vector<1x16x32xf32>
    %101 = vector.shape_cast %100 : vector<1x16x32xf32> to vector<16x32xf32>
    %cst_67 = arith.constant dense<0.000000e+00> : vector<64x32xf32>
    %102 = tpu.matmul %99, %101, %cst_67 {dimension_numbers = #tpu.dot_dimension_numbers<[1], [0], [0], [1], [0, 0, 1, 1], [], []>} : vector<64x16xf32>, vector<16x32xf32>, vector<64x32xf32> -> vector<64x32xf32>
    %103 = arith.addf %94, %102 : vector<64x32xf32>
    %104 = vector.extract_strided_slice %1 {offsets = [8, 0], sizes = [56, 16], strides = [1, 1]} : vector<64x16xf32> to vector<56x16xf32>
    %cst_68 = arith.constant 0.000000e+00 : f32
    %105 = vector.broadcast %cst_68 : f32 to vector<8x16xf32>
    %106 = tpu.concatenate %104, %105 in 0 : vector<56x16xf32>, vector<8x16xf32> -> vector<64x16xf32>
    %c13 = arith.constant 13 : index
    %c0_69 = arith.constant 0 : index
    %c0_70 = arith.constant 0 : index
    %107 = vector.load %arg2[%c13, %c0_69, %c0_70] : memref<16x16x32xf32, #tpu.memory_space<vmem>>, vector<1x16x32xf32>
    %108 = vector.shape_cast %107 : vector<1x16x32xf32> to vector<16x32xf32>
    %cst_71 = arith.constant dense<0.000000e+00> : vector<64x32xf32>
    %109 = tpu.matmul %106, %108, %cst_71 {dimension_numbers = #tpu.dot_dimension_numbers<[1], [0], [0], [1], [0, 0, 1, 1], [], []>} : vector<64x16xf32>, vector<16x32xf32>, vector<64x32xf32> -> vector<64x32xf32>
    %110 = arith.addf %103, %109 : vector<64x32xf32>
    %111 = vector.extract_strided_slice %3 {offsets = [8, 0], sizes = [56, 16], strides = [1, 1]} : vector<64x16xf32> to vector<56x16xf32>
    %cst_72 = arith.constant 0.000000e+00 : f32
    %112 = vector.broadcast %cst_72 : f32 to vector<8x16xf32>
    %113 = tpu.concatenate %111, %112 in 0 : vector<56x16xf32>, vector<8x16xf32> -> vector<64x16xf32>
    %c14 = arith.constant 14 : index
    %c0_73 = arith.constant 0 : index
    %c0_74 = arith.constant 0 : index
    %114 = vector.load %arg2[%c14, %c0_73, %c0_74] : memref<16x16x32xf32, #tpu.memory_space<vmem>>, vector<1x16x32xf32>
    %115 = vector.shape_cast %114 : vector<1x16x32xf32> to vector<16x32xf32>
    %cst_75 = arith.constant dense<0.000000e+00> : vector<64x32xf32>
    %116 = tpu.matmul %113, %115, %cst_75 {dimension_numbers = #tpu.dot_dimension_numbers<[1], [0], [0], [1], [0, 0, 1, 1], [], []>} : vector<64x16xf32>, vector<16x32xf32>, vector<64x32xf32> -> vector<64x32xf32>
    %117 = arith.addf %110, %116 : vector<64x32xf32>
    %118 = vector.extract_strided_slice %1 {offsets = [9, 0], sizes = [55, 16], strides = [1, 1]} : vector<64x16xf32> to vector<55x16xf32>
    %cst_76 = arith.constant 0.000000e+00 : f32
    %119 = vector.broadcast %cst_76 : f32 to vector<9x16xf32>
    %120 = tpu.concatenate %118, %119 in 0 : vector<55x16xf32>, vector<9x16xf32> -> vector<64x16xf32>
    %121 = vector.broadcast %9 : vector<64x1xf32> to vector<64x16xf32>
    %122 = arith.mulf %120, %121 : vector<64x16xf32>
    %c15 = arith.constant 15 : index
    %c0_77 = arith.constant 0 : index
    %c0_78 = arith.constant 0 : index
    %123 = vector.load %arg2[%c15, %c0_77, %c0_78] : memref<16x16x32xf32, #tpu.memory_space<vmem>>, vector<1x16x32xf32>
    %124 = vector.shape_cast %123 : vector<1x16x32xf32> to vector<16x32xf32>
    %cst_79 = arith.constant dense<0.000000e+00> : vector<64x32xf32>
    %125 = tpu.matmul %122, %124, %cst_79 {dimension_numbers = #tpu.dot_dimension_numbers<[1], [0], [0], [1], [0, 0, 1, 1], [], []>} : vector<64x16xf32>, vector<16x32xf32>, vector<64x32xf32> -> vector<64x32xf32>
    %126 = arith.addf %117, %125 : vector<64x32xf32>
    %c0_80 = arith.constant 0 : index
    %c0_81 = arith.constant 0 : index
    %127 = vector.load %arg3[%c0_80, %c0_81] : memref<1x32xf32, #tpu.memory_space<vmem>>, vector<1x32xf32>
    %128 = vector.broadcast %127 : vector<1x32xf32> to vector<64x32xf32>
    %129 = arith.addf %126, %128 : vector<64x32xf32>
    %cst_82 = arith.constant 0.000000e+00 : f32
    %130 = vector.broadcast %cst_82 : f32 to vector<64x32xf32>
    %131 = arith.cmpf ogt, %129, %130 : vector<64x32xf32>
    %cst_83 = arith.constant 0.00999999977 : f32
    %132 = vector.broadcast %cst_83 : f32 to vector<64x32xf32>
    %133 = arith.mulf %132, %129 : vector<64x32xf32>
    %134 = arith.select %131, %129, %133 : vector<64x32xi1>, vector<64x32xf32>
    %c0_84 = arith.constant 0 : index
    %c0_85 = arith.constant 0 : index
    %c0_86 = arith.constant 0 : index
    %135 = vector.load %arg5[%c0_84, %c0_85, %c0_86] : memref<1x64x32xf32, #tpu.memory_space<vmem>>, vector<1x64x32xf32>
    %136 = vector.shape_cast %135 : vector<1x64x32xf32> to vector<64x32xf32>
    %137 = vector.shape_cast %134 : vector<64x32xf32> to vector<1x64x32xf32>
    tpu.vector_store %arg5[%c0_84, %c0_85, %c0_86], %137 {strides = array<i32>} : memref<1x64x32xf32, #tpu.memory_space<vmem>>, vector<1x64x32xf32>,
    return
  }
  func.func @transform_0(%arg0: i32) -> (i32, i32, i32, i32) {
    %c0_i32 = arith.constant 0 : i32
    %c0_i32_0 = arith.constant 0 : i32
    %c0_i32_1 = arith.constant 0 : i32
    %c0_i32_2 = arith.constant 0 : i32
    return %arg0, %c0_i32, %c0_i32_0, %c0_i32_1 : i32, i32, i32, i32
  }
  func.func @transform_1(%arg0: i32) -> (i32, i32, i32) {
    %c0_i32 = arith.constant 0 : i32
    %c0_i32_0 = arith.constant 0 : i32
    %c0_i32_1 = arith.constant 0 : i32
    %c0_i32_2 = arith.constant 0 : i32
    return %c0_i32, %c0_i32_0, %c0_i32_1 : i32, i32, i32
  }
  func.func @transform_2(%arg0: i32) -> (i32, i32) {
    %c0_i32 = arith.constant 0 : i32
    %c0_i32_0 = arith.constant 0 : i32
    %c0_i32_1 = arith.constant 0 : i32
    return %c0_i32, %c0_i32_0 : i32, i32
  }
  func.func @transform_3(%arg0: i32) -> (i32, i32) {
    %c0_i32 = arith.constant 0 : i32
    %c0_i32_0 = arith.constant 0 : i32
    %c0_i32_1 = arith.constant 0 : i32
    return %c0_i32, %c0_i32_0 : i32, i32
  }
  func.func @transform_4(%arg0: i32) -> (i32, i32, i32) {
    %c0_i32 = arith.constant 0 : i32
    %c0_i32_0 = arith.constant 0 : i32
    %c0_i32_1 = arith.constant 0 : i32
    return %arg0, %c0_i32, %c0_i32_0 : i32, i32, i32
  }
}

module attributes {stable_mosaic.version = 11 : i64} {
  func.func @_conv_s2_head_kernel(%arg0: i32, %arg1: memref<1x4x16x32xf32, #tpu.memory_space<vmem>>, %arg2: memref<16x32x64xf32, #tpu.memory_space<vmem>>, %arg3: memref<1x64xf32, #tpu.memory_space<vmem>>, %arg4: memref<16x2xf32, #tpu.memory_space<vmem>>, %arg5: memref<16x64xf32, #tpu.memory_space<vmem>>, %arg6: memref<1x1x1xf32, #tpu.memory_space<vmem>>) attributes {dimension_semantics = [#tpu.dimension_semantics<parallel>], iteration_bounds = array<i64: 2>, scalar_prefetch = 0 : i64, scratch_operands = 0 : i64, tpu.core_type = #tpu.core_type<tc>, window_params = [{transform_indices = @transform_0, window_bounds = array<i64: 1, 4, 16, 32>}, {pipeline_mode = #tpu.pipeline_mode<synchronous>, transform_indices = @transform_1, window_bounds = array<i64: 16, 32, 64>}, {pipeline_mode = #tpu.pipeline_mode<synchronous>, transform_indices = @transform_2, window_bounds = array<i64: 1, 64>}, {pipeline_mode = #tpu.pipeline_mode<synchronous>, transform_indices = @transform_3, window_bounds = array<i64: 16, 2>}, {pipeline_mode = #tpu.pipeline_mode<synchronous>, transform_indices = @transform_4, window_bounds = array<i64: 16, 64>}, {transform_indices = @transform_5, window_bounds = array<i64: 1, 1, 1>}]} {
    %c0 = arith.constant 0 : index
    %c0_0 = arith.constant 0 : index
    %c0_1 = arith.constant 0 : index
    %c0_2 = arith.constant 0 : index
    %0 = vector.load %arg1[%c0, %c0_0, %c0_1, %c0_2] : memref<1x4x16x32xf32, #tpu.memory_space<vmem>>, vector<1x1x16x32xf32>
    %1 = vector.shape_cast %0 : vector<1x1x16x32xf32> to vector<16x32xf32>
    %c0_3 = arith.constant 0 : index
    %c1 = arith.constant 1 : index
    %c0_4 = arith.constant 0 : index
    %c0_5 = arith.constant 0 : index
    %2 = vector.load %arg1[%c0_3, %c1, %c0_4, %c0_5] : memref<1x4x16x32xf32, #tpu.memory_space<vmem>>, vector<1x1x16x32xf32>
    %3 = vector.shape_cast %2 : vector<1x1x16x32xf32> to vector<16x32xf32>
    %c0_6 = arith.constant 0 : index
    %c2 = arith.constant 2 : index
    %c0_7 = arith.constant 0 : index
    %c0_8 = arith.constant 0 : index
    %4 = vector.load %arg1[%c0_6, %c2, %c0_7, %c0_8] : memref<1x4x16x32xf32, #tpu.memory_space<vmem>>, vector<1x1x16x32xf32>
    %5 = vector.shape_cast %4 : vector<1x1x16x32xf32> to vector<16x32xf32>
    %c0_9 = arith.constant 0 : index
    %c3 = arith.constant 3 : index
    %c0_10 = arith.constant 0 : index
    %c0_11 = arith.constant 0 : index
    %6 = vector.load %arg1[%c0_9, %c3, %c0_10, %c0_11] : memref<1x4x16x32xf32, #tpu.memory_space<vmem>>, vector<1x1x16x32xf32>
    %7 = vector.shape_cast %6 : vector<1x1x16x32xf32> to vector<16x32xf32>
    %c0_12 = arith.constant 0 : index
    %c0_13 = arith.constant 0 : index
    %8 = vector.load %arg4[%c0_12, %c0_13] : memref<16x2xf32, #tpu.memory_space<vmem>>, vector<16x1xf32>
    %c0_14 = arith.constant 0 : index
    %c1_15 = arith.constant 1 : index
    %9 = vector.load %arg4[%c0_14, %c1_15] : memref<16x2xf32, #tpu.memory_space<vmem>>, vector<16x1xf32>
    %cst = arith.constant 0.000000e+00 : f32
    %10 = vector.broadcast %cst : f32 to vector<16x64xf32>
    %cst_16 = arith.constant 0.000000e+00 : f32
    %11 = vector.broadcast %cst_16 : f32 to vector<5x32xf32>
    %12 = vector.extract_strided_slice %7 {offsets = [0, 0], sizes = [11, 32], strides = [1, 1]} : vector<16x32xf32> to vector<11x32xf32>
    %13 = tpu.concatenate %11, %12 in 0 : vector<5x32xf32>, vector<11x32xf32> -> vector<16x32xf32>
    %14 = vector.broadcast %8 : vector<16x1xf32> to vector<16x32xf32>
    %15 = arith.mulf %13, %14 : vector<16x32xf32>
    %c0_17 = arith.constant 0 : index
    %c0_18 = arith.constant 0 : index
    %c0_19 = arith.constant 0 : index
    %16 = vector.load %arg2[%c0_17, %c0_18, %c0_19] : memref<16x32x64xf32, #tpu.memory_space<vmem>>, vector<1x32x64xf32>
    %17 = vector.shape_cast %16 : vector<1x32x64xf32> to vector<32x64xf32>
    %cst_20 = arith.constant dense<0.000000e+00> : vector<16x64xf32>
    %18 = tpu.matmul %15, %17, %cst_20 {dimension_numbers = #tpu.dot_dimension_numbers<[1], [0], [0], [1], [0, 0, 1, 1], [], []>} : vector<16x32xf32>, vector<32x64xf32>, vector<16x64xf32> -> vector<16x64xf32>
    %19 = arith.addf %10, %18 : vector<16x64xf32>
    %cst_21 = arith.constant 0.000000e+00 : f32
    %20 = vector.broadcast %cst_21 : f32 to vector<4x32xf32>
    %21 = vector.extract_strided_slice %5 {offsets = [0, 0], sizes = [12, 32], strides = [1, 1]} : vector<16x32xf32> to vector<12x32xf32>
    %22 = tpu.concatenate %20, %21 in 0 : vector<4x32xf32>, vector<12x32xf32> -> vector<16x32xf32>
    %c1_22 = arith.constant 1 : index
    %c0_23 = arith.constant 0 : index
    %c0_24 = arith.constant 0 : index
    %23 = vector.load %arg2[%c1_22, %c0_23, %c0_24] : memref<16x32x64xf32, #tpu.memory_space<vmem>>, vector<1x32x64xf32>
    %24 = vector.shape_cast %23 : vector<1x32x64xf32> to vector<32x64xf32>
    %cst_25 = arith.constant dense<0.000000e+00> : vector<16x64xf32>
    %25 = tpu.matmul %22, %24, %cst_25 {dimension_numbers = #tpu.dot_dimension_numbers<[1], [0], [0], [1], [0, 0, 1, 1], [], []>} : vector<16x32xf32>, vector<32x64xf32>, vector<16x64xf32> -> vector<16x64xf32>
    %26 = arith.addf %19, %25 : vector<16x64xf32>
    %cst_26 = arith.constant 0.000000e+00 : f32
    %27 = vector.broadcast %cst_26 : f32 to vector<4x32xf32>
    %28 = vector.extract_strided_slice %7 {offsets = [0, 0], sizes = [12, 32], strides = [1, 1]} : vector<16x32xf32> to vector<12x32xf32>
    %29 = tpu.concatenate %27, %28 in 0 : vector<4x32xf32>, vector<12x32xf32> -> vector<16x32xf32>
    %c2_27 = arith.constant 2 : index
    %c0_28 = arith.constant 0 : index
    %c0_29 = arith.constant 0 : index
    %30 = vector.load %arg2[%c2_27, %c0_28, %c0_29] : memref<16x32x64xf32, #tpu.memory_space<vmem>>, vector<1x32x64xf32>
    %31 = vector.shape_cast %30 : vector<1x32x64xf32> to vector<32x64xf32>
    %cst_30 = arith.constant dense<0.000000e+00> : vector<16x64xf32>
    %32 = tpu.matmul %29, %31, %cst_30 {dimension_numbers = #tpu.dot_dimension_numbers<[1], [0], [0], [1], [0, 0, 1, 1], [], []>} : vector<16x32xf32>, vector<32x64xf32>, vector<16x64xf32> -> vector<16x64xf32>
    %33 = arith.addf %26, %32 : vector<16x64xf32>
    %cst_31 = arith.constant 0.000000e+00 : f32
    %34 = vector.broadcast %cst_31 : f32 to vector<3x32xf32>
    %35 = vector.extract_strided_slice %5 {offsets = [0, 0], sizes = [13, 32], strides = [1, 1]} : vector<16x32xf32> to vector<13x32xf32>
    %36 = tpu.concatenate %34, %35 in 0 : vector<3x32xf32>, vector<13x32xf32> -> vector<16x32xf32>
    %37 = vector.broadcast %9 : vector<16x1xf32> to vector<16x32xf32>
    %38 = arith.mulf %36, %37 : vector<16x32xf32>
    %c3_32 = arith.constant 3 : index
    %c0_33 = arith.constant 0 : index
    %c0_34 = arith.constant 0 : index
    %39 = vector.load %arg2[%c3_32, %c0_33, %c0_34] : memref<16x32x64xf32, #tpu.memory_space<vmem>>, vector<1x32x64xf32>
    %40 = vector.shape_cast %39 : vector<1x32x64xf32> to vector<32x64xf32>
    %cst_35 = arith.constant dense<0.000000e+00> : vector<16x64xf32>
    %41 = tpu.matmul %38, %40, %cst_35 {dimension_numbers = #tpu.dot_dimension_numbers<[1], [0], [0], [1], [0, 0, 1, 1], [], []>} : vector<16x32xf32>, vector<32x64xf32>, vector<16x64xf32> -> vector<16x64xf32>
    %42 = arith.addf %33, %41 : vector<16x64xf32>
    %cst_36 = arith.constant 0.000000e+00 : f32
    %43 = vector.broadcast %cst_36 : f32 to vector<1x32xf32>
    %44 = vector.extract_strided_slice %3 {offsets = [0, 0], sizes = [15, 32], strides = [1, 1]} : vector<16x32xf32> to vector<15x32xf32>
    %45 = tpu.concatenate %43, %44 in 0 : vector<1x32xf32>, vector<15x32xf32> -> vector<16x32xf32>
    %46 = vector.broadcast %8 : vector<16x1xf32> to vector<16x32xf32>
    %47 = arith.mulf %45, %46 : vector<16x32xf32>
    %c4 = arith.constant 4 : index
    %c0_37 = arith.constant 0 : index
    %c0_38 = arith.constant 0 : index
    %48 = vector.load %arg2[%c4, %c0_37, %c0_38] : memref<16x32x64xf32, #tpu.memory_space<vmem>>, vector<1x32x64xf32>
    %49 = vector.shape_cast %48 : vector<1x32x64xf32> to vector<32x64xf32>
    %cst_39 = arith.constant dense<0.000000e+00> : vector<16x64xf32>
    %50 = tpu.matmul %47, %49, %cst_39 {dimension_numbers = #tpu.dot_dimension_numbers<[1], [0], [0], [1], [0, 0, 1, 1], [], []>} : vector<16x32xf32>, vector<32x64xf32>, vector<16x64xf32> -> vector<16x64xf32>
    %51 = arith.addf %42, %50 : vector<16x64xf32>
    %c5 = arith.constant 5 : index
    %c0_40 = arith.constant 0 : index
    %c0_41 = arith.constant 0 : index
    %52 = vector.load %arg2[%c5, %c0_40, %c0_41] : memref<16x32x64xf32, #tpu.memory_space<vmem>>, vector<1x32x64xf32>
    %53 = vector.shape_cast %52 : vector<1x32x64xf32> to vector<32x64xf32>
    %cst_42 = arith.constant dense<0.000000e+00> : vector<16x64xf32>
    %54 = tpu.matmul %1, %53, %cst_42 {dimension_numbers = #tpu.dot_dimension_numbers<[1], [0], [0], [1], [0, 0, 1, 1], [], []>} : vector<16x32xf32>, vector<32x64xf32>, vector<16x64xf32> -> vector<16x64xf32>
    %55 = arith.addf %51, %54 : vector<16x64xf32>
    %c6 = arith.constant 6 : index
    %c0_43 = arith.constant 0 : index
    %c0_44 = arith.constant 0 : index
    %56 = vector.load %arg2[%c6, %c0_43, %c0_44] : memref<16x32x64xf32, #tpu.memory_space<vmem>>, vector<1x32x64xf32>
    %57 = vector.shape_cast %56 : vector<1x32x64xf32> to vector<32x64xf32>
    %cst_45 = arith.constant dense<0.000000e+00> : vector<16x64xf32>
    %58 = tpu.matmul %3, %57, %cst_45 {dimension_numbers = #tpu.dot_dimension_numbers<[1], [0], [0], [1], [0, 0, 1, 1], [], []>} : vector<16x32xf32>, vector<32x64xf32>, vector<16x64xf32> -> vector<16x64xf32>
    %59 = arith.addf %55, %58 : vector<16x64xf32>
    %60 = vector.extract_strided_slice %1 {offsets = [1, 0], sizes = [15, 32], strides = [1, 1]} : vector<16x32xf32> to vector<15x32xf32>
    %cst_46 = arith.constant 0.000000e+00 : f32
    %61 = vector.broadcast %cst_46 : f32 to vector<1x32xf32>
    %62 = tpu.concatenate %60, %61 in 0 : vector<15x32xf32>, vector<1x32xf32> -> vector<16x32xf32>
    %63 = vector.broadcast %9 : vector<16x1xf32> to vector<16x32xf32>
    %64 = arith.mulf %62, %63 : vector<16x32xf32>
    %c7 = arith.constant 7 : index
    %c0_47 = arith.constant 0 : index
    %c0_48 = arith.constant 0 : index
    %65 = vector.load %arg2[%c7, %c0_47, %c0_48] : memref<16x32x64xf32, #tpu.memory_space<vmem>>, vector<1x32x64xf32>
    %66 = vector.shape_cast %65 : vector<1x32x64xf32> to vector<32x64xf32>
    %cst_49 = arith.constant dense<0.000000e+00> : vector<16x64xf32>
    %67 = tpu.matmul %64, %66, %cst_49 {dimension_numbers = #tpu.dot_dimension_numbers<[1], [0], [0], [1], [0, 0, 1, 1], [], []>} : vector<16x32xf32>, vector<32x64xf32>, vector<16x64xf32> -> vector<16x64xf32>
    %68 = arith.addf %59, %67 : vector<16x64xf32>
    %cst_50 = arith.constant 0.000000e+00 : f32
    %69 = vector.broadcast %cst_50 : f32 to vector<1x32xf32>
    %70 = vector.extract_strided_slice %7 {offsets = [0, 0], sizes = [15, 32], strides = [1, 1]} : vector<16x32xf32> to vector<15x32xf32>
    %71 = tpu.concatenate %69, %70 in 0 : vector<1x32xf32>, vector<15x32xf32> -> vector<16x32xf32>
    %72 = vector.broadcast %8 : vector<16x1xf32> to vector<16x32xf32>
    %73 = arith.mulf %71, %72 : vector<16x32xf32>
    %c8 = arith.constant 8 : index
    %c0_51 = arith.constant 0 : index
    %c0_52 = arith.constant 0 : index
    %74 = vector.load %arg2[%c8, %c0_51, %c0_52] : memref<16x32x64xf32, #tpu.memory_space<vmem>>, vector<1x32x64xf32>
    %75 = vector.shape_cast %74 : vector<1x32x64xf32> to vector<32x64xf32>
    %cst_53 = arith.constant dense<0.000000e+00> : vector<16x64xf32>
    %76 = tpu.matmul %73, %75, %cst_53 {dimension_numbers = #tpu.dot_dimension_numbers<[1], [0], [0], [1], [0, 0, 1, 1], [], []>} : vector<16x32xf32>, vector<32x64xf32>, vector<16x64xf32> -> vector<16x64xf32>
    %77 = arith.addf %68, %76 : vector<16x64xf32>
    %c9 = arith.constant 9 : index
    %c0_54 = arith.constant 0 : index
    %c0_55 = arith.constant 0 : index
    %78 = vector.load %arg2[%c9, %c0_54, %c0_55] : memref<16x32x64xf32, #tpu.memory_space<vmem>>, vector<1x32x64xf32>
    %79 = vector.shape_cast %78 : vector<1x32x64xf32> to vector<32x64xf32>
    %cst_56 = arith.constant dense<0.000000e+00> : vector<16x64xf32>
    %80 = tpu.matmul %5, %79, %cst_56 {dimension_numbers = #tpu.dot_dimension_numbers<[1], [0], [0], [1], [0, 0, 1, 1], [], []>} : vector<16x32xf32>, vector<32x64xf32>, vector<16x64xf32> -> vector<16x64xf32>
    %81 = arith.addf %77, %80 : vector<16x64xf32>
    %c10 = arith.constant 10 : index
    %c0_57 = arith.constant 0 : index
    %c0_58 = arith.constant 0 : index
    %82 = vector.load %arg2[%c10, %c0_57, %c0_58] : memref<16x32x64xf32, #tpu.memory_space<vmem>>, vector<1x32x64xf32>
    %83 = vector.shape_cast %82 : vector<1x32x64xf32> to vector<32x64xf32>
    %cst_59 = arith.constant dense<0.000000e+00> : vector<16x64xf32>
    %84 = tpu.matmul %7, %83, %cst_59 {dimension_numbers = #tpu.dot_dimension_numbers<[1], [0], [0], [1], [0, 0, 1, 1], [], []>} : vector<16x32xf32>, vector<32x64xf32>, vector<16x64xf32> -> vector<16x64xf32>
    %85 = arith.addf %81, %84 : vector<16x64xf32>
    %86 = vector.extract_strided_slice %5 {offsets = [1, 0], sizes = [15, 32], strides = [1, 1]} : vector<16x32xf32> to vector<15x32xf32>
    %cst_60 = arith.constant 0.000000e+00 : f32
    %87 = vector.broadcast %cst_60 : f32 to vector<1x32xf32>
    %88 = tpu.concatenate %86, %87 in 0 : vector<15x32xf32>, vector<1x32xf32> -> vector<16x32xf32>
    %89 = vector.broadcast %9 : vector<16x1xf32> to vector<16x32xf32>
    %90 = arith.mulf %88, %89 : vector<16x32xf32>
    %c11 = arith.constant 11 : index
    %c0_61 = arith.constant 0 : index
    %c0_62 = arith.constant 0 : index
    %91 = vector.load %arg2[%c11, %c0_61, %c0_62] : memref<16x32x64xf32, #tpu.memory_space<vmem>>, vector<1x32x64xf32>
    %92 = vector.shape_cast %91 : vector<1x32x64xf32> to vector<32x64xf32>
    %cst_63 = arith.constant dense<0.000000e+00> : vector<16x64xf32>
    %93 = tpu.matmul %90, %92, %cst_63 {dimension_numbers = #tpu.dot_dimension_numbers<[1], [0], [0], [1], [0, 0, 1, 1], [], []>} : vector<16x32xf32>, vector<32x64xf32>, vector<16x64xf32> -> vector<16x64xf32>
    %94 = arith.addf %85, %93 : vector<16x64xf32>
    %95 = vector.extract_strided_slice %3 {offsets = [3, 0], sizes = [13, 32], strides = [1, 1]} : vector<16x32xf32> to vector<13x32xf32>
    %cst_64 = arith.constant 0.000000e+00 : f32
    %96 = vector.broadcast %cst_64 : f32 to vector<3x32xf32>
    %97 = tpu.concatenate %95, %96 in 0 : vector<13x32xf32>, vector<3x32xf32> -> vector<16x32xf32>
    %98 = vector.broadcast %8 : vector<16x1xf32> to vector<16x32xf32>
    %99 = arith.mulf %97, %98 : vector<16x32xf32>
    %c12 = arith.constant 12 : index
    %c0_65 = arith.constant 0 : index
    %c0_66 = arith.constant 0 : index
    %100 = vector.load %arg2[%c12, %c0_65, %c0_66] : memref<16x32x64xf32, #tpu.memory_space<vmem>>, vector<1x32x64xf32>
    %101 = vector.shape_cast %100 : vector<1x32x64xf32> to vector<32x64xf32>
    %cst_67 = arith.constant dense<0.000000e+00> : vector<16x64xf32>
    %102 = tpu.matmul %99, %101, %cst_67 {dimension_numbers = #tpu.dot_dimension_numbers<[1], [0], [0], [1], [0, 0, 1, 1], [], []>} : vector<16x32xf32>, vector<32x64xf32>, vector<16x64xf32> -> vector<16x64xf32>
    %103 = arith.addf %94, %102 : vector<16x64xf32>
    %104 = vector.extract_strided_slice %1 {offsets = [4, 0], sizes = [12, 32], strides = [1, 1]} : vector<16x32xf32> to vector<12x32xf32>
    %cst_68 = arith.constant 0.000000e+00 : f32
    %105 = vector.broadcast %cst_68 : f32 to vector<4x32xf32>
    %106 = tpu.concatenate %104, %105 in 0 : vector<12x32xf32>, vector<4x32xf32> -> vector<16x32xf32>
    %c13 = arith.constant 13 : index
    %c0_69 = arith.constant 0 : index
    %c0_70 = arith.constant 0 : index
    %107 = vector.load %arg2[%c13, %c0_69, %c0_70] : memref<16x32x64xf32, #tpu.memory_space<vmem>>, vector<1x32x64xf32>
    %108 = vector.shape_cast %107 : vector<1x32x64xf32> to vector<32x64xf32>
    %cst_71 = arith.constant dense<0.000000e+00> : vector<16x64xf32>
    %109 = tpu.matmul %106, %108, %cst_71 {dimension_numbers = #tpu.dot_dimension_numbers<[1], [0], [0], [1], [0, 0, 1, 1], [], []>} : vector<16x32xf32>, vector<32x64xf32>, vector<16x64xf32> -> vector<16x64xf32>
    %110 = arith.addf %103, %109 : vector<16x64xf32>
    %111 = vector.extract_strided_slice %3 {offsets = [4, 0], sizes = [12, 32], strides = [1, 1]} : vector<16x32xf32> to vector<12x32xf32>
    %cst_72 = arith.constant 0.000000e+00 : f32
    %112 = vector.broadcast %cst_72 : f32 to vector<4x32xf32>
    %113 = tpu.concatenate %111, %112 in 0 : vector<12x32xf32>, vector<4x32xf32> -> vector<16x32xf32>
    %c14 = arith.constant 14 : index
    %c0_73 = arith.constant 0 : index
    %c0_74 = arith.constant 0 : index
    %114 = vector.load %arg2[%c14, %c0_73, %c0_74] : memref<16x32x64xf32, #tpu.memory_space<vmem>>, vector<1x32x64xf32>
    %115 = vector.shape_cast %114 : vector<1x32x64xf32> to vector<32x64xf32>
    %cst_75 = arith.constant dense<0.000000e+00> : vector<16x64xf32>
    %116 = tpu.matmul %113, %115, %cst_75 {dimension_numbers = #tpu.dot_dimension_numbers<[1], [0], [0], [1], [0, 0, 1, 1], [], []>} : vector<16x32xf32>, vector<32x64xf32>, vector<16x64xf32> -> vector<16x64xf32>
    %117 = arith.addf %110, %116 : vector<16x64xf32>
    %118 = vector.extract_strided_slice %1 {offsets = [5, 0], sizes = [11, 32], strides = [1, 1]} : vector<16x32xf32> to vector<11x32xf32>
    %cst_76 = arith.constant 0.000000e+00 : f32
    %119 = vector.broadcast %cst_76 : f32 to vector<5x32xf32>
    %120 = tpu.concatenate %118, %119 in 0 : vector<11x32xf32>, vector<5x32xf32> -> vector<16x32xf32>
    %121 = vector.broadcast %9 : vector<16x1xf32> to vector<16x32xf32>
    %122 = arith.mulf %120, %121 : vector<16x32xf32>
    %c15 = arith.constant 15 : index
    %c0_77 = arith.constant 0 : index
    %c0_78 = arith.constant 0 : index
    %123 = vector.load %arg2[%c15, %c0_77, %c0_78] : memref<16x32x64xf32, #tpu.memory_space<vmem>>, vector<1x32x64xf32>
    %124 = vector.shape_cast %123 : vector<1x32x64xf32> to vector<32x64xf32>
    %cst_79 = arith.constant dense<0.000000e+00> : vector<16x64xf32>
    %125 = tpu.matmul %122, %124, %cst_79 {dimension_numbers = #tpu.dot_dimension_numbers<[1], [0], [0], [1], [0, 0, 1, 1], [], []>} : vector<16x32xf32>, vector<32x64xf32>, vector<16x64xf32> -> vector<16x64xf32>
    %126 = arith.addf %117, %125 : vector<16x64xf32>
    %c0_80 = arith.constant 0 : index
    %c0_81 = arith.constant 0 : index
    %127 = vector.load %arg3[%c0_80, %c0_81] : memref<1x64xf32, #tpu.memory_space<vmem>>, vector<1x64xf32>
    %128 = vector.broadcast %127 : vector<1x64xf32> to vector<16x64xf32>
    %129 = arith.addf %126, %128 : vector<16x64xf32>
    %cst_82 = arith.constant 0.000000e+00 : f32
    %130 = vector.broadcast %cst_82 : f32 to vector<16x64xf32>
    %131 = arith.cmpf ogt, %129, %130 : vector<16x64xf32>
    %cst_83 = arith.constant 0.00999999977 : f32
    %132 = vector.broadcast %cst_83 : f32 to vector<16x64xf32>
    %133 = arith.mulf %132, %129 : vector<16x64xf32>
    %134 = arith.select %131, %129, %133 : vector<16x64xi1>, vector<16x64xf32>
    %c0_84 = arith.constant 0 : index
    %c0_85 = arith.constant 0 : index
    %135 = vector.load %arg5[%c0_84, %c0_85] : memref<16x64xf32, #tpu.memory_space<vmem>>, vector<16x64xf32>
    %136 = arith.mulf %134, %135 : vector<16x64xf32>
    %cst_86 = arith.constant dense<0.000000e+00> : vector<64xf32>
    %137 = vector.multi_reduction <add>, %136, %cst_86 [0] : vector<16x64xf32> to vector<64xf32>
    %138 = vector.shape_cast %137 : vector<64xf32> to vector<1x64xf32>
    %cst_87 = arith.constant dense<0.000000e+00> : vector<1xf32>
    %139 = vector.multi_reduction <add>, %138, %cst_87 [1] : vector<1x64xf32> to vector<1xf32>
    %140 = vector.shape_cast %139 : vector<1xf32> to vector<1x1xf32>
    %c0_88 = arith.constant 0 : index
    %c0_89 = arith.constant 0 : index
    %c0_90 = arith.constant 0 : index
    %141 = vector.load %arg6[%c0_88, %c0_89, %c0_90] : memref<1x1x1xf32, #tpu.memory_space<vmem>>, vector<1x1x1xf32>
    %142 = vector.shape_cast %141 : vector<1x1x1xf32> to vector<1x1xf32>
    %143 = vector.shape_cast %140 : vector<1x1xf32> to vector<1x1x1xf32>
    tpu.vector_store %arg6[%c0_88, %c0_89, %c0_90], %143 {strides = array<i32>} : memref<1x1x1xf32, #tpu.memory_space<vmem>>, vector<1x1x1xf32>,
    return
  }
  func.func @transform_0(%arg0: i32) -> (i32, i32, i32, i32) {
    %c0_i32 = arith.constant 0 : i32
    %c0_i32_0 = arith.constant 0 : i32
    %c0_i32_1 = arith.constant 0 : i32
    %c0_i32_2 = arith.constant 0 : i32
    return %arg0, %c0_i32, %c0_i32_0, %c0_i32_1 : i32, i32, i32, i32
  }
  func.func @transform_1(%arg0: i32) -> (i32, i32, i32) {
    %c0_i32 = arith.constant 0 : i32
    %c0_i32_0 = arith.constant 0 : i32
    %c0_i32_1 = arith.constant 0 : i32
    %c0_i32_2 = arith.constant 0 : i32
    return %c0_i32, %c0_i32_0, %c0_i32_1 : i32, i32, i32
  }
  func.func @transform_2(%arg0: i32) -> (i32, i32) {
    %c0_i32 = arith.constant 0 : i32
    %c0_i32_0 = arith.constant 0 : i32
    %c0_i32_1 = arith.constant 0 : i32
    return %c0_i32, %c0_i32_0 : i32, i32
  }
  func.func @transform_3(%arg0: i32) -> (i32, i32) {
    %c0_i32 = arith.constant 0 : i32
    %c0_i32_0 = arith.constant 0 : i32
    %c0_i32_1 = arith.constant 0 : i32
    return %c0_i32, %c0_i32_0 : i32, i32
  }
  func.func @transform_4(%arg0: i32) -> (i32, i32) {
    %c0_i32 = arith.constant 0 : i32
    %c0_i32_0 = arith.constant 0 : i32
    %c0_i32_1 = arith.constant 0 : i32
    return %c0_i32, %c0_i32_0 : i32, i32
  }
  func.func @transform_5(%arg0: i32) -> (i32, i32, i32) {
    %c0_i32 = arith.constant 0 : i32
    %c0_i32_0 = arith.constant 0 : i32
    %c0_i32_1 = arith.constant 0 : i32
    return %arg0, %c0_i32, %c0_i32_0 : i32, i32, i32
  }
}

</mosaic_0001>

<llo_original>
// kernel: discriminator_forward.4
$region0: #{discriminator_forward.4}
  #allocation0 [shape = 'u32[]', space=smem, size = 0x4, offset = 0x4, fixed_abs, tag = 'smem constant byte address 0x4 - core index']
  #allocation1 [shape = 'u32[144,128]{1,0:T(1,128)}', space=vmem, size = 0x12000, scoped, tag = 'internal scratch']
  %s0 = inlined_call_operand.vmem [shape: f32[2,4,64,16], index: 0, kind: input, shape index: {}]
  %s1 = inlined_call_operand.vmem [shape: f32[16,16,32], index: 1, kind: input, shape index: {}]
  %s2 = inlined_call_operand.vmem [shape: f32[1,32], index: 2, kind: input, shape index: {}]
  %s3 = inlined_call_operand.vmem [shape: f32[64,2], index: 3, kind: input, shape index: {}]
  %s4 = inlined_call_operand.vmem [shape: f32[2,64,32], index: 4, kind: output, shape index: {}]
  %s5 = sld [smem:[#allocation0]]
  $region49: #{discriminator_forward.4} parent=0
    _
  %s7 = ssub.s32 1, %s5
  %s8 = scalar_select 0, %s7, %s5
  loop: start=0, step=1, limit=4
  $region2: #{discriminator_forward.4} parent=0 // loop_pre_header
    _
  $region3: #{discriminator_forward.4} parent=0 // loop_header
    %s10 = sphi 0, %s14
    %p11 = scmp.ge.s32.totalorder %s10, 4
    %s20 = sphi 0, %s22
    %s23 = sphi 0, %s20
    %s24 = sphi 0, %s23
    %s40 = sphi 0, %s24
    %s44 = sphi 0, %s44
    %s46 = sphi 0, %s44
    %s47 = sphi 0, %s46
    %s61 = sphi 0, %s47
    %s65 = sphi 0, %s65
    %s67 = sphi 0, %s65
    %s68 = sphi 0, %s67
    %s82 = sphi 0, %s68
    %s86 = sphi 0, %s86
    %s88 = sphi 0, %s86
    %s89 = sphi 0, %s88
    %s103 = sphi 0, %s89
    %s109 = sphi 0, %s111
    %s112 = sphi 0, %s109
    %s113 = sphi 0, %s112
    %s129 = sphi 0, %s113
  $region4: #{discriminator_forward.4} parent=0 // loop_header_branch
    %13 = sbr.rel (%p11) target = $region8
  $region5: #{discriminator_forward.4} parent=0 // loop_body
    %s15 = ssub.s32 %s10, 1
    %s16 = ssub.s32 %s10, 2
    %s17 = sadd.s32 %s10, 1
    %s18 = ssub.s32 %s10, %s17
    %p19 = scmp.eq.s32.totalorder %s18, 0
    %s21 = sadd.s32 %s20, 1
    %s22 = scalar_select %p19, %s20, %s21
    %p25 = pneg %p19
    %p26 = scmp.eq.s32.totalorder %s10, 1
    %p27 = por %p25, %p26
    %p28 = scmp.ne.s32.totalorder %s20, %s23
    %p29 = scmp.eq.s32.totalorder %s10, 0
    %p30 = por %p28, %p29
    %p31 = scmp.ne.s32.totalorder %s20, %s23
    %p32 = scmp.eq.s32.totalorder %s15, 1
    %p33 = por %p31, %p32
    %p34 = scmp.ne.s32.totalorder %s23, %s24
    %p35 = scmp.eq.s32.totalorder %s15, 0
    %p36 = por %p34, %p35
    %p37 = scmp.ne.s32.totalorder %s23, %s24
    %p38 = scmp.eq.s32.totalorder %s16, 1
    %p39 = por %p37, %p38
    %p41 = scmp.ne.s32.totalorder %s24, %s40
    %p42 = scmp.eq.s32.totalorder %s16, 0
    %p43 = por %p41, %p42
    %s45 = sadd.s32 %s44, 1
    %p48 = scmp.eq.s32.totalorder %s10, 1
    %p49 = scmp.ne.s32.totalorder %s44, %s46
    %p50 = scmp.eq.s32.totalorder %s10, 0
    %p51 = por %p49, %p50
    %p52 = scmp.ne.s32.totalorder %s44, %s46
    %p53 = scmp.eq.s32.totalorder %s15, 1
    %p54 = por %p52, %p53
    %p55 = scmp.ne.s32.totalorder %s46, %s47
    %p56 = scmp.eq.s32.totalorder %s15, 0
    %p57 = por %p55, %p56
    %p58 = scmp.ne.s32.totalorder %s46, %s47
    %p59 = scmp.eq.s32.totalorder %s16, 1
    %p60 = por %p58, %p59
    %p62 = scmp.ne.s32.totalorder %s47, %s61
    %p63 = scmp.eq.s32.totalorder %s16, 0
    %p64 = por %p62, %p63
    %s66 = sadd.s32 %s65, 1
    %p69 = scmp.eq.s32.totalorder %s10, 1
    %p70 = scmp.ne.s32.totalorder %s65, %s67
    %p71 = scmp.eq.s32.totalorder %s10, 0
    %p72 = por %p70, %p71
    %p73 = scmp.ne.s32.totalorder %s65, %s67
    %p74 = scmp.eq.s32.totalorder %s15, 1
    %p75 = por %p73, %p74
    %p76 = scmp.ne.s32.totalorder %s67, %s68
    %p77 = scmp.eq.s32.totalorder %s15, 0
    %p78 = por %p76, %p77
    %p79 = scmp.ne.s32.totalorder %s67, %s68
    %p80 = scmp.eq.s32.totalorder %s16, 1
    %p81 = por %p79, %p80
    %p83 = scmp.ne.s32.totalorder %s68, %s82
    %p84 = scmp.eq.s32.totalorder %s16, 0
    %p85 = por %p83, %p84
    %s87 = sadd.s32 %s86, 1
    %p90 = scmp.eq.s32.totalorder %s10, 1
    %p91 = scmp.ne.s32.totalorder %s86, %s88
    %p92 = scmp.eq.s32.totalorder %s10, 0
    %p93 = por %p91, %p92
    %p94 = scmp.ne.s32.totalorder %s86, %s88
    %p95 = scmp.eq.s32.totalorder %s15, 1
    %p96 = por %p94, %p95
    %p97 = scmp.ne.s32.totalorder %s88, %s89
    %p98 = scmp.eq.s32.totalorder %s15, 0
    %p99 = por %p97, %p98
    %p100 = scmp.ne.s32.totalorder %s88, %s89
    %p101 = scmp.eq.s32.totalorder %s16, 1
    %p102 = por %p100, %p101
    %p104 = scmp.ne.s32.totalorder %s89, %s103
    %p105 = scmp.eq.s32.totalorder %s16, 0
    %p106 = por %p104, %p105
    %s107 = ssub.s32 %s10, %s17
    %p108 = scmp.eq.s32.totalorder %s107, 0
    %s110 = sadd.s32 %s109, 1
    %s111 = scalar_select %p108, %s109, %s110
    %p114 = pneg %p108
    %p115 = scmp.eq.s32.totalorder %s10, 1
    %p116 = por %p114, %p115
    %p117 = scmp.ne.s32.totalorder %s109, %s112
    %p118 = scmp.eq.s32.totalorder %s10, 0
    %p119 = por %p117, %p118
    %p120 = scmp.ne.s32.totalorder %s109, %s112
    %p121 = scmp.eq.s32.totalorder %s15, 1
    %p122 = por %p120, %p121
    %p123 = scmp.ne.s32.totalorder %s112, %s113
    %p124 = scmp.eq.s32.totalorder %s15, 0
    %p125 = por %p123, %p124
    %p126 = scmp.ne.s32.totalorder %s112, %s113
    %p127 = scmp.eq.s32.totalorder %s16, 1
    %p128 = por %p126, %p127
    %p130 = scmp.ne.s32.totalorder %s113, %s129
    %p131 = scmp.eq.s32.totalorder %s16, 0
    %p132 = por %p130, %p131
    %p133 = scmp.le.s32.totalorder 1, %s10
    %p134 = scmp.lt.s32.totalorder %s10, 3
    %p135 = pnand %p133, %p134
    %p136 = pneg %p135
    // Predicated region
    $region9: #{discriminator_forward.4} parent=5 // pred_check
      _
    $region10: #{discriminator_forward.4} parent=5 // pred_check_branch
      %138 = sbr.rel (%p135) target = $region12
    $region11: #{discriminator_forward.4} parent=5 // pred_region
      %s139 = ssub.s32 %s10, 1
      // Predicated region
      $region13: #{discriminator_forward.4} parent=11 // pred_check
        %p140 = pneg %p57
      $region14: #{discriminator_forward.4} parent=11 // pred_check_branch
        %142 = sbr.rel (%p140) target = $region16
      $region15: #{discriminator_forward.4} parent=11 // pred_region
        _
      $region16: #{discriminator_forward.4} parent=11 // pred_fallthru
        _
      // Predicated region
      $region17: #{discriminator_forward.4} parent=11 // pred_check
        %p143 = pneg %p78
      $region18: #{discriminator_forward.4} parent=11 // pred_check_branch
        %145 = sbr.rel (%p143) target = $region20
      $region19: #{discriminator_forward.4} parent=11 // pred_region
        _
      $region20: #{discriminator_forward.4} parent=11 // pred_fallthru
        _
      // Predicated region
      $region21: #{discriminator_forward.4} parent=11 // pred_check
        %p146 = pneg %p99
      $region22: #{discriminator_forward.4} parent=11 // pred_check_branch
        %148 = sbr.rel (%p146) target = $region24
      $region23: #{discriminator_forward.4} parent=11 // pred_region
        _
      $region24: #{discriminator_forward.4} parent=11 // pred_fallthru
        _
    $region12: #{discriminator_forward.4} parent=5 // pred_fallthru
      _
    %p149 = scmp.lt.s32.totalorder %s10, 2
    // Predicated region
    $region25: #{discriminator_forward.4} parent=5 // pred_check
      %p150 = pneg %p149
    $region26: #{discriminator_forward.4} parent=5 // pred_check_branch
      %152 = sbr.rel (%p150) target = $region28
    $region27: #{discriminator_forward.4} parent=5 // pred_region
      // Predicated region
      $region29: #{discriminator_forward.4} parent=27 // pred_check
        %p153 = pneg %p30
      $region30: #{discriminator_forward.4} parent=27 // pred_check_branch
        %155 = sbr.rel (%p153) target = $region32
      $region31: #{discriminator_forward.4} parent=27 // pred_region
        %p156 = scmp.lt.s32.totalorder %s10, 1
        %s157 = scalar_select %p156, %s10, 1
        %s158 = smul.addr %s157, 32
        %s159 = smul.addr %s158, 8
        %s160 = scalar_lea.vmem %s0, %s159
      $region32: #{discriminator_forward.4} parent=27 // pred_fallthru
        _
    $region28: #{discriminator_forward.4} parent=5 // pred_fallthru
      _
    %p161 = scmp.le.s32.totalorder 1, %s10
    %p162 = scmp.lt.s32.totalorder %s10, 3
    %p163 = pnand %p161, %p162
    %p164 = pneg %p163
    // Predicated region
    $region33: #{discriminator_forward.4} parent=5 // pred_check
      _
    $region34: #{discriminator_forward.4} parent=5 // pred_check_branch
      %166 = sbr.rel (%p163) target = $region36
    $region35: #{discriminator_forward.4} parent=5 // pred_region
      %s167 = ssub.s32 %s10, 1
      %p168 = scmp.lt.s32.totalorder %s15, 1
      %s169 = scalar_select %p168, %s15, 1
      %s170 = smul.addr %s169, 32
      %s171 = smul.addr %s170, 8
      %s172 = scalar_lea.vmem %s0, %s171
      %p173 = pneg %p36
      %p174 = pneg %p33
      %p175 = pneg %p57
      %p176 = pneg %p54
      %p177 = pneg %p78
      %p178 = pneg %p75
      %p179 = pneg %p99
      %p180 = pneg %p96
      %p181 = pneg %p125
      %p182 = pneg %p122
      %p183 = scmp.lt.s32.totalorder %s15, 1
      %s184 = scalar_select %p183, %s15, 1
      %s185 = smul.addr %s184, 8
      %s186 = smul.addr %s185, 8
      %s187 = scalar_lea.vmem %s4, %s186
      %p188 = scmp.lt.s32.totalorder %s15, 1
      %s189 = scalar_select %p188, %s15, 1
      %s190 = smul.addr %s189, 32
      %s191 = smul.addr %s190, 8
      %s192 = scalar_lea.vmem %s0, %s191
      %p193 = scmp.lt.s32.totalorder %s15, 1
      %s194 = scalar_select %p193, %s15, 1
      %s195 = smul.addr %s194, 8
      %s196 = smul.addr %s195, 8
      %s197 = scalar_lea.vmem %s4, %s196
      %v198 = vld [vmem:[%s192] sm:$0xff]
      %v199 = vld [vmem:[%s192 + $0x8] sm:$0xff]
      %v200 = vld [vmem:[%s192 + $0x10] sm:$0xff]
      %v201 = vld [vmem:[%s192 + $0x18] sm:$0xff]
      %v202 = vld [vmem:[%s192 + $0x20] sm:$0xff]
      %v203 = vld [vmem:[%s192 + $0x28] sm:$0xff]
      %v204 = vld [vmem:[%s192 + $0x30] sm:$0xff]
      %v205 = vld [vmem:[%s192 + $0x38] sm:$0xff]
      %s206 = scalar_lea.vmem %s192, 64
      %v207 = vld [vmem:[%s206] sm:$0xff]
      %v208 = vld [vmem:[%s206 + $0x8] sm:$0xff]
      %v209 = vld [vmem:[%s206 + $0x10] sm:$0xff]
      %v210 = vld [vmem:[%s206 + $0x18] sm:$0xff]
      %v211 = vld [vmem:[%s206 + $0x20] sm:$0xff]
      %v212 = vld [vmem:[%s206 + $0x28] sm:$0xff]
      %v213 = vld [vmem:[%s206 + $0x30] sm:$0xff]
      %v214 = vld [vmem:[%s206 + $0x38] sm:$0xff]
      %s215 = scalar_lea.vmem %s192, 128
      %v216 = vld [vmem:[%s215] sm:$0xff]
      %v217 = vld [vmem:[%s215 + $0x8] sm:$0xff]
      %v218 = vld [vmem:[%s215 + $0x10] sm:$0xff]
      %v219 = vld [vmem:[%s215 + $0x18] sm:$0xff]
      %v220 = vld [vmem:[%s215 + $0x20] sm:$0xff]
      %v221 = vld [vmem:[%s215 + $0x28] sm:$0xff]
      %v222 = vld [vmem:[%s215 + $0x30] sm:$0xff]
      %v223 = vld [vmem:[%s215 + $0x38] sm:$0xff]
      %s224 = scalar_lea.vmem %s192, 192
      %v225 = vld [vmem:[%s224] sm:$0xff]
      %v226 = vld [vmem:[%s224 + $0x8] sm:$0xff]
      %v227 = vld [vmem:[%s224 + $0x10] sm:$0xff]
      %v228 = vld [vmem:[%s224 + $0x18] sm:$0xff]
      %v229 = vld [vmem:[%s224 + $0x20] sm:$0xff]
      %v230 = vld [vmem:[%s224 + $0x28] sm:$0xff]
      %v231 = vld [vmem:[%s224 + $0x30] sm:$0xff]
      %v232 = vld [vmem:[%s224 + $0x38] sm:$0xff]
      %v233 = vld [vmem:[%s3] sm:$0xff]
      %v234 = vld [vmem:[%s3 + $0x8] sm:$0xff]
      %v235 = vld [vmem:[%s3 + $0x10] sm:$0xff]
      %v236 = vld [vmem:[%s3 + $0x18] sm:$0xff]
      %v237 = vld [vmem:[%s3 + $0x20] sm:$0xff]
      %v238 = vld [vmem:[%s3 + $0x28] sm:$0xff]
      %v239 = vld [vmem:[%s3 + $0x30] sm:$0xff]
      %v240 = vld [vmem:[%s3 + $0x38] sm:$0xff]
      %vm248 = vcmask 1040384
      %v249 = vrot.slane %v225, 7
      %v250 = vrot.slane %v226, 7
      %v251 = vsel %vm248, %v249, %v250
      %v252 = vrot.slane %v227, 7
      %v253 = vsel %vm248, %v250, %v252
      %v254 = vrot.slane %v228, 7
      %v255 = vsel %vm248, %v252, %v254
      %v256 = vrot.slane %v229, 7
      %v257 = vsel %vm248, %v254, %v256
      %v258 = vrot.slane %v230, 7
      %v259 = vsel %vm248, %v256, %v258
      %v260 = vrot.slane %v231, 7
      %v261 = vsel %vm248, %v258, %v260
      %v269 = vsel %vm248, 0.0, %v249
      %271 = vset.pattern.permute.xlu0 0
      %272 = vperm.xlu0 %271, %v233
      %v273 = vpop.permute.xlu0 %272
      %276 = vset.pattern.permute.xlu0 0
      %277 = vperm.xlu0 %276, %v234
      %v278 = vpop.permute.xlu0 %277
      %281 = vset.pattern.permute.xlu0 0
      %282 = vperm.xlu0 %281, %v235
      %v283 = vpop.permute.xlu0 %282
      %286 = vset.pattern.permute.xlu0 0
      %287 = vperm.xlu0 %286, %v236
      %v288 = vpop.permute.xlu0 %287
      %291 = vset.pattern.permute.xlu0 0
      %292 = vperm.xlu0 %291, %v237
      %v293 = vpop.permute.xlu0 %292
      %296 = vset.pattern.permute.xlu0 0
      %297 = vperm.xlu0 %296, %v238
      %v298 = vpop.permute.xlu0 %297
      %301 = vset.pattern.permute.xlu0 0
      %302 = vperm.xlu0 %301, %v239
      %v303 = vpop.permute.xlu0 %302
      %306 = vset.pattern.permute.xlu0 0
      %307 = vperm.xlu0 %306, %v240
      %v308 = vpop.permute.xlu0 %307
      %v310 = vmul.f32 %v273, 0.0
      %v311 = vmul.f32 %v269, %v278
      %v312 = vmul.f32 %v251, %v283
      %v313 = vmul.f32 %v253, %v288
      %v314 = vmul.f32 %v255, %v293
      %v315 = vmul.f32 %v257, %v298
      %v316 = vmul.f32 %v259, %v303
      %v317 = vmul.f32 %v261, %v308
      %v318 = vld [vmem:[%s1] sm:$0xff]
      %v319 = vld [vmem:[%s1 + $0x8] sm:$0xff]
      %s320 = scalar_lea.vmem %s1, 16
      %v321 = vld [vmem:[%s320] sm:$0xff]
      %v322 = vld [vmem:[%s320 + $0x8] sm:$0xff]
      %vm323 = vcmask 130048
      %v325 = vsel %vm323, 0.0, 0
      %v328 = vsel %vm323, %v216, 0
      %v331 = vsel %vm323, %v217, 0
      %v334 = vsel %vm323, %v218, 0
      %v337 = vsel %vm323, %v219, 0
      %v340 = vsel %vm323, %v220, 0
      %v343 = vsel %vm323, %v221, 0
      %v346 = vsel %vm323, %v222, 0
      %348 = vmatprep.subr.mxu0 0.0
      %349 = vmatpush1.msra.mxu0 %v321
      %350 = vmatprep.subr.mxu0 0.0
      %351 = vmatpush1.msra.mxu0 %v322
      %352 = vmatprep.subr.mxu0 0.0
      %353 = vmatpush1.msra.mxu0 0.0
      %354 = vmatprep.subr.mxu0 0.0
      %355 = vmatpush1.msra.mxu0 0.0
      %356 = vmatprep.subr.mxu0 0.0
      %357 = vmatpush1.msra.mxu0 0.0
      %358 = vmatprep.subr.mxu0 0.0
      %359 = vmatpush1.msra.mxu0 0.0
      %360 = vmatprep.subr.mxu0 0.0
      %361 = vmatpush1.msra.mxu0 0.0
      %362 = vmatprep.subr.mxu0 0.0
      %363 = vmatpush1.msra.mxu0 0.0
      %364 = vmatprep.subr.mxu0 0.0
      %365 = vmatpush1.msra.mxu0 0.0
      %366 = vmatprep.subr.mxu0 0.0
      %367 = vmatpush1.msra.mxu0 0.0
      %368 = vmatprep.subr.mxu0 0.0
      %369 = vmatpush1.msra.mxu0 0.0
      %370 = vmatprep.subr.mxu0 0.0
      %371 = vmatpush1.msra.mxu0 0.0
      %372 = vmatprep.subr.mxu0 0.0
      %373 = vmatpush1.msra.mxu0 0.0
      %374 = vmatprep.subr.mxu0 0.0
      %375 = vmatpush1.msra.mxu0 0.0
      %376 = vmatprep.subr.mxu0 0.0
      %377 = vmatpush1.msra.mxu0 0.0
      %378 = vmatprep.subr.mxu0 0.0
      %379 = vmatpush1.msra.mxu0 0.0
      %380 = vmatprep.subr.mxu0 0.0
      %381 = vmatpush1.msra.mxu0 0.0
      %382 = vmatprep.subr.mxu0 0.0
      %383 = vmatpush1.msra.mxu0 0.0
      %384 = vmatprep.subr.mxu0 0.0
      %385 = vmatpush1.msra.mxu0 0.0
      %386 = vmatprep.subr.mxu0 0.0
      %387 = vmatpush1.msra.mxu0 0.0
      %388 = vmatprep.subr.mxu0 0.0
      %389 = vmatpush1.msra.mxu0 0.0
      %390 = vmatprep.subr.mxu0 0.0
      %391 = vmatpush1.msra.mxu0 0.0
      %392 = vmatprep.subr.mxu0 0.0
      %393 = vmatpush1.msra.mxu0 0.0
      %394 = vmatprep.subr.mxu0 0.0
      %395 = vmatpush1.msra.mxu0 0.0
      %396 = vmatprep.subr.mxu0 0.0
      %397 = vmatpush1.msra.mxu0 0.0
      %398 = vmatprep.subr.mxu0 0.0
      %399 = vmatpush1.msra.mxu0 0.0
      %400 = vmatprep.subr.mxu0 0.0
      %401 = vmatpush1.msra.mxu0 0.0
      %402 = vmatprep.subr.mxu0 0.0
      %403 = vmatpush1.msra.mxu0 0.0
      %404 = vmatprep.subr.mxu0 0.0
      %405 = vmatpush1.msra.mxu0 0.0
      %406 = vmatprep.subr.mxu0 0.0
      %407 = vmatpush1.msra.mxu0 0.0
      %408 = vmatprep.subr.mxu0 0.0
      %409 = vmatpush1.msra.mxu0 0.0
      %410 = vmatprep.subr.mxu0 0.0
      %411 = vmatpush1.msra.mxu0 0.0
      %412 = vmatprep.mubr.f32.mxu0 0.0
      %413 = vmatmul.mubr.f32.gmra.mrb[0].mxu0 %v325
      %v414 = vpop.f32.mrb[0].mxu0
      %v415 = vadd.f32 0.0, %v414
      %v416 = vpop.f32.mrb[0].mxu0
      %417 = vmatprep.mubr.f32.mxu0 0.0
      %418 = vmatmul.mubr.f32.gmra.mrb[0].mxu0 %v328
      %v419 = vpop.f32.mrb[0].mxu0
      %v420 = vadd.f32 0.0, %v419
      %v421 = vpop.f32.mrb[0].mxu0
      %422 = vmatprep.mubr.f32.mxu0 0.0
      %423 = vmatmul.mubr.f32.gmra.mrb[0].mxu0 %v331
      %v424 = vpop.f32.mrb[0].mxu0
      %v425 = vadd.f32 0.0, %v424
      %v426 = vpop.f32.mrb[0].mxu0
      %427 = vmatprep.mubr.f32.mxu0 0.0
      %428 = vmatmul.mubr.f32.gmra.mrb[0].mxu0 %v334
      %v429 = vpop.f32.mrb[0].mxu0
      %v430 = vadd.f32 0.0, %v429
      %v431 = vpop.f32.mrb[0].mxu0
      %432 = vmatprep.mubr.f32.mxu0 0.0
      %433 = vmatmul.mubr.f32.gmra.mrb[0].mxu0 %v337
      %v434 = vpop.f32.mrb[0].mxu0
      %v435 = vadd.f32 0.0, %v434
      %v436 = vpop.f32.mrb[0].mxu0
      %437 = vmatprep.mubr.f32.mxu0 0.0
      %438 = vmatmul.mubr.f32.gmra.mrb[0].mxu0 %v340
      %v439 = vpop.f32.mrb[0].mxu0
      %v440 = vadd.f32 0.0, %v439
      %v441 = vpop.f32.mrb[0].mxu0
      %442 = vmatprep.mubr.f32.mxu0 0.0
      %443 = vmatmul.mubr.f32.gmra.mrb[0].mxu0 %v343
      %v444 = vpop.f32.mrb[0].mxu0
      %v445 = vadd.f32 0.0, %v444
      %v446 = vpop.f32.mrb[0].mxu0
      %447 = vmatprep.mubr.f32.mxu0 0.0
      %448 = vmatmul.mubr.f32.gmra.mrb[0].mxu0 %v346
      %v449 = vpop.f32.mrb[0].mxu0
      %v450 = vadd.f32 0.0, %v449
      %v451 = vpop.f32.mrb[0].mxu0
      %452 = vdwg.mxu0
      %v454 = vsel %vm323, %v310, 0
      %v457 = vsel %vm323, %v311, 0
      %v460 = vsel %vm323, %v312, 0
      %v463 = vsel %vm323, %v313, 0
      %v466 = vsel %vm323, %v314, 0
      %v469 = vsel %vm323, %v315, 0
      %v472 = vsel %vm323, %v316, 0
      %v475 = vsel %vm323, %v317, 0
      %477 = vmatprep.subr.mxu0 0.0
      %478 = vmatpush1.msra.mxu0 %v318
      %479 = vmatprep.subr.mxu0 0.0
      %480 = vmatpush1.msra.mxu0 %v319
      %481 = vmatprep.subr.mxu0 0.0
      %482 = vmatpush1.msra.mxu0 0.0
      %483 = vmatprep.subr.mxu0 0.0
      %484 = vmatpush1.msra.mxu0 0.0
      %485 = vmatprep.subr.mxu0 0.0
      %486 = vmatpush1.msra.mxu0 0.0
      %487 = vmatprep.subr.mxu0 0.0
      %488 = vmatpush1.msra.mxu0 0.0
      %489 = vmatprep.subr.mxu0 0.0
      %490 = vmatpush1.msra.mxu0 0.0
      %491 = vmatprep.subr.mxu0 0.0
      %492 = vmatpush1.msra.mxu0 0.0
      %493 = vmatprep.subr.mxu0 0.0
      %494 = vmatpush1.msra.mxu0 0.0
      %495 = vmatprep.subr.mxu0 0.0
      %496 = vmatpush1.msra.mxu0 0.0
      %497 = vmatprep.subr.mxu0 0.0
      %498 = vmatpush1.msra.mxu0 0.0
      %499 = vmatprep.subr.mxu0 0.0
      %500 = vmatpush1.msra.mxu0 0.0
      %501 = vmatprep.subr.mxu0 0.0
      %502 = vmatpush1.msra.mxu0 0.0
      %503 = vmatprep.subr.mxu0 0.0
      %504 = vmatpush1.msra.mxu0 0.0
      %505 = vmatprep.subr.mxu0 0.0
      %506 = vmatpush1.msra.mxu0 0.0
      %507 = vmatprep.subr.mxu0 0.0
      %508 = vmatpush1.msra.mxu0 0.0
      %509 = vmatprep.subr.mxu0 0.0
      %510 = vmatpush1.msra.mxu0 0.0
      %511 = vmatprep.subr.mxu0 0.0
      %512 = vmatpush1.msra.mxu0 0.0
      %513 = vmatprep.subr.mxu0 0.0
      %514 = vmatpush1.msra.mxu0 0.0
      %515 = vmatprep.subr.mxu0 0.0
      %516 = vmatpush1.msra.mxu0 0.0
      %517 = vmatprep.subr.mxu0 0.0
      %518 = vmatpush1.msra.mxu0 0.0
      %519 = vmatprep.subr.mxu0 0.0
      %520 = vmatpush1.msra.mxu0 0.0
      %521 = vmatprep.subr.mxu0 0.0
      %522 = vmatpush1.msra.mxu0 0.0
      %523 = vmatprep.subr.mxu0 0.0
      %524 = vmatpush1.msra.mxu0 0.0
      %525 = vmatprep.subr.mxu0 0.0
      %526 = vmatpush1.msra.mxu0 0.0
      %527 = vmatprep.subr.mxu0 0.0
      %528 = vmatpush1.msra.mxu0 0.0
      %529 = vmatprep.subr.mxu0 0.0
      %530 = vmatpush1.msra.mxu0 0.0
      %531 = vmatprep.subr.mxu0 0.0
      %532 = vmatpush1.msra.mxu0 0.0
      %533 = vmatprep.subr.mxu0 0.0
      %534 = vmatpush1.msra.mxu0 0.0
      %535 = vmatprep.subr.mxu0 0.0
      %536 = vmatpush1.msra.mxu0 0.0
      %537 = vmatprep.subr.mxu0 0.0
      %538 = vmatpush1.msra.mxu0 0.0
      %539 = vmatprep.subr.mxu0 0.0
      %540 = vmatpush1.msra.mxu0 0.0
      %541 = vmatprep.mubr.f32.mxu0 0.0
      %542 = vmatmul.mubr.f32.gmra.mrb[0].mxu0 %v454
      %v543 = vpop.f32.mrb[0].mxu0
      %v544 = vadd.f32 %v415, %v543
      %v545 = vpop.f32.mrb[0].mxu0
      %546 = vmatprep.mubr.f32.mxu0 0.0
      %547 = vmatmul.mubr.f32.gmra.mrb[0].mxu0 %v457
      %v548 = vpop.f32.mrb[0].mxu0
      %v549 = vadd.f32 %v420, %v548
      %v550 = vpop.f32.mrb[0].mxu0
      %551 = vmatprep.mubr.f32.mxu0 0.0
      %552 = vmatmul.mubr.f32.gmra.mrb[0].mxu0 %v460
      %v553 = vpop.f32.mrb[0].mxu0
      %v554 = vadd.f32 %v425, %v553
      %v555 = vpop.f32.mrb[0].mxu0
      %556 = vmatprep.mubr.f32.mxu0 0.0
      %557 = vmatmul.mubr.f32.gmra.mrb[0].mxu0 %v463
      %v558 = vpop.f32.mrb[0].mxu0
      %v559 = vadd.f32 %v430, %v558
      %v560 = vpop.f32.mrb[0].mxu0
      %561 = vmatprep.mubr.f32.mxu0 0.0
      %562 = vmatmul.mubr.f32.gmra.mrb[0].mxu0 %v466
      %v563 = vpop.f32.mrb[0].mxu0
      %v564 = vadd.f32 %v435, %v563
      %v565 = vpop.f32.mrb[0].mxu0
      %566 = vmatprep.mubr.f32.mxu0 0.0
      %567 = vmatmul.mubr.f32.gmra.mrb[0].mxu0 %v469
      %v568 = vpop.f32.mrb[0].mxu0
      %v569 = vadd.f32 %v440, %v568
      %v570 = vpop.f32.mrb[0].mxu0
      %571 = vmatprep.mubr.f32.mxu0 0.0
      %572 = vmatmul.mubr.f32.gmra.mrb[0].mxu0 %v472
      %v573 = vpop.f32.mrb[0].mxu0
      %v574 = vadd.f32 %v445, %v573
      %v575 = vpop.f32.mrb[0].mxu0
      %576 = vmatprep.mubr.f32.mxu0 0.0
      %577 = vmatmul.mubr.f32.gmra.mrb[0].mxu0 %v475
      %v578 = vpop.f32.mrb[0].mxu0
      %v579 = vadd.f32 %v450, %v578
      %v580 = vpop.f32.mrb[0].mxu0
      %581 = vdwg.mxu0
      %s582 = scalar_lea.vmem %s1, 32
      %v583 = vld [vmem:[%s582] sm:$0xff]
      %v584 = vld [vmem:[%s582 + $0x8] sm:$0xff]
      %v585 = vsel %vm323, %v225, 0
      %v587 = vsel %vm323, %v226, 0
      %v589 = vsel %vm323, %v227, 0
      %v591 = vsel %vm323, %v228, 0
      %v593 = vsel %vm323, %v229, 0
      %v595 = vsel %vm323, %v230, 0
      %v597 = vsel %vm323, %v231, 0
      %599 = vmatprep.subr.mxu0 0.0
      %600 = vmatpush1.msra.mxu0 %v583
      %601 = vmatprep.subr.mxu0 0.0
      %602 = vmatpush1.msra.mxu0 %v584
      %603 = vmatprep.subr.mxu0 0.0
      %604 = vmatpush1.msra.mxu0 0.0
      %605 = vmatprep.subr.mxu0 0.0
      %606 = vmatpush1.msra.mxu0 0.0
      %607 = vmatprep.subr.mxu0 0.0
      %608 = vmatpush1.msra.mxu0 0.0
      %609 = vmatprep.subr.mxu0 0.0
      %610 = vmatpush1.msra.mxu0 0.0
      %611 = vmatprep.subr.mxu0 0.0
      %612 = vmatpush1.msra.mxu0 0.0
      %613 = vmatprep.subr.mxu0 0.0
      %614 = vmatpush1.msra.mxu0 0.0
      %615 = vmatprep.subr.mxu0 0.0
      %616 = vmatpush1.msra.mxu0 0.0
      %617 = vmatprep.subr.mxu0 0.0
      %618 = vmatpush1.msra.mxu0 0.0
      %619 = vmatprep.subr.mxu0 0.0
      %620 = vmatpush1.msra.mxu0 0.0
      %621 = vmatprep.subr.mxu0 0.0
      %622 = vmatpush1.msra.mxu0 0.0
      %623 = vmatprep.subr.mxu0 0.0
      %624 = vmatpush1.msra.mxu0 0.0
      %625 = vmatprep.subr.mxu0 0.0
      %626 = vmatpush1.msra.mxu0 0.0
      %627 = vmatprep.subr.mxu0 0.0
      %628 = vmatpush1.msra.mxu0 0.0
      %629 = vmatprep.subr.mxu0 0.0
      %630 = vmatpush1.msra.mxu0 0.0
      %631 = vmatprep.subr.mxu0 0.0
      %632 = vmatpush1.msra.mxu0 0.0
      %633 = vmatprep.subr.mxu0 0.0
      %634 = vmatpush1.msra.mxu0 0.0
      %635 = vmatprep.subr.mxu0 0.0
      %636 = vmatpush1.msra.mxu0 0.0
      %637 = vmatprep.subr.mxu0 0.0
      %638 = vmatpush1.msra.mxu0 0.0
      %639 = vmatprep.subr.mxu0 0.0
      %640 = vmatpush1.msra.mxu0 0.0
      %641 = vmatprep.subr.mxu0 0.0
      %642 = vmatpush1.msra.mxu0 0.0
      %643 = vmatprep.subr.mxu0 0.0
      %644 = vmatpush1.msra.mxu0 0.0
      %645 = vmatprep.subr.mxu0 0.0
      %646 = vmatpush1.msra.mxu0 0.0
      %647 = vmatprep.subr.mxu0 0.0
      %648 = vmatpush1.msra.mxu0 0.0
      %649 = vmatprep.subr.mxu0 0.0
      %650 = vmatpush1.msra.mxu0 0.0
      %651 = vmatprep.subr.mxu0 0.0
      %652 = vmatpush1.msra.mxu0 0.0
      %653 = vmatprep.subr.mxu0 0.0
      %654 = vmatpush1.msra.mxu0 0.0
      %655 = vmatprep.subr.mxu0 0.0
      %656 = vmatpush1.msra.mxu0 0.0
      %657 = vmatprep.subr.mxu0 0.0
      %658 = vmatpush1.msra.mxu0 0.0
      %659 = vmatprep.subr.mxu0 0.0
      %660 = vmatpush1.msra.mxu0 0.0
      %661 = vmatprep.subr.mxu0 0.0
      %662 = vmatpush1.msra.mxu0 0.0
      %663 = vmatprep.mubr.f32.mxu0 0.0
      %664 = vmatmul.mubr.f32.gmra.mrb[0].mxu0 %v325
      %v665 = vpop.f32.mrb[0].mxu0
      %v666 = vadd.f32 0.0, %v665
      %v667 = vpop.f32.mrb[0].mxu0
      %668 = vmatprep.mubr.f32.mxu0 0.0
      %669 = vmatmul.mubr.f32.gmra.mrb[0].mxu0 %v585
      %v670 = vpop.f32.mrb[0].mxu0
      %v671 = vadd.f32 0.0, %v670
      %v672 = vpop.f32.mrb[0].mxu0
      %673 = vmatprep.mubr.f32.mxu0 0.0
      %674 = vmatmul.mubr.f32.gmra.mrb[0].mxu0 %v587
      %v675 = vpop.f32.mrb[0].mxu0
      %v676 = vadd.f32 0.0, %v675
      %v677 = vpop.f32.mrb[0].mxu0
      %678 = vmatprep.mubr.f32.mxu0 0.0
      %679 = vmatmul.mubr.f32.gmra.mrb[0].mxu0 %v589
      %v680 = vpop.f32.mrb[0].mxu0
      %v681 = vadd.f32 0.0, %v680
      %v682 = vpop.f32.mrb[0].mxu0
      %683 = vmatprep.mubr.f32.mxu0 0.0
      %684 = vmatmul.mubr.f32.gmra.mrb[0].mxu0 %v591
      %v685 = vpop.f32.mrb[0].mxu0
      %v686 = vadd.f32 0.0, %v685
      %v687 = vpop.f32.mrb[0].mxu0
      %688 = vmatprep.mubr.f32.mxu0 0.0
      %689 = vmatmul.mubr.f32.gmra.mrb[0].mxu0 %v593
      %v690 = vpop.f32.mrb[0].mxu0
      %v691 = vadd.f32 0.0, %v690
      %v692 = vpop.f32.mrb[0].mxu0
      %693 = vmatprep.mubr.f32.mxu0 0.0
      %694 = vmatmul.mubr.f32.gmra.mrb[0].mxu0 %v595
      %v695 = vpop.f32.mrb[0].mxu0
      %v696 = vadd.f32 0.0, %v695
      %v697 = vpop.f32.mrb[0].mxu0
      %698 = vmatprep.mubr.f32.mxu0 0.0
      %699 = vmatmul.mubr.f32.gmra.mrb[0].mxu0 %v597
      %v700 = vpop.f32.mrb[0].mxu0
      %v701 = vadd.f32 0.0, %v700
      %v702 = vpop.f32.mrb[0].mxu0
      %703 = vdwg.mxu0
      %v704 = vadd.f32 %v544, %v666
      %v705 = vadd.f32 %v549, %v671
      %v706 = vadd.f32 %v554, %v676
      %v707 = vadd.f32 %v559, %v681
      %v708 = vadd.f32 %v564, %v686
      %v709 = vadd.f32 %v569, %v691
      %v710 = vadd.f32 %v574, %v696
      %v711 = vadd.f32 %v579, %v701
      %vm713 = vcmask 1046528
      %v714 = vrot.slane %v216, 1
      %v715 = vrot.slane %v217, 1
      %v716 = vsel %vm713, %v714, %v715
      %v717 = vrot.slane %v218, 1
      %v718 = vsel %vm713, %v715, %v717
      %v719 = vrot.slane %v219, 1
      %v720 = vsel %vm713, %v717, %v719
      %v721 = vrot.slane %v220, 1
      %v722 = vsel %vm713, %v719, %v721
      %v723 = vrot.slane %v221, 1
      %v724 = vsel %vm713, %v721, %v723
      %v725 = vrot.slane %v222, 1
      %v726 = vsel %vm713, %v723, %v725
      %v727 = vrot.slane %v223, 1
      %v728 = vsel %vm713, %v725, %v727
      %v737 = vsel %vm713, 0.0, %v714
      %738 = vset.pattern.permute.xlu0 1
      %739 = vperm.xlu0 %738, %v233
      %v740 = vpop.permute.xlu0 %739
      %742 = vset.pattern.permute.xlu0 1
      %743 = vperm.xlu0 %742, %v234
      %v744 = vpop.permute.xlu0 %743
      %746 = vset.pattern.permute.xlu0 1
      %747 = vperm.xlu0 %746, %v235
      %v748 = vpop.permute.xlu0 %747
      %750 = vset.pattern.permute.xlu0 1
      %751 = vperm.xlu0 %750, %v236
      %v752 = vpop.permute.xlu0 %751
      %754 = vset.pattern.permute.xlu0 1
      %755 = vperm.xlu0 %754, %v237
      %v756 = vpop.permute.xlu0 %755
      %758 = vset.pattern.permute.xlu0 1
      %759 = vperm.xlu0 %758, %v238
      %v760 = vpop.permute.xlu0 %759
      %762 = vset.pattern.permute.xlu0 1
      %763 = vperm.xlu0 %762, %v239
      %v764 = vpop.permute.xlu0 %763
      %766 = vset.pattern.permute.xlu0 1
      %767 = vperm.xlu0 %766, %v240
      %v768 = vpop.permute.xlu0 %767
      %v770 = vmul.f32 %v737, %v740
      %v771 = vmul.f32 %v716, %v744
      %v772 = vmul.f32 %v718, %v748
      %v773 = vmul.f32 %v720, %v752
      %v774 = vmul.f32 %v722, %v756
      %v775 = vmul.f32 %v724, %v760
      %v776 = vmul.f32 %v726, %v764
      %v777 = vmul.f32 %v728, %v768
      %s778 = scalar_lea.vmem %s1, 48
      %v779 = vld [vmem:[%s778] sm:$0xff]
      %v780 = vld [vmem:[%s778 + $0x8] sm:$0xff]
      %v782 = vsel %vm323, %v770, 0
      %v785 = vsel %vm323, %v771, 0
      %v788 = vsel %vm323, %v772, 0
      %v791 = vsel %vm323, %v773, 0
      %v794 = vsel %vm323, %v774, 0
      %v797 = vsel %vm323, %v775, 0
      %v800 = vsel %vm323, %v776, 0
      %v803 = vsel %vm323, %v777, 0
      %805 = vmatprep.subr.mxu0 0.0
      %806 = vmatpush1.msra.mxu0 %v779
      %807 = vmatprep.subr.mxu0 0.0
      %808 = vmatpush1.msra.mxu0 %v780
      %809 = vmatprep.subr.mxu0 0.0
      %810 = vmatpush1.msra.mxu0 0.0
      %811 = vmatprep.subr.mxu0 0.0
      %812 = vmatpush1.msra.mxu0 0.0
      %813 = vmatprep.subr.mxu0 0.0
      %814 = vmatpush1.msra.mxu0 0.0
      %815 = vmatprep.subr.mxu0 0.0
      %816 = vmatpush1.msra.mxu0 0.0
      %817 = vmatprep.subr.mxu0 0.0
      %818 = vmatpush1.msra.mxu0 0.0
      %819 = vmatprep.subr.mxu0 0.0
      %820 = vmatpush1.msra.mxu0 0.0
      %821 = vmatprep.subr.mxu0 0.0
      %822 = vmatpush1.msra.mxu0 0.0
      %823 = vmatprep.subr.mxu0 0.0
      %824 = vmatpush1.msra.mxu0 0.0
      %825 = vmatprep.subr.mxu0 0.0
      %826 = vmatpush1.msra.mxu0 0.0
      %827 = vmatprep.subr.mxu0 0.0
      %828 = vmatpush1.msra.mxu0 0.0
      %829 = vmatprep.subr.mxu0 0.0
      %830 = vmatpush1.msra.mxu0 0.0
      %831 = vmatprep.subr.mxu0 0.0
      %832 = vmatpush1.msra.mxu0 0.0
      %833 = vmatprep.subr.mxu0 0.0
      %834 = vmatpush1.msra.mxu0 0.0
      %835 = vmatprep.subr.mxu0 0.0
      %836 = vmatpush1.msra.mxu0 0.0
      %837 = vmatprep.subr.mxu0 0.0
      %838 = vmatpush1.msra.mxu0 0.0
      %839 = vmatprep.subr.mxu0 0.0
      %840 = vmatpush1.msra.mxu0 0.0
      %841 = vmatprep.subr.mxu0 0.0
      %842 = vmatpush1.msra.mxu0 0.0
      %843 = vmatprep.subr.mxu0 0.0
      %844 = vmatpush1.msra.mxu0 0.0
      %845 = vmatprep.subr.mxu0 0.0
      %846 = vmatpush1.msra.mxu0 0.0
      %847 = vmatprep.subr.mxu0 0.0
      %848 = vmatpush1.msra.mxu0 0.0
      %849 = vmatprep.subr.mxu0 0.0
      %850 = vmatpush1.msra.mxu0 0.0
      %851 = vmatprep.subr.mxu0 0.0
      %852 = vmatpush1.msra.mxu0 0.0
      %853 = vmatprep.subr.mxu0 0.0
      %854 = vmatpush1.msra.mxu0 0.0
      %855 = vmatprep.subr.mxu0 0.0
      %856 = vmatpush1.msra.mxu0 0.0
      %857 = vmatprep.subr.mxu0 0.0
      %858 = vmatpush1.msra.mxu0 0.0
      %859 = vmatprep.subr.mxu0 0.0
      %860 = vmatpush1.msra.mxu0 0.0
      %861 = vmatprep.subr.mxu0 0.0
      %862 = vmatpush1.msra.mxu0 0.0
      %863 = vmatprep.subr.mxu0 0.0
      %864 = vmatpush1.msra.mxu0 0.0
      %865 = vmatprep.subr.mxu0 0.0
      %866 = vmatpush1.msra.mxu0 0.0
      %867 = vmatprep.subr.mxu0 0.0
      %868 = vmatpush1.msra.mxu0 0.0
      %869 = vmatprep.mubr.f32.mxu0 0.0
      %870 = vmatmul.mubr.f32.gmra.mrb[0].mxu0 %v782
      %v871 = vpop.f32.mrb[0].mxu0
      %v872 = vadd.f32 0.0, %v871
      %v873 = vpop.f32.mrb[0].mxu0
      %874 = vmatprep.mubr.f32.mxu0 0.0
      %875 = vmatmul.mubr.f32.gmra.mrb[0].mxu0 %v785
      %v876 = vpop.f32.mrb[0].mxu0
      %v877 = vadd.f32 0.0, %v876
      %v878 = vpop.f32.mrb[0].mxu0
      %879 = vmatprep.mubr.f32.mxu0 0.0
      %880 = vmatmul.mubr.f32.gmra.mrb[0].mxu0 %v788
      %v881 = vpop.f32.mrb[0].mxu0
      %v882 = vadd.f32 0.0, %v881
      %v883 = vpop.f32.mrb[0].mxu0
      %884 = vmatprep.mubr.f32.mxu0 0.0
      %885 = vmatmul.mubr.f32.gmra.mrb[0].mxu0 %v791
      %v886 = vpop.f32.mrb[0].mxu0
      %v887 = vadd.f32 0.0, %v886
      %v888 = vpop.f32.mrb[0].mxu0
      %889 = vmatprep.mubr.f32.mxu0 0.0
      %890 = vmatmul.mubr.f32.gmra.mrb[0].mxu0 %v794
      %v891 = vpop.f32.mrb[0].mxu0
      %v892 = vadd.f32 0.0, %v891
      %v893 = vpop.f32.mrb[0].mxu0
      %894 = vmatprep.mubr.f32.mxu0 0.0
      %895 = vmatmul.mubr.f32.gmra.mrb[0].mxu0 %v797
      %v896 = vpop.f32.mrb[0].mxu0
      %v897 = vadd.f32 0.0, %v896
      %v898 = vpop.f32.mrb[0].mxu0
      %899 = vmatprep.mubr.f32.mxu0 0.0
      %900 = vmatmul.mubr.f32.gmra.mrb[0].mxu0 %v800
      %v901 = vpop.f32.mrb[0].mxu0
      %v902 = vadd.f32 0.0, %v901
      %v903 = vpop.f32.mrb[0].mxu0
      %904 = vmatprep.mubr.f32.mxu0 0.0
      %905 = vmatmul.mubr.f32.gmra.mrb[0].mxu0 %v803
      %v906 = vpop.f32.mrb[0].mxu0
      %v907 = vadd.f32 0.0, %v906
      %v908 = vpop.f32.mrb[0].mxu0
      %909 = vdwg.mxu0
      %v910 = vadd.f32 %v704, %v872
      %v911 = vadd.f32 %v705, %v877
      %v912 = vadd.f32 %v706, %v882
      %v913 = vadd.f32 %v707, %v887
      %v914 = vadd.f32 %v708, %v892
      %v915 = vadd.f32 %v709, %v897
      %v916 = vadd.f32 %v710, %v902
      %v917 = vadd.f32 %v711, %v907
      %v926 = vrot.slane %v207, 7
      %v927 = vrot.slane %v208, 7
      %v928 = vsel %vm248, %v926, %v927
      %v929 = vrot.slane %v209, 7
      %v930 = vsel %vm248, %v927, %v929
      %v931 = vrot.slane %v210, 7
      %v932 = vsel %vm248, %v929, %v931
      %v933 = vrot.slane %v211, 7
      %v934 = vsel %vm248, %v931, %v933
      %v935 = vrot.slane %v212, 7
      %v936 = vsel %vm248, %v933, %v935
      %v937 = vrot.slane %v213, 7
      %v938 = vsel %vm248, %v935, %v937
      %v939 = vrot.slane %v214, 7
      %v940 = vsel %vm248, %v937, %v939
      %v949 = vsel %vm248, 0.0, %v926
      %v950 = vmul.f32 %v949, %v273
      %v951 = vmul.f32 %v928, %v278
      %v952 = vmul.f32 %v930, %v283
      %v953 = vmul.f32 %v932, %v288
      %v954 = vmul.f32 %v934, %v293
      %v955 = vmul.f32 %v936, %v298
      %v956 = vmul.f32 %v938, %v303
      %v957 = vmul.f32 %v940, %v308
      %s958 = scalar_lea.vmem %s1, 64
      %v959 = vld [vmem:[%s958] sm:$0xff]
      %v960 = vld [vmem:[%s958 + $0x8] sm:$0xff]
      %v962 = vsel %vm323, %v950, 0
      %v965 = vsel %vm323, %v951, 0
      %v968 = vsel %vm323, %v952, 0
      %v971 = vsel %vm323, %v953, 0
      %v974 = vsel %vm323, %v954, 0
      %v977 = vsel %vm323, %v955, 0
      %v980 = vsel %vm323, %v956, 0
      %v983 = vsel %vm323, %v957, 0
      %985 = vmatprep.subr.mxu0 0.0
      %986 = vmatpush1.msra.mxu0 %v959
      %987 = vmatprep.subr.mxu0 0.0
      %988 = vmatpush1.msra.mxu0 %v960
      %989 = vmatprep.subr.mxu0 0.0
      %990 = vmatpush1.msra.mxu0 0.0
      %991 = vmatprep.subr.mxu0 0.0
      %992 = vmatpush1.msra.mxu0 0.0
      %993 = vmatprep.subr.mxu0 0.0
      %994 = vmatpush1.msra.mxu0 0.0
      %995 = vmatprep.subr.mxu0 0.0
      %996 = vmatpush1.msra.mxu0 0.0
      %997 = vmatprep.subr.mxu0 0.0
      %998 = vmatpush1.msra.mxu0 0.0
      %999 = vmatprep.subr.mxu0 0.0
      %1000 = vmatpush1.msra.mxu0 0.0
      %1001 = vmatprep.subr.mxu0 0.0
      %1002 = vmatpush1.msra.mxu0 0.0
      %1003 = vmatprep.subr.mxu0 0.0
      %1004 = vmatpush1.msra.mxu0 0.0
      %1005 = vmatprep.subr.mxu0 0.0
      %1006 = vmatpush1.msra.mxu0 0.0
      %1007 = vmatprep.subr.mxu0 0.0
      %1008 = vmatpush1.msra.mxu0 0.0
      %1009 = vmatprep.subr.mxu0 0.0
      %1010 = vmatpush1.msra.mxu0 0.0
      %1011 = vmatprep.subr.mxu0 0.0
      %1012 = vmatpush1.msra.mxu0 0.0
      %1013 = vmatprep.subr.mxu0 0.0
      %1014 = vmatpush1.msra.mxu0 0.0
      %1015 = vmatprep.subr.mxu0 0.0
      %1016 = vmatpush1.msra.mxu0 0.0
      %1017 = vmatprep.subr.mxu0 0.0
      %1018 = vmatpush1.msra.mxu0 0.0
      %1019 = vmatprep.subr.mxu0 0.0
      %1020 = vmatpush1.msra.mxu0 0.0
      %1021 = vmatprep.subr.mxu0 0.0
      %1022 = vmatpush1.msra.mxu0 0.0
      %1023 = vmatprep.subr.mxu0 0.0
      %1024 = vmatpush1.msra.mxu0 0.0
      %1025 = vmatprep.subr.mxu0 0.0
      %1026 = vmatpush1.msra.mxu0 0.0
      %1027 = vmatprep.subr.mxu0 0.0
      %1028 = vmatpush1.msra.mxu0 0.0
      %1029 = vmatprep.subr.mxu0 0.0
      %1030 = vmatpush1.msra.mxu0 0.0
      %1031 = vmatprep.subr.mxu0 0.0
      %1032 = vmatpush1.msra.mxu0 0.0
      %1033 = vmatprep.subr.mxu0 0.0
      %1034 = vmatpush1.msra.mxu0 0.0
      %1035 = vmatprep.subr.mxu0 0.0
      %1036 = vmatpush1.msra.mxu0 0.0
      %1037 = vmatprep.subr.mxu0 0.0
      %1038 = vmatpush1.msra.mxu0 0.0
      %1039 = vmatprep.subr.mxu0 0.0
      %1040 = vmatpush1.msra.mxu0 0.0
      %1041 = vmatprep.subr.mxu0 0.0
      %1042 = vmatpush1.msra.mxu0 0.0
      %1043 = vmatprep.subr.mxu0 0.0
      %1044 = vmatpush1.msra.mxu0 0.0
      %1045 = vmatprep.subr.mxu0 0.0
      %1046 = vmatpush1.msra.mxu0 0.0
      %1047 = vmatprep.subr.mxu0 0.0
      %1048 = vmatpush1.msra.mxu0 0.0
      %1049 = vmatprep.mubr.f32.mxu0 0.0
      %1050 = vmatmul.mubr.f32.gmra.mrb[0].mxu0 %v962
      %v1051 = vpop.f32.mrb[0].mxu0
      %v1052 = vadd.f32 0.0, %v1051
      %v1053 = vpop.f32.mrb[0].mxu0
      %1054 = vmatprep.mubr.f32.mxu0 0.0
      %1055 = vmatmul.mubr.f32.gmra.mrb[0].mxu0 %v965
      %v1056 = vpop.f32.mrb[0].mxu0
      %v1057 = vadd.f32 0.0, %v1056
      %v1058 = vpop.f32.mrb[0].mxu0
      %1059 = vmatprep.mubr.f32.mxu0 0.0
      %1060 = vmatmul.mubr.f32.gmra.mrb[0].mxu0 %v968
      %v1061 = vpop.f32.mrb[0].mxu0
      %v1062 = vadd.f32 0.0, %v1061
      %v1063 = vpop.f32.mrb[0].mxu0
      %1064 = vmatprep.mubr.f32.mxu0 0.0
      %1065 = vmatmul.mubr.f32.gmra.mrb[0].mxu0 %v971
      %v1066 = vpop.f32.mrb[0].mxu0
      %v1067 = vadd.f32 0.0, %v1066
      %v1068 = vpop.f32.mrb[0].mxu0
      %1069 = vmatprep.mubr.f32.mxu0 0.0
      %1070 = vmatmul.mubr.f32.gmra.mrb[0].mxu0 %v974
      %v1071 = vpop.f32.mrb[0].mxu0
      %v1072 = vadd.f32 0.0, %v1071
      %v1073 = vpop.f32.mrb[0].mxu0
      %1074 = vmatprep.mubr.f32.mxu0 0.0
      %1075 = vmatmul.mubr.f32.gmra.mrb[0].mxu0 %v977
      %v1076 = vpop.f32.mrb[0].mxu0
      %v1077 = vadd.f32 0.0, %v1076
      %v1078 = vpop.f32.mrb[0].mxu0
      %1079 = vmatprep.mubr.f32.mxu0 0.0
      %1080 = vmatmul.mubr.f32.gmra.mrb[0].mxu0 %v980
      %v1081 = vpop.f32.mrb[0].mxu0
      %v1082 = vadd.f32 0.0, %v1081
      %v1083 = vpop.f32.mrb[0].mxu0
      %1084 = vmatprep.mubr.f32.mxu0 0.0
      %1085 = vmatmul.mubr.f32.gmra.mrb[0].mxu0 %v983
      %v1086 = vpop.f32.mrb[0].mxu0
      %v1087 = vadd.f32 0.0, %v1086
      %v1088 = vpop.f32.mrb[0].mxu0
      %1089 = vdwg.mxu0
      %v1090 = vadd.f32 %v910, %v1052
      %v1091 = vadd.f32 %v911, %v1057
      %v1092 = vadd.f32 %v912, %v1062
      %v1093 = vadd.f32 %v913, %v1067
      %v1094 = vadd.f32 %v914, %v1072
      %v1095 = vadd.f32 %v915, %v1077
      %v1096 = vadd.f32 %v916, %v1082
      %v1097 = vadd.f32 %v917, %v1087
      %s1098 = scalar_lea.vmem %s1, 80
      %v1099 = vld [vmem:[%s1098] sm:$0xff]
      %v1100 = vld [vmem:[%s1098 + $0x8] sm:$0xff]
      %v1102 = vsel %vm323, %v198, 0
      %v1105 = vsel %vm323, %v199, 0
      %v1108 = vsel %vm323, %v200, 0
      %v1111 = vsel %vm323, %v201, 0
      %v1114 = vsel %vm323, %v202, 0
      %v1117 = vsel %vm323, %v203, 0
      %v1120 = vsel %vm323, %v204, 0
      %v1123 = vsel %vm323, %v205, 0
      %1125 = vmatprep.subr.mxu0 0.0
      %1126 = vmatpush1.msra.mxu0 %v1099
      %1127 = vmatprep.subr.mxu0 0.0
      %1128 = vmatpush1.msra.mxu0 %v1100
      %1129 = vmatprep.subr.mxu0 0.0
      %1130 = vmatpush1.msra.mxu0 0.0
      %1131 = vmatprep.subr.mxu0 0.0
      %1132 = vmatpush1.msra.mxu0 0.0
      %1133 = vmatprep.subr.mxu0 0.0
      %1134 = vmatpush1.msra.mxu0 0.0
      %1135 = vmatprep.subr.mxu0 0.0
      %1136 = vmatpush1.msra.mxu0 0.0
      %1137 = vmatprep.subr.mxu0 0.0
      %1138 = vmatpush1.msra.mxu0 0.0
      %1139 = vmatprep.subr.mxu0 0.0
      %1140 = vmatpush1.msra.mxu0 0.0
      %1141 = vmatprep.subr.mxu0 0.0
      %1142 = vmatpush1.msra.mxu0 0.0
      %1143 = vmatprep.subr.mxu0 0.0
      %1144 = vmatpush1.msra.mxu0 0.0
      %1145 = vmatprep.subr.mxu0 0.0
      %1146 = vmatpush1.msra.mxu0 0.0
      %1147 = vmatprep.subr.mxu0 0.0
      %1148 = vmatpush1.msra.mxu0 0.0
      %1149 = vmatprep.subr.mxu0 0.0
      %1150 = vmatpush1.msra.mxu0 0.0
      %1151 = vmatprep.subr.mxu0 0.0
      %1152 = vmatpush1.msra.mxu0 0.0
      %1153 = vmatprep.subr.mxu0 0.0
      %1154 = vmatpush1.msra.mxu0 0.0
      %1155 = vmatprep.subr.mxu0 0.0
      %1156 = vmatpush1.msra.mxu0 0.0
      %1157 = vmatprep.subr.mxu0 0.0
      %1158 = vmatpush1.msra.mxu0 0.0
      %1159 = vmatprep.subr.mxu0 0.0
      %1160 = vmatpush1.msra.mxu0 0.0
      %1161 = vmatprep.subr.mxu0 0.0
      %1162 = vmatpush1.msra.mxu0 0.0
      %1163 = vmatprep.subr.mxu0 0.0
      %1164 = vmatpush1.msra.mxu0 0.0
      %1165 = vmatprep.subr.mxu0 0.0
      %1166 = vmatpush1.msra.mxu0 0.0
      %1167 = vmatprep.subr.mxu0 0.0
      %1168 = vmatpush1.msra.mxu0 0.0
      %1169 = vmatprep.subr.mxu0 0.0
      %1170 = vmatpush1.msra.mxu0 0.0
      %1171 = vmatprep.subr.mxu0 0.0
      %1172 = vmatpush1.msra.mxu0 0.0
      %1173 = vmatprep.subr.mxu0 0.0
      %1174 = vmatpush1.msra.mxu0 0.0
      %1175 = vmatprep.subr.mxu0 0.0
      %1176 = vmatpush1.msra.mxu0 0.0
      %1177 = vmatprep.subr.mxu0 0.0
      %1178 = vmatpush1.msra.mxu0 0.0
      %1179 = vmatprep.subr.mxu0 0.0
      %1180 = vmatpush1.msra.mxu0 0.0
      %1181 = vmatprep.subr.mxu0 0.0
      %1182 = vmatpush1.msra.mxu0 0.0
      %1183 = vmatprep.subr.mxu0 0.0
      %1184 = vmatpush1.msra.mxu0 0.0
      %1185 = vmatprep.subr.mxu0 0.0
      %1186 = vmatpush1.msra.mxu0 0.0
      %1187 = vmatprep.subr.mxu0 0.0
      %1188 = vmatpush1.msra.mxu0 0.0
      %1189 = vmatprep.mubr.f32.mxu0 0.0
      %1190 = vmatmul.mubr.f32.gmra.mrb[0].mxu0 %v1102
      %v1191 = vpop.f32.mrb[0].mxu0
      %v1192 = vadd.f32 0.0, %v1191
      %v1193 = vpop.f32.mrb[0].mxu0
      %1194 = vmatprep.mubr.f32.mxu0 0.0
      %1195 = vmatmul.mubr.f32.gmra.mrb[0].mxu0 %v1105
      %v1196 = vpop.f32.mrb[0].mxu0
      %v1197 = vadd.f32 0.0, %v1196
      %v1198 = vpop.f32.mrb[0].mxu0
      %1199 = vmatprep.mubr.f32.mxu0 0.0
      %1200 = vmatmul.mubr.f32.gmra.mrb[0].mxu0 %v1108
      %v1201 = vpop.f32.mrb[0].mxu0
      %v1202 = vadd.f32 0.0, %v1201
      %v1203 = vpop.f32.mrb[0].mxu0
      %1204 = vmatprep.mubr.f32.mxu0 0.0
      %1205 = vmatmul.mubr.f32.gmra.mrb[0].mxu0 %v1111
      %v1206 = vpop.f32.mrb[0].mxu0
      %v1207 = vadd.f32 0.0, %v1206
      %v1208 = vpop.f32.mrb[0].mxu0
      %1209 = vmatprep.mubr.f32.mxu0 0.0
      %1210 = vmatmul.mubr.f32.gmra.mrb[0].mxu0 %v1114
      %v1211 = vpop.f32.mrb[0].mxu0
      %v1212 = vadd.f32 0.0, %v1211
      %v1213 = vpop.f32.mrb[0].mxu0
      %1214 = vmatprep.mubr.f32.mxu0 0.0
      %1215 = vmatmul.mubr.f32.gmra.mrb[0].mxu0 %v1117
      %v1216 = vpop.f32.mrb[0].mxu0
      %v1217 = vadd.f32 0.0, %v1216
      %v1218 = vpop.f32.mrb[0].mxu0
      %1219 = vmatprep.mubr.f32.mxu0 0.0
      %1220 = vmatmul.mubr.f32.gmra.mrb[0].mxu0 %v1120
      %v1221 = vpop.f32.mrb[0].mxu0
      %v1222 = vadd.f32 0.0, %v1221
      %v1223 = vpop.f32.mrb[0].mxu0
      %1224 = vmatprep.mubr.f32.mxu0 0.0
      %1225 = vmatmul.mubr.f32.gmra.mrb[0].mxu0 %v1123
      %v1226 = vpop.f32.mrb[0].mxu0
      %v1227 = vadd.f32 0.0, %v1226
      %v1228 = vpop.f32.mrb[0].mxu0
      %1229 = vdwg.mxu0
      %v1230 = vadd.f32 %v1090, %v1192
      %v1231 = vadd.f32 %v1091, %v1197
      %v1232 = vadd.f32 %v1092, %v1202
      %v1233 = vadd.f32 %v1093, %v1207
      %v1234 = vadd.f32 %v1094, %v1212
      %v1235 = vadd.f32 %v1095, %v1217
      %v1236 = vadd.f32 %v1096, %v1222
      %v1237 = vadd.f32 %v1097, %v1227
      %s1238 = scalar_lea.vmem %s1, 96
      %v1239 = vld [vmem:[%s1238] sm:$0xff]
      %v1240 = vld [vmem:[%s1238 + $0x8] sm:$0xff]
      %v1241 = vsel %vm323, %v207, 0
      %v1243 = vsel %vm323, %v208, 0
      %v1245 = vsel %vm323, %v209, 0
      %v1247 = vsel %vm323, %v210, 0
      %v1249 = vsel %vm323, %v211, 0
      %v1251 = vsel %vm323, %v212, 0
      %v1253 = vsel %vm323, %v213, 0
      %v1255 = vsel %vm323, %v214, 0
      %1257 = vmatprep.subr.mxu0 0.0
      %1258 = vmatpush1.msra.mxu0 %v1239
      %1259 = vmatprep.subr.mxu0 0.0
      %1260 = vmatpush1.msra.mxu0 %v1240
      %1261 = vmatprep.subr.mxu0 0.0
      %1262 = vmatpush1.msra.mxu0 0.0
      %1263 = vmatprep.subr.mxu0 0.0
      %1264 = vmatpush1.msra.mxu0 0.0
      %1265 = vmatprep.subr.mxu0 0.0
      %1266 = vmatpush1.msra.mxu0 0.0
      %1267 = vmatprep.subr.mxu0 0.0
      %1268 = vmatpush1.msra.mxu0 0.0
      %1269 = vmatprep.subr.mxu0 0.0
      %1270 = vmatpush1.msra.mxu0 0.0
      %1271 = vmatprep.subr.mxu0 0.0
      %1272 = vmatpush1.msra.mxu0 0.0
      %1273 = vmatprep.subr.mxu0 0.0
      %1274 = vmatpush1.msra.mxu0 0.0
      %1275 = vmatprep.subr.mxu0 0.0
      %1276 = vmatpush1.msra.mxu0 0.0
      %1277 = vmatprep.subr.mxu0 0.0
      %1278 = vmatpush1.msra.mxu0 0.0
      %1279 = vmatprep.subr.mxu0 0.0
      %1280 = vmatpush1.msra.mxu0 0.0
      %1281 = vmatprep.subr.mxu0 0.0
      %1282 = vmatpush1.msra.mxu0 0.0
      %1283 = vmatprep.subr.mxu0 0.0
      %1284 = vmatpush1.msra.mxu0 0.0
      %1285 = vmatprep.subr.mxu0 0.0
      %1286 = vmatpush1.msra.mxu0 0.0
      %1287 = vmatprep.subr.mxu0 0.0
      %1288 = vmatpush1.msra.mxu0 0.0
      %1289 = vmatprep.subr.mxu0 0.0
      %1290 = vmatpush1.msra.mxu0 0.0
      %1291 = vmatprep.subr.mxu0 0.0
      %1292 = vmatpush1.msra.mxu0 0.0
      %1293 = vmatprep.subr.mxu0 0.0
      %1294 = vmatpush1.msra.mxu0 0.0
      %1295 = vmatprep.subr.mxu0 0.0
      %1296 = vmatpush1.msra.mxu0 0.0
      %1297 = vmatprep.subr.mxu0 0.0
      %1298 = vmatpush1.msra.mxu0 0.0
      %1299 = vmatprep.subr.mxu0 0.0
      %1300 = vmatpush1.msra.mxu0 0.0
      %1301 = vmatprep.subr.mxu0 0.0
      %1302 = vmatpush1.msra.mxu0 0.0
      %1303 = vmatprep.subr.mxu0 0.0
      %1304 = vmatpush1.msra.mxu0 0.0
      %1305 = vmatprep.subr.mxu0 0.0
      %1306 = vmatpush1.msra.mxu0 0.0
      %1307 = vmatprep.subr.mxu0 0.0
      %1308 = vmatpush1.msra.mxu0 0.0
      %1309 = vmatprep.subr.mxu0 0.0
      %1310 = vmatpush1.msra.mxu0 0.0
      %1311 = vmatprep.subr.mxu0 0.0
      %1312 = vmatpush1.msra.mxu0 0.0
      %1313 = vmatprep.subr.mxu0 0.0
      %1314 = vmatpush1.msra.mxu0 0.0
      %1315 = vmatprep.subr.mxu0 0.0
      %1316 = vmatpush1.msra.mxu0 0.0
      %1317 = vmatprep.subr.mxu0 0.0
      %1318 = vmatpush1.msra.mxu0 0.0
      %1319 = vmatprep.subr.mxu0 0.0
      %1320 = vmatpush1.msra.mxu0 0.0
      %1321 = vmatprep.mubr.f32.mxu0 0.0
      %1322 = vmatmul.mubr.f32.gmra.mrb[0].mxu0 %v1241
      %v1323 = vpop.f32.mrb[0].mxu0
      %v1324 = vadd.f32 0.0, %v1323
      %v1325 = vpop.f32.mrb[0].mxu0
      %1326 = vmatprep.mubr.f32.mxu0 0.0
      %1327 = vmatmul.mubr.f32.gmra.mrb[0].mxu0 %v1243
      %v1328 = vpop.f32.mrb[0].mxu0
      %v1329 = vadd.f32 0.0, %v1328
      %v1330 = vpop.f32.mrb[0].mxu0
      %1331 = vmatprep.mubr.f32.mxu0 0.0
      %1332 = vmatmul.mubr.f32.gmra.mrb[0].mxu0 %v1245
      %v1333 = vpop.f32.mrb[0].mxu0
      %v1334 = vadd.f32 0.0, %v1333
      %v1335 = vpop.f32.mrb[0].mxu0
      %1336 = vmatprep.mubr.f32.mxu0 0.0
      %1337 = vmatmul.mubr.f32.gmra.mrb[0].mxu0 %v1247
      %v1338 = vpop.f32.mrb[0].mxu0
      %v1339 = vadd.f32 0.0, %v1338
      %v1340 = vpop.f32.mrb[0].mxu0
      %1341 = vmatprep.mubr.f32.mxu0 0.0
      %1342 = vmatmul.mubr.f32.gmra.mrb[0].mxu0 %v1249
      %v1343 = vpop.f32.mrb[0].mxu0
      %v1344 = vadd.f32 0.0, %v1343
      %v1345 = vpop.f32.mrb[0].mxu0
      %1346 = vmatprep.mubr.f32.mxu0 0.0
      %1347 = vmatmul.mubr.f32.gmra.mrb[0].mxu0 %v1251
      %v1348 = vpop.f32.mrb[0].mxu0
      %v1349 = vadd.f32 0.0, %v1348
      %v1350 = vpop.f32.mrb[0].mxu0
      %1351 = vmatprep.mubr.f32.mxu0 0.0
      %1352 = vmatmul.mubr.f32.gmra.mrb[0].mxu0 %v1253
      %v1353 = vpop.f32.mrb[0].mxu0
      %v1354 = vadd.f32 0.0, %v1353
      %v1355 = vpop.f32.mrb[0].mxu0
      %1356 = vmatprep.mubr.f32.mxu0 0.0
      %1357 = vmatmul.mubr.f32.gmra.mrb[0].mxu0 %v1255
      %v1358 = vpop.f32.mrb[0].mxu0
      %v1359 = vadd.f32 0.0, %v1358
      %v1360 = vpop.f32.mrb[0].mxu0
      %1361 = vdwg.mxu0
      %v1362 = vadd.f32 %v1230, %v1324
      %v1363 = vadd.f32 %v1231, %v1329
      %v1364 = vadd.f32 %v1232, %v1334
      %v1365 = vadd.f32 %v1233, %v1339
      %v1366 = vadd.f32 %v1234, %v1344
      %v1367 = vadd.f32 %v1235, %v1349
      %v1368 = vadd.f32 %v1236, %v1354
      %v1369 = vadd.f32 %v1237, %v1359
      %v1370 = vrot.slane %v198, 1
      %v1371 = vrot.slane %v199, 1
      %v1372 = vsel %vm713, %v1370, %v1371
      %v1373 = vrot.slane %v200, 1
      %v1374 = vsel %vm713, %v1371, %v1373
      %v1375 = vrot.slane %v201, 1
      %v1376 = vsel %vm713, %v1373, %v1375
      %v1377 = vrot.slane %v202, 1
      %v1378 = vsel %vm713, %v1375, %v1377
      %v1379 = vrot.slane %v203, 1
      %v1380 = vsel %vm713, %v1377, %v1379
      %v1381 = vrot.slane %v204, 1
      %v1382 = vsel %vm713, %v1379, %v1381
      %v1383 = vrot.slane %v205, 1
      %v1384 = vsel %vm713, %v1381, %v1383
      %v1393 = vsel %vm713, %v1383, 0.0
      %v1394 = vmul.f32 %v1372, %v740
      %v1395 = vmul.f32 %v1374, %v744
      %v1396 = vmul.f32 %v1376, %v748
      %v1397 = vmul.f32 %v1378, %v752
      %v1398 = vmul.f32 %v1380, %v756
      %v1399 = vmul.f32 %v1382, %v760
      %v1400 = vmul.f32 %v1384, %v764
      %v1401 = vmul.f32 %v1393, %v768
      %s1402 = scalar_lea.vmem %s1, 112
      %v1403 = vld [vmem:[%s1402] sm:$0xff]
      %v1404 = vld [vmem:[%s1402 + $0x8] sm:$0xff]
      %v1406 = vsel %vm323, %v1394, 0
      %v1409 = vsel %vm323, %v1395, 0
      %v1412 = vsel %vm323, %v1396, 0
      %v1415 = vsel %vm323, %v1397, 0
      %v1418 = vsel %vm323, %v1398, 0
      %v1421 = vsel %vm323, %v1399, 0
      %v1424 = vsel %vm323, %v1400, 0
      %v1427 = vsel %vm323, %v1401, 0
      %1429 = vmatprep.subr.mxu0 0.0
      %1430 = vmatpush1.msra.mxu0 %v1403
      %1431 = vmatprep.subr.mxu0 0.0
      %1432 = vmatpush1.msra.mxu0 %v1404
      %1433 = vmatprep.subr.mxu0 0.0
      %1434 = vmatpush1.msra.mxu0 0.0
      %1435 = vmatprep.subr.mxu0 0.0
      %1436 = vmatpush1.msra.mxu0 0.0
      %1437 = vmatprep.subr.mxu0 0.0
      %1438 = vmatpush1.msra.mxu0 0.0
      %1439 = vmatprep.subr.mxu0 0.0
      %1440 = vmatpush1.msra.mxu0 0.0
      %1441 = vmatprep.subr.mxu0 0.0
      %1442 = vmatpush1.msra.mxu0 0.0
      %1443 = vmatprep.subr.mxu0 0.0
      %1444 = vmatpush1.msra.mxu0 0.0
      %1445 = vmatprep.subr.mxu0 0.0
      %1446 = vmatpush1.msra.mxu0 0.0
      %1447 = vmatprep.subr.mxu0 0.0
      %1448 = vmatpush1.msra.mxu0 0.0
      %1449 = vmatprep.subr.mxu0 0.0
      %1450 = vmatpush1.msra.mxu0 0.0
      %1451 = vmatprep.subr.mxu0 0.0
      %1452 = vmatpush1.msra.mxu0 0.0
      %1453 = vmatprep.subr.mxu0 0.0
      %1454 = vmatpush1.msra.mxu0 0.0
      %1455 = vmatprep.subr.mxu0 0.0
      %1456 = vmatpush1.msra.mxu0 0.0
      %1457 = vmatprep.subr.mxu0 0.0
      %1458 = vmatpush1.msra.mxu0 0.0
      %1459 = vmatprep.subr.mxu0 0.0
      %1460 = vmatpush1.msra.mxu0 0.0
      %1461 = vmatprep.subr.mxu0 0.0
      %1462 = vmatpush1.msra.mxu0 0.0
      %1463 = vmatprep.subr.mxu0 0.0
      %1464 = vmatpush1.msra.mxu0 0.0
      %1465 = vmatprep.subr.mxu0 0.0
      %1466 = vmatpush1.msra.mxu0 0.0
      %1467 = vmatprep.subr.mxu0 0.0
      %1468 = vmatpush1.msra.mxu0 0.0
      %1469 = vmatprep.subr.mxu0 0.0
      %1470 = vmatpush1.msra.mxu0 0.0
      %1471 = vmatprep.subr.mxu0 0.0
      %1472 = vmatpush1.msra.mxu0 0.0
      %1473 = vmatprep.subr.mxu0 0.0
      %1474 = vmatpush1.msra.mxu0 0.0
      %1475 = vmatprep.subr.mxu0 0.0
      %1476 = vmatpush1.msra.mxu0 0.0
      %1477 = vmatprep.subr.mxu0 0.0
      %1478 = vmatpush1.msra.mxu0 0.0
      %1479 = vmatprep.subr.mxu0 0.0
      %1480 = vmatpush1.msra.mxu0 0.0
      %1481 = vmatprep.subr.mxu0 0.0
      %1482 = vmatpush1.msra.mxu0 0.0
      %1483 = vmatprep.subr.mxu0 0.0
      %1484 = vmatpush1.msra.mxu0 0.0
      %1485 = vmatprep.subr.mxu0 0.0
      %1486 = vmatpush1.msra.mxu0 0.0
      %1487 = vmatprep.subr.mxu0 0.0
      %1488 = vmatpush1.msra.mxu0 0.0
      %1489 = vmatprep.subr.mxu0 0.0
      %1490 = vmatpush1.msra.mxu0 0.0
      %1491 = vmatprep.subr.mxu0 0.0
      %1492 = vmatpush1.msra.mxu0 0.0
      %1493 = vmatprep.mubr.f32.mxu0 0.0
      %1494 = vmatmul.mubr.f32.gmra.mrb[0].mxu0 %v1406
      %v1495 = vpop.f32.mrb[0].mxu0
      %v1496 = vadd.f32 0.0, %v1495
      %v1497 = vpop.f32.mrb[0].mxu0
      %1498 = vmatprep.mubr.f32.mxu0 0.0
      %1499 = vmatmul.mubr.f32.gmra.mrb[0].mxu0 %v1409
      %v1500 = vpop.f32.mrb[0].mxu0
      %v1501 = vadd.f32 0.0, %v1500
      %v1502 = vpop.f32.mrb[0].mxu0
      %1503 = vmatprep.mubr.f32.mxu0 0.0
      %1504 = vmatmul.mubr.f32.gmra.mrb[0].mxu0 %v1412
      %v1505 = vpop.f32.mrb[0].mxu0
      %v1506 = vadd.f32 0.0, %v1505
      %v1507 = vpop.f32.mrb[0].mxu0
      %1508 = vmatprep.mubr.f32.mxu0 0.0
      %1509 = vmatmul.mubr.f32.gmra.mrb[0].mxu0 %v1415
      %v1510 = vpop.f32.mrb[0].mxu0
      %v1511 = vadd.f32 0.0, %v1510
      %v1512 = vpop.f32.mrb[0].mxu0
      %1513 = vmatprep.mubr.f32.mxu0 0.0
      %1514 = vmatmul.mubr.f32.gmra.mrb[0].mxu0 %v1418
      %v1515 = vpop.f32.mrb[0].mxu0
      %v1516 = vadd.f32 0.0, %v1515
      %v1517 = vpop.f32.mrb[0].mxu0
      %1518 = vmatprep.mubr.f32.mxu0 0.0
      %1519 = vmatmul.mubr.f32.gmra.mrb[0].mxu0 %v1421
      %v1520 = vpop.f32.mrb[0].mxu0
      %v1521 = vadd.f32 0.0, %v1520
      %v1522 = vpop.f32.mrb[0].mxu0
      %1523 = vmatprep.mubr.f32.mxu0 0.0
      %1524 = vmatmul.mubr.f32.gmra.mrb[0].mxu0 %v1424
      %v1525 = vpop.f32.mrb[0].mxu0
      %v1526 = vadd.f32 0.0, %v1525
      %v1527 = vpop.f32.mrb[0].mxu0
      %1528 = vmatprep.mubr.f32.mxu0 0.0
      %1529 = vmatmul.mubr.f32.gmra.mrb[0].mxu0 %v1427
      %v1530 = vpop.f32.mrb[0].mxu0
      %v1531 = vadd.f32 0.0, %v1530
      %v1532 = vpop.f32.mrb[0].mxu0
      %1533 = vdwg.mxu0
      %v1534 = vadd.f32 %v1362, %v1496
      %v1535 = vadd.f32 %v1363, %v1501
      %v1536 = vadd.f32 %v1364, %v1506
      %v1537 = vadd.f32 %v1365, %v1511
      %v1538 = vadd.f32 %v1366, %v1516
      %v1539 = vadd.f32 %v1367, %v1521
      %v1540 = vadd.f32 %v1368, %v1526
      %v1541 = vadd.f32 %v1369, %v1531
      %v1543 = vrot.slane %v232, 7
      %v1544 = vsel %vm248, %v260, %v1543
      %v1546 = vmul.f32 %v269, %v273
      %v1547 = vmul.f32 %v251, %v278
      %v1548 = vmul.f32 %v253, %v283
      %v1549 = vmul.f32 %v255, %v288
      %v1550 = vmul.f32 %v257, %v293
      %v1551 = vmul.f32 %v259, %v298
      %v1552 = vmul.f32 %v261, %v303
      %v1553 = vmul.f32 %v1544, %v308
      %s1554 = scalar_lea.vmem %s1, 128
      %v1555 = vld [vmem:[%s1554] sm:$0xff]
      %v1556 = vld [vmem:[%s1554 + $0x8] sm:$0xff]
      %v1558 = vsel %vm323, %v1546, 0
      %v1561 = vsel %vm323, %v1547, 0
      %v1564 = vsel %vm323, %v1548, 0
      %v1567 = vsel %vm323, %v1549, 0
      %v1570 = vsel %vm323, %v1550, 0
      %v1573 = vsel %vm323, %v1551, 0
      %v1576 = vsel %vm323, %v1552, 0
      %v1579 = vsel %vm323, %v1553, 0
      %1581 = vmatprep.subr.mxu0 0.0
      %1582 = vmatpush1.msra.mxu0 %v1555
      %1583 = vmatprep.subr.mxu0 0.0
      %1584 = vmatpush1.msra.mxu0 %v1556
      %1585 = vmatprep.subr.mxu0 0.0
      %1586 = vmatpush1.msra.mxu0 0.0
      %1587 = vmatprep.subr.mxu0 0.0
      %1588 = vmatpush1.msra.mxu0 0.0
      %1589 = vmatprep.subr.mxu0 0.0
      %1590 = vmatpush1.msra.mxu0 0.0
      %1591 = vmatprep.subr.mxu0 0.0
      %1592 = vmatpush1.msra.mxu0 0.0
      %1593 = vmatprep.subr.mxu0 0.0
      %1594 = vmatpush1.msra.mxu0 0.0
      %1595 = vmatprep.subr.mxu0 0.0
      %1596 = vmatpush1.msra.mxu0 0.0
      %1597 = vmatprep.subr.mxu0 0.0
      %1598 = vmatpush1.msra.mxu0 0.0
      %1599 = vmatprep.subr.mxu0 0.0
      %1600 = vmatpush1.msra.mxu0 0.0
      %1601 = vmatprep.subr.mxu0 0.0
      %1602 = vmatpush1.msra.mxu0 0.0
      %1603 = vmatprep.subr.mxu0 0.0
      %1604 = vmatpush1.msra.mxu0 0.0
      %1605 = vmatprep.subr.mxu0 0.0
      %1606 = vmatpush1.msra.mxu0 0.0
      %1607 = vmatprep.subr.mxu0 0.0
      %1608 = vmatpush1.msra.mxu0 0.0
      %1609 = vmatprep.subr.mxu0 0.0
      %1610 = vmatpush1.msra.mxu0 0.0
      %1611 = vmatprep.subr.mxu0 0.0
      %1612 = vmatpush1.msra.mxu0 0.0
      %1613 = vmatprep.subr.mxu0 0.0
      %1614 = vmatpush1.msra.mxu0 0.0
      %1615 = vmatprep.subr.mxu0 0.0
      %1616 = vmatpush1.msra.mxu0 0.0
      %1617 = vmatprep.subr.mxu0 0.0
      %1618 = vmatpush1.msra.mxu0 0.0
      %1619 = vmatprep.subr.mxu0 0.0
      %1620 = vmatpush1.msra.mxu0 0.0
      %1621 = vmatprep.subr.mxu0 0.0
      %1622 = vmatpush1.msra.mxu0 0.0
      %1623 = vmatprep.subr.mxu0 0.0
      %1624 = vmatpush1.msra.mxu0 0.0
      %1625 = vmatprep.subr.mxu0 0.0
      %1626 = vmatpush1.msra.mxu0 0.0
      %1627 = vmatprep.subr.mxu0 0.0
      %1628 = vmatpush1.msra.mxu0 0.0
      %1629 = vmatprep.subr.mxu0 0.0
      %1630 = vmatpush1.msra.mxu0 0.0
      %1631 = vmatprep.subr.mxu0 0.0
      %1632 = vmatpush1.msra.mxu0 0.0
      %1633 = vmatprep.subr.mxu0 0.0
      %1634 = vmatpush1.msra.mxu0 0.0
      %1635 = vmatprep.subr.mxu0 0.0
      %1636 = vmatpush1.msra.mxu0 0.0
      %1637 = vmatprep.subr.mxu0 0.0
      %1638 = vmatpush1.msra.mxu0 0.0
      %1639 = vmatprep.subr.mxu0 0.0
      %1640 = vmatpush1.msra.mxu0 0.0
      %1641 = vmatprep.subr.mxu0 0.0
      %1642 = vmatpush1.msra.mxu0 0.0
      %1643 = vmatprep.subr.mxu0 0.0
      %1644 = vmatpush1.msra.mxu0 0.0
      %1645 = vmatprep.mubr.f32.mxu0 0.0
      %1646 = vmatmul.mubr.f32.gmra.mrb[0].mxu0 %v1558
      %v1647 = vpop.f32.mrb[0].mxu0
      %v1648 = vadd.f32 0.0, %v1647
      %v1649 = vpop.f32.mrb[0].mxu0
      %1650 = vmatprep.mubr.f32.mxu0 0.0
      %1651 = vmatmul.mubr.f32.gmra.mrb[0].mxu0 %v1561
      %v1652 = vpop.f32.mrb[0].mxu0
      %v1653 = vadd.f32 0.0, %v1652
      %v1654 = vpop.f32.mrb[0].mxu0
      %1655 = vmatprep.mubr.f32.mxu0 0.0
      %1656 = vmatmul.mubr.f32.gmra.mrb[0].mxu0 %v1564
      %v1657 = vpop.f32.mrb[0].mxu0
      %v1658 = vadd.f32 0.0, %v1657
      %v1659 = vpop.f32.mrb[0].mxu0
      %1660 = vmatprep.mubr.f32.mxu0 0.0
      %1661 = vmatmul.mubr.f32.gmra.mrb[0].mxu0 %v1567
      %v1662 = vpop.f32.mrb[0].mxu0
      %v1663 = vadd.f32 0.0, %v1662
      %v1664 = vpop.f32.mrb[0].mxu0
      %1665 = vmatprep.mubr.f32.mxu0 0.0
      %1666 = vmatmul.mubr.f32.gmra.mrb[0].mxu0 %v1570
      %v1667 = vpop.f32.mrb[0].mxu0
      %v1668 = vadd.f32 0.0, %v1667
      %v1669 = vpop.f32.mrb[0].mxu0
      %1670 = vmatprep.mubr.f32.mxu0 0.0
      %1671 = vmatmul.mubr.f32.gmra.mrb[0].mxu0 %v1573
      %v1672 = vpop.f32.mrb[0].mxu0
      %v1673 = vadd.f32 0.0, %v1672
      %v1674 = vpop.f32.mrb[0].mxu0
      %1675 = vmatprep.mubr.f32.mxu0 0.0
      %1676 = vmatmul.mubr.f32.gmra.mrb[0].mxu0 %v1576
      %v1677 = vpop.f32.mrb[0].mxu0
      %v1678 = vadd.f32 0.0, %v1677
      %v1679 = vpop.f32.mrb[0].mxu0
      %1680 = vmatprep.mubr.f32.mxu0 0.0
      %1681 = vmatmul.mubr.f32.gmra.mrb[0].mxu0 %v1579
      %v1682 = vpop.f32.mrb[0].mxu0
      %v1683 = vadd.f32 0.0, %v1682
      %v1684 = vpop.f32.mrb[0].mxu0
      %1685 = vdwg.mxu0
      %v1686 = vadd.f32 %v1534, %v1648
      %v1687 = vadd.f32 %v1535, %v1653
      %v1688 = vadd.f32 %v1536, %v1658
      %v1689 = vadd.f32 %v1537, %v1663
      %v1690 = vadd.f32 %v1538, %v1668
      %v1691 = vadd.f32 %v1539, %v1673
      %v1692 = vadd.f32 %v1540, %v1678
      %v1693 = vadd.f32 %v1541, %v1683
      %s1694 = scalar_lea.vmem %s1, 144
      %v1695 = vld [vmem:[%s1694] sm:$0xff]
      %v1696 = vld [vmem:[%s1694 + $0x8] sm:$0xff]
      %v1697 = vsel %vm323, %v223, 0
      %1699 = vmatprep.subr.mxu0 0.0
      %1700 = vmatpush1.msra.mxu0 %v1695
      %1701 = vmatprep.subr.mxu0 0.0
      %1702 = vmatpush1.msra.mxu0 %v1696
      %1703 = vmatprep.subr.mxu0 0.0
      %1704 = vmatpush1.msra.mxu0 0.0
      %1705 = vmatprep.subr.mxu0 0.0
      %1706 = vmatpush1.msra.mxu0 0.0
      %1707 = vmatprep.subr.mxu0 0.0
      %1708 = vmatpush1.msra.mxu0 0.0
      %1709 = vmatprep.subr.mxu0 0.0
      %1710 = vmatpush1.msra.mxu0 0.0
      %1711 = vmatprep.subr.mxu0 0.0
      %1712 = vmatpush1.msra.mxu0 0.0
      %1713 = vmatprep.subr.mxu0 0.0
      %1714 = vmatpush1.msra.mxu0 0.0
      %1715 = vmatprep.subr.mxu0 0.0
      %1716 = vmatpush1.msra.mxu0 0.0
      %1717 = vmatprep.subr.mxu0 0.0
      %1718 = vmatpush1.msra.mxu0 0.0
      %1719 = vmatprep.subr.mxu0 0.0
      %1720 = vmatpush1.msra.mxu0 0.0
      %1721 = vmatprep.subr.mxu0 0.0
      %1722 = vmatpush1.msra.mxu0 0.0
      %1723 = vmatprep.subr.mxu0 0.0
      %1724 = vmatpush1.msra.mxu0 0.0
      %1725 = vmatprep.subr.mxu0 0.0
      %1726 = vmatpush1.msra.mxu0 0.0
      %1727 = vmatprep.subr.mxu0 0.0
      %1728 = vmatpush1.msra.mxu0 0.0
      %1729 = vmatprep.subr.mxu0 0.0
      %1730 = vmatpush1.msra.mxu0 0.0
      %1731 = vmatprep.subr.mxu0 0.0
      %1732 = vmatpush1.msra.mxu0 0.0
      %1733 = vmatprep.subr.mxu0 0.0
      %1734 = vmatpush1.msra.mxu0 0.0
      %1735 = vmatprep.subr.mxu0 0.0
      %1736 = vmatpush1.msra.mxu0 0.0
      %1737 = vmatprep.subr.mxu0 0.0
      %1738 = vmatpush1.msra.mxu0 0.0
      %1739 = vmatprep.subr.mxu0 0.0
      %1740 = vmatpush1.msra.mxu0 0.0
      %1741 = vmatprep.subr.mxu0 0.0
      %1742 = vmatpush1.msra.mxu0 0.0
      %1743 = vmatprep.subr.mxu0 0.0
      %1744 = vmatpush1.msra.mxu0 0.0
      %1745 = vmatprep.subr.mxu0 0.0
      %1746 = vmatpush1.msra.mxu0 0.0
      %1747 = vmatprep.subr.mxu0 0.0
      %1748 = vmatpush1.msra.mxu0 0.0
      %1749 = vmatprep.subr.mxu0 0.0
      %1750 = vmatpush1.msra.mxu0 0.0
      %1751 = vmatprep.subr.mxu0 0.0
      %1752 = vmatpush1.msra.mxu0 0.0
      %1753 = vmatprep.subr.mxu0 0.0
      %1754 = vmatpush1.msra.mxu0 0.0
      %1755 = vmatprep.subr.mxu0 0.0
      %1756 = vmatpush1.msra.mxu0 0.0
      %1757 = vmatprep.subr.mxu0 0.0
      %1758 = vmatpush1.msra.mxu0 0.0
      %1759 = vmatprep.subr.mxu0 0.0
      %1760 = vmatpush1.msra.mxu0 0.0
      %1761 = vmatprep.subr.mxu0 0.0
      %1762 = vmatpush1.msra.mxu0 0.0
      %1763 = vmatprep.mubr.f32.mxu0 0.0
      %1764 = vmatmul.mubr.f32.gmra.mrb[0].mxu0 %v328
      %v1765 = vpop.f32.mrb[0].mxu0
      %v1766 = vadd.f32 0.0, %v1765
      %v1767 = vpop.f32.mrb[0].mxu0
      %1768 = vmatprep.mubr.f32.mxu0 0.0
      %1769 = vmatmul.mubr.f32.gmra.mrb[0].mxu0 %v331
      %v1770 = vpop.f32.mrb[0].mxu0
      %v1771 = vadd.f32 0.0, %v1770
      %v1772 = vpop.f32.mrb[0].mxu0
      %1773 = vmatprep.mubr.f32.mxu0 0.0
      %1774 = vmatmul.mubr.f32.gmra.mrb[0].mxu0 %v334
      %v1775 = vpop.f32.mrb[0].mxu0
      %v1776 = vadd.f32 0.0, %v1775
      %v1777 = vpop.f32.mrb[0].mxu0
      %1778 = vmatprep.mubr.f32.mxu0 0.0
      %1779 = vmatmul.mubr.f32.gmra.mrb[0].mxu0 %v337
      %v1780 = vpop.f32.mrb[0].mxu0
      %v1781 = vadd.f32 0.0, %v1780
      %v1782 = vpop.f32.mrb[0].mxu0
      %1783 = vmatprep.mubr.f32.mxu0 0.0
      %1784 = vmatmul.mubr.f32.gmra.mrb[0].mxu0 %v340
      %v1785 = vpop.f32.mrb[0].mxu0
      %v1786 = vadd.f32 0.0, %v1785
      %v1787 = vpop.f32.mrb[0].mxu0
      %1788 = vmatprep.mubr.f32.mxu0 0.0
      %1789 = vmatmul.mubr.f32.gmra.mrb[0].mxu0 %v343
      %v1790 = vpop.f32.mrb[0].mxu0
      %v1791 = vadd.f32 0.0, %v1790
      %v1792 = vpop.f32.mrb[0].mxu0
      %1793 = vmatprep.mubr.f32.mxu0 0.0
      %1794 = vmatmul.mubr.f32.gmra.mrb[0].mxu0 %v346
      %v1795 = vpop.f32.mrb[0].mxu0
      %v1796 = vadd.f32 0.0, %v1795
      %v1797 = vpop.f32.mrb[0].mxu0
      %1798 = vmatprep.mubr.f32.mxu0 0.0
      %1799 = vmatmul.mubr.f32.gmra.mrb[0].mxu0 %v1697
      %v1800 = vpop.f32.mrb[0].mxu0
      %v1801 = vadd.f32 0.0, %v1800
      %v1802 = vpop.f32.mrb[0].mxu0
      %1803 = vdwg.mxu0
      %v1804 = vadd.f32 %v1686, %v1766
      %v1805 = vadd.f32 %v1687, %v1771
      %v1806 = vadd.f32 %v1688, %v1776
      %v1807 = vadd.f32 %v1689, %v1781
      %v1808 = vadd.f32 %v1690, %v1786
      %v1809 = vadd.f32 %v1691, %v1791
      %v1810 = vadd.f32 %v1692, %v1796
      %v1811 = vadd.f32 %v1693, %v1801
      %s1812 = scalar_lea.vmem %s1, 160
      %v1813 = vld [vmem:[%s1812] sm:$0xff]
      %v1814 = vld [vmem:[%s1812 + $0x8] sm:$0xff]
      %v1815 = vsel %vm323, %v232, 0
      %1817 = vmatprep.subr.mxu0 0.0
      %1818 = vmatpush1.msra.mxu0 %v1813
      %1819 = vmatprep.subr.mxu0 0.0
      %1820 = vmatpush1.msra.mxu0 %v1814
      %1821 = vmatprep.subr.mxu0 0.0
      %1822 = vmatpush1.msra.mxu0 0.0
      %1823 = vmatprep.subr.mxu0 0.0
      %1824 = vmatpush1.msra.mxu0 0.0
      %1825 = vmatprep.subr.mxu0 0.0
      %1826 = vmatpush1.msra.mxu0 0.0
      %1827 = vmatprep.subr.mxu0 0.0
      %1828 = vmatpush1.msra.mxu0 0.0
      %1829 = vmatprep.subr.mxu0 0.0
      %1830 = vmatpush1.msra.mxu0 0.0
      %1831 = vmatprep.subr.mxu0 0.0
      %1832 = vmatpush1.msra.mxu0 0.0
      %1833 = vmatprep.subr.mxu0 0.0
      %1834 = vmatpush1.msra.mxu0 0.0
      %1835 = vmatprep.subr.mxu0 0.0
      %1836 = vmatpush1.msra.mxu0 0.0
      %1837 = vmatprep.subr.mxu0 0.0
      %1838 = vmatpush1.msra.mxu0 0.0
      %1839 = vmatprep.subr.mxu0 0.0
      %1840 = vmatpush1.msra.mxu0 0.0
      %1841 = vmatprep.subr.mxu0 0.0
      %1842 = vmatpush1.msra.mxu0 0.0
      %1843 = vmatprep.subr.mxu0 0.0
      %1844 = vmatpush1.msra.mxu0 0.0
      %1845 = vmatprep.subr.mxu0 0.0
      %1846 = vmatpush1.msra.mxu0 0.0
      %1847 = vmatprep.subr.mxu0 0.0
      %1848 = vmatpush1.msra.mxu0 0.0
      %1849 = vmatprep.subr.mxu0 0.0
      %1850 = vmatpush1.msra.mxu0 0.0
      %1851 = vmatprep.subr.mxu0 0.0
      %1852 = vmatpush1.msra.mxu0 0.0
      %1853 = vmatprep.subr.mxu0 0.0
      %1854 = vmatpush1.msra.mxu0 0.0
      %1855 = vmatprep.subr.mxu0 0.0
      %1856 = vmatpush1.msra.mxu0 0.0
      %1857 = vmatprep.subr.mxu0 0.0
      %1858 = vmatpush1.msra.mxu0 0.0
      %1859 = vmatprep.subr.mxu0 0.0
      %1860 = vmatpush1.msra.mxu0 0.0
      %1861 = vmatprep.subr.mxu0 0.0
      %1862 = vmatpush1.msra.mxu0 0.0
      %1863 = vmatprep.subr.mxu0 0.0
      %1864 = vmatpush1.msra.mxu0 0.0
      %1865 = vmatprep.subr.mxu0 0.0
      %1866 = vmatpush1.msra.mxu0 0.0
      %1867 = vmatprep.subr.mxu0 0.0
      %1868 = vmatpush1.msra.mxu0 0.0
      %1869 = vmatprep.subr.mxu0 0.0
      %1870 = vmatpush1.msra.mxu0 0.0
      %1871 = vmatprep.subr.mxu0 0.0
      %1872 = vmatpush1.msra.mxu0 0.0
      %1873 = vmatprep.subr.mxu0 0.0
      %1874 = vmatpush1.msra.mxu0 0.0
      %1875 = vmatprep.subr.mxu0 0.0
      %1876 = vmatpush1.msra.mxu0 0.0
      %1877 = vmatprep.subr.mxu0 0.0
      %1878 = vmatpush1.msra.mxu0 0.0
      %1879 = vmatprep.subr.mxu0 0.0
      %1880 = vmatpush1.msra.mxu0 0.0
      %1881 = vmatprep.mubr.f32.mxu0 0.0
      %1882 = vmatmul.mubr.f32.gmra.mrb[0].mxu0 %v585
      %v1883 = vpop.f32.mrb[0].mxu0
      %v1884 = vadd.f32 0.0, %v1883
      %v1885 = vpop.f32.mrb[0].mxu0
      %1886 = vmatprep.mubr.f32.mxu0 0.0
      %1887 = vmatmul.mubr.f32.gmra.mrb[0].mxu0 %v587
      %v1888 = vpop.f32.mrb[0].mxu0
      %v1889 = vadd.f32 0.0, %v1888
      %v1890 = vpop.f32.mrb[0].mxu0
      %1891 = vmatprep.mubr.f32.mxu0 0.0
      %1892 = vmatmul.mubr.f32.gmra.mrb[0].mxu0 %v589
      %v1893 = vpop.f32.mrb[0].mxu0
      %v1894 = vadd.f32 0.0, %v1893
      %v1895 = vpop.f32.mrb[0].mxu0
      %1896 = vmatprep.mubr.f32.mxu0 0.0
      %1897 = vmatmul.mubr.f32.gmra.mrb[0].mxu0 %v591
      %v1898 = vpop.f32.mrb[0].mxu0
      %v1899 = vadd.f32 0.0, %v1898
      %v1900 = vpop.f32.mrb[0].mxu0
      %1901 = vmatprep.mubr.f32.mxu0 0.0
      %1902 = vmatmul.mubr.f32.gmra.mrb[0].mxu0 %v593
      %v1903 = vpop.f32.mrb[0].mxu0
      %v1904 = vadd.f32 0.0, %v1903
      %v1905 = vpop.f32.mrb[0].mxu0
      %1906 = vmatprep.mubr.f32.mxu0 0.0
      %1907 = vmatmul.mubr.f32.gmra.mrb[0].mxu0 %v595
      %v1908 = vpop.f32.mrb[0].mxu0
      %v1909 = vadd.f32 0.0, %v1908
      %v1910 = vpop.f32.mrb[0].mxu0
      %1911 = vmatprep.mubr.f32.mxu0 0.0
      %1912 = vmatmul.mubr.f32.gmra.mrb[0].mxu0 %v597
      %v1913 = vpop.f32.mrb[0].mxu0
      %v1914 = vadd.f32 0.0, %v1913
      %v1915 = vpop.f32.mrb[0].mxu0
      %1916 = vmatprep.mubr.f32.mxu0 0.0
      %1917 = vmatmul.mubr.f32.gmra.mrb[0].mxu0 %v1815
      %v1918 = vpop.f32.mrb[0].mxu0
      %v1919 = vadd.f32 0.0, %v1918
      %v1920 = vpop.f32.mrb[0].mxu0
      %1921 = vdwg.mxu0
      %v1922 = vadd.f32 %v1804, %v1884
      %v1923 = vadd.f32 %v1805, %v1889
      %v1924 = vadd.f32 %v1806, %v1894
      %v1925 = vadd.f32 %v1807, %v1899
      %v1926 = vadd.f32 %v1808, %v1904
      %v1927 = vadd.f32 %v1809, %v1909
      %v1928 = vadd.f32 %v1810, %v1914
      %v1929 = vadd.f32 %v1811, %v1919
      %v1931 = vsel %vm713, %v727, 0.0
      %v1932 = vmul.f32 %v716, %v740
      %v1933 = vmul.f32 %v718, %v744
      %v1934 = vmul.f32 %v720, %v748
      %v1935 = vmul.f32 %v722, %v752
      %v1936 = vmul.f32 %v724, %v756
      %v1937 = vmul.f32 %v726, %v760
      %v1938 = vmul.f32 %v728, %v764
      %v1939 = vmul.f32 %v1931, %v768
      %s1940 = scalar_lea.vmem %s1, 176
      %v1941 = vld [vmem:[%s1940] sm:$0xff]
      %v1942 = vld [vmem:[%s1940 + $0x8] sm:$0xff]
      %v1944 = vsel %vm323, %v1932, 0
      %v1947 = vsel %vm323, %v1933, 0
      %v1950 = vsel %vm323, %v1934, 0
      %v1953 = vsel %vm323, %v1935, 0
      %v1956 = vsel %vm323, %v1936, 0
      %v1959 = vsel %vm323, %v1937, 0
      %v1962 = vsel %vm323, %v1938, 0
      %v1965 = vsel %vm323, %v1939, 0
      %1967 = vmatprep.subr.mxu0 0.0
      %1968 = vmatpush1.msra.mxu0 %v1941
      %1969 = vmatprep.subr.mxu0 0.0
      %1970 = vmatpush1.msra.mxu0 %v1942
      %1971 = vmatprep.subr.mxu0 0.0
      %1972 = vmatpush1.msra.mxu0 0.0
      %1973 = vmatprep.subr.mxu0 0.0
      %1974 = vmatpush1.msra.mxu0 0.0
      %1975 = vmatprep.subr.mxu0 0.0
      %1976 = vmatpush1.msra.mxu0 0.0
      %1977 = vmatprep.subr.mxu0 0.0
      %1978 = vmatpush1.msra.mxu0 0.0
      %1979 = vmatprep.subr.mxu0 0.0
      %1980 = vmatpush1.msra.mxu0 0.0
      %1981 = vmatprep.subr.mxu0 0.0
      %1982 = vmatpush1.msra.mxu0 0.0
      %1983 = vmatprep.subr.mxu0 0.0
      %1984 = vmatpush1.msra.mxu0 0.0
      %1985 = vmatprep.subr.mxu0 0.0
      %1986 = vmatpush1.msra.mxu0 0.0
      %1987 = vmatprep.subr.mxu0 0.0
      %1988 = vmatpush1.msra.mxu0 0.0
      %1989 = vmatprep.subr.mxu0 0.0
      %1990 = vmatpush1.msra.mxu0 0.0
      %1991 = vmatprep.subr.mxu0 0.0
      %1992 = vmatpush1.msra.mxu0 0.0
      %1993 = vmatprep.subr.mxu0 0.0
      %1994 = vmatpush1.msra.mxu0 0.0
      %1995 = vmatprep.subr.mxu0 0.0
      %1996 = vmatpush1.msra.mxu0 0.0
      %1997 = vmatprep.subr.mxu0 0.0
      %1998 = vmatpush1.msra.mxu0 0.0
      %1999 = vmatprep.subr.mxu0 0.0
      %2000 = vmatpush1.msra.mxu0 0.0
      %2001 = vmatprep.subr.mxu0 0.0
      %2002 = vmatpush1.msra.mxu0 0.0
      %2003 = vmatprep.subr.mxu0 0.0
      %2004 = vmatpush1.msra.mxu0 0.0
      %2005 = vmatprep.subr.mxu0 0.0
      %2006 = vmatpush1.msra.mxu0 0.0
      %2007 = vmatprep.subr.mxu0 0.0
      %2008 = vmatpush1.msra.mxu0 0.0
      %2009 = vmatprep.subr.mxu0 0.0
      %2010 = vmatpush1.msra.mxu0 0.0
      %2011 = vmatprep.subr.mxu0 0.0
      %2012 = vmatpush1.msra.mxu0 0.0
      %2013 = vmatprep.subr.mxu0 0.0
      %2014 = vmatpush1.msra.mxu0 0.0
      %2015 = vmatprep.subr.mxu0 0.0
      %2016 = vmatpush1.msra.mxu0 0.0
      %2017 = vmatprep.subr.mxu0 0.0
      %2018 = vmatpush1.msra.mxu0 0.0
      %2019 = vmatprep.subr.mxu0 0.0
      %2020 = vmatpush1.msra.mxu0 0.0
      %2021 = vmatprep.subr.mxu0 0.0
      %2022 = vmatpush1.msra.mxu0 0.0
      %2023 = vmatprep.subr.mxu0 0.0
      %2024 = vmatpush1.msra.mxu0 0.0
      %2025 = vmatprep.subr.mxu0 0.0
      %2026 = vmatpush1.msra.mxu0 0.0
      %2027 = vmatprep.subr.mxu0 0.0
      %2028 = vmatpush1.msra.mxu0 0.0
      %2029 = vmatprep.subr.mxu0 0.0
      %2030 = vmatpush1.msra.mxu0 0.0
      %2031 = vmatprep.mubr.f32.mxu0 0.0
      %2032 = vmatmul.mubr.f32.gmra.mrb[0].mxu0 %v1944
      %v2033 = vpop.f32.mrb[0].mxu0
      %v2034 = vadd.f32 0.0, %v2033
      %v2035 = vpop.f32.mrb[0].mxu0
      %2036 = vmatprep.mubr.f32.mxu0 0.0
      %2037 = vmatmul.mubr.f32.gmra.mrb[0].mxu0 %v1947
      %v2038 = vpop.f32.mrb[0].mxu0
      %v2039 = vadd.f32 0.0, %v2038
      %v2040 = vpop.f32.mrb[0].mxu0
      %2041 = vmatprep.mubr.f32.mxu0 0.0
      %2042 = vmatmul.mubr.f32.gmra.mrb[0].mxu0 %v1950
      %v2043 = vpop.f32.mrb[0].mxu0
      %v2044 = vadd.f32 0.0, %v2043
      %v2045 = vpop.f32.mrb[0].mxu0
      %2046 = vmatprep.mubr.f32.mxu0 0.0
      %2047 = vmatmul.mubr.f32.gmra.mrb[0].mxu0 %v1953
      %v2048 = vpop.f32.mrb[0].mxu0
      %v2049 = vadd.f32 0.0, %v2048
      %v2050 = vpop.f32.mrb[0].mxu0
      %2051 = vmatprep.mubr.f32.mxu0 0.0
      %2052 = vmatmul.mubr.f32.gmra.mrb[0].mxu0 %v1956
      %v2053 = vpop.f32.mrb[0].mxu0
      %v2054 = vadd.f32 0.0, %v2053
      %v2055 = vpop.f32.mrb[0].mxu0
      %2056 = vmatprep.mubr.f32.mxu0 0.0
      %2057 = vmatmul.mubr.f32.gmra.mrb[0].mxu0 %v1959
      %v2058 = vpop.f32.mrb[0].mxu0
      %v2059 = vadd.f32 0.0, %v2058
      %v2060 = vpop.f32.mrb[0].mxu0
      %2061 = vmatprep.mubr.f32.mxu0 0.0
      %2062 = vmatmul.mubr.f32.gmra.mrb[0].mxu0 %v1962
      %v2063 = vpop.f32.mrb[0].mxu0
      %v2064 = vadd.f32 0.0, %v2063
      %v2065 = vpop.f32.mrb[0].mxu0
      %2066 = vmatprep.mubr.f32.mxu0 0.0
      %2067 = vmatmul.mubr.f32.gmra.mrb[0].mxu0 %v1965
      %v2068 = vpop.f32.mrb[0].mxu0
      %v2069 = vadd.f32 0.0, %v2068
      %v2070 = vpop.f32.mrb[0].mxu0
      %2071 = vdwg.mxu0
      %v2072 = vadd.f32 %v1922, %v2034
      %v2073 = vadd.f32 %v1923, %v2039
      %v2074 = vadd.f32 %v1924, %v2044
      %v2075 = vadd.f32 %v1925, %v2049
      %v2076 = vadd.f32 %v1926, %v2054
      %v2077 = vadd.f32 %v1927, %v2059
      %v2078 = vadd.f32 %v1928, %v2064
      %v2079 = vadd.f32 %v1929, %v2069
      %v2081 = vsel %vm248, %v939, 0.0
      %v2082 = vmul.f32 %v928, %v273
      %v2083 = vmul.f32 %v930, %v278
      %v2084 = vmul.f32 %v932, %v283
      %v2085 = vmul.f32 %v934, %v288
      %v2086 = vmul.f32 %v936, %v293
      %v2087 = vmul.f32 %v938, %v298
      %v2088 = vmul.f32 %v940, %v303
      %v2089 = vmul.f32 %v2081, %v308
      %s2090 = scalar_lea.vmem %s1, 192
      %v2091 = vld [vmem:[%s2090] sm:$0xff]
      %v2092 = vld [vmem:[%s2090 + $0x8] sm:$0xff]
      %v2094 = vsel %vm323, %v2082, 0
      %v2097 = vsel %vm323, %v2083, 0
      %v2100 = vsel %vm323, %v2084, 0
      %v2103 = vsel %vm323, %v2085, 0
      %v2106 = vsel %vm323, %v2086, 0
      %v2109 = vsel %vm323, %v2087, 0
      %v2112 = vsel %vm323, %v2088, 0
      %v2115 = vsel %vm323, %v2089, 0
      %2117 = vmatprep.subr.mxu0 0.0
      %2118 = vmatpush1.msra.mxu0 %v2091
      %2119 = vmatprep.subr.mxu0 0.0
      %2120 = vmatpush1.msra.mxu0 %v2092
      %2121 = vmatprep.subr.mxu0 0.0
      %2122 = vmatpush1.msra.mxu0 0.0
      %2123 = vmatprep.subr.mxu0 0.0
      %2124 = vmatpush1.msra.mxu0 0.0
      %2125 = vmatprep.subr.mxu0 0.0
      %2126 = vmatpush1.msra.mxu0 0.0
      %2127 = vmatprep.subr.mxu0 0.0
      %2128 = vmatpush1.msra.mxu0 0.0
      %2129 = vmatprep.subr.mxu0 0.0
      %2130 = vmatpush1.msra.mxu0 0.0
      %2131 = vmatprep.subr.mxu0 0.0
      %2132 = vmatpush1.msra.mxu0 0.0
      %2133 = vmatprep.subr.mxu0 0.0
      %2134 = vmatpush1.msra.mxu0 0.0
      %2135 = vmatprep.subr.mxu0 0.0
      %2136 = vmatpush1.msra.mxu0 0.0
      %2137 = vmatprep.subr.mxu0 0.0
      %2138 = vmatpush1.msra.mxu0 0.0
      %2139 = vmatprep.subr.mxu0 0.0
      %2140 = vmatpush1.msra.mxu0 0.0
      %2141 = vmatprep.subr.mxu0 0.0
      %2142 = vmatpush1.msra.mxu0 0.0
      %2143 = vmatprep.subr.mxu0 0.0
      %2144 = vmatpush1.msra.mxu0 0.0
      %2145 = vmatprep.subr.mxu0 0.0
      %2146 = vmatpush1.msra.mxu0 0.0
      %2147 = vmatprep.subr.mxu0 0.0
      %2148 = vmatpush1.msra.mxu0 0.0
      %2149 = vmatprep.subr.mxu0 0.0
      %2150 = vmatpush1.msra.mxu0 0.0
      %2151 = vmatprep.subr.mxu0 0.0
      %2152 = vmatpush1.msra.mxu0 0.0
      %2153 = vmatprep.subr.mxu0 0.0
      %2154 = vmatpush1.msra.mxu0 0.0
      %2155 = vmatprep.subr.mxu0 0.0
      %2156 = vmatpush1.msra.mxu0 0.0
      %2157 = vmatprep.subr.mxu0 0.0
      %2158 = vmatpush1.msra.mxu0 0.0
      %2159 = vmatprep.subr.mxu0 0.0
      %2160 = vmatpush1.msra.mxu0 0.0
      %2161 = vmatprep.subr.mxu0 0.0
      %2162 = vmatpush1.msra.mxu0 0.0
      %2163 = vmatprep.subr.mxu0 0.0
      %2164 = vmatpush1.msra.mxu0 0.0
      %2165 = vmatprep.subr.mxu0 0.0
      %2166 = vmatpush1.msra.mxu0 0.0
      %2167 = vmatprep.subr.mxu0 0.0
      %2168 = vmatpush1.msra.mxu0 0.0
      %2169 = vmatprep.subr.mxu0 0.0
      %2170 = vmatpush1.msra.mxu0 0.0
      %2171 = vmatprep.subr.mxu0 0.0
      %2172 = vmatpush1.msra.mxu0 0.0
      %2173 = vmatprep.subr.mxu0 0.0
      %2174 = vmatpush1.msra.mxu0 0.0
      %2175 = vmatprep.subr.mxu0 0.0
      %2176 = vmatpush1.msra.mxu0 0.0
      %2177 = vmatprep.subr.mxu0 0.0
      %2178 = vmatpush1.msra.mxu0 0.0
      %2179 = vmatprep.subr.mxu0 0.0
      %2180 = vmatpush1.msra.mxu0 0.0
      %2181 = vmatprep.mubr.f32.mxu0 0.0
      %2182 = vmatmul.mubr.f32.gmra.mrb[0].mxu0 %v2094
      %v2183 = vpop.f32.mrb[0].mxu0
      %v2184 = vadd.f32 0.0, %v2183
      %v2185 = vpop.f32.mrb[0].mxu0
      %2186 = vmatprep.mubr.f32.mxu0 0.0
      %2187 = vmatmul.mubr.f32.gmra.mrb[0].mxu0 %v2097
      %v2188 = vpop.f32.mrb[0].mxu0
      %v2189 = vadd.f32 0.0, %v2188
      %v2190 = vpop.f32.mrb[0].mxu0
      %2191 = vmatprep.mubr.f32.mxu0 0.0
      %2192 = vmatmul.mubr.f32.gmra.mrb[0].mxu0 %v2100
      %v2193 = vpop.f32.mrb[0].mxu0
      %v2194 = vadd.f32 0.0, %v2193
      %v2195 = vpop.f32.mrb[0].mxu0
      %2196 = vmatprep.mubr.f32.mxu0 0.0
      %2197 = vmatmul.mubr.f32.gmra.mrb[0].mxu0 %v2103
      %v2198 = vpop.f32.mrb[0].mxu0
      %v2199 = vadd.f32 0.0, %v2198
      %v2200 = vpop.f32.mrb[0].mxu0
      %2201 = vmatprep.mubr.f32.mxu0 0.0
      %2202 = vmatmul.mubr.f32.gmra.mrb[0].mxu0 %v2106
      %v2203 = vpop.f32.mrb[0].mxu0
      %v2204 = vadd.f32 0.0, %v2203
      %v2205 = vpop.f32.mrb[0].mxu0
      %2206 = vmatprep.mubr.f32.mxu0 0.0
      %2207 = vmatmul.mubr.f32.gmra.mrb[0].mxu0 %v2109
      %v2208 = vpop.f32.mrb[0].mxu0
      %v2209 = vadd.f32 0.0, %v2208
      %v2210 = vpop.f32.mrb[0].mxu0
      %2211 = vmatprep.mubr.f32.mxu0 0.0
      %2212 = vmatmul.mubr.f32.gmra.mrb[0].mxu0 %v2112
      %v2213 = vpop.f32.mrb[0].mxu0
      %v2214 = vadd.f32 0.0, %v2213
      %v2215 = vpop.f32.mrb[0].mxu0
      %2216 = vmatprep.mubr.f32.mxu0 0.0
      %2217 = vmatmul.mubr.f32.gmra.mrb[0].mxu0 %v2115
      %v2218 = vpop.f32.mrb[0].mxu0
      %v2219 = vadd.f32 0.0, %v2218
      %v2220 = vpop.f32.mrb[0].mxu0
      %2221 = vdwg.mxu0
      %v2222 = vadd.f32 %v2072, %v2184
      %v2223 = vadd.f32 %v2073, %v2189
      %v2224 = vadd.f32 %v2074, %v2194
      %v2225 = vadd.f32 %v2075, %v2199
      %v2226 = vadd.f32 %v2076, %v2204
      %v2227 = vadd.f32 %v2077, %v2209
      %v2228 = vadd.f32 %v2078, %v2214
      %v2229 = vadd.f32 %v2079, %v2219
      %s2230 = scalar_lea.vmem %s1, 208
      %v2231 = vld [vmem:[%s2230] sm:$0xff]
      %v2232 = vld [vmem:[%s2230 + $0x8] sm:$0xff]
      %2233 = vmatprep.subr.mxu0 0.0
      %2234 = vmatpush1.msra.mxu0 %v2231
      %2235 = vmatprep.subr.mxu0 0.0
      %2236 = vmatpush1.msra.mxu0 %v2232
      %2237 = vmatprep.subr.mxu0 0.0
      %2238 = vmatpush1.msra.mxu0 0.0
      %2239 = vmatprep.subr.mxu0 0.0
      %2240 = vmatpush1.msra.mxu0 0.0
      %2241 = vmatprep.subr.mxu0 0.0
      %2242 = vmatpush1.msra.mxu0 0.0
      %2243 = vmatprep.subr.mxu0 0.0
      %2244 = vmatpush1.msra.mxu0 0.0
      %2245 = vmatprep.subr.mxu0 0.0
      %2246 = vmatpush1.msra.mxu0 0.0
      %2247 = vmatprep.subr.mxu0 0.0
      %2248 = vmatpush1.msra.mxu0 0.0
      %2249 = vmatprep.subr.mxu0 0.0
      %2250 = vmatpush1.msra.mxu0 0.0
      %2251 = vmatprep.subr.mxu0 0.0
      %2252 = vmatpush1.msra.mxu0 0.0
      %2253 = vmatprep.subr.mxu0 0.0
      %2254 = vmatpush1.msra.mxu0 0.0
      %2255 = vmatprep.subr.mxu0 0.0
      %2256 = vmatpush1.msra.mxu0 0.0
      %2257 = vmatprep.subr.mxu0 0.0
      %2258 = vmatpush1.msra.mxu0 0.0
      %2259 = vmatprep.subr.mxu0 0.0
      %2260 = vmatpush1.msra.mxu0 0.0
      %2261 = vmatprep.subr.mxu0 0.0
      %2262 = vmatpush1.msra.mxu0 0.0
      %2263 = vmatprep.subr.mxu0 0.0
      %2264 = vmatpush1.msra.mxu0 0.0
      %2265 = vmatprep.subr.mxu0 0.0
      %2266 = vmatpush1.msra.mxu0 0.0
      %2267 = vmatprep.subr.mxu0 0.0
      %2268 = vmatpush1.msra.mxu0 0.0
      %2269 = vmatprep.subr.mxu0 0.0
      %2270 = vmatpush1.msra.mxu0 0.0
      %2271 = vmatprep.subr.mxu0 0.0
      %2272 = vmatpush1.msra.mxu0 0.0
      %2273 = vmatprep.subr.mxu0 0.0
      %2274 = vmatpush1.msra.mxu0 0.0
      %2275 = vmatprep.subr.mxu0 0.0
      %2276 = vmatpush1.msra.mxu0 0.0
      %2277 = vmatprep.subr.mxu0 0.0
      %2278 = vmatpush1.msra.mxu0 0.0
      %2279 = vmatprep.subr.mxu0 0.0
      %2280 = vmatpush1.msra.mxu0 0.0
      %2281 = vmatprep.subr.mxu0 0.0
      %2282 = vmatpush1.msra.mxu0 0.0
      %2283 = vmatprep.subr.mxu0 0.0
      %2284 = vmatpush1.msra.mxu0 0.0
      %2285 = vmatprep.subr.mxu0 0.0
      %2286 = vmatpush1.msra.mxu0 0.0
      %2287 = vmatprep.subr.mxu0 0.0
      %2288 = vmatpush1.msra.mxu0 0.0
      %2289 = vmatprep.subr.mxu0 0.0
      %2290 = vmatpush1.msra.mxu0 0.0
      %2291 = vmatprep.subr.mxu0 0.0
      %2292 = vmatpush1.msra.mxu0 0.0
      %2293 = vmatprep.subr.mxu0 0.0
      %2294 = vmatpush1.msra.mxu0 0.0
      %2295 = vmatprep.subr.mxu0 0.0
      %2296 = vmatpush1.msra.mxu0 0.0
      %2297 = vmatprep.mubr.f32.mxu0 0.0
      %2298 = vmatmul.mubr.f32.gmra.mrb[0].mxu0 %v1105
      %v2299 = vpop.f32.mrb[0].mxu0
      %v2300 = vadd.f32 0.0, %v2299
      %v2301 = vpop.f32.mrb[0].mxu0
      %2302 = vmatprep.mubr.f32.mxu0 0.0
      %2303 = vmatmul.mubr.f32.gmra.mrb[0].mxu0 %v1108
      %v2304 = vpop.f32.mrb[0].mxu0
      %v2305 = vadd.f32 0.0, %v2304
      %v2306 = vpop.f32.mrb[0].mxu0
      %2307 = vmatprep.mubr.f32.mxu0 0.0
      %2308 = vmatmul.mubr.f32.gmra.mrb[0].mxu0 %v1111
      %v2309 = vpop.f32.mrb[0].mxu0
      %v2310 = vadd.f32 0.0, %v2309
      %v2311 = vpop.f32.mrb[0].mxu0
      %2312 = vmatprep.mubr.f32.mxu0 0.0
      %2313 = vmatmul.mubr.f32.gmra.mrb[0].mxu0 %v1114
      %v2314 = vpop.f32.mrb[0].mxu0
      %v2315 = vadd.f32 0.0, %v2314
      %v2316 = vpop.f32.mrb[0].mxu0
      %2317 = vmatprep.mubr.f32.mxu0 0.0
      %2318 = vmatmul.mubr.f32.gmra.mrb[0].mxu0 %v1117
      %v2319 = vpop.f32.mrb[0].mxu0
      %v2320 = vadd.f32 0.0, %v2319
      %v2321 = vpop.f32.mrb[0].mxu0
      %2322 = vmatprep.mubr.f32.mxu0 0.0
      %2323 = vmatmul.mubr.f32.gmra.mrb[0].mxu0 %v1120
      %v2324 = vpop.f32.mrb[0].mxu0
      %v2325 = vadd.f32 0.0, %v2324
      %v2326 = vpop.f32.mrb[0].mxu0
      %2327 = vmatprep.mubr.f32.mxu0 0.0
      %2328 = vmatmul.mubr.f32.gmra.mrb[0].mxu0 %v1123
      %v2329 = vpop.f32.mrb[0].mxu0
      %v2330 = vadd.f32 0.0, %v2329
      %v2331 = vpop.f32.mrb[0].mxu0
      %2332 = vmatprep.mubr.f32.mxu0 0.0
      %2333 = vmatmul.mubr.f32.gmra.mrb[0].mxu0 %v325
      %v2334 = vpop.f32.mrb[0].mxu0
      %v2335 = vadd.f32 0.0, %v2334
      %v2336 = vpop.f32.mrb[0].mxu0
      %2337 = vdwg.mxu0
      %v2338 = vadd.f32 %v2222, %v2300
      %v2339 = vadd.f32 %v2223, %v2305
      %v2340 = vadd.f32 %v2224, %v2310
      %v2341 = vadd.f32 %v2225, %v2315
      %v2342 = vadd.f32 %v2226, %v2320
      %v2343 = vadd.f32 %v2227, %v2325
      %v2344 = vadd.f32 %v2228, %v2330
      %v2345 = vadd.f32 %v2229, %v2335
      %s2346 = scalar_lea.vmem %s1, 224
      %v2347 = vld [vmem:[%s2346] sm:$0xff]
      %v2348 = vld [vmem:[%s2346 + $0x8] sm:$0xff]
      %2349 = vmatprep.subr.mxu0 0.0
      %2350 = vmatpush1.msra.mxu0 %v2347
      %2351 = vmatprep.subr.mxu0 0.0
      %2352 = vmatpush1.msra.mxu0 %v2348
      %2353 = vmatprep.subr.mxu0 0.0
      %2354 = vmatpush1.msra.mxu0 0.0
      %2355 = vmatprep.subr.mxu0 0.0
      %2356 = vmatpush1.msra.mxu0 0.0
      %2357 = vmatprep.subr.mxu0 0.0
      %2358 = vmatpush1.msra.mxu0 0.0
      %2359 = vmatprep.subr.mxu0 0.0
      %2360 = vmatpush1.msra.mxu0 0.0
      %2361 = vmatprep.subr.mxu0 0.0
      %2362 = vmatpush1.msra.mxu0 0.0
      %2363 = vmatprep.subr.mxu0 0.0
      %2364 = vmatpush1.msra.mxu0 0.0
      %2365 = vmatprep.subr.mxu0 0.0
      %2366 = vmatpush1.msra.mxu0 0.0
      %2367 = vmatprep.subr.mxu0 0.0
      %2368 = vmatpush1.msra.mxu0 0.0
      %2369 = vmatprep.subr.mxu0 0.0
      %2370 = vmatpush1.msra.mxu0 0.0
      %2371 = vmatprep.subr.mxu0 0.0
      %2372 = vmatpush1.msra.mxu0 0.0
      %2373 = vmatprep.subr.mxu0 0.0
      %2374 = vmatpush1.msra.mxu0 0.0
      %2375 = vmatprep.subr.mxu0 0.0
      %2376 = vmatpush1.msra.mxu0 0.0
      %2377 = vmatprep.subr.mxu0 0.0
      %2378 = vmatpush1.msra.mxu0 0.0
      %2379 = vmatprep.subr.mxu0 0.0
      %2380 = vmatpush1.msra.mxu0 0.0
      %2381 = vmatprep.subr.mxu0 0.0
      %2382 = vmatpush1.msra.mxu0 0.0
      %2383 = vmatprep.subr.mxu0 0.0
      %2384 = vmatpush1.msra.mxu0 0.0
      %2385 = vmatprep.subr.mxu0 0.0
      %2386 = vmatpush1.msra.mxu0 0.0
      %2387 = vmatprep.subr.mxu0 0.0
      %2388 = vmatpush1.msra.mxu0 0.0
      %2389 = vmatprep.subr.mxu0 0.0
      %2390 = vmatpush1.msra.mxu0 0.0
      %2391 = vmatprep.subr.mxu0 0.0
      %2392 = vmatpush1.msra.mxu0 0.0
      %2393 = vmatprep.subr.mxu0 0.0
      %2394 = vmatpush1.msra.mxu0 0.0
      %2395 = vmatprep.subr.mxu0 0.0
      %2396 = vmatpush1.msra.mxu0 0.0
      %2397 = vmatprep.subr.mxu0 0.0
      %2398 = vmatpush1.msra.mxu0 0.0
      %2399 = vmatprep.subr.mxu0 0.0
      %2400 = vmatpush1.msra.mxu0 0.0
      %2401 = vmatprep.subr.mxu0 0.0
      %2402 = vmatpush1.msra.mxu0 0.0
      %2403 = vmatprep.subr.mxu0 0.0
      %2404 = vmatpush1.msra.mxu0 0.0
      %2405 = vmatprep.subr.mxu0 0.0
      %2406 = vmatpush1.msra.mxu0 0.0
      %2407 = vmatprep.subr.mxu0 0.0
      %2408 = vmatpush1.msra.mxu0 0.0
      %2409 = vmatprep.subr.mxu0 0.0
      %2410 = vmatpush1.msra.mxu0 0.0
      %2411 = vmatprep.subr.mxu0 0.0
      %2412 = vmatpush1.msra.mxu0 0.0
      %2413 = vmatprep.mubr.f32.mxu0 0.0
      %2414 = vmatmul.mubr.f32.gmra.mrb[0].mxu0 %v1243
      %v2415 = vpop.f32.mrb[0].mxu0
      %v2416 = vadd.f32 0.0, %v2415
      %v2417 = vpop.f32.mrb[0].mxu0
      %2418 = vmatprep.mubr.f32.mxu0 0.0
      %2419 = vmatmul.mubr.f32.gmra.mrb[0].mxu0 %v1245
      %v2420 = vpop.f32.mrb[0].mxu0
      %v2421 = vadd.f32 0.0, %v2420
      %v2422 = vpop.f32.mrb[0].mxu0
      %2423 = vmatprep.mubr.f32.mxu0 0.0
      %2424 = vmatmul.mubr.f32.gmra.mrb[0].mxu0 %v1247
      %v2425 = vpop.f32.mrb[0].mxu0
      %v2426 = vadd.f32 0.0, %v2425
      %v2427 = vpop.f32.mrb[0].mxu0
      %2428 = vmatprep.mubr.f32.mxu0 0.0
      %2429 = vmatmul.mubr.f32.gmra.mrb[0].mxu0 %v1249
      %v2430 = vpop.f32.mrb[0].mxu0
      %v2431 = vadd.f32 0.0, %v2430
      %v2432 = vpop.f32.mrb[0].mxu0
      %2433 = vmatprep.mubr.f32.mxu0 0.0
      %2434 = vmatmul.mubr.f32.gmra.mrb[0].mxu0 %v1251
      %v2435 = vpop.f32.mrb[0].mxu0
      %v2436 = vadd.f32 0.0, %v2435
      %v2437 = vpop.f32.mrb[0].mxu0
      %2438 = vmatprep.mubr.f32.mxu0 0.0
      %2439 = vmatmul.mubr.f32.gmra.mrb[0].mxu0 %v1253
      %v2440 = vpop.f32.mrb[0].mxu0
      %v2441 = vadd.f32 0.0, %v2440
      %v2442 = vpop.f32.mrb[0].mxu0
      %2443 = vmatprep.mubr.f32.mxu0 0.0
      %2444 = vmatmul.mubr.f32.gmra.mrb[0].mxu0 %v1255
      %v2445 = vpop.f32.mrb[0].mxu0
      %v2446 = vadd.f32 0.0, %v2445
      %v2447 = vpop.f32.mrb[0].mxu0
      %2448 = vmatprep.mubr.f32.mxu0 0.0
      %2449 = vmatmul.mubr.f32.gmra.mrb[0].mxu0 %v325
      %v2450 = vpop.f32.mrb[0].mxu0
      %v2451 = vadd.f32 0.0, %v2450
      %v2452 = vpop.f32.mrb[0].mxu0
      %2453 = vdwg.mxu0
      %v2454 = vadd.f32 %v2338, %v2416
      %v2455 = vadd.f32 %v2339, %v2421
      %v2456 = vadd.f32 %v2340, %v2426
      %v2457 = vadd.f32 %v2341, %v2431
      %v2458 = vadd.f32 %v2342, %v2436
      %v2459 = vadd.f32 %v2343, %v2441
      %v2460 = vadd.f32 %v2344, %v2446
      %v2461 = vadd.f32 %v2345, %v2451
      %v2462 = vmul.f32 %v1374, %v740
      %v2463 = vmul.f32 %v1376, %v744
      %v2464 = vmul.f32 %v1378, %v748
      %v2465 = vmul.f32 %v1380, %v752
      %v2466 = vmul.f32 %v1382, %v756
      %v2467 = vmul.f32 %v1384, %v760
      %v2468 = vmul.f32 %v1393, %v764
      %v2469 = vmul.f32 %v768, 0.0
      %s2470 = scalar_lea.vmem %s1, 240
      %v2471 = vld [vmem:[%s2470] sm:$0xff]
      %v2472 = vld [vmem:[%s2470 + $0x8] sm:$0xff]
      %v2474 = vsel %vm323, %v2462, 0
      %v2477 = vsel %vm323, %v2463, 0
      %v2480 = vsel %vm323, %v2464, 0
      %v2483 = vsel %vm323, %v2465, 0
      %v2486 = vsel %vm323, %v2466, 0
      %v2489 = vsel %vm323, %v2467, 0
      %v2492 = vsel %vm323, %v2468, 0
      %v2495 = vsel %vm323, %v2469, 0
      %2497 = vmatprep.subr.mxu0 0.0
      %2498 = vmatpush1.msra.mxu0 %v2471
      %2499 = vmatprep.subr.mxu0 0.0
      %2500 = vmatpush1.msra.mxu0 %v2472
      %2501 = vmatprep.subr.mxu0 0.0
      %2502 = vmatpush1.msra.mxu0 0.0
      %2503 = vmatprep.subr.mxu0 0.0
      %2504 = vmatpush1.msra.mxu0 0.0
      %2505 = vmatprep.subr.mxu0 0.0
      %2506 = vmatpush1.msra.mxu0 0.0
      %2507 = vmatprep.subr.mxu0 0.0
      %2508 = vmatpush1.msra.mxu0 0.0
      %2509 = vmatprep.subr.mxu0 0.0
      %2510 = vmatpush1.msra.mxu0 0.0
      %2511 = vmatprep.subr.mxu0 0.0
      %2512 = vmatpush1.msra.mxu0 0.0
      %2513 = vmatprep.subr.mxu0 0.0
      %2514 = vmatpush1.msra.mxu0 0.0
      %2515 = vmatprep.subr.mxu0 0.0
      %2516 = vmatpush1.msra.mxu0 0.0
      %2517 = vmatprep.subr.mxu0 0.0
      %2518 = vmatpush1.msra.mxu0 0.0
      %2519 = vmatprep.subr.mxu0 0.0
      %2520 = vmatpush1.msra.mxu0 0.0
      %2521 = vmatprep.subr.mxu0 0.0
      %2522 = vmatpush1.msra.mxu0 0.0
      %2523 = vmatprep.subr.mxu0 0.0
      %2524 = vmatpush1.msra.mxu0 0.0
      %2525 = vmatprep.subr.mxu0 0.0
      %2526 = vmatpush1.msra.mxu0 0.0
      %2527 = vmatprep.subr.mxu0 0.0
      %2528 = vmatpush1.msra.mxu0 0.0
      %2529 = vmatprep.subr.mxu0 0.0
      %2530 = vmatpush1.msra.mxu0 0.0
      %2531 = vmatprep.subr.mxu0 0.0
      %2532 = vmatpush1.msra.mxu0 0.0
      %2533 = vmatprep.subr.mxu0 0.0
      %2534 = vmatpush1.msra.mxu0 0.0
      %2535 = vmatprep.subr.mxu0 0.0
      %2536 = vmatpush1.msra.mxu0 0.0
      %2537 = vmatprep.subr.mxu0 0.0
      %2538 = vmatpush1.msra.mxu0 0.0
      %2539 = vmatprep.subr.mxu0 0.0
      %2540 = vmatpush1.msra.mxu0 0.0
      %2541 = vmatprep.subr.mxu0 0.0
      %2542 = vmatpush1.msra.mxu0 0.0
      %2543 = vmatprep.subr.mxu0 0.0
      %2544 = vmatpush1.msra.mxu0 0.0
      %2545 = vmatprep.subr.mxu0 0.0
      %2546 = vmatpush1.msra.mxu0 0.0
      %2547 = vmatprep.subr.mxu0 0.0
      %2548 = vmatpush1.msra.mxu0 0.0
      %2549 = vmatprep.subr.mxu0 0.0
      %2550 = vmatpush1.msra.mxu0 0.0
      %2551 = vmatprep.subr.mxu0 0.0
      %2552 = vmatpush1.msra.mxu0 0.0
      %2553 = vmatprep.subr.mxu0 0.0
      %2554 = vmatpush1.msra.mxu0 0.0
      %2555 = vmatprep.subr.mxu0 0.0
      %2556 = vmatpush1.msra.mxu0 0.0
      %2557 = vmatprep.subr.mxu0 0.0
      %2558 = vmatpush1.msra.mxu0 0.0
      %2559 = vmatprep.subr.mxu0 0.0
      %2560 = vmatpush1.msra.mxu0 0.0
      %2561 = vmatprep.mubr.f32.mxu0 0.0
      %2562 = vmatmul.mubr.f32.gmra.mrb[0].mxu0 %v2474
      %v2563 = vpop.f32.mrb[0].mxu0
      %v2564 = vadd.f32 0.0, %v2563
      %v2565 = vpop.f32.mrb[0].mxu0
      %2566 = vmatprep.mubr.f32.mxu0 0.0
      %2567 = vmatmul.mubr.f32.gmra.mrb[0].mxu0 %v2477
      %v2568 = vpop.f32.mrb[0].mxu0
      %v2569 = vadd.f32 0.0, %v2568
      %v2570 = vpop.f32.mrb[0].mxu0
      %2571 = vmatprep.mubr.f32.mxu0 0.0
      %2572 = vmatmul.mubr.f32.gmra.mrb[0].mxu0 %v2480
      %v2573 = vpop.f32.mrb[0].mxu0
      %v2574 = vadd.f32 0.0, %v2573
      %v2575 = vpop.f32.mrb[0].mxu0
      %2576 = vmatprep.mubr.f32.mxu0 0.0
      %2577 = vmatmul.mubr.f32.gmra.mrb[0].mxu0 %v2483
      %v2578 = vpop.f32.mrb[0].mxu0
      %v2579 = vadd.f32 0.0, %v2578
      %v2580 = vpop.f32.mrb[0].mxu0
      %2581 = vmatprep.mubr.f32.mxu0 0.0
      %2582 = vmatmul.mubr.f32.gmra.mrb[0].mxu0 %v2486
      %v2583 = vpop.f32.mrb[0].mxu0
      %v2584 = vadd.f32 0.0, %v2583
      %v2585 = vpop.f32.mrb[0].mxu0
      %2586 = vmatprep.mubr.f32.mxu0 0.0
      %2587 = vmatmul.mubr.f32.gmra.mrb[0].mxu0 %v2489
      %v2588 = vpop.f32.mrb[0].mxu0
      %v2589 = vadd.f32 0.0, %v2588
      %v2590 = vpop.f32.mrb[0].mxu0
      %2591 = vmatprep.mubr.f32.mxu0 0.0
      %2592 = vmatmul.mubr.f32.gmra.mrb[0].mxu0 %v2492
      %v2593 = vpop.f32.mrb[0].mxu0
      %v2594 = vadd.f32 0.0, %v2593
      %v2595 = vpop.f32.mrb[0].mxu0
      %2596 = vmatprep.mubr.f32.mxu0 0.0
      %2597 = vmatmul.mubr.f32.gmra.mrb[0].mxu0 %v2495
      %v2598 = vpop.f32.mrb[0].mxu0
      %v2599 = vadd.f32 0.0, %v2598
      %v2600 = vpop.f32.mrb[0].mxu0
      %2601 = vdwg.mxu0
      %v2602 = vadd.f32 %v2454, %v2564
      %v2603 = vadd.f32 %v2455, %v2569
      %v2604 = vadd.f32 %v2456, %v2574
      %v2605 = vadd.f32 %v2457, %v2579
      %v2606 = vadd.f32 %v2458, %v2584
      %v2607 = vadd.f32 %v2459, %v2589
      %v2608 = vadd.f32 %v2460, %v2594
      %v2609 = vadd.f32 %v2461, %v2599
      %v2610 = vld [vmem:[%s2] sm:$0x1]
      %v2612 = vlaneseq
      %v2613 = vshrl.u32 %v2612, 7
      %v2614 = vsub.s32 0, %v2613
      %v2615 = vrot.slane %v2610, %v2614
      %v2617 = vadd.f32 %v2602, %v2615
      %v2618 = vadd.f32 %v2603, %v2615
      %v2619 = vadd.f32 %v2604, %v2615
      %v2620 = vadd.f32 %v2605, %v2615
      %v2621 = vadd.f32 %v2606, %v2615
      %v2622 = vadd.f32 %v2607, %v2615
      %v2623 = vadd.f32 %v2608, %v2615
      %v2624 = vadd.f32 %v2609, %v2615
      %vm2625 = vcmp.gt.f32.partialorder %v2617, 0.0
      %vm2626 = vcmp.gt.f32.partialorder %v2618, 0.0
      %vm2627 = vcmp.gt.f32.partialorder %v2619, 0.0
      %vm2628 = vcmp.gt.f32.partialorder %v2620, 0.0
      %vm2629 = vcmp.gt.f32.partialorder %v2621, 0.0
      %vm2630 = vcmp.gt.f32.partialorder %v2622, 0.0
      %vm2631 = vcmp.gt.f32.partialorder %v2623, 0.0
      %vm2632 = vcmp.gt.f32.partialorder %v2624, 0.0
      %v2633 = vmul.f32 %v2617, 0.01
      %v2634 = vmul.f32 %v2618, 0.01
      %v2635 = vmul.f32 %v2619, 0.01
      %v2636 = vmul.f32 %v2620, 0.01
      %v2637 = vmul.f32 %v2621, 0.01
      %v2638 = vmul.f32 %v2622, 0.01
      %v2639 = vmul.f32 %v2623, 0.01
      %v2640 = vmul.f32 %v2624, 0.01
      %v2641 = vsel %vm2625, %v2617, %v2633
      %v2642 = vsel %vm2626, %v2618, %v2634
      %v2643 = vsel %vm2627, %v2619, %v2635
      %v2644 = vsel %vm2628, %v2620, %v2636
      %v2645 = vsel %vm2629, %v2621, %v2637
      %v2646 = vsel %vm2630, %v2622, %v2638
      %v2647 = vsel %vm2631, %v2623, %v2639
      %v2648 = vsel %vm2632, %v2624, %v2640
      %vm2649 = vcmask 261120
      %2650 = vst.msk [vmem:[%s197] sm:$0xff] %vm2649, %v2641
      %2651 = vst.msk [vmem:[%s197 + $0x8] sm:$0xff] %vm2649, %v2642
      %2652 = vst.msk [vmem:[%s197 + $0x10] sm:$0xff] %vm2649, %v2643
      %2653 = vst.msk [vmem:[%s197 + $0x18] sm:$0xff] %vm2649, %v2644
      %2654 = vst.msk [vmem:[%s197 + $0x20] sm:$0xff] %vm2649, %v2645
      %2655 = vst.msk [vmem:[%s197 + $0x28] sm:$0xff] %vm2649, %v2646
      %2656 = vst.msk [vmem:[%s197 + $0x30] sm:$0xff] %vm2649, %v2647
      %2657 = vst.msk [vmem:[%s197 + $0x38] sm:$0xff] %vm2649, %v2648
      %p2658 = scmp.lt.s32.totalorder %s15, 1
      %s2659 = scalar_select %p2658, %s15, 1
      %s2660 = smul.addr %s2659, 8
      %s2661 = smul.addr %s2660, 8
      %s2662 = scalar_lea.vmem %s4, %s2661
      // Predicated region
      $region37: #{discriminator_forward.4} parent=35 // pred_check
        %p2663 = pneg %p122
      $region38: #{discriminator_forward.4} parent=35 // pred_check_branch
        %2665 = sbr.rel (%p2663) target = $region40
      $region39: #{discriminator_forward.4} parent=35 // pred_region
        _
      $region40: #{discriminator_forward.4} parent=35 // pred_fallthru
        _
    $region36: #{discriminator_forward.4} parent=5 // pred_fallthru
      _
    %p2666 = scmp.le.s32.totalorder 2, %s10
    // Predicated region
    $region41: #{discriminator_forward.4} parent=5 // pred_check
      %p2667 = pneg %p2666
    $region42: #{discriminator_forward.4} parent=5 // pred_check_branch
      %2669 = sbr.rel (%p2667) target = $region44
    $region43: #{discriminator_forward.4} parent=5 // pred_region
      %s2670 = ssub.s32 %s10, 2
      // Predicated region
      $region45: #{discriminator_forward.4} parent=43 // pred_check
        %p2671 = pneg %p128
      $region46: #{discriminator_forward.4} parent=43 // pred_check_branch
        %2673 = sbr.rel (%p2671) target = $region48
      $region47: #{discriminator_forward.4} parent=43 // pred_region
        %p2674 = scmp.lt.s32.totalorder %s16, 1
        %s2675 = scalar_select %p2674, %s16, 1
        %s2676 = smul.addr %s2675, 8
        %s2677 = smul.addr %s2676, 8
        %s2678 = scalar_lea.vmem %s4, %s2677
      $region48: #{discriminator_forward.4} parent=43 // pred_fallthru
        _
    $region44: #{discriminator_forward.4} parent=5 // pred_fallthru
      _
  $region6: #{discriminator_forward.4} parent=0 // loop_footer
    %s14 = sadd.s32 1, %s10
  $region7: #{discriminator_forward.4} parent=0 // loop_footer_branch
    %9 = sbr.rel target = $region3
  $region8: #{discriminator_forward.4} parent=0 // loop_exit
    _

// kernel: discriminator_forward.3
$region0: #{discriminator_forward.3}
  #allocation0 [shape = 'u32[]', space=smem, size = 0x4, offset = 0x4, fixed_abs, tag = 'smem constant byte address 0x4 - core index']
  #allocation1 [shape = 'u32[144,128]{1,0:T(1,128)}', space=vmem, size = 0x12000, scoped, tag = 'internal scratch']
  %s0 = inlined_call_operand.vmem [shape: f32[2,4,256,3], index: 0, kind: input, shape index: {}]
  %s1 = inlined_call_operand.vmem [shape: f32[16,3,16], index: 1, kind: input, shape index: {}]
  %s2 = inlined_call_operand.vmem [shape: f32[1,16], index: 2, kind: input, shape index: {}]
  %s3 = inlined_call_operand.vmem [shape: f32[256,2], index: 3, kind: input, shape index: {}]
  %s4 = inlined_call_operand.vmem [shape: f32[2,256,16], index: 4, kind: output, shape index: {}]
  %s5 = sld [smem:[#allocation0]]
  $region49: #{discriminator_forward.3} parent=0
    _
  %s7 = ssub.s32 1, %s5
  %s8 = scalar_select 0, %s7, %s5
  loop: start=0, step=1, limit=4
  $region2: #{discriminator_forward.3} parent=0 // loop_pre_header
    _
  $region3: #{discriminator_forward.3} parent=0 // loop_header
    %s10 = sphi 0, %s14
    %p11 = scmp.ge.s32.totalorder %s10, 4
    %s20 = sphi 0, %s22
    %s23 = sphi 0, %s20
    %s24 = sphi 0, %s23
    %s40 = sphi 0, %s24
    %s44 = sphi 0, %s44
    %s46 = sphi 0, %s44
    %s47 = sphi 0, %s46
    %s61 = sphi 0, %s47
    %s65 = sphi 0, %s65
    %s67 = sphi 0, %s65
    %s68 = sphi 0, %s67
    %s82 = sphi 0, %s68
    %s86 = sphi 0, %s86
    %s88 = sphi 0, %s86
    %s89 = sphi 0, %s88
    %s103 = sphi 0, %s89
    %s109 = sphi 0, %s111
    %s112 = sphi 0, %s109
    %s113 = sphi 0, %s112
    %s129 = sphi 0, %s113
  $region4: #{discriminator_forward.3} parent=0 // loop_header_branch
    %13 = sbr.rel (%p11) target = $region8
  $region5: #{discriminator_forward.3} parent=0 // loop_body
    %s15 = ssub.s32 %s10, 1
    %s16 = ssub.s32 %s10, 2
    %s17 = sadd.s32 %s10, 1
    %s18 = ssub.s32 %s10, %s17
    %p19 = scmp.eq.s32.totalorder %s18, 0
    %s21 = sadd.s32 %s20, 1
    %s22 = scalar_select %p19, %s20, %s21
    %p25 = pneg %p19
    %p26 = scmp.eq.s32.totalorder %s10, 1
    %p27 = por %p25, %p26
    %p28 = scmp.ne.s32.totalorder %s20, %s23
    %p29 = scmp.eq.s32.totalorder %s10, 0
    %p30 = por %p28, %p29
    %p31 = scmp.ne.s32.totalorder %s20, %s23
    %p32 = scmp.eq.s32.totalorder %s15, 1
    %p33 = por %p31, %p32
    %p34 = scmp.ne.s32.totalorder %s23, %s24
    %p35 = scmp.eq.s32.totalorder %s15, 0
    %p36 = por %p34, %p35
    %p37 = scmp.ne.s32.totalorder %s23, %s24
    %p38 = scmp.eq.s32.totalorder %s16, 1
    %p39 = por %p37, %p38
    %p41 = scmp.ne.s32.totalorder %s24, %s40
    %p42 = scmp.eq.s32.totalorder %s16, 0
    %p43 = por %p41, %p42
    %s45 = sadd.s32 %s44, 1
    %p48 = scmp.eq.s32.totalorder %s10, 1
    %p49 = scmp.ne.s32.totalorder %s44, %s46
    %p50 = scmp.eq.s32.totalorder %s10, 0
    %p51 = por %p49, %p50
    %p52 = scmp.ne.s32.totalorder %s44, %s46
    %p53 = scmp.eq.s32.totalorder %s15, 1
    %p54 = por %p52, %p53
    %p55 = scmp.ne.s32.totalorder %s46, %s47
    %p56 = scmp.eq.s32.totalorder %s15, 0
    %p57 = por %p55, %p56
    %p58 = scmp.ne.s32.totalorder %s46, %s47
    %p59 = scmp.eq.s32.totalorder %s16, 1
    %p60 = por %p58, %p59
    %p62 = scmp.ne.s32.totalorder %s47, %s61
    %p63 = scmp.eq.s32.totalorder %s16, 0
    %p64 = por %p62, %p63
    %s66 = sadd.s32 %s65, 1
    %p69 = scmp.eq.s32.totalorder %s10, 1
    %p70 = scmp.ne.s32.totalorder %s65, %s67
    %p71 = scmp.eq.s32.totalorder %s10, 0
    %p72 = por %p70, %p71
    %p73 = scmp.ne.s32.totalorder %s65, %s67
    %p74 = scmp.eq.s32.totalorder %s15, 1
    %p75 = por %p73, %p74
    %p76 = scmp.ne.s32.totalorder %s67, %s68
    %p77 = scmp.eq.s32.totalorder %s15, 0
    %p78 = por %p76, %p77
    %p79 = scmp.ne.s32.totalorder %s67, %s68
    %p80 = scmp.eq.s32.totalorder %s16, 1
    %p81 = por %p79, %p80
    %p83 = scmp.ne.s32.totalorder %s68, %s82
    %p84 = scmp.eq.s32.totalorder %s16, 0
    %p85 = por %p83, %p84
    %s87 = sadd.s32 %s86, 1
    %p90 = scmp.eq.s32.totalorder %s10, 1
    %p91 = scmp.ne.s32.totalorder %s86, %s88
    %p92 = scmp.eq.s32.totalorder %s10, 0
    %p93 = por %p91, %p92
    %p94 = scmp.ne.s32.totalorder %s86, %s88
    %p95 = scmp.eq.s32.totalorder %s15, 1
    %p96 = por %p94, %p95
    %p97 = scmp.ne.s32.totalorder %s88, %s89
    %p98 = scmp.eq.s32.totalorder %s15, 0
    %p99 = por %p97, %p98
    %p100 = scmp.ne.s32.totalorder %s88, %s89
    %p101 = scmp.eq.s32.totalorder %s16, 1
    %p102 = por %p100, %p101
    %p104 = scmp.ne.s32.totalorder %s89, %s103
    %p105 = scmp.eq.s32.totalorder %s16, 0
    %p106 = por %p104, %p105
    %s107 = ssub.s32 %s10, %s17
    %p108 = scmp.eq.s32.totalorder %s107, 0
    %s110 = sadd.s32 %s109, 1
    %s111 = scalar_select %p108, %s109, %s110
    %p114 = pneg %p108
    %p115 = scmp.eq.s32.totalorder %s10, 1
    %p116 = por %p114, %p115
    %p117 = scmp.ne.s32.totalorder %s109, %s112
    %p118 = scmp.eq.s32.totalorder %s10, 0
    %p119 = por %p117, %p118
    %p120 = scmp.ne.s32.totalorder %s109, %s112
    %p121 = scmp.eq.s32.totalorder %s15, 1
    %p122 = por %p120, %p121
    %p123 = scmp.ne.s32.totalorder %s112, %s113
    %p124 = scmp.eq.s32.totalorder %s15, 0
    %p125 = por %p123, %p124
    %p126 = scmp.ne.s32.totalorder %s112, %s113
    %p127 = scmp.eq.s32.totalorder %s16, 1
    %p128 = por %p126, %p127
    %p130 = scmp.ne.s32.totalorder %s113, %s129
    %p131 = scmp.eq.s32.totalorder %s16, 0
    %p132 = por %p130, %p131
    %p133 = scmp.le.s32.totalorder 1, %s10
    %p134 = scmp.lt.s32.totalorder %s10, 3
    %p135 = pnand %p133, %p134
    %p136 = pneg %p135
    // Predicated region
    $region9: #{discriminator_forward.3} parent=5 // pred_check
      _
    $region10: #{discriminator_forward.3} parent=5 // pred_check_branch
      %138 = sbr.rel (%p135) target = $region12
    $region11: #{discriminator_forward.3} parent=5 // pred_region
      %s139 = ssub.s32 %s10, 1
      // Predicated region
      $region13: #{discriminator_forward.3} parent=11 // pred_check
        %p140 = pneg %p57
      $region14: #{discriminator_forward.3} parent=11 // pred_check_branch
        %142 = sbr.rel (%p140) target = $region16
      $region15: #{discriminator_forward.3} parent=11 // pred_region
        _
      $region16: #{discriminator_forward.3} parent=11 // pred_fallthru
        _
      // Predicated region
      $region17: #{discriminator_forward.3} parent=11 // pred_check
        %p143 = pneg %p78
      $region18: #{discriminator_forward.3} parent=11 // pred_check_branch
        %145 = sbr.rel (%p143) target = $region20
      $region19: #{discriminator_forward.3} parent=11 // pred_region
        _
      $region20: #{discriminator_forward.3} parent=11 // pred_fallthru
        _
      // Predicated region
      $region21: #{discriminator_forward.3} parent=11 // pred_check
        %p146 = pneg %p99
      $region22: #{discriminator_forward.3} parent=11 // pred_check_branch
        %148 = sbr.rel (%p146) target = $region24
      $region23: #{discriminator_forward.3} parent=11 // pred_region
        _
      $region24: #{discriminator_forward.3} parent=11 // pred_fallthru
        _
    $region12: #{discriminator_forward.3} parent=5 // pred_fallthru
      _
    %p149 = scmp.lt.s32.totalorder %s10, 2
    // Predicated region
    $region25: #{discriminator_forward.3} parent=5 // pred_check
      %p150 = pneg %p149
    $region26: #{discriminator_forward.3} parent=5 // pred_check_branch
      %152 = sbr.rel (%p150) target = $region28
    $region27: #{discriminator_forward.3} parent=5 // pred_region
      // Predicated region
      $region29: #{discriminator_forward.3} parent=27 // pred_check
        %p153 = pneg %p30
      $region30: #{discriminator_forward.3} parent=27 // pred_check_branch
        %155 = sbr.rel (%p153) target = $region32
      $region31: #{discriminator_forward.3} parent=27 // pred_region
        %p156 = scmp.lt.s32.totalorder %s10, 1
        %s157 = scalar_select %p156, %s10, 1
        %s158 = smul.addr %s157, 128
        %s159 = smul.addr %s158, 8
        %s160 = scalar_lea.vmem %s0, %s159
      $region32: #{discriminator_forward.3} parent=27 // pred_fallthru
        _
    $region28: #{discriminator_forward.3} parent=5 // pred_fallthru
      _
    %p161 = scmp.le.s32.totalorder 1, %s10
    %p162 = scmp.lt.s32.totalorder %s10, 3
    %p163 = pnand %p161, %p162
    %p164 = pneg %p163
    // Predicated region
    $region33: #{discriminator_forward.3} parent=5 // pred_check
      _
    $region34: #{discriminator_forward.3} parent=5 // pred_check_branch
      %166 = sbr.rel (%p163) target = $region36
    $region35: #{discriminator_forward.3} parent=5 // pred_region
      %s167 = ssub.s32 %s10, 1
      %p168 = scmp.lt.s32.totalorder %s15, 1
      %s169 = scalar_select %p168, %s15, 1
      %s170 = smul.addr %s169, 128
      %s171 = smul.addr %s170, 8
      %s172 = scalar_lea.vmem %s0, %s171
      %p173 = pneg %p36
      %p174 = pneg %p33
      %p175 = pneg %p57
      %p176 = pneg %p54
      %p177 = pneg %p78
      %p178 = pneg %p75
      %p179 = pneg %p99
      %p180 = pneg %p96
      %p181 = pneg %p125
      %p182 = pneg %p122
      %p183 = scmp.lt.s32.totalorder %s15, 1
      %s184 = scalar_select %p183, %s15, 1
      %s185 = smul.addr %s184, 32
      %s186 = smul.addr %s185, 8
      %s187 = scalar_lea.vmem %s4, %s186
      %p188 = scmp.lt.s32.totalorder %s15, 1
      %s189 = scalar_select %p188, %s15, 1
      %s190 = smul.addr %s189, 128
      %s191 = smul.addr %s190, 8
      %s192 = scalar_lea.vmem %s0, %s191
      %p193 = scmp.lt.s32.totalorder %s15, 1
      %s194 = scalar_select %p193, %s15, 1
      %s195 = smul.addr %s194, 32
      %s196 = smul.addr %s195, 8
      %s197 = scalar_lea.vmem %s4, %s196
      %v198 = vld [vmem:[%s192] sm:$0xff]
      %v199 = vld [vmem:[%s192 + $0x8] sm:$0xff]
      %v200 = vld [vmem:[%s192 + $0x10] sm:$0xff]
      %v201 = vld [vmem:[%s192 + $0x18] sm:$0xff]
      %v202 = vld [vmem:[%s192 + $0x20] sm:$0xff]
      %v203 = vld [vmem:[%s192 + $0x28] sm:$0xff]
      %v204 = vld [vmem:[%s192 + $0x30] sm:$0xff]
      %v205 = vld [vmem:[%s192 + $0x38] sm:$0xff]
      %v206 = vld [vmem:[%s192 + $0x40] sm:$0xff]
      %v207 = vld [vmem:[%s192 + $0x48] sm:$0xff]
      %v208 = vld [vmem:[%s192 + $0x50] sm:$0xff]
      %v209 = vld [vmem:[%s192 + $0x58] sm:$0xff]
      %v210 = vld [vmem:[%s192 + $0x60] sm:$0xff]
      %v211 = vld [vmem:[%s192 + $0x68] sm:$0xff]
      %v212 = vld [vmem:[%s192 + $0x70] sm:$0xff]
      %v213 = vld [vmem:[%s192 + $0x78] sm:$0xff]
      %v214 = vld [vmem:[%s192 + $0x80] sm:$0xff]
      %v215 = vld [vmem:[%s192 + $0x88] sm:$0xff]
      %v216 = vld [vmem:[%s192 + $0x90] sm:$0xff]
      %v217 = vld [vmem:[%s192 + $0x98] sm:$0xff]
      %v218 = vld [vmem:[%s192 + $0xa0] sm:$0xff]
      %v219 = vld [vmem:[%s192 + $0xa8] sm:$0xff]
      %v220 = vld [vmem:[%s192 + $0xb0] sm:$0xff]
      %v221 = vld [vmem:[%s192 + $0xb8] sm:$0xff]
      %v222 = vld [vmem:[%s192 + $0xc0] sm:$0xff]
      %v223 = vld [vmem:[%s192 + $0xc8] sm:$0xff]
      %v224 = vld [vmem:[%s192 + $0xd0] sm:$0xff]
      %v225 = vld [vmem:[%s192 + $0xd8] sm:$0xff]
      %v226 = vld [vmem:[%s192 + $0xe0] sm:$0xff]
      %v227 = vld [vmem:[%s192 + $0xe8] sm:$0xff]
      %v228 = vld [vmem:[%s192 + $0xf0] sm:$0xff]
      %v229 = vld [vmem:[%s192 + $0xf8] sm:$0xff]
      %s230 = scalar_lea.vmem %s192, 256
      %v231 = vld [vmem:[%s230] sm:$0xff]
      %v232 = vld [vmem:[%s230 + $0x8] sm:$0xff]
      %v233 = vld [vmem:[%s230 + $0x10] sm:$0xff]
      %v234 = vld [vmem:[%s230 + $0x18] sm:$0xff]
      %v235 = vld [vmem:[%s230 + $0x20] sm:$0xff]
      %v236 = vld [vmem:[%s230 + $0x28] sm:$0xff]
      %v237 = vld [vmem:[%s230 + $0x30] sm:$0xff]
      %v238 = vld [vmem:[%s230 + $0x38] sm:$0xff]
      %v239 = vld [vmem:[%s230 + $0x40] sm:$0xff]
      %v240 = vld [vmem:[%s230 + $0x48] sm:$0xff]
      %v241 = vld [vmem:[%s230 + $0x50] sm:$0xff]
      %v242 = vld [vmem:[%s230 + $0x58] sm:$0xff]
      %v243 = vld [vmem:[%s230 + $0x60] sm:$0xff]
      %v244 = vld [vmem:[%s230 + $0x68] sm:$0xff]
      %v245 = vld [vmem:[%s230 + $0x70] sm:$0xff]
      %v246 = vld [vmem:[%s230 + $0x78] sm:$0xff]
      %v247 = vld [vmem:[%s230 + $0x80] sm:$0xff]
      %v248 = vld [vmem:[%s230 + $0x88] sm:$0xff]
      %v249 = vld [vmem:[%s230 + $0x90] sm:$0xff]
      %v250 = vld [vmem:[%s230 + $0x98] sm:$0xff]
      %v251 = vld [vmem:[%s230 + $0xa0] sm:$0xff]
      %v252 = vld [vmem:[%s230 + $0xa8] sm:$0xff]
      %v253 = vld [vmem:[%s230 + $0xb0] sm:$0xff]
      %v254 = vld [vmem:[%s230 + $0xb8] sm:$0xff]
      %v255 = vld [vmem:[%s230 + $0xc0] sm:$0xff]
      %v256 = vld [vmem:[%s230 + $0xc8] sm:$0xff]
      %v257 = vld [vmem:[%s230 + $0xd0] sm:$0xff]
      %v258 = vld [vmem:[%s230 + $0xd8] sm:$0xff]
      %v259 = vld [vmem:[%s230 + $0xe0] sm:$0xff]
      %v260 = vld [vmem:[%s230 + $0xe8] sm:$0xff]
      %v261 = vld [vmem:[%s230 + $0xf0] sm:$0xff]
      %v262 = vld [vmem:[%s230 + $0xf8] sm:$0xff]
      %s263 = scalar_lea.vmem %s192, 512
      %v264 = vld [vmem:[%s263] sm:$0xff]
      %v265 = vld [vmem:[%s263 + $0x8] sm:$0xff]
      %v266 = vld [vmem:[%s263 + $0x10] sm:$0xff]
      %v267 = vld [vmem:[%s263 + $0x18] sm:$0xff]
      %v268 = vld [vmem:[%s263 + $0x20] sm:$0xff]
      %v269 = vld [vmem:[%s263 + $0x28] sm:$0xff]
      %v270 = vld [vmem:[%s263 + $0x30] sm:$0xff]
      %v271 = vld [vmem:[%s263 + $0x38] sm:$0xff]
      %v272 = vld [vmem:[%s263 + $0x40] sm:$0xff]
      %v273 = vld [vmem:[%s263 + $0x48] sm:$0xff]
      %v274 = vld [vmem:[%s263 + $0x50] sm:$0xff]
      %v275 = vld [vmem:[%s263 + $0x58] sm:$0xff]
      %v276 = vld [vmem:[%s263 + $0x60] sm:$0xff]
      %v277 = vld [vmem:[%s263 + $0x68] sm:$0xff]
      %v278 = vld [vmem:[%s263 + $0x70] sm:$0xff]
      %v279 = vld [vmem:[%s263 + $0x78] sm:$0xff]
      %v280 = vld [vmem:[%s263 + $0x80] sm:$0xff]
      %v281 = vld [vmem:[%s263 + $0x88] sm:$0xff]
      %v282 = vld [vmem:[%s263 + $0x90] sm:$0xff]
      %v283 = vld [vmem:[%s263 + $0x98] sm:$0xff]
      %v284 = vld [vmem:[%s263 + $0xa0] sm:$0xff]
      %v285 = vld [vmem:[%s263 + $0xa8] sm:$0xff]
      %v286 = vld [vmem:[%s263 + $0xb0] sm:$0xff]
      %v287 = vld [vmem:[%s263 + $0xb8] sm:$0xff]
      %v288 = vld [vmem:[%s263 + $0xc0] sm:$0xff]
      %v289 = vld [vmem:[%s263 + $0xc8] sm:$0xff]
      %v290 = vld [vmem:[%s263 + $0xd0] sm:$0xff]
      %v291 = vld [vmem:[%s263 + $0xd8] sm:$0xff]
      %v292 = vld [vmem:[%s263 + $0xe0] sm:$0xff]
      %v293 = vld [vmem:[%s263 + $0xe8] sm:$0xff]
      %v294 = vld [vmem:[%s263 + $0xf0] sm:$0xff]
      %v295 = vld [vmem:[%s263 + $0xf8] sm:$0xff]
      %s296 = scalar_lea.vmem %s192, 768
      %v297 = vld [vmem:[%s296] sm:$0xff]
      %v298 = vld [vmem:[%s296 + $0x8] sm:$0xff]
      %v299 = vld [vmem:[%s296 + $0x10] sm:$0xff]
      %v300 = vld [vmem:[%s296 + $0x18] sm:$0xff]
      %v301 = vld [vmem:[%s296 + $0x20] sm:$0xff]
      %v302 = vld [vmem:[%s296 + $0x28] sm:$0xff]
      %v303 = vld [vmem:[%s296 + $0x30] sm:$0xff]
      %v304 = vld [vmem:[%s296 + $0x38] sm:$0xff]
      %v305 = vld [vmem:[%s296 + $0x40] sm:$0xff]
      %v306 = vld [vmem:[%s296 + $0x48] sm:$0xff]
      %v307 = vld [vmem:[%s296 + $0x50] sm:$0xff]
      %v308 = vld [vmem:[%s296 + $0x58] sm:$0xff]
      %v309 = vld [vmem:[%s296 + $0x60] sm:$0xff]
      %v310 = vld [vmem:[%s296 + $0x68] sm:$0xff]
      %v311 = vld [vmem:[%s296 + $0x70] sm:$0xff]
      %v312 = vld [vmem:[%s296 + $0x78] sm:$0xff]
      %v313 = vld [vmem:[%s296 + $0x80] sm:$0xff]
      %v314 = vld [vmem:[%s296 + $0x88] sm:$0xff]
      %v315 = vld [vmem:[%s296 + $0x90] sm:$0xff]
      %v316 = vld [vmem:[%s296 + $0x98] sm:$0xff]
      %v317 = vld [vmem:[%s296 + $0xa0] sm:$0xff]
      %v318 = vld [vmem:[%s296 + $0xa8] sm:$0xff]
      %v319 = vld [vmem:[%s296 + $0xb0] sm:$0xff]
      %v320 = vld [vmem:[%s296 + $0xb8] sm:$0xff]
      %v321 = vld [vmem:[%s296 + $0xc0] sm:$0xff]
      %v322 = vld [vmem:[%s296 + $0xc8] sm:$0xff]
      %v323 = vld [vmem:[%s296 + $0xd0] sm:$0xff]
      %v324 = vld [vmem:[%s296 + $0xd8] sm:$0xff]
      %v325 = vld [vmem:[%s296 + $0xe0] sm:$0xff]
      %v326 = vld [vmem:[%s296 + $0xe8] sm:$0xff]
      %v327 = vld [vmem:[%s296 + $0xf0] sm:$0xff]
      %v328 = vld [vmem:[%s296 + $0xf8] sm:$0xff]
      %v329 = vld [vmem:[%s3] sm:$0xff]
      %v330 = vld [vmem:[%s3 + $0x8] sm:$0xff]
      %v331 = vld [vmem:[%s3 + $0x10] sm:$0xff]
      %v332 = vld [vmem:[%s3 + $0x18] sm:$0xff]
      %v333 = vld [vmem:[%s3 + $0x20] sm:$0xff]
      %v334 = vld [vmem:[%s3 + $0x28] sm:$0xff]
      %v335 = vld [vmem:[%s3 + $0x30] sm:$0xff]
      %v336 = vld [vmem:[%s3 + $0x38] sm:$0xff]
      %v337 = vld [vmem:[%s3 + $0x40] sm:$0xff]
      %v338 = vld [vmem:[%s3 + $0x48] sm:$0xff]
      %v339 = vld [vmem:[%s3 + $0x50] sm:$0xff]
      %v340 = vld [vmem:[%s3 + $0x58] sm:$0xff]
      %v341 = vld [vmem:[%s3 + $0x60] sm:$0xff]
      %v342 = vld [vmem:[%s3 + $0x68] sm:$0xff]
      %v343 = vld [vmem:[%s3 + $0x70] sm:$0xff]
      %v344 = vld [vmem:[%s3 + $0x78] sm:$0xff]
      %v345 = vld [vmem:[%s3 + $0x80] sm:$0xff]
      %v346 = vld [vmem:[%s3 + $0x88] sm:$0xff]
      %v347 = vld [vmem:[%s3 + $0x90] sm:$0xff]
      %v348 = vld [vmem:[%s3 + $0x98] sm:$0xff]
      %v349 = vld [vmem:[%s3 + $0xa0] sm:$0xff]
      %v350 = vld [vmem:[%s3 + $0xa8] sm:$0xff]
      %v351 = vld [vmem:[%s3 + $0xb0] sm:$0xff]
      %v352 = vld [vmem:[%s3 + $0xb8] sm:$0xff]
      %v353 = vld [vmem:[%s3 + $0xc0] sm:$0xff]
      %v354 = vld [vmem:[%s3 + $0xc8] sm:$0xff]
      %v355 = vld [vmem:[%s3 + $0xd0] sm:$0xff]
      %v356 = vld [vmem:[%s3 + $0xd8] sm:$0xff]
      %v357 = vld [vmem:[%s3 + $0xe0] sm:$0xff]
      %v358 = vld [vmem:[%s3 + $0xe8] sm:$0xff]
      %v359 = vld [vmem:[%s3 + $0xf0] sm:$0xff]
      %v360 = vld [vmem:[%s3 + $0xf8] sm:$0xff]
      %vm391 = vcmask 1040384
      %v392 = vrot.slane %v297, 7
      %v393 = vrot.slane %v298, 7
      %v394 = vsel %vm391, %v392, %v393
      %v395 = vrot.slane %v299, 7
      %v396 = vsel %vm391, %v393, %v395
      %v397 = vrot.slane %v300, 7
      %v398 = vsel %vm391, %v395, %v397
      %v399 = vrot.slane %v301, 7
      %v400 = vsel %vm391, %v397, %v399
      %v401 = vrot.slane %v302, 7
      %v402 = vsel %vm391, %v399, %v401
      %v403 = vrot.slane %v303, 7
      %v404 = vsel %vm391, %v401, %v403
      %v405 = vrot.slane %v304, 7
      %v406 = vsel %vm391, %v403, %v405
      %v407 = vrot.slane %v305, 7
      %v408 = vsel %vm391, %v405, %v407
      %v409 = vrot.slane %v306, 7
      %v410 = vsel %vm391, %v407, %v409
      %v411 = vrot.slane %v307, 7
      %v412 = vsel %vm391, %v409, %v411
      %v413 = vrot.slane %v308, 7
      %v414 = vsel %vm391, %v411, %v413
      %v415 = vrot.slane %v309, 7
      %v416 = vsel %vm391, %v413, %v415
      %v417 = vrot.slane %v310, 7
      %v418 = vsel %vm391, %v415, %v417
      %v419 = vrot.slane %v311, 7
      %v420 = vsel %vm391, %v417, %v419
      %v421 = vrot.slane %v312, 7
      %v422 = vsel %vm391, %v419, %v421
      %v423 = vrot.slane %v313, 7
      %v424 = vsel %vm391, %v421, %v423
      %v425 = vrot.slane %v314, 7
      %v426 = vsel %vm391, %v423, %v425
      %v427 = vrot.slane %v315, 7
      %v428 = vsel %vm391, %v425, %v427
      %v429 = vrot.slane %v316, 7
      %v430 = vsel %vm391, %v427, %v429
      %v431 = vrot.slane %v317, 7
      %v432 = vsel %vm391, %v429, %v431
      %v433 = vrot.slane %v318, 7
      %v434 = vsel %vm391, %v431, %v433
      %v435 = vrot.slane %v319, 7
      %v436 = vsel %vm391, %v433, %v435
      %v437 = vrot.slane %v320, 7
      %v438 = vsel %vm391, %v435, %v437
      %v439 = vrot.slane %v321, 7
      %v440 = vsel %vm391, %v437, %v439
      %v441 = vrot.slane %v322, 7
      %v442 = vsel %vm391, %v439, %v441
      %v443 = vrot.slane %v323, 7
      %v444 = vsel %vm391, %v441, %v443
      %v445 = vrot.slane %v324, 7
      %v446 = vsel %vm391, %v443, %v445
      %v447 = vrot.slane %v325, 7
      %v448 = vsel %vm391, %v445, %v447
      %v449 = vrot.slane %v326, 7
      %v450 = vsel %vm391, %v447, %v449
      %v481 = vsel %vm391, 0.0, %v392
      %483 = vset.pattern.permute.xlu0 0
      %484 = vperm.xlu0 %483, %v329
      %v485 = vpop.permute.xlu0 %484
      %488 = vset.pattern.permute.xlu0 0
      %489 = vperm.xlu0 %488, %v330
      %v490 = vpop.permute.xlu0 %489
      %493 = vset.pattern.permute.xlu0 0
      %494 = vperm.xlu0 %493, %v331
      %v495 = vpop.permute.xlu0 %494
      %498 = vset.pattern.permute.xlu0 0
      %499 = vperm.xlu0 %498, %v332
      %v500 = vpop.permute.xlu0 %499
      %503 = vset.pattern.permute.xlu0 0
      %504 = vperm.xlu0 %503, %v333
      %v505 = vpop.permute.xlu0 %504
      %508 = vset.pattern.permute.xlu0 0
      %509 = vperm.xlu0 %508, %v334
      %v510 = vpop.permute.xlu0 %509
      %513 = vset.pattern.permute.xlu0 0
      %514 = vperm.xlu0 %513, %v335
      %v515 = vpop.permute.xlu0 %514
      %518 = vset.pattern.permute.xlu0 0
      %519 = vperm.xlu0 %518, %v336
      %v520 = vpop.permute.xlu0 %519
      %523 = vset.pattern.permute.xlu0 0
      %524 = vperm.xlu0 %523, %v337
      %v525 = vpop.permute.xlu0 %524
      %528 = vset.pattern.permute.xlu0 0
      %529 = vperm.xlu0 %528, %v338
      %v530 = vpop.permute.xlu0 %529
      %533 = vset.pattern.permute.xlu0 0
      %534 = vperm.xlu0 %533, %v339
      %v535 = vpop.permute.xlu0 %534
      %538 = vset.pattern.permute.xlu0 0
      %539 = vperm.xlu0 %538, %v340
      %v540 = vpop.permute.xlu0 %539
      %543 = vset.pattern.permute.xlu0 0
      %544 = vperm.xlu0 %543, %v341
      %v545 = vpop.permute.xlu0 %544
      %548 = vset.pattern.permute.xlu0 0
      %549 = vperm.xlu0 %548, %v342
      %v550 = vpop.permute.xlu0 %549
      %553 = vset.pattern.permute.xlu0 0
      %554 = vperm.xlu0 %553, %v343
      %v555 = vpop.permute.xlu0 %554
      %558 = vset.pattern.permute.xlu0 0
      %559 = vperm.xlu0 %558, %v344
      %v560 = vpop.permute.xlu0 %559
      %563 = vset.pattern.permute.xlu0 0
      %564 = vperm.xlu0 %563, %v345
      %v565 = vpop.permute.xlu0 %564
      %568 = vset.pattern.permute.xlu0 0
      %569 = vperm.xlu0 %568, %v346
      %v570 = vpop.permute.xlu0 %569
      %573 = vset.pattern.permute.xlu0 0
      %574 = vperm.xlu0 %573, %v347
      %v575 = vpop.permute.xlu0 %574
      %578 = vset.pattern.permute.xlu0 0
      %579 = vperm.xlu0 %578, %v348
      %v580 = vpop.permute.xlu0 %579
      %583 = vset.pattern.permute.xlu0 0
      %584 = vperm.xlu0 %583, %v349
      %v585 = vpop.permute.xlu0 %584
      %588 = vset.pattern.permute.xlu0 0
      %589 = vperm.xlu0 %588, %v350
      %v590 = vpop.permute.xlu0 %589
      %593 = vset.pattern.permute.xlu0 0
      %594 = vperm.xlu0 %593, %v351
      %v595 = vpop.permute.xlu0 %594
      %598 = vset.pattern.permute.xlu0 0
      %599 = vperm.xlu0 %598, %v352
      %v600 = vpop.permute.xlu0 %599
      %603 = vset.pattern.permute.xlu0 0
      %604 = vperm.xlu0 %603, %v353
      %v605 = vpop.permute.xlu0 %604
      %608 = vset.pattern.permute.xlu0 0
      %609 = vperm.xlu0 %608, %v354
      %v610 = vpop.permute.xlu0 %609
      %613 = vset.pattern.permute.xlu0 0
      %614 = vperm.xlu0 %613, %v355
      %v615 = vpop.permute.xlu0 %614
      %618 = vset.pattern.permute.xlu0 0
      %619 = vperm.xlu0 %618, %v356
      %v620 = vpop.permute.xlu0 %619
      %623 = vset.pattern.permute.xlu0 0
      %624 = vperm.xlu0 %623, %v357
      %v625 = vpop.permute.xlu0 %624
      %628 = vset.pattern.permute.xlu0 0
      %629 = vperm.xlu0 %628, %v358
      %v630 = vpop.permute.xlu0 %629
      %633 = vset.pattern.permute.xlu0 0
      %634 = vperm.xlu0 %633, %v359
      %v635 = vpop.permute.xlu0 %634
      %638 = vset.pattern.permute.xlu0 0
      %639 = vperm.xlu0 %638, %v360
      %v640 = vpop.permute.xlu0 %639
      %v642 = vmul.f32 %v485, 0.0
      %v643 = vmul.f32 %v490, 0.0
      %v644 = vmul.f32 %v481, %v495
      %v645 = vmul.f32 %v394, %v500
      %v646 = vmul.f32 %v396, %v505
      %v647 = vmul.f32 %v398, %v510
      %v648 = vmul.f32 %v400, %v515
      %v649 = vmul.f32 %v402, %v520
      %v650 = vmul.f32 %v404, %v525
      %v651 = vmul.f32 %v406, %v530
      %v652 = vmul.f32 %v408, %v535
      %v653 = vmul.f32 %v410, %v540
      %v654 = vmul.f32 %v412, %v545
      %v655 = vmul.f32 %v414, %v550
      %v656 = vmul.f32 %v416, %v555
      %v657 = vmul.f32 %v418, %v560
      %v658 = vmul.f32 %v420, %v565
      %v659 = vmul.f32 %v422, %v570
      %v660 = vmul.f32 %v424, %v575
      %v661 = vmul.f32 %v426, %v580
      %v662 = vmul.f32 %v428, %v585
      %v663 = vmul.f32 %v430, %v590
      %v664 = vmul.f32 %v432, %v595
      %v665 = vmul.f32 %v434, %v600
      %v666 = vmul.f32 %v436, %v605
      %v667 = vmul.f32 %v438, %v610
      %v668 = vmul.f32 %v440, %v615
      %v669 = vmul.f32 %v442, %v620
      %v670 = vmul.f32 %v444, %v625
      %v671 = vmul.f32 %v446, %v630
      %v672 = vmul.f32 %v448, %v635
      %v673 = vmul.f32 %v450, %v640
      %v674 = vld [vmem:[%s1] sm:$0x7]
      %s675 = scalar_lea.vmem %s1, 4
      %v676 = vld [vmem:[%s675] sm:$0x7]
      %vm677 = vcmask 23552
      %v679 = vsel %vm677, 0.0, 0
      %v682 = vsel %vm677, %v264, 0
      %v685 = vsel %vm677, %v265, 0
      %v688 = vsel %vm677, %v266, 0
      %v691 = vsel %vm677, %v267, 0
      %v694 = vsel %vm677, %v268, 0
      %v697 = vsel %vm677, %v269, 0
      %v700 = vsel %vm677, %v270, 0
      %v703 = vsel %vm677, %v271, 0
      %v706 = vsel %vm677, %v272, 0
      %v709 = vsel %vm677, %v273, 0
      %v712 = vsel %vm677, %v274, 0
      %v715 = vsel %vm677, %v275, 0
      %v718 = vsel %vm677, %v276, 0
      %v721 = vsel %vm677, %v277, 0
      %v724 = vsel %vm677, %v278, 0
      %v727 = vsel %vm677, %v279, 0
      %v730 = vsel %vm677, %v280, 0
      %v733 = vsel %vm677, %v281, 0
      %v736 = vsel %vm677, %v282, 0
      %v739 = vsel %vm677, %v283, 0
      %v742 = vsel %vm677, %v284, 0
      %v745 = vsel %vm677, %v285, 0
      %v748 = vsel %vm677, %v286, 0
      %v751 = vsel %vm677, %v287, 0
      %v754 = vsel %vm677, %v288, 0
      %v757 = vsel %vm677, %v289, 0
      %v760 = vsel %vm677, %v290, 0
      %v763 = vsel %vm677, %v291, 0
      %v766 = vsel %vm677, %v292, 0
      %v769 = vsel %vm677, %v293, 0
      %vm771 = vcmask 1042432
      %v773 = vsel %vm771, %v676, 0
      %775 = vmatprep.subr.mxu0 0.0
      %776 = vmatpush1.msra.mxu0 %v773
      %777 = vmatprep.subr.mxu0 0.0
      %778 = vmatpush1.msra.mxu0 0.0
      %779 = vmatprep.subr.mxu0 0.0
      %780 = vmatpush1.msra.mxu0 0.0
      %781 = vmatprep.subr.mxu0 0.0
      %782 = vmatpush1.msra.mxu0 0.0
      %783 = vmatprep.subr.mxu0 0.0
      %784 = vmatpush1.msra.mxu0 0.0
      %785 = vmatprep.subr.mxu0 0.0
      %786 = vmatpush1.msra.mxu0 0.0
      %787 = vmatprep.subr.mxu0 0.0
      %788 = vmatpush1.msra.mxu0 0.0
      %789 = vmatprep.subr.mxu0 0.0
      %790 = vmatpush1.msra.mxu0 0.0
      %791 = vmatprep.subr.mxu0 0.0
      %792 = vmatpush1.msra.mxu0 0.0
      %793 = vmatprep.subr.mxu0 0.0
      %794 = vmatpush1.msra.mxu0 0.0
      %795 = vmatprep.subr.mxu0 0.0
      %796 = vmatpush1.msra.mxu0 0.0
      %797 = vmatprep.subr.mxu0 0.0
      %798 = vmatpush1.msra.mxu0 0.0
      %799 = vmatprep.subr.mxu0 0.0
      %800 = vmatpush1.msra.mxu0 0.0
      %801 = vmatprep.subr.mxu0 0.0
      %802 = vmatpush1.msra.mxu0 0.0
      %803 = vmatprep.subr.mxu0 0.0
      %804 = vmatpush1.msra.mxu0 0.0
      %805 = vmatprep.subr.mxu0 0.0
      %806 = vmatpush1.msra.mxu0 0.0
      %807 = vmatprep.subr.mxu0 0.0
      %808 = vmatpush1.msra.mxu0 0.0
      %809 = vmatprep.subr.mxu0 0.0
      %810 = vmatpush1.msra.mxu0 0.0
      %811 = vmatprep.subr.mxu0 0.0
      %812 = vmatpush1.msra.mxu0 0.0
      %813 = vmatprep.subr.mxu0 0.0
      %814 = vmatpush1.msra.mxu0 0.0
      %815 = vmatprep.subr.mxu0 0.0
      %816 = vmatpush1.msra.mxu0 0.0
      %817 = vmatprep.subr.mxu0 0.0
      %818 = vmatpush1.msra.mxu0 0.0
      %819 = vmatprep.subr.mxu0 0.0
      %820 = vmatpush1.msra.mxu0 0.0
      %821 = vmatprep.subr.mxu0 0.0
      %822 = vmatpush1.msra.mxu0 0.0
      %823 = vmatprep.subr.mxu0 0.0
      %824 = vmatpush1.msra.mxu0 0.0
      %825 = vmatprep.subr.mxu0 0.0
      %826 = vmatpush1.msra.mxu0 0.0
      %827 = vmatprep.subr.mxu0 0.0
      %828 = vmatpush1.msra.mxu0 0.0
      %829 = vmatprep.subr.mxu0 0.0
      %830 = vmatpush1.msra.mxu0 0.0
      %831 = vmatprep.subr.mxu0 0.0
      %832 = vmatpush1.msra.mxu0 0.0
      %833 = vmatprep.subr.mxu0 0.0
      %834 = vmatpush1.msra.mxu0 0.0
      %835 = vmatprep.subr.mxu0 0.0
      %836 = vmatpush1.msra.mxu0 0.0
      %837 = vmatprep.subr.mxu0 0.0
      %838 = vmatpush1.msra.mxu0 0.0
      %839 = vmatprep.mubr.f32.mxu0 0.0
      %840 = vmatmul.mubr.f32.gmra.mrb[0].mxu0 %v679
      %v841 = vpop.f32.mrb[0].mxu0
      %v842 = vadd.f32 0.0, %v841
      %v843 = vpop.f32.mrb[0].mxu0
      %844 = vmatprep.mubr.f32.mxu0 0.0
      %845 = vmatmul.mubr.f32.gmra.mrb[0].mxu0 %v679
      %v846 = vpop.f32.mrb[0].mxu0
      %v847 = vadd.f32 0.0, %v846
      %v848 = vpop.f32.mrb[0].mxu0
      %849 = vmatprep.mubr.f32.mxu0 0.0
      %850 = vmatmul.mubr.f32.gmra.mrb[0].mxu0 %v682
      %v851 = vpop.f32.mrb[0].mxu0
      %v852 = vadd.f32 0.0, %v851
      %v853 = vpop.f32.mrb[0].mxu0
      %854 = vmatprep.mubr.f32.mxu0 0.0
      %855 = vmatmul.mubr.f32.gmra.mrb[0].mxu0 %v685
      %v856 = vpop.f32.mrb[0].mxu0
      %v857 = vadd.f32 0.0, %v856
      %v858 = vpop.f32.mrb[0].mxu0
      %859 = vmatprep.mubr.f32.mxu0 0.0
      %860 = vmatmul.mubr.f32.gmra.mrb[0].mxu0 %v688
      %v861 = vpop.f32.mrb[0].mxu0
      %v862 = vadd.f32 0.0, %v861
      %v863 = vpop.f32.mrb[0].mxu0
      %864 = vmatprep.mubr.f32.mxu0 0.0
      %865 = vmatmul.mubr.f32.gmra.mrb[0].mxu0 %v691
      %v866 = vpop.f32.mrb[0].mxu0
      %v867 = vadd.f32 0.0, %v866
      %v868 = vpop.f32.mrb[0].mxu0
      %869 = vmatprep.mubr.f32.mxu0 0.0
      %870 = vmatmul.mubr.f32.gmra.mrb[0].mxu0 %v694
      %v871 = vpop.f32.mrb[0].mxu0
      %v872 = vadd.f32 0.0, %v871
      %v873 = vpop.f32.mrb[0].mxu0
      %874 = vmatprep.mubr.f32.mxu0 0.0
      %875 = vmatmul.mubr.f32.gmra.mrb[0].mxu0 %v697
      %v876 = vpop.f32.mrb[0].mxu0
      %v877 = vadd.f32 0.0, %v876
      %v878 = vpop.f32.mrb[0].mxu0
      %879 = vmatprep.mubr.f32.mxu0 0.0
      %880 = vmatmul.mubr.f32.gmra.mrb[0].mxu0 %v700
      %v881 = vpop.f32.mrb[0].mxu0
      %v882 = vadd.f32 0.0, %v881
      %v883 = vpop.f32.mrb[0].mxu0
      %884 = vmatprep.mubr.f32.mxu0 0.0
      %885 = vmatmul.mubr.f32.gmra.mrb[0].mxu0 %v703
      %v886 = vpop.f32.mrb[0].mxu0
      %v887 = vadd.f32 0.0, %v886
      %v888 = vpop.f32.mrb[0].mxu0
      %889 = vmatprep.mubr.f32.mxu0 0.0
      %890 = vmatmul.mubr.f32.gmra.mrb[0].mxu0 %v706
      %v891 = vpop.f32.mrb[0].mxu0
      %v892 = vadd.f32 0.0, %v891
      %v893 = vpop.f32.mrb[0].mxu0
      %894 = vmatprep.mubr.f32.mxu0 0.0
      %895 = vmatmul.mubr.f32.gmra.mrb[0].mxu0 %v709
      %v896 = vpop.f32.mrb[0].mxu0
      %v897 = vadd.f32 0.0, %v896
      %v898 = vpop.f32.mrb[0].mxu0
      %899 = vmatprep.mubr.f32.mxu0 0.0
      %900 = vmatmul.mubr.f32.gmra.mrb[0].mxu0 %v712
      %v901 = vpop.f32.mrb[0].mxu0
      %v902 = vadd.f32 0.0, %v901
      %v903 = vpop.f32.mrb[0].mxu0
      %904 = vmatprep.mubr.f32.mxu0 0.0
      %905 = vmatmul.mubr.f32.gmra.mrb[0].mxu0 %v715
      %v906 = vpop.f32.mrb[0].mxu0
      %v907 = vadd.f32 0.0, %v906
      %v908 = vpop.f32.mrb[0].mxu0
      %909 = vmatprep.mubr.f32.mxu0 0.0
      %910 = vmatmul.mubr.f32.gmra.mrb[0].mxu0 %v718
      %v911 = vpop.f32.mrb[0].mxu0
      %v912 = vadd.f32 0.0, %v911
      %v913 = vpop.f32.mrb[0].mxu0
      %914 = vmatprep.mubr.f32.mxu0 0.0
      %915 = vmatmul.mubr.f32.gmra.mrb[0].mxu0 %v721
      %v916 = vpop.f32.mrb[0].mxu0
      %v917 = vadd.f32 0.0, %v916
      %v918 = vpop.f32.mrb[0].mxu0
      %919 = vmatprep.mubr.f32.mxu0 0.0
      %920 = vmatmul.mubr.f32.gmra.mrb[0].mxu0 %v724
      %v921 = vpop.f32.mrb[0].mxu0
      %v922 = vadd.f32 0.0, %v921
      %v923 = vpop.f32.mrb[0].mxu0
      %924 = vmatprep.mubr.f32.mxu0 0.0
      %925 = vmatmul.mubr.f32.gmra.mrb[0].mxu0 %v727
      %v926 = vpop.f32.mrb[0].mxu0
      %v927 = vadd.f32 0.0, %v926
      %v928 = vpop.f32.mrb[0].mxu0
      %929 = vmatprep.mubr.f32.mxu0 0.0
      %930 = vmatmul.mubr.f32.gmra.mrb[0].mxu0 %v730
      %v931 = vpop.f32.mrb[0].mxu0
      %v932 = vadd.f32 0.0, %v931
      %v933 = vpop.f32.mrb[0].mxu0
      %934 = vmatprep.mubr.f32.mxu0 0.0
      %935 = vmatmul.mubr.f32.gmra.mrb[0].mxu0 %v733
      %v936 = vpop.f32.mrb[0].mxu0
      %v937 = vadd.f32 0.0, %v936
      %v938 = vpop.f32.mrb[0].mxu0
      %939 = vmatprep.mubr.f32.mxu0 0.0
      %940 = vmatmul.mubr.f32.gmra.mrb[0].mxu0 %v736
      %v941 = vpop.f32.mrb[0].mxu0
      %v942 = vadd.f32 0.0, %v941
      %v943 = vpop.f32.mrb[0].mxu0
      %944 = vmatprep.mubr.f32.mxu0 0.0
      %945 = vmatmul.mubr.f32.gmra.mrb[0].mxu0 %v739
      %v946 = vpop.f32.mrb[0].mxu0
      %v947 = vadd.f32 0.0, %v946
      %v948 = vpop.f32.mrb[0].mxu0
      %949 = vmatprep.mubr.f32.mxu0 0.0
      %950 = vmatmul.mubr.f32.gmra.mrb[0].mxu0 %v742
      %v951 = vpop.f32.mrb[0].mxu0
      %v952 = vadd.f32 0.0, %v951
      %v953 = vpop.f32.mrb[0].mxu0
      %954 = vmatprep.mubr.f32.mxu0 0.0
      %955 = vmatmul.mubr.f32.gmra.mrb[0].mxu0 %v745
      %v956 = vpop.f32.mrb[0].mxu0
      %v957 = vadd.f32 0.0, %v956
      %v958 = vpop.f32.mrb[0].mxu0
      %959 = vmatprep.mubr.f32.mxu0 0.0
      %960 = vmatmul.mubr.f32.gmra.mrb[0].mxu0 %v748
      %v961 = vpop.f32.mrb[0].mxu0
      %v962 = vadd.f32 0.0, %v961
      %v963 = vpop.f32.mrb[0].mxu0
      %964 = vmatprep.mubr.f32.mxu0 0.0
      %965 = vmatmul.mubr.f32.gmra.mrb[0].mxu0 %v751
      %v966 = vpop.f32.mrb[0].mxu0
      %v967 = vadd.f32 0.0, %v966
      %v968 = vpop.f32.mrb[0].mxu0
      %969 = vmatprep.mubr.f32.mxu0 0.0
      %970 = vmatmul.mubr.f32.gmra.mrb[0].mxu0 %v754
      %v971 = vpop.f32.mrb[0].mxu0
      %v972 = vadd.f32 0.0, %v971
      %v973 = vpop.f32.mrb[0].mxu0
      %974 = vmatprep.mubr.f32.mxu0 0.0
      %975 = vmatmul.mubr.f32.gmra.mrb[0].mxu0 %v757
      %v976 = vpop.f32.mrb[0].mxu0
      %v977 = vadd.f32 0.0, %v976
      %v978 = vpop.f32.mrb[0].mxu0
      %979 = vmatprep.mubr.f32.mxu0 0.0
      %980 = vmatmul.mubr.f32.gmra.mrb[0].mxu0 %v760
      %v981 = vpop.f32.mrb[0].mxu0
      %v982 = vadd.f32 0.0, %v981
      %v983 = vpop.f32.mrb[0].mxu0
      %984 = vmatprep.mubr.f32.mxu0 0.0
      %985 = vmatmul.mubr.f32.gmra.mrb[0].mxu0 %v763
      %v986 = vpop.f32.mrb[0].mxu0
      %v987 = vadd.f32 0.0, %v986
      %v988 = vpop.f32.mrb[0].mxu0
      %989 = vmatprep.mubr.f32.mxu0 0.0
      %990 = vmatmul.mubr.f32.gmra.mrb[0].mxu0 %v766
      %v991 = vpop.f32.mrb[0].mxu0
      %v992 = vadd.f32 0.0, %v991
      %v993 = vpop.f32.mrb[0].mxu0
      %994 = vmatprep.mubr.f32.mxu0 0.0
      %995 = vmatmul.mubr.f32.gmra.mrb[0].mxu0 %v769
      %v996 = vpop.f32.mrb[0].mxu0
      %v997 = vadd.f32 0.0, %v996
      %v998 = vpop.f32.mrb[0].mxu0
      %999 = vdwg.mxu0
      %v1001 = vsel %vm677, %v642, 0
      %v1004 = vsel %vm677, %v643, 0
      %v1007 = vsel %vm677, %v644, 0
      %v1010 = vsel %vm677, %v645, 0
      %v1013 = vsel %vm677, %v646, 0
      %v1016 = vsel %vm677, %v647, 0
      %v1019 = vsel %vm677, %v648, 0
      %v1022 = vsel %vm677, %v649, 0
      %v1025 = vsel %vm677, %v650, 0
      %v1028 = vsel %vm677, %v651, 0
      %v1031 = vsel %vm677, %v652, 0
      %v1034 = vsel %vm677, %v653, 0
      %v1037 = vsel %vm677, %v654, 0
      %v1040 = vsel %vm677, %v655, 0
      %v1043 = vsel %vm677, %v656, 0
      %v1046 = vsel %vm677, %v657, 0
      %v1049 = vsel %vm677, %v658, 0
      %v1052 = vsel %vm677, %v659, 0
      %v1055 = vsel %vm677, %v660, 0
      %v1058 = vsel %vm677, %v661, 0
      %v1061 = vsel %vm677, %v662, 0
      %v1064 = vsel %vm677, %v663, 0
      %v1067 = vsel %vm677, %v664, 0
      %v1070 = vsel %vm677, %v665, 0
      %v1073 = vsel %vm677, %v666, 0
      %v1076 = vsel %vm677, %v667, 0
      %v1079 = vsel %vm677, %v668, 0
      %v1082 = vsel %vm677, %v669, 0
      %v1085 = vsel %vm677, %v670, 0
      %v1088 = vsel %vm677, %v671, 0
      %v1091 = vsel %vm677, %v672, 0
      %v1094 = vsel %vm677, %v673, 0
      %v1097 = vsel %vm771, %v674, 0
      %1099 = vmatprep.subr.mxu0 0.0
      %1100 = vmatpush1.msra.mxu0 %v1097
      %1101 = vmatprep.subr.mxu0 0.0
      %1102 = vmatpush1.msra.mxu0 0.0
      %1103 = vmatprep.subr.mxu0 0.0
      %1104 = vmatpush1.msra.mxu0 0.0
      %1105 = vmatprep.subr.mxu0 0.0
      %1106 = vmatpush1.msra.mxu0 0.0
      %1107 = vmatprep.subr.mxu0 0.0
      %1108 = vmatpush1.msra.mxu0 0.0
      %1109 = vmatprep.subr.mxu0 0.0
      %1110 = vmatpush1.msra.mxu0 0.0
      %1111 = vmatprep.subr.mxu0 0.0
      %1112 = vmatpush1.msra.mxu0 0.0
      %1113 = vmatprep.subr.mxu0 0.0
      %1114 = vmatpush1.msra.mxu0 0.0
      %1115 = vmatprep.subr.mxu0 0.0
      %1116 = vmatpush1.msra.mxu0 0.0
      %1117 = vmatprep.subr.mxu0 0.0
      %1118 = vmatpush1.msra.mxu0 0.0
      %1119 = vmatprep.subr.mxu0 0.0
      %1120 = vmatpush1.msra.mxu0 0.0
      %1121 = vmatprep.subr.mxu0 0.0
      %1122 = vmatpush1.msra.mxu0 0.0
      %1123 = vmatprep.subr.mxu0 0.0
      %1124 = vmatpush1.msra.mxu0 0.0
      %1125 = vmatprep.subr.mxu0 0.0
      %1126 = vmatpush1.msra.mxu0 0.0
      %1127 = vmatprep.subr.mxu0 0.0
      %1128 = vmatpush1.msra.mxu0 0.0
      %1129 = vmatprep.subr.mxu0 0.0
      %1130 = vmatpush1.msra.mxu0 0.0
      %1131 = vmatprep.subr.mxu0 0.0
      %1132 = vmatpush1.msra.mxu0 0.0
      %1133 = vmatprep.subr.mxu0 0.0
      %1134 = vmatpush1.msra.mxu0 0.0
      %1135 = vmatprep.subr.mxu0 0.0
      %1136 = vmatpush1.msra.mxu0 0.0
      %1137 = vmatprep.subr.mxu0 0.0
      %1138 = vmatpush1.msra.mxu0 0.0
      %1139 = vmatprep.subr.mxu0 0.0
      %1140 = vmatpush1.msra.mxu0 0.0
      %1141 = vmatprep.subr.mxu0 0.0
      %1142 = vmatpush1.msra.mxu0 0.0
      %1143 = vmatprep.subr.mxu0 0.0
      %1144 = vmatpush1.msra.mxu0 0.0
      %1145 = vmatprep.subr.mxu0 0.0
      %1146 = vmatpush1.msra.mxu0 0.0
      %1147 = vmatprep.subr.mxu0 0.0
      %1148 = vmatpush1.msra.mxu0 0.0
      %1149 = vmatprep.subr.mxu0 0.0
      %1150 = vmatpush1.msra.mxu0 0.0
      %1151 = vmatprep.subr.mxu0 0.0
      %1152 = vmatpush1.msra.mxu0 0.0
      %1153 = vmatprep.subr.mxu0 0.0
      %1154 = vmatpush1.msra.mxu0 0.0
      %1155 = vmatprep.subr.mxu0 0.0
      %1156 = vmatpush1.msra.mxu0 0.0
      %1157 = vmatprep.subr.mxu0 0.0
      %1158 = vmatpush1.msra.mxu0 0.0
      %1159 = vmatprep.subr.mxu0 0.0
      %1160 = vmatpush1.msra.mxu0 0.0
      %1161 = vmatprep.subr.mxu0 0.0
      %1162 = vmatpush1.msra.mxu0 0.0
      %1163 = vmatprep.mubr.f32.mxu0 0.0
      %1164 = vmatmul.mubr.f32.gmra.mrb[0].mxu0 %v1001
      %v1165 = vpop.f32.mrb[0].mxu0
      %v1166 = vadd.f32 %v842, %v1165
      %v1167 = vpop.f32.mrb[0].mxu0
      %1168 = vmatprep.mubr.f32.mxu0 0.0
      %1169 = vmatmul.mubr.f32.gmra.mrb[0].mxu0 %v1004
      %v1170 = vpop.f32.mrb[0].mxu0
      %v1171 = vadd.f32 %v847, %v1170
      %v1172 = vpop.f32.mrb[0].mxu0
      %1173 = vmatprep.mubr.f32.mxu0 0.0
      %1174 = vmatmul.mubr.f32.gmra.mrb[0].mxu0 %v1007
      %v1175 = vpop.f32.mrb[0].mxu0
      %v1176 = vadd.f32 %v852, %v1175
      %v1177 = vpop.f32.mrb[0].mxu0
      %1178 = vmatprep.mubr.f32.mxu0 0.0
      %1179 = vmatmul.mubr.f32.gmra.mrb[0].mxu0 %v1010
      %v1180 = vpop.f32.mrb[0].mxu0
      %v1181 = vadd.f32 %v857, %v1180
      %v1182 = vpop.f32.mrb[0].mxu0
      %1183 = vmatprep.mubr.f32.mxu0 0.0
      %1184 = vmatmul.mubr.f32.gmra.mrb[0].mxu0 %v1013
      %v1185 = vpop.f32.mrb[0].mxu0
      %v1186 = vadd.f32 %v862, %v1185
      %v1187 = vpop.f32.mrb[0].mxu0
      %1188 = vmatprep.mubr.f32.mxu0 0.0
      %1189 = vmatmul.mubr.f32.gmra.mrb[0].mxu0 %v1016
      %v1190 = vpop.f32.mrb[0].mxu0
      %v1191 = vadd.f32 %v867, %v1190
      %v1192 = vpop.f32.mrb[0].mxu0
      %1193 = vmatprep.mubr.f32.mxu0 0.0
      %1194 = vmatmul.mubr.f32.gmra.mrb[0].mxu0 %v1019
      %v1195 = vpop.f32.mrb[0].mxu0
      %v1196 = vadd.f32 %v872, %v1195
      %v1197 = vpop.f32.mrb[0].mxu0
      %1198 = vmatprep.mubr.f32.mxu0 0.0
      %1199 = vmatmul.mubr.f32.gmra.mrb[0].mxu0 %v1022
      %v1200 = vpop.f32.mrb[0].mxu0
      %v1201 = vadd.f32 %v877, %v1200
      %v1202 = vpop.f32.mrb[0].mxu0
      %1203 = vmatprep.mubr.f32.mxu0 0.0
      %1204 = vmatmul.mubr.f32.gmra.mrb[0].mxu0 %v1025
      %v1205 = vpop.f32.mrb[0].mxu0
      %v1206 = vadd.f32 %v882, %v1205
      %v1207 = vpop.f32.mrb[0].mxu0
      %1208 = vmatprep.mubr.f32.mxu0 0.0
      %1209 = vmatmul.mubr.f32.gmra.mrb[0].mxu0 %v1028
      %v1210 = vpop.f32.mrb[0].mxu0
      %v1211 = vadd.f32 %v887, %v1210
      %v1212 = vpop.f32.mrb[0].mxu0
      %1213 = vmatprep.mubr.f32.mxu0 0.0
      %1214 = vmatmul.mubr.f32.gmra.mrb[0].mxu0 %v1031
      %v1215 = vpop.f32.mrb[0].mxu0
      %v1216 = vadd.f32 %v892, %v1215
      %v1217 = vpop.f32.mrb[0].mxu0
      %1218 = vmatprep.mubr.f32.mxu0 0.0
      %1219 = vmatmul.mubr.f32.gmra.mrb[0].mxu0 %v1034
      %v1220 = vpop.f32.mrb[0].mxu0
      %v1221 = vadd.f32 %v897, %v1220
      %v1222 = vpop.f32.mrb[0].mxu0
      %1223 = vmatprep.mubr.f32.mxu0 0.0
      %1224 = vmatmul.mubr.f32.gmra.mrb[0].mxu0 %v1037
      %v1225 = vpop.f32.mrb[0].mxu0
      %v1226 = vadd.f32 %v902, %v1225
      %v1227 = vpop.f32.mrb[0].mxu0
      %1228 = vmatprep.mubr.f32.mxu0 0.0
      %1229 = vmatmul.mubr.f32.gmra.mrb[0].mxu0 %v1040
      %v1230 = vpop.f32.mrb[0].mxu0
      %v1231 = vadd.f32 %v907, %v1230
      %v1232 = vpop.f32.mrb[0].mxu0
      %1233 = vmatprep.mubr.f32.mxu0 0.0
      %1234 = vmatmul.mubr.f32.gmra.mrb[0].mxu0 %v1043
      %v1235 = vpop.f32.mrb[0].mxu0
      %v1236 = vadd.f32 %v912, %v1235
      %v1237 = vpop.f32.mrb[0].mxu0
      %1238 = vmatprep.mubr.f32.mxu0 0.0
      %1239 = vmatmul.mubr.f32.gmra.mrb[0].mxu0 %v1046
      %v1240 = vpop.f32.mrb[0].mxu0
      %v1241 = vadd.f32 %v917, %v1240
      %v1242 = vpop.f32.mrb[0].mxu0
      %1243 = vmatprep.mubr.f32.mxu0 0.0
      %1244 = vmatmul.mubr.f32.gmra.mrb[0].mxu0 %v1049
      %v1245 = vpop.f32.mrb[0].mxu0
      %v1246 = vadd.f32 %v922, %v1245
      %v1247 = vpop.f32.mrb[0].mxu0
      %1248 = vmatprep.mubr.f32.mxu0 0.0
      %1249 = vmatmul.mubr.f32.gmra.mrb[0].mxu0 %v1052
      %v1250 = vpop.f32.mrb[0].mxu0
      %v1251 = vadd.f32 %v927, %v1250
      %v1252 = vpop.f32.mrb[0].mxu0
      %1253 = vmatprep.mubr.f32.mxu0 0.0
      %1254 = vmatmul.mubr.f32.gmra.mrb[0].mxu0 %v1055
      %v1255 = vpop.f32.mrb[0].mxu0
      %v1256 = vadd.f32 %v932, %v1255
      %v1257 = vpop.f32.mrb[0].mxu0
      %1258 = vmatprep.mubr.f32.mxu0 0.0
      %1259 = vmatmul.mubr.f32.gmra.mrb[0].mxu0 %v1058
      %v1260 = vpop.f32.mrb[0].mxu0
      %v1261 = vadd.f32 %v937, %v1260
      %v1262 = vpop.f32.mrb[0].mxu0
      %1263 = vmatprep.mubr.f32.mxu0 0.0
      %1264 = vmatmul.mubr.f32.gmra.mrb[0].mxu0 %v1061
      %v1265 = vpop.f32.mrb[0].mxu0
      %v1266 = vadd.f32 %v942, %v1265
      %v1267 = vpop.f32.mrb[0].mxu0
      %1268 = vmatprep.mubr.f32.mxu0 0.0
      %1269 = vmatmul.mubr.f32.gmra.mrb[0].mxu0 %v1064
      %v1270 = vpop.f32.mrb[0].mxu0
      %v1271 = vadd.f32 %v947, %v1270
      %v1272 = vpop.f32.mrb[0].mxu0
      %1273 = vmatprep.mubr.f32.mxu0 0.0
      %1274 = vmatmul.mubr.f32.gmra.mrb[0].mxu0 %v1067
      %v1275 = vpop.f32.mrb[0].mxu0
      %v1276 = vadd.f32 %v952, %v1275
      %v1277 = vpop.f32.mrb[0].mxu0
      %1278 = vmatprep.mubr.f32.mxu0 0.0
      %1279 = vmatmul.mubr.f32.gmra.mrb[0].mxu0 %v1070
      %v1280 = vpop.f32.mrb[0].mxu0
      %v1281 = vadd.f32 %v957, %v1280
      %v1282 = vpop.f32.mrb[0].mxu0
      %1283 = vmatprep.mubr.f32.mxu0 0.0
      %1284 = vmatmul.mubr.f32.gmra.mrb[0].mxu0 %v1073
      %v1285 = vpop.f32.mrb[0].mxu0
      %v1286 = vadd.f32 %v962, %v1285
      %v1287 = vpop.f32.mrb[0].mxu0
      %1288 = vmatprep.mubr.f32.mxu0 0.0
      %1289 = vmatmul.mubr.f32.gmra.mrb[0].mxu0 %v1076
      %v1290 = vpop.f32.mrb[0].mxu0
      %v1291 = vadd.f32 %v967, %v1290
      %v1292 = vpop.f32.mrb[0].mxu0
      %1293 = vmatprep.mubr.f32.mxu0 0.0
      %1294 = vmatmul.mubr.f32.gmra.mrb[0].mxu0 %v1079
      %v1295 = vpop.f32.mrb[0].mxu0
      %v1296 = vadd.f32 %v972, %v1295
      %v1297 = vpop.f32.mrb[0].mxu0
      %1298 = vmatprep.mubr.f32.mxu0 0.0
      %1299 = vmatmul.mubr.f32.gmra.mrb[0].mxu0 %v1082
      %v1300 = vpop.f32.mrb[0].mxu0
      %v1301 = vadd.f32 %v977, %v1300
      %v1302 = vpop.f32.mrb[0].mxu0
      %1303 = vmatprep.mubr.f32.mxu0 0.0
      %1304 = vmatmul.mubr.f32.gmra.mrb[0].mxu0 %v1085
      %v1305 = vpop.f32.mrb[0].mxu0
      %v1306 = vadd.f32 %v982, %v1305
      %v1307 = vpop.f32.mrb[0].mxu0
      %1308 = vmatprep.mubr.f32.mxu0 0.0
      %1309 = vmatmul.mubr.f32.gmra.mrb[0].mxu0 %v1088
      %v1310 = vpop.f32.mrb[0].mxu0
      %v1311 = vadd.f32 %v987, %v1310
      %v1312 = vpop.f32.mrb[0].mxu0
      %1313 = vmatprep.mubr.f32.mxu0 0.0
      %1314 = vmatmul.mubr.f32.gmra.mrb[0].mxu0 %v1091
      %v1315 = vpop.f32.mrb[0].mxu0
      %v1316 = vadd.f32 %v992, %v1315
      %v1317 = vpop.f32.mrb[0].mxu0
      %1318 = vmatprep.mubr.f32.mxu0 0.0
      %1319 = vmatmul.mubr.f32.gmra.mrb[0].mxu0 %v1094
      %v1320 = vpop.f32.mrb[0].mxu0
      %v1321 = vadd.f32 %v997, %v1320
      %v1322 = vpop.f32.mrb[0].mxu0
      %1323 = vdwg.mxu0
      %s1324 = scalar_lea.vmem %s1, 8
      %v1325 = vld [vmem:[%s1324] sm:$0x7]
      %v1326 = vsel %vm677, %v297, 0
      %v1328 = vsel %vm677, %v298, 0
      %v1330 = vsel %vm677, %v299, 0
      %v1332 = vsel %vm677, %v300, 0
      %v1334 = vsel %vm677, %v301, 0
      %v1336 = vsel %vm677, %v302, 0
      %v1338 = vsel %vm677, %v303, 0
      %v1340 = vsel %vm677, %v304, 0
      %v1342 = vsel %vm677, %v305, 0
      %v1344 = vsel %vm677, %v306, 0
      %v1346 = vsel %vm677, %v307, 0
      %v1348 = vsel %vm677, %v308, 0
      %v1350 = vsel %vm677, %v309, 0
      %v1352 = vsel %vm677, %v310, 0
      %v1354 = vsel %vm677, %v311, 0
      %v1356 = vsel %vm677, %v312, 0
      %v1358 = vsel %vm677, %v313, 0
      %v1360 = vsel %vm677, %v314, 0
      %v1362 = vsel %vm677, %v315, 0
      %v1364 = vsel %vm677, %v316, 0
      %v1366 = vsel %vm677, %v317, 0
      %v1368 = vsel %vm677, %v318, 0
      %v1370 = vsel %vm677, %v319, 0
      %v1372 = vsel %vm677, %v320, 0
      %v1374 = vsel %vm677, %v321, 0
      %v1376 = vsel %vm677, %v322, 0
      %v1378 = vsel %vm677, %v323, 0
      %v1380 = vsel %vm677, %v324, 0
      %v1382 = vsel %vm677, %v325, 0
      %v1384 = vsel %vm677, %v326, 0
      %v1387 = vsel %vm771, %v1325, 0
      %1389 = vmatprep.subr.mxu0 0.0
      %1390 = vmatpush1.msra.mxu0 %v1387
      %1391 = vmatprep.subr.mxu0 0.0
      %1392 = vmatpush1.msra.mxu0 0.0
      %1393 = vmatprep.subr.mxu0 0.0
      %1394 = vmatpush1.msra.mxu0 0.0
      %1395 = vmatprep.subr.mxu0 0.0
      %1396 = vmatpush1.msra.mxu0 0.0
      %1397 = vmatprep.subr.mxu0 0.0
      %1398 = vmatpush1.msra.mxu0 0.0
      %1399 = vmatprep.subr.mxu0 0.0
      %1400 = vmatpush1.msra.mxu0 0.0
      %1401 = vmatprep.subr.mxu0 0.0
      %1402 = vmatpush1.msra.mxu0 0.0
      %1403 = vmatprep.subr.mxu0 0.0
      %1404 = vmatpush1.msra.mxu0 0.0
      %1405 = vmatprep.subr.mxu0 0.0
      %1406 = vmatpush1.msra.mxu0 0.0
      %1407 = vmatprep.subr.mxu0 0.0
      %1408 = vmatpush1.msra.mxu0 0.0
      %1409 = vmatprep.subr.mxu0 0.0
      %1410 = vmatpush1.msra.mxu0 0.0
      %1411 = vmatprep.subr.mxu0 0.0
      %1412 = vmatpush1.msra.mxu0 0.0
      %1413 = vmatprep.subr.mxu0 0.0
      %1414 = vmatpush1.msra.mxu0 0.0
      %1415 = vmatprep.subr.mxu0 0.0
      %1416 = vmatpush1.msra.mxu0 0.0
      %1417 = vmatprep.subr.mxu0 0.0
      %1418 = vmatpush1.msra.mxu0 0.0
      %1419 = vmatprep.subr.mxu0 0.0
      %1420 = vmatpush1.msra.mxu0 0.0
      %1421 = vmatprep.subr.mxu0 0.0
      %1422 = vmatpush1.msra.mxu0 0.0
      %1423 = vmatprep.subr.mxu0 0.0
      %1424 = vmatpush1.msra.mxu0 0.0
      %1425 = vmatprep.subr.mxu0 0.0
      %1426 = vmatpush1.msra.mxu0 0.0
      %1427 = vmatprep.subr.mxu0 0.0
      %1428 = vmatpush1.msra.mxu0 0.0
      %1429 = vmatprep.subr.mxu0 0.0
      %1430 = vmatpush1.msra.mxu0 0.0
      %1431 = vmatprep.subr.mxu0 0.0
      %1432 = vmatpush1.msra.mxu0 0.0
      %1433 = vmatprep.subr.mxu0 0.0
      %1434 = vmatpush1.msra.mxu0 0.0
      %1435 = vmatprep.subr.mxu0 0.0
      %1436 = vmatpush1.msra.mxu0 0.0
      %1437 = vmatprep.subr.mxu0 0.0
      %1438 = vmatpush1.msra.mxu0 0.0
      %1439 = vmatprep.subr.mxu0 0.0
      %1440 = vmatpush1.msra.mxu0 0.0
      %1441 = vmatprep.subr.mxu0 0.0
      %1442 = vmatpush1.msra.mxu0 0.0
      %1443 = vmatprep.subr.mxu0 0.0
      %1444 = vmatpush1.msra.mxu0 0.0
      %1445 = vmatprep.subr.mxu0 0.0
      %1446 = vmatpush1.msra.mxu0 0.0
      %1447 = vmatprep.subr.mxu0 0.0
      %1448 = vmatpush1.msra.mxu0 0.0
      %1449 = vmatprep.subr.mxu0 0.0
      %1450 = vmatpush1.msra.mxu0 0.0
      %1451 = vmatprep.subr.mxu0 0.0
      %1452 = vmatpush1.msra.mxu0 0.0
      %1453 = vmatprep.mubr.f32.mxu0 0.0
      %1454 = vmatmul.mubr.f32.gmra.mrb[0].mxu0 %v679
      %v1455 = vpop.f32.mrb[0].mxu0
      %v1456 = vadd.f32 0.0, %v1455
      %v1457 = vpop.f32.mrb[0].mxu0
      %1458 = vmatprep.mubr.f32.mxu0 0.0
      %1459 = vmatmul.mubr.f32.gmra.mrb[0].mxu0 %v679
      %v1460 = vpop.f32.mrb[0].mxu0
      %v1461 = vadd.f32 0.0, %v1460
      %v1462 = vpop.f32.mrb[0].mxu0
      %1463 = vmatprep.mubr.f32.mxu0 0.0
      %1464 = vmatmul.mubr.f32.gmra.mrb[0].mxu0 %v1326
      %v1465 = vpop.f32.mrb[0].mxu0
      %v1466 = vadd.f32 0.0, %v1465
      %v1467 = vpop.f32.mrb[0].mxu0
      %1468 = vmatprep.mubr.f32.mxu0 0.0
      %1469 = vmatmul.mubr.f32.gmra.mrb[0].mxu0 %v1328
      %v1470 = vpop.f32.mrb[0].mxu0
      %v1471 = vadd.f32 0.0, %v1470
      %v1472 = vpop.f32.mrb[0].mxu0
      %1473 = vmatprep.mubr.f32.mxu0 0.0
      %1474 = vmatmul.mubr.f32.gmra.mrb[0].mxu0 %v1330
      %v1475 = vpop.f32.mrb[0].mxu0
      %v1476 = vadd.f32 0.0, %v1475
      %v1477 = vpop.f32.mrb[0].mxu0
      %1478 = vmatprep.mubr.f32.mxu0 0.0
      %1479 = vmatmul.mubr.f32.gmra.mrb[0].mxu0 %v1332
      %v1480 = vpop.f32.mrb[0].mxu0
      %v1481 = vadd.f32 0.0, %v1480
      %v1482 = vpop.f32.mrb[0].mxu0
      %1483 = vmatprep.mubr.f32.mxu0 0.0
      %1484 = vmatmul.mubr.f32.gmra.mrb[0].mxu0 %v1334
      %v1485 = vpop.f32.mrb[0].mxu0
      %v1486 = vadd.f32 0.0, %v1485
      %v1487 = vpop.f32.mrb[0].mxu0
      %1488 = vmatprep.mubr.f32.mxu0 0.0
      %1489 = vmatmul.mubr.f32.gmra.mrb[0].mxu0 %v1336
      %v1490 = vpop.f32.mrb[0].mxu0
      %v1491 = vadd.f32 0.0, %v1490
      %v1492 = vpop.f32.mrb[0].mxu0
      %1493 = vmatprep.mubr.f32.mxu0 0.0
      %1494 = vmatmul.mubr.f32.gmra.mrb[0].mxu0 %v1338
      %v1495 = vpop.f32.mrb[0].mxu0
      %v1496 = vadd.f32 0.0, %v1495
      %v1497 = vpop.f32.mrb[0].mxu0
      %1498 = vmatprep.mubr.f32.mxu0 0.0
      %1499 = vmatmul.mubr.f32.gmra.mrb[0].mxu0 %v1340
      %v1500 = vpop.f32.mrb[0].mxu0
      %v1501 = vadd.f32 0.0, %v1500
      %v1502 = vpop.f32.mrb[0].mxu0
      %1503 = vmatprep.mubr.f32.mxu0 0.0
      %1504 = vmatmul.mubr.f32.gmra.mrb[0].mxu0 %v1342
      %v1505 = vpop.f32.mrb[0].mxu0
      %v1506 = vadd.f32 0.0, %v1505
      %v1507 = vpop.f32.mrb[0].mxu0
      %1508 = vmatprep.mubr.f32.mxu0 0.0
      %1509 = vmatmul.mubr.f32.gmra.mrb[0].mxu0 %v1344
      %v1510 = vpop.f32.mrb[0].mxu0
      %v1511 = vadd.f32 0.0, %v1510
      %v1512 = vpop.f32.mrb[0].mxu0
      %1513 = vmatprep.mubr.f32.mxu0 0.0
      %1514 = vmatmul.mubr.f32.gmra.mrb[0].mxu0 %v1346
      %v1515 = vpop.f32.mrb[0].mxu0
      %v1516 = vadd.f32 0.0, %v1515
      %v1517 = vpop.f32.mrb[0].mxu0
      %1518 = vmatprep.mubr.f32.mxu0 0.0
      %1519 = vmatmul.mubr.f32.gmra.mrb[0].mxu0 %v1348
      %v1520 = vpop.f32.mrb[0].mxu0
      %v1521 = vadd.f32 0.0, %v1520
      %v1522 = vpop.f32.mrb[0].mxu0
      %1523 = vmatprep.mubr.f32.mxu0 0.0
      %1524 = vmatmul.mubr.f32.gmra.mrb[0].mxu0 %v1350
      %v1525 = vpop.f32.mrb[0].mxu0
      %v1526 = vadd.f32 0.0, %v1525
      %v1527 = vpop.f32.mrb[0].mxu0
      %1528 = vmatprep.mubr.f32.mxu0 0.0
      %1529 = vmatmul.mubr.f32.gmra.mrb[0].mxu0 %v1352
      %v1530 = vpop.f32.mrb[0].mxu0
      %v1531 = vadd.f32 0.0, %v1530
      %v1532 = vpop.f32.mrb[0].mxu0
      %1533 = vmatprep.mubr.f32.mxu0 0.0
      %1534 = vmatmul.mubr.f32.gmra.mrb[0].mxu0 %v1354
      %v1535 = vpop.f32.mrb[0].mxu0
      %v1536 = vadd.f32 0.0, %v1535
      %v1537 = vpop.f32.mrb[0].mxu0
      %1538 = vmatprep.mubr.f32.mxu0 0.0
      %1539 = vmatmul.mubr.f32.gmra.mrb[0].mxu0 %v1356
      %v1540 = vpop.f32.mrb[0].mxu0
      %v1541 = vadd.f32 0.0, %v1540
      %v1542 = vpop.f32.mrb[0].mxu0
      %1543 = vmatprep.mubr.f32.mxu0 0.0
      %1544 = vmatmul.mubr.f32.gmra.mrb[0].mxu0 %v1358
      %v1545 = vpop.f32.mrb[0].mxu0
      %v1546 = vadd.f32 0.0, %v1545
      %v1547 = vpop.f32.mrb[0].mxu0
      %1548 = vmatprep.mubr.f32.mxu0 0.0
      %1549 = vmatmul.mubr.f32.gmra.mrb[0].mxu0 %v1360
      %v1550 = vpop.f32.mrb[0].mxu0
      %v1551 = vadd.f32 0.0, %v1550
      %v1552 = vpop.f32.mrb[0].mxu0
      %1553 = vmatprep.mubr.f32.mxu0 0.0
      %1554 = vmatmul.mubr.f32.gmra.mrb[0].mxu0 %v1362
      %v1555 = vpop.f32.mrb[0].mxu0
      %v1556 = vadd.f32 0.0, %v1555
      %v1557 = vpop.f32.mrb[0].mxu0
      %1558 = vmatprep.mubr.f32.mxu0 0.0
      %1559 = vmatmul.mubr.f32.gmra.mrb[0].mxu0 %v1364
      %v1560 = vpop.f32.mrb[0].mxu0
      %v1561 = vadd.f32 0.0, %v1560
      %v1562 = vpop.f32.mrb[0].mxu0
      %1563 = vmatprep.mubr.f32.mxu0 0.0
      %1564 = vmatmul.mubr.f32.gmra.mrb[0].mxu0 %v1366
      %v1565 = vpop.f32.mrb[0].mxu0
      %v1566 = vadd.f32 0.0, %v1565
      %v1567 = vpop.f32.mrb[0].mxu0
      %1568 = vmatprep.mubr.f32.mxu0 0.0
      %1569 = vmatmul.mubr.f32.gmra.mrb[0].mxu0 %v1368
      %v1570 = vpop.f32.mrb[0].mxu0
      %v1571 = vadd.f32 0.0, %v1570
      %v1572 = vpop.f32.mrb[0].mxu0
      %1573 = vmatprep.mubr.f32.mxu0 0.0
      %1574 = vmatmul.mubr.f32.gmra.mrb[0].mxu0 %v1370
      %v1575 = vpop.f32.mrb[0].mxu0
      %v1576 = vadd.f32 0.0, %v1575
      %v1577 = vpop.f32.mrb[0].mxu0
      %1578 = vmatprep.mubr.f32.mxu0 0.0
      %1579 = vmatmul.mubr.f32.gmra.mrb[0].mxu0 %v1372
      %v1580 = vpop.f32.mrb[0].mxu0
      %v1581 = vadd.f32 0.0, %v1580
      %v1582 = vpop.f32.mrb[0].mxu0
      %1583 = vmatprep.mubr.f32.mxu0 0.0
      %1584 = vmatmul.mubr.f32.gmra.mrb[0].mxu0 %v1374
      %v1585 = vpop.f32.mrb[0].mxu0
      %v1586 = vadd.f32 0.0, %v1585
      %v1587 = vpop.f32.mrb[0].mxu0
      %1588 = vmatprep.mubr.f32.mxu0 0.0
      %1589 = vmatmul.mubr.f32.gmra.mrb[0].mxu0 %v1376
      %v1590 = vpop.f32.mrb[0].mxu0
      %v1591 = vadd.f32 0.0, %v1590
      %v1592 = vpop.f32.mrb[0].mxu0
      %1593 = vmatprep.mubr.f32.mxu0 0.0
      %1594 = vmatmul.mubr.f32.gmra.mrb[0].mxu0 %v1378
      %v1595 = vpop.f32.mrb[0].mxu0
      %v1596 = vadd.f32 0.0, %v1595
      %v1597 = vpop.f32.mrb[0].mxu0
      %1598 = vmatprep.mubr.f32.mxu0 0.0
      %1599 = vmatmul.mubr.f32.gmra.mrb[0].mxu0 %v1380
      %v1600 = vpop.f32.mrb[0].mxu0
      %v1601 = vadd.f32 0.0, %v1600
      %v1602 = vpop.f32.mrb[0].mxu0
      %1603 = vmatprep.mubr.f32.mxu0 0.0
      %1604 = vmatmul.mubr.f32.gmra.mrb[0].mxu0 %v1382
      %v1605 = vpop.f32.mrb[0].mxu0
      %v1606 = vadd.f32 0.0, %v1605
      %v1607 = vpop.f32.mrb[0].mxu0
      %1608 = vmatprep.mubr.f32.mxu0 0.0
      %1609 = vmatmul.mubr.f32.gmra.mrb[0].mxu0 %v1384
      %v1610 = vpop.f32.mrb[0].mxu0
      %v1611 = vadd.f32 0.0, %v1610
      %v1612 = vpop.f32.mrb[0].mxu0
      %1613 = vdwg.mxu0
      %v1614 = vadd.f32 %v1166, %v1456
      %v1615 = vadd.f32 %v1171, %v1461
      %v1616 = vadd.f32 %v1176, %v1466
      %v1617 = vadd.f32 %v1181, %v1471
      %v1618 = vadd.f32 %v1186, %v1476
      %v1619 = vadd.f32 %v1191, %v1481
      %v1620 = vadd.f32 %v1196, %v1486
      %v1621 = vadd.f32 %v1201, %v1491
      %v1622 = vadd.f32 %v1206, %v1496
      %v1623 = vadd.f32 %v1211, %v1501
      %v1624 = vadd.f32 %v1216, %v1506
      %v1625 = vadd.f32 %v1221, %v1511
      %v1626 = vadd.f32 %v1226, %v1516
      %v1627 = vadd.f32 %v1231, %v1521
      %v1628 = vadd.f32 %v1236, %v1526
      %v1629 = vadd.f32 %v1241, %v1531
      %v1630 = vadd.f32 %v1246, %v1536
      %v1631 = vadd.f32 %v1251, %v1541
      %v1632 = vadd.f32 %v1256, %v1546
      %v1633 = vadd.f32 %v1261, %v1551
      %v1634 = vadd.f32 %v1266, %v1556
      %v1635 = vadd.f32 %v1271, %v1561
      %v1636 = vadd.f32 %v1276, %v1566
      %v1637 = vadd.f32 %v1281, %v1571
      %v1638 = vadd.f32 %v1286, %v1576
      %v1639 = vadd.f32 %v1291, %v1581
      %v1640 = vadd.f32 %v1296, %v1586
      %v1641 = vadd.f32 %v1301, %v1591
      %v1642 = vadd.f32 %v1306, %v1596
      %v1643 = vadd.f32 %v1311, %v1601
      %v1644 = vadd.f32 %v1316, %v1606
      %v1645 = vadd.f32 %v1321, %v1611
      %vm1647 = vcmask 1046528
      %v1648 = vrot.slane %v264, 1
      %v1649 = vrot.slane %v265, 1
      %v1650 = vsel %vm1647, %v1648, %v1649
      %v1651 = vrot.slane %v266, 1
      %v1652 = vsel %vm1647, %v1649, %v1651
      %v1653 = vrot.slane %v267, 1
      %v1654 = vsel %vm1647, %v1651, %v1653
      %v1655 = vrot.slane %v268, 1
      %v1656 = vsel %vm1647, %v1653, %v1655
      %v1657 = vrot.slane %v269, 1
      %v1658 = vsel %vm1647, %v1655, %v1657
      %v1659 = vrot.slane %v270, 1
      %v1660 = vsel %vm1647, %v1657, %v1659
      %v1661 = vrot.slane %v271, 1
      %v1662 = vsel %vm1647, %v1659, %v1661
      %v1663 = vrot.slane %v272, 1
      %v1664 = vsel %vm1647, %v1661, %v1663
      %v1665 = vrot.slane %v273, 1
      %v1666 = vsel %vm1647, %v1663, %v1665
      %v1667 = vrot.slane %v274, 1
      %v1668 = vsel %vm1647, %v1665, %v1667
      %v1669 = vrot.slane %v275, 1
      %v1670 = vsel %vm1647, %v1667, %v1669
      %v1671 = vrot.slane %v276, 1
      %v1672 = vsel %vm1647, %v1669, %v1671
      %v1673 = vrot.slane %v277, 1
      %v1674 = vsel %vm1647, %v1671, %v1673
      %v1675 = vrot.slane %v278, 1
      %v1676 = vsel %vm1647, %v1673, %v1675
      %v1677 = vrot.slane %v279, 1
      %v1678 = vsel %vm1647, %v1675, %v1677
      %v1679 = vrot.slane %v280, 1
      %v1680 = vsel %vm1647, %v1677, %v1679
      %v1681 = vrot.slane %v281, 1
      %v1682 = vsel %vm1647, %v1679, %v1681
      %v1683 = vrot.slane %v282, 1
      %v1684 = vsel %vm1647, %v1681, %v1683
      %v1685 = vrot.slane %v283, 1
      %v1686 = vsel %vm1647, %v1683, %v1685
      %v1687 = vrot.slane %v284, 1
      %v1688 = vsel %vm1647, %v1685, %v1687
      %v1689 = vrot.slane %v285, 1
      %v1690 = vsel %vm1647, %v1687, %v1689
      %v1691 = vrot.slane %v286, 1
      %v1692 = vsel %vm1647, %v1689, %v1691
      %v1693 = vrot.slane %v287, 1
      %v1694 = vsel %vm1647, %v1691, %v1693
      %v1695 = vrot.slane %v288, 1
      %v1696 = vsel %vm1647, %v1693, %v1695
      %v1697 = vrot.slane %v289, 1
      %v1698 = vsel %vm1647, %v1695, %v1697
      %v1699 = vrot.slane %v290, 1
      %v1700 = vsel %vm1647, %v1697, %v1699
      %v1701 = vrot.slane %v291, 1
      %v1702 = vsel %vm1647, %v1699, %v1701
      %v1703 = vrot.slane %v292, 1
      %v1704 = vsel %vm1647, %v1701, %v1703
      %v1705 = vrot.slane %v293, 1
      %v1706 = vsel %vm1647, %v1703, %v1705
      %v1707 = vrot.slane %v294, 1
      %v1708 = vsel %vm1647, %v1705, %v1707
      %v1740 = vsel %vm1647, 0.0, %v1648
      %1741 = vset.pattern.permute.xlu0 1
      %1742 = vperm.xlu0 %1741, %v329
      %v1743 = vpop.permute.xlu0 %1742
      %1745 = vset.pattern.permute.xlu0 1
      %1746 = vperm.xlu0 %1745, %v330
      %v1747 = vpop.permute.xlu0 %1746
      %1749 = vset.pattern.permute.xlu0 1
      %1750 = vperm.xlu0 %1749, %v331
      %v1751 = vpop.permute.xlu0 %1750
      %1753 = vset.pattern.permute.xlu0 1
      %1754 = vperm.xlu0 %1753, %v332
      %v1755 = vpop.permute.xlu0 %1754
      %1757 = vset.pattern.permute.xlu0 1
      %1758 = vperm.xlu0 %1757, %v333
      %v1759 = vpop.permute.xlu0 %1758
      %1761 = vset.pattern.permute.xlu0 1
      %1762 = vperm.xlu0 %1761, %v334
      %v1763 = vpop.permute.xlu0 %1762
      %1765 = vset.pattern.permute.xlu0 1
      %1766 = vperm.xlu0 %1765, %v335
      %v1767 = vpop.permute.xlu0 %1766
      %1769 = vset.pattern.permute.xlu0 1
      %1770 = vperm.xlu0 %1769, %v336
      %v1771 = vpop.permute.xlu0 %1770
      %1773 = vset.pattern.permute.xlu0 1
      %1774 = vperm.xlu0 %1773, %v337
      %v1775 = vpop.permute.xlu0 %1774
      %1777 = vset.pattern.permute.xlu0 1
      %1778 = vperm.xlu0 %1777, %v338
      %v1779 = vpop.permute.xlu0 %1778
      %1781 = vset.pattern.permute.xlu0 1
      %1782 = vperm.xlu0 %1781, %v339
      %v1783 = vpop.permute.xlu0 %1782
      %1785 = vset.pattern.permute.xlu0 1
      %1786 = vperm.xlu0 %1785, %v340
      %v1787 = vpop.permute.xlu0 %1786
      %1789 = vset.pattern.permute.xlu0 1
      %1790 = vperm.xlu0 %1789, %v341
      %v1791 = vpop.permute.xlu0 %1790
      %1793 = vset.pattern.permute.xlu0 1
      %1794 = vperm.xlu0 %1793, %v342
      %v1795 = vpop.permute.xlu0 %1794
      %1797 = vset.pattern.permute.xlu0 1
      %1798 = vperm.xlu0 %1797, %v343
      %v1799 = vpop.permute.xlu0 %1798
      %1801 = vset.pattern.permute.xlu0 1
      %1802 = vperm.xlu0 %1801, %v344
      %v1803 = vpop.permute.xlu0 %1802
      %1805 = vset.pattern.permute.xlu0 1
      %1806 = vperm.xlu0 %1805, %v345
      %v1807 = vpop.permute.xlu0 %1806
      %1809 = vset.pattern.permute.xlu0 1
      %1810 = vperm.xlu0 %1809, %v346
      %v1811 = vpop.permute.xlu0 %1810
      %1813 = vset.pattern.permute.xlu0 1
      %1814 = vperm.xlu0 %1813, %v347
      %v1815 = vpop.permute.xlu0 %1814
      %1817 = vset.pattern.permute.xlu0 1
      %1818 = vperm.xlu0 %1817, %v348
      %v1819 = vpop.permute.xlu0 %1818
      %1821 = vset.pattern.permute.xlu0 1
      %1822 = vperm.xlu0 %1821, %v349
      %v1823 = vpop.permute.xlu0 %1822
      %1825 = vset.pattern.permute.xlu0 1
      %1826 = vperm.xlu0 %1825, %v350
      %v1827 = vpop.permute.xlu0 %1826
      %1829 = vset.pattern.permute.xlu0 1
      %1830 = vperm.xlu0 %1829, %v351
      %v1831 = vpop.permute.xlu0 %1830
      %1833 = vset.pattern.permute.xlu0 1
      %1834 = vperm.xlu0 %1833, %v352
      %v1835 = vpop.permute.xlu0 %1834
      %1837 = vset.pattern.permute.xlu0 1
      %1838 = vperm.xlu0 %1837, %v353
      %v1839 = vpop.permute.xlu0 %1838
      %1841 = vset.pattern.permute.xlu0 1
      %1842 = vperm.xlu0 %1841, %v354
      %v1843 = vpop.permute.xlu0 %1842
      %1845 = vset.pattern.permute.xlu0 1
      %1846 = vperm.xlu0 %1845, %v355
      %v1847 = vpop.permute.xlu0 %1846
      %1849 = vset.pattern.permute.xlu0 1
      %1850 = vperm.xlu0 %1849, %v356
      %v1851 = vpop.permute.xlu0 %1850
      %1853 = vset.pattern.permute.xlu0 1
      %1854 = vperm.xlu0 %1853, %v357
      %v1855 = vpop.permute.xlu0 %1854
      %1857 = vset.pattern.permute.xlu0 1
      %1858 = vperm.xlu0 %1857, %v358
      %v1859 = vpop.permute.xlu0 %1858
      %1861 = vset.pattern.permute.xlu0 1
      %1862 = vperm.xlu0 %1861, %v359
      %v1863 = vpop.permute.xlu0 %1862
      %1865 = vset.pattern.permute.xlu0 1
      %1866 = vperm.xlu0 %1865, %v360
      %v1867 = vpop.permute.xlu0 %1866
      %v1869 = vmul.f32 %v1743, 0.0
      %v1870 = vmul.f32 %v1740, %v1747
      %v1871 = vmul.f32 %v1650, %v1751
      %v1872 = vmul.f32 %v1652, %v1755
      %v1873 = vmul.f32 %v1654, %v1759
      %v1874 = vmul.f32 %v1656, %v1763
      %v1875 = vmul.f32 %v1658, %v1767
      %v1876 = vmul.f32 %v1660, %v1771
      %v1877 = vmul.f32 %v1662, %v1775
      %v1878 = vmul.f32 %v1664, %v1779
      %v1879 = vmul.f32 %v1666, %v1783
      %v1880 = vmul.f32 %v1668, %v1787
      %v1881 = vmul.f32 %v1670, %v1791
      %v1882 = vmul.f32 %v1672, %v1795
      %v1883 = vmul.f32 %v1674, %v1799
      %v1884 = vmul.f32 %v1676, %v1803
      %v1885 = vmul.f32 %v1678, %v1807
      %v1886 = vmul.f32 %v1680, %v1811
      %v1887 = vmul.f32 %v1682, %v1815
      %v1888 = vmul.f32 %v1684, %v1819
      %v1889 = vmul.f32 %v1686, %v1823
      %v1890 = vmul.f32 %v1688, %v1827
      %v1891 = vmul.f32 %v1690, %v1831
      %v1892 = vmul.f32 %v1692, %v1835
      %v1893 = vmul.f32 %v1694, %v1839
      %v1894 = vmul.f32 %v1696, %v1843
      %v1895 = vmul.f32 %v1698, %v1847
      %v1896 = vmul.f32 %v1700, %v1851
      %v1897 = vmul.f32 %v1702, %v1855
      %v1898 = vmul.f32 %v1704, %v1859
      %v1899 = vmul.f32 %v1706, %v1863
      %v1900 = vmul.f32 %v1708, %v1867
      %s1901 = scalar_lea.vmem %s1, 12
      %v1902 = vld [vmem:[%s1901] sm:$0x7]
      %v1904 = vsel %vm677, %v1869, 0
      %v1907 = vsel %vm677, %v1870, 0
      %v1910 = vsel %vm677, %v1871, 0
      %v1913 = vsel %vm677, %v1872, 0
      %v1916 = vsel %vm677, %v1873, 0
      %v1919 = vsel %vm677, %v1874, 0
      %v1922 = vsel %vm677, %v1875, 0
      %v1925 = vsel %vm677, %v1876, 0
      %v1928 = vsel %vm677, %v1877, 0
      %v1931 = vsel %vm677, %v1878, 0
      %v1934 = vsel %vm677, %v1879, 0
      %v1937 = vsel %vm677, %v1880, 0
      %v1940 = vsel %vm677, %v1881, 0
      %v1943 = vsel %vm677, %v1882, 0
      %v1946 = vsel %vm677, %v1883, 0
      %v1949 = vsel %vm677, %v1884, 0
      %v1952 = vsel %vm677, %v1885, 0
      %v1955 = vsel %vm677, %v1886, 0
      %v1958 = vsel %vm677, %v1887, 0
      %v1961 = vsel %vm677, %v1888, 0
      %v1964 = vsel %vm677, %v1889, 0
      %v1967 = vsel %vm677, %v1890, 0
      %v1970 = vsel %vm677, %v1891, 0
      %v1973 = vsel %vm677, %v1892, 0
      %v1976 = vsel %vm677, %v1893, 0
      %v1979 = vsel %vm677, %v1894, 0
      %v1982 = vsel %vm677, %v1895, 0
      %v1985 = vsel %vm677, %v1896, 0
      %v1988 = vsel %vm677, %v1897, 0
      %v1991 = vsel %vm677, %v1898, 0
      %v1994 = vsel %vm677, %v1899, 0
      %v1997 = vsel %vm677, %v1900, 0
      %v2000 = vsel %vm771, %v1902, 0
      %2002 = vmatprep.subr.mxu0 0.0
      %2003 = vmatpush1.msra.mxu0 %v2000
      %2004 = vmatprep.subr.mxu0 0.0
      %2005 = vmatpush1.msra.mxu0 0.0
      %2006 = vmatprep.subr.mxu0 0.0
      %2007 = vmatpush1.msra.mxu0 0.0
      %2008 = vmatprep.subr.mxu0 0.0
      %2009 = vmatpush1.msra.mxu0 0.0
      %2010 = vmatprep.subr.mxu0 0.0
      %2011 = vmatpush1.msra.mxu0 0.0
      %2012 = vmatprep.subr.mxu0 0.0
      %2013 = vmatpush1.msra.mxu0 0.0
      %2014 = vmatprep.subr.mxu0 0.0
      %2015 = vmatpush1.msra.mxu0 0.0
      %2016 = vmatprep.subr.mxu0 0.0
      %2017 = vmatpush1.msra.mxu0 0.0
      %2018 = vmatprep.subr.mxu0 0.0
      %2019 = vmatpush1.msra.mxu0 0.0
      %2020 = vmatprep.subr.mxu0 0.0
      %2021 = vmatpush1.msra.mxu0 0.0
      %2022 = vmatprep.subr.mxu0 0.0
      %2023 = vmatpush1.msra.mxu0 0.0
      %2024 = vmatprep.subr.mxu0 0.0
      %2025 = vmatpush1.msra.mxu0 0.0
      %2026 = vmatprep.subr.mxu0 0.0
      %2027 = vmatpush1.msra.mxu0 0.0
      %2028 = vmatprep.subr.mxu0 0.0
      %2029 = vmatpush1.msra.mxu0 0.0
      %2030 = vmatprep.subr.mxu0 0.0
      %2031 = vmatpush1.msra.mxu0 0.0
      %2032 = vmatprep.subr.mxu0 0.0
      %2033 = vmatpush1.msra.mxu0 0.0
      %2034 = vmatprep.subr.mxu0 0.0
      %2035 = vmatpush1.msra.mxu0 0.0
      %2036 = vmatprep.subr.mxu0 0.0
      %2037 = vmatpush1.msra.mxu0 0.0
      %2038 = vmatprep.subr.mxu0 0.0
      %2039 = vmatpush1.msra.mxu0 0.0
      %2040 = vmatprep.subr.mxu0 0.0
      %2041 = vmatpush1.msra.mxu0 0.0
      %2042 = vmatprep.subr.mxu0 0.0
      %2043 = vmatpush1.msra.mxu0 0.0
      %2044 = vmatprep.subr.mxu0 0.0
      %2045 = vmatpush1.msra.mxu0 0.0
      %2046 = vmatprep.subr.mxu0 0.0
      %2047 = vmatpush1.msra.mxu0 0.0
      %2048 = vmatprep.subr.mxu0 0.0
      %2049 = vmatpush1.msra.mxu0 0.0
      %2050 = vmatprep.subr.mxu0 0.0
      %2051 = vmatpush1.msra.mxu0 0.0
      %2052 = vmatprep.subr.mxu0 0.0
      %2053 = vmatpush1.msra.mxu0 0.0
      %2054 = vmatprep.subr.mxu0 0.0
      %2055 = vmatpush1.msra.mxu0 0.0
      %2056 = vmatprep.subr.mxu0 0.0
      %2057 = vmatpush1.msra.mxu0 0.0
      %2058 = vmatprep.subr.mxu0 0.0
      %2059 = vmatpush1.msra.mxu0 0.0
      %2060 = vmatprep.subr.mxu0 0.0
      %2061 = vmatpush1.msra.mxu0 0.0
      %2062 = vmatprep.subr.mxu0 0.0
      %2063 = vmatpush1.msra.mxu0 0.0
      %2064 = vmatprep.subr.mxu0 0.0
      %2065 = vmatpush1.msra.mxu0 0.0
      %2066 = vmatprep.mubr.f32.mxu0 0.0
      %2067 = vmatmul.mubr.f32.gmra.mrb[0].mxu0 %v1904
      %v2068 = vpop.f32.mrb[0].mxu0
      %v2069 = vadd.f32 0.0, %v2068
      %v2070 = vpop.f32.mrb[0].mxu0
      %2071 = vmatprep.mubr.f32.mxu0 0.0
      %2072 = vmatmul.mubr.f32.gmra.mrb[0].mxu0 %v1907
      %v2073 = vpop.f32.mrb[0].mxu0
      %v2074 = vadd.f32 0.0, %v2073
      %v2075 = vpop.f32.mrb[0].mxu0
      %2076 = vmatprep.mubr.f32.mxu0 0.0
      %2077 = vmatmul.mubr.f32.gmra.mrb[0].mxu0 %v1910
      %v2078 = vpop.f32.mrb[0].mxu0
      %v2079 = vadd.f32 0.0, %v2078
      %v2080 = vpop.f32.mrb[0].mxu0
      %2081 = vmatprep.mubr.f32.mxu0 0.0
      %2082 = vmatmul.mubr.f32.gmra.mrb[0].mxu0 %v1913
      %v2083 = vpop.f32.mrb[0].mxu0
      %v2084 = vadd.f32 0.0, %v2083
      %v2085 = vpop.f32.mrb[0].mxu0
      %2086 = vmatprep.mubr.f32.mxu0 0.0
      %2087 = vmatmul.mubr.f32.gmra.mrb[0].mxu0 %v1916
      %v2088 = vpop.f32.mrb[0].mxu0
      %v2089 = vadd.f32 0.0, %v2088
      %v2090 = vpop.f32.mrb[0].mxu0
      %2091 = vmatprep.mubr.f32.mxu0 0.0
      %2092 = vmatmul.mubr.f32.gmra.mrb[0].mxu0 %v1919
      %v2093 = vpop.f32.mrb[0].mxu0
      %v2094 = vadd.f32 0.0, %v2093
      %v2095 = vpop.f32.mrb[0].mxu0
      %2096 = vmatprep.mubr.f32.mxu0 0.0
      %2097 = vmatmul.mubr.f32.gmra.mrb[0].mxu0 %v1922
      %v2098 = vpop.f32.mrb[0].mxu0
      %v2099 = vadd.f32 0.0, %v2098
      %v2100 = vpop.f32.mrb[0].mxu0
      %2101 = vmatprep.mubr.f32.mxu0 0.0
      %2102 = vmatmul.mubr.f32.gmra.mrb[0].mxu0 %v1925
      %v2103 = vpop.f32.mrb[0].mxu0
      %v2104 = vadd.f32 0.0, %v2103
      %v2105 = vpop.f32.mrb[0].mxu0
      %2106 = vmatprep.mubr.f32.mxu0 0.0
      %2107 = vmatmul.mubr.f32.gmra.mrb[0].mxu0 %v1928
      %v2108 = vpop.f32.mrb[0].mxu0
      %v2109 = vadd.f32 0.0, %v2108
      %v2110 = vpop.f32.mrb[0].mxu0
      %2111 = vmatprep.mubr.f32.mxu0 0.0
      %2112 = vmatmul.mubr.f32.gmra.mrb[0].mxu0 %v1931
      %v2113 = vpop.f32.mrb[0].mxu0
      %v2114 = vadd.f32 0.0, %v2113
      %v2115 = vpop.f32.mrb[0].mxu0
      %2116 = vmatprep.mubr.f32.mxu0 0.0
      %2117 = vmatmul.mubr.f32.gmra.mrb[0].mxu0 %v1934
      %v2118 = vpop.f32.mrb[0].mxu0
      %v2119 = vadd.f32 0.0, %v2118
      %v2120 = vpop.f32.mrb[0].mxu0
      %2121 = vmatprep.mubr.f32.mxu0 0.0
      %2122 = vmatmul.mubr.f32.gmra.mrb[0].mxu0 %v1937
      %v2123 = vpop.f32.mrb[0].mxu0
      %v2124 = vadd.f32 0.0, %v2123
      %v2125 = vpop.f32.mrb[0].mxu0
      %2126 = vmatprep.mubr.f32.mxu0 0.0
      %2127 = vmatmul.mubr.f32.gmra.mrb[0].mxu0 %v1940
      %v2128 = vpop.f32.mrb[0].mxu0
      %v2129 = vadd.f32 0.0, %v2128
      %v2130 = vpop.f32.mrb[0].mxu0
      %2131 = vmatprep.mubr.f32.mxu0 0.0
      %2132 = vmatmul.mubr.f32.gmra.mrb[0].mxu0 %v1943
      %v2133 = vpop.f32.mrb[0].mxu0
      %v2134 = vadd.f32 0.0, %v2133
      %v2135 = vpop.f32.mrb[0].mxu0
      %2136 = vmatprep.mubr.f32.mxu0 0.0
      %2137 = vmatmul.mubr.f32.gmra.mrb[0].mxu0 %v1946
      %v2138 = vpop.f32.mrb[0].mxu0
      %v2139 = vadd.f32 0.0, %v2138
      %v2140 = vpop.f32.mrb[0].mxu0
      %2141 = vmatprep.mubr.f32.mxu0 0.0
      %2142 = vmatmul.mubr.f32.gmra.mrb[0].mxu0 %v1949
      %v2143 = vpop.f32.mrb[0].mxu0
      %v2144 = vadd.f32 0.0, %v2143
      %v2145 = vpop.f32.mrb[0].mxu0
      %2146 = vmatprep.mubr.f32.mxu0 0.0
      %2147 = vmatmul.mubr.f32.gmra.mrb[0].mxu0 %v1952
      %v2148 = vpop.f32.mrb[0].mxu0
      %v2149 = vadd.f32 0.0, %v2148
      %v2150 = vpop.f32.mrb[0].mxu0
      %2151 = vmatprep.mubr.f32.mxu0 0.0
      %2152 = vmatmul.mubr.f32.gmra.mrb[0].mxu0 %v1955
      %v2153 = vpop.f32.mrb[0].mxu0
      %v2154 = vadd.f32 0.0, %v2153
      %v2155 = vpop.f32.mrb[0].mxu0
      %2156 = vmatprep.mubr.f32.mxu0 0.0
      %2157 = vmatmul.mubr.f32.gmra.mrb[0].mxu0 %v1958
      %v2158 = vpop.f32.mrb[0].mxu0
      %v2159 = vadd.f32 0.0, %v2158
      %v2160 = vpop.f32.mrb[0].mxu0
      %2161 = vmatprep.mubr.f32.mxu0 0.0
      %2162 = vmatmul.mubr.f32.gmra.mrb[0].mxu0 %v1961
      %v2163 = vpop.f32.mrb[0].mxu0
      %v2164 = vadd.f32 0.0, %v2163
      %v2165 = vpop.f32.mrb[0].mxu0
      %2166 = vmatprep.mubr.f32.mxu0 0.0
      %2167 = vmatmul.mubr.f32.gmra.mrb[0].mxu0 %v1964
      %v2168 = vpop.f32.mrb[0].mxu0
      %v2169 = vadd.f32 0.0, %v2168
      %v2170 = vpop.f32.mrb[0].mxu0
      %2171 = vmatprep.mubr.f32.mxu0 0.0
      %2172 = vmatmul.mubr.f32.gmra.mrb[0].mxu0 %v1967
      %v2173 = vpop.f32.mrb[0].mxu0
      %v2174 = vadd.f32 0.0, %v2173
      %v2175 = vpop.f32.mrb[0].mxu0
      %2176 = vmatprep.mubr.f32.mxu0 0.0
      %2177 = vmatmul.mubr.f32.gmra.mrb[0].mxu0 %v1970
      %v2178 = vpop.f32.mrb[0].mxu0
      %v2179 = vadd.f32 0.0, %v2178
      %v2180 = vpop.f32.mrb[0].mxu0
      %2181 = vmatprep.mubr.f32.mxu0 0.0
      %2182 = vmatmul.mubr.f32.gmra.mrb[0].mxu0 %v1973
      %v2183 = vpop.f32.mrb[0].mxu0
      %v2184 = vadd.f32 0.0, %v2183
      %v2185 = vpop.f32.mrb[0].mxu0
      %2186 = vmatprep.mubr.f32.mxu0 0.0
      %2187 = vmatmul.mubr.f32.gmra.mrb[0].mxu0 %v1976
      %v2188 = vpop.f32.mrb[0].mxu0
      %v2189 = vadd.f32 0.0, %v2188
      %v2190 = vpop.f32.mrb[0].mxu0
      %2191 = vmatprep.mubr.f32.mxu0 0.0
      %2192 = vmatmul.mubr.f32.gmra.mrb[0].mxu0 %v1979
      %v2193 = vpop.f32.mrb[0].mxu0
      %v2194 = vadd.f32 0.0, %v2193
      %v2195 = vpop.f32.mrb[0].mxu0
      %2196 = vmatprep.mubr.f32.mxu0 0.0
      %2197 = vmatmul.mubr.f32.gmra.mrb[0].mxu0 %v1982
      %v2198 = vpop.f32.mrb[0].mxu0
      %v2199 = vadd.f32 0.0, %v2198
      %v2200 = vpop.f32.mrb[0].mxu0
      %2201 = vmatprep.mubr.f32.mxu0 0.0
      %2202 = vmatmul.mubr.f32.gmra.mrb[0].mxu0 %v1985
      %v2203 = vpop.f32.mrb[0].mxu0
      %v2204 = vadd.f32 0.0, %v2203
      %v2205 = vpop.f32.mrb[0].mxu0
      %2206 = vmatprep.mubr.f32.mxu0 0.0
      %2207 = vmatmul.mubr.f32.gmra.mrb[0].mxu0 %v1988
      %v2208 = vpop.f32.mrb[0].mxu0
      %v2209 = vadd.f32 0.0, %v2208
      %v2210 = vpop.f32.mrb[0].mxu0
      %2211 = vmatprep.mubr.f32.mxu0 0.0
      %2212 = vmatmul.mubr.f32.gmra.mrb[0].mxu0 %v1991
      %v2213 = vpop.f32.mrb[0].mxu0
      %v2214 = vadd.f32 0.0, %v2213
      %v2215 = vpop.f32.mrb[0].mxu0
      %2216 = vmatprep.mubr.f32.mxu0 0.0
      %2217 = vmatmul.mubr.f32.gmra.mrb[0].mxu0 %v1994
      %v2218 = vpop.f32.mrb[0].mxu0
      %v2219 = vadd.f32 0.0, %v2218
      %v2220 = vpop.f32.mrb[0].mxu0
      %2221 = vmatprep.mubr.f32.mxu0 0.0
      %2222 = vmatmul.mubr.f32.gmra.mrb[0].mxu0 %v1997
      %v2223 = vpop.f32.mrb[0].mxu0
      %v2224 = vadd.f32 0.0, %v2223
      %v2225 = vpop.f32.mrb[0].mxu0
      %2226 = vdwg.mxu0
      %v2227 = vadd.f32 %v1614, %v2069
      %v2228 = vadd.f32 %v1615, %v2074
      %v2229 = vadd.f32 %v1616, %v2079
      %v2230 = vadd.f32 %v1617, %v2084
      %v2231 = vadd.f32 %v1618, %v2089
      %v2232 = vadd.f32 %v1619, %v2094
      %v2233 = vadd.f32 %v1620, %v2099
      %v2234 = vadd.f32 %v1621, %v2104
      %v2235 = vadd.f32 %v1622, %v2109
      %v2236 = vadd.f32 %v1623, %v2114
      %v2237 = vadd.f32 %v1624, %v2119
      %v2238 = vadd.f32 %v1625, %v2124
      %v2239 = vadd.f32 %v1626, %v2129
      %v2240 = vadd.f32 %v1627, %v2134
      %v2241 = vadd.f32 %v1628, %v2139
      %v2242 = vadd.f32 %v1629, %v2144
      %v2243 = vadd.f32 %v1630, %v2149
      %v2244 = vadd.f32 %v1631, %v2154
      %v2245 = vadd.f32 %v1632, %v2159
      %v2246 = vadd.f32 %v1633, %v2164
      %v2247 = vadd.f32 %v1634, %v2169
      %v2248 = vadd.f32 %v1635, %v2174
      %v2249 = vadd.f32 %v1636, %v2179
      %v2250 = vadd.f32 %v1637, %v2184
      %v2251 = vadd.f32 %v1638, %v2189
      %v2252 = vadd.f32 %v1639, %v2194
      %v2253 = vadd.f32 %v1640, %v2199
      %v2254 = vadd.f32 %v1641, %v2204
      %v2255 = vadd.f32 %v1642, %v2209
      %v2256 = vadd.f32 %v1643, %v2214
      %v2257 = vadd.f32 %v1644, %v2219
      %v2258 = vadd.f32 %v1645, %v2224
      %v2291 = vrot.slane %v231, 7
      %v2292 = vrot.slane %v232, 7
      %v2293 = vsel %vm391, %v2291, %v2292
      %v2294 = vrot.slane %v233, 7
      %v2295 = vsel %vm391, %v2292, %v2294
      %v2296 = vrot.slane %v234, 7
      %v2297 = vsel %vm391, %v2294, %v2296
      %v2298 = vrot.slane %v235, 7
      %v2299 = vsel %vm391, %v2296, %v2298
      %v2300 = vrot.slane %v236, 7
      %v2301 = vsel %vm391, %v2298, %v2300
      %v2302 = vrot.slane %v237, 7
      %v2303 = vsel %vm391, %v2300, %v2302
      %v2304 = vrot.slane %v238, 7
      %v2305 = vsel %vm391, %v2302, %v2304
      %v2306 = vrot.slane %v239, 7
      %v2307 = vsel %vm391, %v2304, %v2306
      %v2308 = vrot.slane %v240, 7
      %v2309 = vsel %vm391, %v2306, %v2308
      %v2310 = vrot.slane %v241, 7
      %v2311 = vsel %vm391, %v2308, %v2310
      %v2312 = vrot.slane %v242, 7
      %v2313 = vsel %vm391, %v2310, %v2312
      %v2314 = vrot.slane %v243, 7
      %v2315 = vsel %vm391, %v2312, %v2314
      %v2316 = vrot.slane %v244, 7
      %v2317 = vsel %vm391, %v2314, %v2316
      %v2318 = vrot.slane %v245, 7
      %v2319 = vsel %vm391, %v2316, %v2318
      %v2320 = vrot.slane %v246, 7
      %v2321 = vsel %vm391, %v2318, %v2320
      %v2322 = vrot.slane %v247, 7
      %v2323 = vsel %vm391, %v2320, %v2322
      %v2324 = vrot.slane %v248, 7
      %v2325 = vsel %vm391, %v2322, %v2324
      %v2326 = vrot.slane %v249, 7
      %v2327 = vsel %vm391, %v2324, %v2326
      %v2328 = vrot.slane %v250, 7
      %v2329 = vsel %vm391, %v2326, %v2328
      %v2330 = vrot.slane %v251, 7
      %v2331 = vsel %vm391, %v2328, %v2330
      %v2332 = vrot.slane %v252, 7
      %v2333 = vsel %vm391, %v2330, %v2332
      %v2334 = vrot.slane %v253, 7
      %v2335 = vsel %vm391, %v2332, %v2334
      %v2336 = vrot.slane %v254, 7
      %v2337 = vsel %vm391, %v2334, %v2336
      %v2338 = vrot.slane %v255, 7
      %v2339 = vsel %vm391, %v2336, %v2338
      %v2340 = vrot.slane %v256, 7
      %v2341 = vsel %vm391, %v2338, %v2340
      %v2342 = vrot.slane %v257, 7
      %v2343 = vsel %vm391, %v2340, %v2342
      %v2344 = vrot.slane %v258, 7
      %v2345 = vsel %vm391, %v2342, %v2344
      %v2346 = vrot.slane %v259, 7
      %v2347 = vsel %vm391, %v2344, %v2346
      %v2348 = vrot.slane %v260, 7
      %v2349 = vsel %vm391, %v2346, %v2348
      %v2350 = vrot.slane %v261, 7
      %v2351 = vsel %vm391, %v2348, %v2350
      %v2352 = vrot.slane %v262, 7
      %v2353 = vsel %vm391, %v2350, %v2352
      %v2386 = vsel %vm391, 0.0, %v2291
      %v2387 = vmul.f32 %v2386, %v485
      %v2388 = vmul.f32 %v2293, %v490
      %v2389 = vmul.f32 %v2295, %v495
      %v2390 = vmul.f32 %v2297, %v500
      %v2391 = vmul.f32 %v2299, %v505
      %v2392 = vmul.f32 %v2301, %v510
      %v2393 = vmul.f32 %v2303, %v515
      %v2394 = vmul.f32 %v2305, %v520
      %v2395 = vmul.f32 %v2307, %v525
      %v2396 = vmul.f32 %v2309, %v530
      %v2397 = vmul.f32 %v2311, %v535
      %v2398 = vmul.f32 %v2313, %v540
      %v2399 = vmul.f32 %v2315, %v545
      %v2400 = vmul.f32 %v2317, %v550
      %v2401 = vmul.f32 %v2319, %v555
      %v2402 = vmul.f32 %v2321, %v560
      %v2403 = vmul.f32 %v2323, %v565
      %v2404 = vmul.f32 %v2325, %v570
      %v2405 = vmul.f32 %v2327, %v575
      %v2406 = vmul.f32 %v2329, %v580
      %v2407 = vmul.f32 %v2331, %v585
      %v2408 = vmul.f32 %v2333, %v590
      %v2409 = vmul.f32 %v2335, %v595
      %v2410 = vmul.f32 %v2337, %v600
      %v2411 = vmul.f32 %v2339, %v605
      %v2412 = vmul.f32 %v2341, %v610
      %v2413 = vmul.f32 %v2343, %v615
      %v2414 = vmul.f32 %v2345, %v620
      %v2415 = vmul.f32 %v2347, %v625
      %v2416 = vmul.f32 %v2349, %v630
      %v2417 = vmul.f32 %v2351, %v635
      %v2418 = vmul.f32 %v2353, %v640
      %s2419 = scalar_lea.vmem %s1, 16
      %v2420 = vld [vmem:[%s2419] sm:$0x7]
      %v2422 = vsel %vm677, %v2387, 0
      %v2425 = vsel %vm677, %v2388, 0
      %v2428 = vsel %vm677, %v2389, 0
      %v2431 = vsel %vm677, %v2390, 0
      %v2434 = vsel %vm677, %v2391, 0
      %v2437 = vsel %vm677, %v2392, 0
      %v2440 = vsel %vm677, %v2393, 0
      %v2443 = vsel %vm677, %v2394, 0
      %v2446 = vsel %vm677, %v2395, 0
      %v2449 = vsel %vm677, %v2396, 0
      %v2452 = vsel %vm677, %v2397, 0
      %v2455 = vsel %vm677, %v2398, 0
      %v2458 = vsel %vm677, %v2399, 0
      %v2461 = vsel %vm677, %v2400, 0
      %v2464 = vsel %vm677, %v2401, 0
      %v2467 = vsel %vm677, %v2402, 0
      %v2470 = vsel %vm677, %v2403, 0
      %v2473 = vsel %vm677, %v2404, 0
      %v2476 = vsel %vm677, %v2405, 0
      %v2479 = vsel %vm677, %v2406, 0
      %v2482 = vsel %vm677, %v2407, 0
      %v2485 = vsel %vm677, %v2408, 0
      %v2488 = vsel %vm677, %v2409, 0
      %v2491 = vsel %vm677, %v2410, 0
      %v2494 = vsel %vm677, %v2411, 0
      %v2497 = vsel %vm677, %v2412, 0
      %v2500 = vsel %vm677, %v2413, 0
      %v2503 = vsel %vm677, %v2414, 0
      %v2506 = vsel %vm677, %v2415, 0
      %v2509 = vsel %vm677, %v2416, 0
      %v2512 = vsel %vm677, %v2417, 0
      %v2515 = vsel %vm677, %v2418, 0
      %v2518 = vsel %vm771, %v2420, 0
      %2520 = vmatprep.subr.mxu0 0.0
      %2521 = vmatpush1.msra.mxu0 %v2518
      %2522 = vmatprep.subr.mxu0 0.0
      %2523 = vmatpush1.msra.mxu0 0.0
      %2524 = vmatprep.subr.mxu0 0.0
      %2525 = vmatpush1.msra.mxu0 0.0
      %2526 = vmatprep.subr.mxu0 0.0
      %2527 = vmatpush1.msra.mxu0 0.0
      %2528 = vmatprep.subr.mxu0 0.0
      %2529 = vmatpush1.msra.mxu0 0.0
      %2530 = vmatprep.subr.mxu0 0.0
      %2531 = vmatpush1.msra.mxu0 0.0
      %2532 = vmatprep.subr.mxu0 0.0
      %2533 = vmatpush1.msra.mxu0 0.0
      %2534 = vmatprep.subr.mxu0 0.0
      %2535 = vmatpush1.msra.mxu0 0.0
      %2536 = vmatprep.subr.mxu0 0.0
      %2537 = vmatpush1.msra.mxu0 0.0
      %2538 = vmatprep.subr.mxu0 0.0
      %2539 = vmatpush1.msra.mxu0 0.0
      %2540 = vmatprep.subr.mxu0 0.0
      %2541 = vmatpush1.msra.mxu0 0.0
      %2542 = vmatprep.subr.mxu0 0.0
      %2543 = vmatpush1.msra.mxu0 0.0
      %2544 = vmatprep.subr.mxu0 0.0
      %2545 = vmatpush1.msra.mxu0 0.0
      %2546 = vmatprep.subr.mxu0 0.0
      %2547 = vmatpush1.msra.mxu0 0.0
      %2548 = vmatprep.subr.mxu0 0.0
      %2549 = vmatpush1.msra.mxu0 0.0
      %2550 = vmatprep.subr.mxu0 0.0
      %2551 = vmatpush1.msra.mxu0 0.0
      %2552 = vmatprep.subr.mxu0 0.0
      %2553 = vmatpush1.msra.mxu0 0.0
      %2554 = vmatprep.subr.mxu0 0.0
      %2555 = vmatpush1.msra.mxu0 0.0
      %2556 = vmatprep.subr.mxu0 0.0
      %2557 = vmatpush1.msra.mxu0 0.0
      %2558 = vmatprep.subr.mxu0 0.0
      %2559 = vmatpush1.msra.mxu0 0.0
      %2560 = vmatprep.subr.mxu0 0.0
      %2561 = vmatpush1.msra.mxu0 0.0
      %2562 = vmatprep.subr.mxu0 0.0
      %2563 = vmatpush1.msra.mxu0 0.0
      %2564 = vmatprep.subr.mxu0 0.0
      %2565 = vmatpush1.msra.mxu0 0.0
      %2566 = vmatprep.subr.mxu0 0.0
      %2567 = vmatpush1.msra.mxu0 0.0
      %2568 = vmatprep.subr.mxu0 0.0
      %2569 = vmatpush1.msra.mxu0 0.0
      %2570 = vmatprep.subr.mxu0 0.0
      %2571 = vmatpush1.msra.mxu0 0.0
      %2572 = vmatprep.subr.mxu0 0.0
      %2573 = vmatpush1.msra.mxu0 0.0
      %2574 = vmatprep.subr.mxu0 0.0
      %2575 = vmatpush1.msra.mxu0 0.0
      %2576 = vmatprep.subr.mxu0 0.0
      %2577 = vmatpush1.msra.mxu0 0.0
      %2578 = vmatprep.subr.mxu0 0.0
      %2579 = vmatpush1.msra.mxu0 0.0
      %2580 = vmatprep.subr.mxu0 0.0
      %2581 = vmatpush1.msra.mxu0 0.0
      %2582 = vmatprep.subr.mxu0 0.0
      %2583 = vmatpush1.msra.mxu0 0.0
      %2584 = vmatprep.mubr.f32.mxu0 0.0
      %2585 = vmatmul.mubr.f32.gmra.mrb[0].mxu0 %v2422
      %v2586 = vpop.f32.mrb[0].mxu0
      %v2587 = vadd.f32 0.0, %v2586
      %v2588 = vpop.f32.mrb[0].mxu0
      %2589 = vmatprep.mubr.f32.mxu0 0.0
      %2590 = vmatmul.mubr.f32.gmra.mrb[0].mxu0 %v2425
      %v2591 = vpop.f32.mrb[0].mxu0
      %v2592 = vadd.f32 0.0, %v2591
      %v2593 = vpop.f32.mrb[0].mxu0
      %2594 = vmatprep.mubr.f32.mxu0 0.0
      %2595 = vmatmul.mubr.f32.gmra.mrb[0].mxu0 %v2428
      %v2596 = vpop.f32.mrb[0].mxu0
      %v2597 = vadd.f32 0.0, %v2596
      %v2598 = vpop.f32.mrb[0].mxu0
      %2599 = vmatprep.mubr.f32.mxu0 0.0
      %2600 = vmatmul.mubr.f32.gmra.mrb[0].mxu0 %v2431
      %v2601 = vpop.f32.mrb[0].mxu0
      %v2602 = vadd.f32 0.0, %v2601
      %v2603 = vpop.f32.mrb[0].mxu0
      %2604 = vmatprep.mubr.f32.mxu0 0.0
      %2605 = vmatmul.mubr.f32.gmra.mrb[0].mxu0 %v2434
      %v2606 = vpop.f32.mrb[0].mxu0
      %v2607 = vadd.f32 0.0, %v2606
      %v2608 = vpop.f32.mrb[0].mxu0
      %2609 = vmatprep.mubr.f32.mxu0 0.0
      %2610 = vmatmul.mubr.f32.gmra.mrb[0].mxu0 %v2437
      %v2611 = vpop.f32.mrb[0].mxu0
      %v2612 = vadd.f32 0.0, %v2611
      %v2613 = vpop.f32.mrb[0].mxu0
      %2614 = vmatprep.mubr.f32.mxu0 0.0
      %2615 = vmatmul.mubr.f32.gmra.mrb[0].mxu0 %v2440
      %v2616 = vpop.f32.mrb[0].mxu0
      %v2617 = vadd.f32 0.0, %v2616
      %v2618 = vpop.f32.mrb[0].mxu0
      %2619 = vmatprep.mubr.f32.mxu0 0.0
      %2620 = vmatmul.mubr.f32.gmra.mrb[0].mxu0 %v2443
      %v2621 = vpop.f32.mrb[0].mxu0
      %v2622 = vadd.f32 0.0, %v2621
      %v2623 = vpop.f32.mrb[0].mxu0
      %2624 = vmatprep.mubr.f32.mxu0 0.0
      %2625 = vmatmul.mubr.f32.gmra.mrb[0].mxu0 %v2446
      %v2626 = vpop.f32.mrb[0].mxu0
      %v2627 = vadd.f32 0.0, %v2626
      %v2628 = vpop.f32.mrb[0].mxu0
      %2629 = vmatprep.mubr.f32.mxu0 0.0
      %2630 = vmatmul.mubr.f32.gmra.mrb[0].mxu0 %v2449
      %v2631 = vpop.f32.mrb[0].mxu0
      %v2632 = vadd.f32 0.0, %v2631
      %v2633 = vpop.f32.mrb[0].mxu0
      %2634 = vmatprep.mubr.f32.mxu0 0.0
      %2635 = vmatmul.mubr.f32.gmra.mrb[0].mxu0 %v2452
      %v2636 = vpop.f32.mrb[0].mxu0
      %v2637 = vadd.f32 0.0, %v2636
      %v2638 = vpop.f32.mrb[0].mxu0
      %2639 = vmatprep.mubr.f32.mxu0 0.0
      %2640 = vmatmul.mubr.f32.gmra.mrb[0].mxu0 %v2455
      %v2641 = vpop.f32.mrb[0].mxu0
      %v2642 = vadd.f32 0.0, %v2641
      %v2643 = vpop.f32.mrb[0].mxu0
      %2644 = vmatprep.mubr.f32.mxu0 0.0
      %2645 = vmatmul.mubr.f32.gmra.mrb[0].mxu0 %v2458
      %v2646 = vpop.f32.mrb[0].mxu0
      %v2647 = vadd.f32 0.0, %v2646
      %v2648 = vpop.f32.mrb[0].mxu0
      %2649 = vmatprep.mubr.f32.mxu0 0.0
      %2650 = vmatmul.mubr.f32.gmra.mrb[0].mxu0 %v2461
      %v2651 = vpop.f32.mrb[0].mxu0
      %v2652 = vadd.f32 0.0, %v2651
      %v2653 = vpop.f32.mrb[0].mxu0
      %2654 = vmatprep.mubr.f32.mxu0 0.0
      %2655 = vmatmul.mubr.f32.gmra.mrb[0].mxu0 %v2464
      %v2656 = vpop.f32.mrb[0].mxu0
      %v2657 = vadd.f32 0.0, %v2656
      %v2658 = vpop.f32.mrb[0].mxu0
      %2659 = vmatprep.mubr.f32.mxu0 0.0
      %2660 = vmatmul.mubr.f32.gmra.mrb[0].mxu0 %v2467
      %v2661 = vpop.f32.mrb[0].mxu0
      %v2662 = vadd.f32 0.0, %v2661
      %v2663 = vpop.f32.mrb[0].mxu0
      %2664 = vmatprep.mubr.f32.mxu0 0.0
      %2665 = vmatmul.mubr.f32.gmra.mrb[0].mxu0 %v2470
      %v2666 = vpop.f32.mrb[0].mxu0
      %v2667 = vadd.f32 0.0, %v2666
      %v2668 = vpop.f32.mrb[0].mxu0
      %2669 = vmatprep.mubr.f32.mxu0 0.0
      %2670 = vmatmul.mubr.f32.gmra.mrb[0].mxu0 %v2473
      %v2671 = vpop.f32.mrb[0].mxu0
      %v2672 = vadd.f32 0.0, %v2671
      %v2673 = vpop.f32.mrb[0].mxu0
      %2674 = vmatprep.mubr.f32.mxu0 0.0
      %2675 = vmatmul.mubr.f32.gmra.mrb[0].mxu0 %v2476
      %v2676 = vpop.f32.mrb[0].mxu0
      %v2677 = vadd.f32 0.0, %v2676
      %v2678 = vpop.f32.mrb[0].mxu0
      %2679 = vmatprep.mubr.f32.mxu0 0.0
      %2680 = vmatmul.mubr.f32.gmra.mrb[0].mxu0 %v2479
      %v2681 = vpop.f32.mrb[0].mxu0
      %v2682 = vadd.f32 0.0, %v2681
      %v2683 = vpop.f32.mrb[0].mxu0
      %2684 = vmatprep.mubr.f32.mxu0 0.0
      %2685 = vmatmul.mubr.f32.gmra.mrb[0].mxu0 %v2482
      %v2686 = vpop.f32.mrb[0].mxu0
      %v2687 = vadd.f32 0.0, %v2686
      %v2688 = vpop.f32.mrb[0].mxu0
      %2689 = vmatprep.mubr.f32.mxu0 0.0
      %2690 = vmatmul.mubr.f32.gmra.mrb[0].mxu0 %v2485
      %v2691 = vpop.f32.mrb[0].mxu0
      %v2692 = vadd.f32 0.0, %v2691
      %v2693 = vpop.f32.mrb[0].mxu0
      %2694 = vmatprep.mubr.f32.mxu0 0.0
      %2695 = vmatmul.mubr.f32.gmra.mrb[0].mxu0 %v2488
      %v2696 = vpop.f32.mrb[0].mxu0
      %v2697 = vadd.f32 0.0, %v2696
      %v2698 = vpop.f32.mrb[0].mxu0
      %2699 = vmatprep.mubr.f32.mxu0 0.0
      %2700 = vmatmul.mubr.f32.gmra.mrb[0].mxu0 %v2491
      %v2701 = vpop.f32.mrb[0].mxu0
      %v2702 = vadd.f32 0.0, %v2701
      %v2703 = vpop.f32.mrb[0].mxu0
      %2704 = vmatprep.mubr.f32.mxu0 0.0
      %2705 = vmatmul.mubr.f32.gmra.mrb[0].mxu0 %v2494
      %v2706 = vpop.f32.mrb[0].mxu0
      %v2707 = vadd.f32 0.0, %v2706
      %v2708 = vpop.f32.mrb[0].mxu0
      %2709 = vmatprep.mubr.f32.mxu0 0.0
      %2710 = vmatmul.mubr.f32.gmra.mrb[0].mxu0 %v2497
      %v2711 = vpop.f32.mrb[0].mxu0
      %v2712 = vadd.f32 0.0, %v2711
      %v2713 = vpop.f32.mrb[0].mxu0
      %2714 = vmatprep.mubr.f32.mxu0 0.0
      %2715 = vmatmul.mubr.f32.gmra.mrb[0].mxu0 %v2500
      %v2716 = vpop.f32.mrb[0].mxu0
      %v2717 = vadd.f32 0.0, %v2716
      %v2718 = vpop.f32.mrb[0].mxu0
      %2719 = vmatprep.mubr.f32.mxu0 0.0
      %2720 = vmatmul.mubr.f32.gmra.mrb[0].mxu0 %v2503
      %v2721 = vpop.f32.mrb[0].mxu0
      %v2722 = vadd.f32 0.0, %v2721
      %v2723 = vpop.f32.mrb[0].mxu0
      %2724 = vmatprep.mubr.f32.mxu0 0.0
      %2725 = vmatmul.mubr.f32.gmra.mrb[0].mxu0 %v2506
      %v2726 = vpop.f32.mrb[0].mxu0
      %v2727 = vadd.f32 0.0, %v2726
      %v2728 = vpop.f32.mrb[0].mxu0
      %2729 = vmatprep.mubr.f32.mxu0 0.0
      %2730 = vmatmul.mubr.f32.gmra.mrb[0].mxu0 %v2509
      %v2731 = vpop.f32.mrb[0].mxu0
      %v2732 = vadd.f32 0.0, %v2731
      %v2733 = vpop.f32.mrb[0].mxu0
      %2734 = vmatprep.mubr.f32.mxu0 0.0
      %2735 = vmatmul.mubr.f32.gmra.mrb[0].mxu0 %v2512
      %v2736 = vpop.f32.mrb[0].mxu0
      %v2737 = vadd.f32 0.0, %v2736
      %v2738 = vpop.f32.mrb[0].mxu0
      %2739 = vmatprep.mubr.f32.mxu0 0.0
      %2740 = vmatmul.mubr.f32.gmra.mrb[0].mxu0 %v2515
      %v2741 = vpop.f32.mrb[0].mxu0
      %v2742 = vadd.f32 0.0, %v2741
      %v2743 = vpop.f32.mrb[0].mxu0
      %2744 = vdwg.mxu0
      %v2745 = vadd.f32 %v2227, %v2587
      %v2746 = vadd.f32 %v2228, %v2592
      %v2747 = vadd.f32 %v2229, %v2597
      %v2748 = vadd.f32 %v2230, %v2602
      %v2749 = vadd.f32 %v2231, %v2607
      %v2750 = vadd.f32 %v2232, %v2612
      %v2751 = vadd.f32 %v2233, %v2617
      %v2752 = vadd.f32 %v2234, %v2622
      %v2753 = vadd.f32 %v2235, %v2627
      %v2754 = vadd.f32 %v2236, %v2632
      %v2755 = vadd.f32 %v2237, %v2637
      %v2756 = vadd.f32 %v2238, %v2642
      %v2757 = vadd.f32 %v2239, %v2647
      %v2758 = vadd.f32 %v2240, %v2652
      %v2759 = vadd.f32 %v2241, %v2657
      %v2760 = vadd.f32 %v2242, %v2662
      %v2761 = vadd.f32 %v2243, %v2667
      %v2762 = vadd.f32 %v2244, %v2672
      %v2763 = vadd.f32 %v2245, %v2677
      %v2764 = vadd.f32 %v2246, %v2682
      %v2765 = vadd.f32 %v2247, %v2687
      %v2766 = vadd.f32 %v2248, %v2692
      %v2767 = vadd.f32 %v2249, %v2697
      %v2768 = vadd.f32 %v2250, %v2702
      %v2769 = vadd.f32 %v2251, %v2707
      %v2770 = vadd.f32 %v2252, %v2712
      %v2771 = vadd.f32 %v2253, %v2717
      %v2772 = vadd.f32 %v2254, %v2722
      %v2773 = vadd.f32 %v2255, %v2727
      %v2774 = vadd.f32 %v2256, %v2732
      %v2775 = vadd.f32 %v2257, %v2737
      %v2776 = vadd.f32 %v2258, %v2742
      %s2777 = scalar_lea.vmem %s1, 20
      %v2778 = vld [vmem:[%s2777] sm:$0x7]
      %v2780 = vsel %vm677, %v198, 0
      %v2783 = vsel %vm677, %v199, 0
      %v2786 = vsel %vm677, %v200, 0
      %v2789 = vsel %vm677, %v201, 0
      %v2792 = vsel %vm677, %v202, 0
      %v2795 = vsel %vm677, %v203, 0
      %v2798 = vsel %vm677, %v204, 0
      %v2801 = vsel %vm677, %v205, 0
      %v2804 = vsel %vm677, %v206, 0
      %v2807 = vsel %vm677, %v207, 0
      %v2810 = vsel %vm677, %v208, 0
      %v2813 = vsel %vm677, %v209, 0
      %v2816 = vsel %vm677, %v210, 0
      %v2819 = vsel %vm677, %v211, 0
      %v2822 = vsel %vm677, %v212, 0
      %v2825 = vsel %vm677, %v213, 0
      %v2828 = vsel %vm677, %v214, 0
      %v2831 = vsel %vm677, %v215, 0
      %v2834 = vsel %vm677, %v216, 0
      %v2837 = vsel %vm677, %v217, 0
      %v2840 = vsel %vm677, %v218, 0
      %v2843 = vsel %vm677, %v219, 0
      %v2846 = vsel %vm677, %v220, 0
      %v2849 = vsel %vm677, %v221, 0
      %v2852 = vsel %vm677, %v222, 0
      %v2855 = vsel %vm677, %v223, 0
      %v2858 = vsel %vm677, %v224, 0
      %v2861 = vsel %vm677, %v225, 0
      %v2864 = vsel %vm677, %v226, 0
      %v2867 = vsel %vm677, %v227, 0
      %v2870 = vsel %vm677, %v228, 0
      %v2873 = vsel %vm677, %v229, 0
      %v2876 = vsel %vm771, %v2778, 0
      %2878 = vmatprep.subr.mxu0 0.0
      %2879 = vmatpush1.msra.mxu0 %v2876
      %2880 = vmatprep.subr.mxu0 0.0
      %2881 = vmatpush1.msra.mxu0 0.0
      %2882 = vmatprep.subr.mxu0 0.0
      %2883 = vmatpush1.msra.mxu0 0.0
      %2884 = vmatprep.subr.mxu0 0.0
      %2885 = vmatpush1.msra.mxu0 0.0
      %2886 = vmatprep.subr.mxu0 0.0
      %2887 = vmatpush1.msra.mxu0 0.0
      %2888 = vmatprep.subr.mxu0 0.0
      %2889 = vmatpush1.msra.mxu0 0.0
      %2890 = vmatprep.subr.mxu0 0.0
      %2891 = vmatpush1.msra.mxu0 0.0
      %2892 = vmatprep.subr.mxu0 0.0
      %2893 = vmatpush1.msra.mxu0 0.0
      %2894 = vmatprep.subr.mxu0 0.0
      %2895 = vmatpush1.msra.mxu0 0.0
      %2896 = vmatprep.subr.mxu0 0.0
      %2897 = vmatpush1.msra.mxu0 0.0
      %2898 = vmatprep.subr.mxu0 0.0
      %2899 = vmatpush1.msra.mxu0 0.0
      %2900 = vmatprep.subr.mxu0 0.0
      %2901 = vmatpush1.msra.mxu0 0.0
      %2902 = vmatprep.subr.mxu0 0.0
      %2903 = vmatpush1.msra.mxu0 0.0
      %2904 = vmatprep.subr.mxu0 0.0
      %2905 = vmatpush1.msra.mxu0 0.0
      %2906 = vmatprep.subr.mxu0 0.0
      %2907 = vmatpush1.msra.mxu0 0.0
      %2908 = vmatprep.subr.mxu0 0.0
      %2909 = vmatpush1.msra.mxu0 0.0
      %2910 = vmatprep.subr.mxu0 0.0
      %2911 = vmatpush1.msra.mxu0 0.0
      %2912 = vmatprep.subr.mxu0 0.0
      %2913 = vmatpush1.msra.mxu0 0.0
      %2914 = vmatprep.subr.mxu0 0.0
      %2915 = vmatpush1.msra.mxu0 0.0
      %2916 = vmatprep.subr.mxu0 0.0
      %2917 = vmatpush1.msra.mxu0 0.0
      %2918 = vmatprep.subr.mxu0 0.0
      %2919 = vmatpush1.msra.mxu0 0.0
      %2920 = vmatprep.subr.mxu0 0.0
      %2921 = vmatpush1.msra.mxu0 0.0
      %2922 = vmatprep.subr.mxu0 0.0
      %2923 = vmatpush1.msra.mxu0 0.0
      %2924 = vmatprep.subr.mxu0 0.0
      %2925 = vmatpush1.msra.mxu0 0.0
      %2926 = vmatprep.subr.mxu0 0.0
      %2927 = vmatpush1.msra.mxu0 0.0
      %2928 = vmatprep.subr.mxu0 0.0
      %2929 = vmatpush1.msra.mxu0 0.0
      %2930 = vmatprep.subr.mxu0 0.0
      %2931 = vmatpush1.msra.mxu0 0.0
      %2932 = vmatprep.subr.mxu0 0.0
      %2933 = vmatpush1.msra.mxu0 0.0
      %2934 = vmatprep.subr.mxu0 0.0
      %2935 = vmatpush1.msra.mxu0 0.0
      %2936 = vmatprep.subr.mxu0 0.0
      %2937 = vmatpush1.msra.mxu0 0.0
      %2938 = vmatprep.subr.mxu0 0.0
      %2939 = vmatpush1.msra.mxu0 0.0
      %2940 = vmatprep.subr.mxu0 0.0
      %2941 = vmatpush1.msra.mxu0 0.0
      %2942 = vmatprep.mubr.f32.mxu0 0.0
      %2943 = vmatmul.mubr.f32.gmra.mrb[0].mxu0 %v2780
      %v2944 = vpop.f32.mrb[0].mxu0
      %v2945 = vadd.f32 0.0, %v2944
      %v2946 = vpop.f32.mrb[0].mxu0
      %2947 = vmatprep.mubr.f32.mxu0 0.0
      %2948 = vmatmul.mubr.f32.gmra.mrb[0].mxu0 %v2783
      %v2949 = vpop.f32.mrb[0].mxu0
      %v2950 = vadd.f32 0.0, %v2949
      %v2951 = vpop.f32.mrb[0].mxu0
      %2952 = vmatprep.mubr.f32.mxu0 0.0
      %2953 = vmatmul.mubr.f32.gmra.mrb[0].mxu0 %v2786
      %v2954 = vpop.f32.mrb[0].mxu0
      %v2955 = vadd.f32 0.0, %v2954
      %v2956 = vpop.f32.mrb[0].mxu0
      %2957 = vmatprep.mubr.f32.mxu0 0.0
      %2958 = vmatmul.mubr.f32.gmra.mrb[0].mxu0 %v2789
      %v2959 = vpop.f32.mrb[0].mxu0
      %v2960 = vadd.f32 0.0, %v2959
      %v2961 = vpop.f32.mrb[0].mxu0
      %2962 = vmatprep.mubr.f32.mxu0 0.0
      %2963 = vmatmul.mubr.f32.gmra.mrb[0].mxu0 %v2792
      %v2964 = vpop.f32.mrb[0].mxu0
      %v2965 = vadd.f32 0.0, %v2964
      %v2966 = vpop.f32.mrb[0].mxu0
      %2967 = vmatprep.mubr.f32.mxu0 0.0
      %2968 = vmatmul.mubr.f32.gmra.mrb[0].mxu0 %v2795
      %v2969 = vpop.f32.mrb[0].mxu0
      %v2970 = vadd.f32 0.0, %v2969
      %v2971 = vpop.f32.mrb[0].mxu0
      %2972 = vmatprep.mubr.f32.mxu0 0.0
      %2973 = vmatmul.mubr.f32.gmra.mrb[0].mxu0 %v2798
      %v2974 = vpop.f32.mrb[0].mxu0
      %v2975 = vadd.f32 0.0, %v2974
      %v2976 = vpop.f32.mrb[0].mxu0
      %2977 = vmatprep.mubr.f32.mxu0 0.0
      %2978 = vmatmul.mubr.f32.gmra.mrb[0].mxu0 %v2801
      %v2979 = vpop.f32.mrb[0].mxu0
      %v2980 = vadd.f32 0.0, %v2979
      %v2981 = vpop.f32.mrb[0].mxu0
      %2982 = vmatprep.mubr.f32.mxu0 0.0
      %2983 = vmatmul.mubr.f32.gmra.mrb[0].mxu0 %v2804
      %v2984 = vpop.f32.mrb[0].mxu0
      %v2985 = vadd.f32 0.0, %v2984
      %v2986 = vpop.f32.mrb[0].mxu0
      %2987 = vmatprep.mubr.f32.mxu0 0.0
      %2988 = vmatmul.mubr.f32.gmra.mrb[0].mxu0 %v2807
      %v2989 = vpop.f32.mrb[0].mxu0
      %v2990 = vadd.f32 0.0, %v2989
      %v2991 = vpop.f32.mrb[0].mxu0
      %2992 = vmatprep.mubr.f32.mxu0 0.0
      %2993 = vmatmul.mubr.f32.gmra.mrb[0].mxu0 %v2810
      %v2994 = vpop.f32.mrb[0].mxu0
      %v2995 = vadd.f32 0.0, %v2994
      %v2996 = vpop.f32.mrb[0].mxu0
      %2997 = vmatprep.mubr.f32.mxu0 0.0
      %2998 = vmatmul.mubr.f32.gmra.mrb[0].mxu0 %v2813
      %v2999 = vpop.f32.mrb[0].mxu0
      %v3000 = vadd.f32 0.0, %v2999
      %v3001 = vpop.f32.mrb[0].mxu0
      %3002 = vmatprep.mubr.f32.mxu0 0.0
      %3003 = vmatmul.mubr.f32.gmra.mrb[0].mxu0 %v2816
      %v3004 = vpop.f32.mrb[0].mxu0
      %v3005 = vadd.f32 0.0, %v3004
      %v3006 = vpop.f32.mrb[0].mxu0
      %3007 = vmatprep.mubr.f32.mxu0 0.0
      %3008 = vmatmul.mubr.f32.gmra.mrb[0].mxu0 %v2819
      %v3009 = vpop.f32.mrb[0].mxu0
      %v3010 = vadd.f32 0.0, %v3009
      %v3011 = vpop.f32.mrb[0].mxu0
      %3012 = vmatprep.mubr.f32.mxu0 0.0
      %3013 = vmatmul.mubr.f32.gmra.mrb[0].mxu0 %v2822
      %v3014 = vpop.f32.mrb[0].mxu0
      %v3015 = vadd.f32 0.0, %v3014
      %v3016 = vpop.f32.mrb[0].mxu0
      %3017 = vmatprep.mubr.f32.mxu0 0.0
      %3018 = vmatmul.mubr.f32.gmra.mrb[0].mxu0 %v2825
      %v3019 = vpop.f32.mrb[0].mxu0
      %v3020 = vadd.f32 0.0, %v3019
      %v3021 = vpop.f32.mrb[0].mxu0
      %3022 = vmatprep.mubr.f32.mxu0 0.0
      %3023 = vmatmul.mubr.f32.gmra.mrb[0].mxu0 %v2828
      %v3024 = vpop.f32.mrb[0].mxu0
      %v3025 = vadd.f32 0.0, %v3024
      %v3026 = vpop.f32.mrb[0].mxu0
      %3027 = vmatprep.mubr.f32.mxu0 0.0
      %3028 = vmatmul.mubr.f32.gmra.mrb[0].mxu0 %v2831
      %v3029 = vpop.f32.mrb[0].mxu0
      %v3030 = vadd.f32 0.0, %v3029
      %v3031 = vpop.f32.mrb[0].mxu0
      %3032 = vmatprep.mubr.f32.mxu0 0.0
      %3033 = vmatmul.mubr.f32.gmra.mrb[0].mxu0 %v2834
      %v3034 = vpop.f32.mrb[0].mxu0
      %v3035 = vadd.f32 0.0, %v3034
      %v3036 = vpop.f32.mrb[0].mxu0
      %3037 = vmatprep.mubr.f32.mxu0 0.0
      %3038 = vmatmul.mubr.f32.gmra.mrb[0].mxu0 %v2837
      %v3039 = vpop.f32.mrb[0].mxu0
      %v3040 = vadd.f32 0.0, %v3039
      %v3041 = vpop.f32.mrb[0].mxu0
      %3042 = vmatprep.mubr.f32.mxu0 0.0
      %3043 = vmatmul.mubr.f32.gmra.mrb[0].mxu0 %v2840
      %v3044 = vpop.f32.mrb[0].mxu0
      %v3045 = vadd.f32 0.0, %v3044
      %v3046 = vpop.f32.mrb[0].mxu0
      %3047 = vmatprep.mubr.f32.mxu0 0.0
      %3048 = vmatmul.mubr.f32.gmra.mrb[0].mxu0 %v2843
      %v3049 = vpop.f32.mrb[0].mxu0
      %v3050 = vadd.f32 0.0, %v3049
      %v3051 = vpop.f32.mrb[0].mxu0
      %3052 = vmatprep.mubr.f32.mxu0 0.0
      %3053 = vmatmul.mubr.f32.gmra.mrb[0].mxu0 %v2846
      %v3054 = vpop.f32.mrb[0].mxu0
      %v3055 = vadd.f32 0.0, %v3054
      %v3056 = vpop.f32.mrb[0].mxu0
      %3057 = vmatprep.mubr.f32.mxu0 0.0
      %3058 = vmatmul.mubr.f32.gmra.mrb[0].mxu0 %v2849
      %v3059 = vpop.f32.mrb[0].mxu0
      %v3060 = vadd.f32 0.0, %v3059
      %v3061 = vpop.f32.mrb[0].mxu0
      %3062 = vmatprep.mubr.f32.mxu0 0.0
      %3063 = vmatmul.mubr.f32.gmra.mrb[0].mxu0 %v2852
      %v3064 = vpop.f32.mrb[0].mxu0
      %v3065 = vadd.f32 0.0, %v3064
      %v3066 = vpop.f32.mrb[0].mxu0
      %3067 = vmatprep.mubr.f32.mxu0 0.0
      %3068 = vmatmul.mubr.f32.gmra.mrb[0].mxu0 %v2855
      %v3069 = vpop.f32.mrb[0].mxu0
      %v3070 = vadd.f32 0.0, %v3069
      %v3071 = vpop.f32.mrb[0].mxu0
      %3072 = vmatprep.mubr.f32.mxu0 0.0
      %3073 = vmatmul.mubr.f32.gmra.mrb[0].mxu0 %v2858
      %v3074 = vpop.f32.mrb[0].mxu0
      %v3075 = vadd.f32 0.0, %v3074
      %v3076 = vpop.f32.mrb[0].mxu0
      %3077 = vmatprep.mubr.f32.mxu0 0.0
      %3078 = vmatmul.mubr.f32.gmra.mrb[0].mxu0 %v2861
      %v3079 = vpop.f32.mrb[0].mxu0
      %v3080 = vadd.f32 0.0, %v3079
      %v3081 = vpop.f32.mrb[0].mxu0
      %3082 = vmatprep.mubr.f32.mxu0 0.0
      %3083 = vmatmul.mubr.f32.gmra.mrb[0].mxu0 %v2864
      %v3084 = vpop.f32.mrb[0].mxu0
      %v3085 = vadd.f32 0.0, %v3084
      %v3086 = vpop.f32.mrb[0].mxu0
      %3087 = vmatprep.mubr.f32.mxu0 0.0
      %3088 = vmatmul.mubr.f32.gmra.mrb[0].mxu0 %v2867
      %v3089 = vpop.f32.mrb[0].mxu0
      %v3090 = vadd.f32 0.0, %v3089
      %v3091 = vpop.f32.mrb[0].mxu0
      %3092 = vmatprep.mubr.f32.mxu0 0.0
      %3093 = vmatmul.mubr.f32.gmra.mrb[0].mxu0 %v2870
      %v3094 = vpop.f32.mrb[0].mxu0
      %v3095 = vadd.f32 0.0, %v3094
      %v3096 = vpop.f32.mrb[0].mxu0
      %3097 = vmatprep.mubr.f32.mxu0 0.0
      %3098 = vmatmul.mubr.f32.gmra.mrb[0].mxu0 %v2873
      %v3099 = vpop.f32.mrb[0].mxu0
      %v3100 = vadd.f32 0.0, %v3099
      %v3101 = vpop.f32.mrb[0].mxu0
      %3102 = vdwg.mxu0
      %v3103 = vadd.f32 %v2745, %v2945
      %v3104 = vadd.f32 %v2746, %v2950
      %v3105 = vadd.f32 %v2747, %v2955
      %v3106 = vadd.f32 %v2748, %v2960
      %v3107 = vadd.f32 %v2749, %v2965
      %v3108 = vadd.f32 %v2750, %v2970
      %v3109 = vadd.f32 %v2751, %v2975
      %v3110 = vadd.f32 %v2752, %v2980
      %v3111 = vadd.f32 %v2753, %v2985
      %v3112 = vadd.f32 %v2754, %v2990
      %v3113 = vadd.f32 %v2755, %v2995
      %v3114 = vadd.f32 %v2756, %v3000
      %v3115 = vadd.f32 %v2757, %v3005
      %v3116 = vadd.f32 %v2758, %v3010
      %v3117 = vadd.f32 %v2759, %v3015
      %v3118 = vadd.f32 %v2760, %v3020
      %v3119 = vadd.f32 %v2761, %v3025
      %v3120 = vadd.f32 %v2762, %v3030
      %v3121 = vadd.f32 %v2763, %v3035
      %v3122 = vadd.f32 %v2764, %v3040
      %v3123 = vadd.f32 %v2765, %v3045
      %v3124 = vadd.f32 %v2766, %v3050
      %v3125 = vadd.f32 %v2767, %v3055
      %v3126 = vadd.f32 %v2768, %v3060
      %v3127 = vadd.f32 %v2769, %v3065
      %v3128 = vadd.f32 %v2770, %v3070
      %v3129 = vadd.f32 %v2771, %v3075
      %v3130 = vadd.f32 %v2772, %v3080
      %v3131 = vadd.f32 %v2773, %v3085
      %v3132 = vadd.f32 %v2774, %v3090
      %v3133 = vadd.f32 %v2775, %v3095
      %v3134 = vadd.f32 %v2776, %v3100
      %s3135 = scalar_lea.vmem %s1, 24
      %v3136 = vld [vmem:[%s3135] sm:$0x7]
      %v3137 = vsel %vm677, %v231, 0
      %v3139 = vsel %vm677, %v232, 0
      %v3141 = vsel %vm677, %v233, 0
      %v3143 = vsel %vm677, %v234, 0
      %v3145 = vsel %vm677, %v235, 0
      %v3147 = vsel %vm677, %v236, 0
      %v3149 = vsel %vm677, %v237, 0
      %v3151 = vsel %vm677, %v238, 0
      %v3153 = vsel %vm677, %v239, 0
      %v3155 = vsel %vm677, %v240, 0
      %v3157 = vsel %vm677, %v241, 0
      %v3159 = vsel %vm677, %v242, 0
      %v3161 = vsel %vm677, %v243, 0
      %v3163 = vsel %vm677, %v244, 0
      %v3165 = vsel %vm677, %v245, 0
      %v3167 = vsel %vm677, %v246, 0
      %v3169 = vsel %vm677, %v247, 0
      %v3171 = vsel %vm677, %v248, 0
      %v3173 = vsel %vm677, %v249, 0
      %v3175 = vsel %vm677, %v250, 0
      %v3177 = vsel %vm677, %v251, 0
      %v3179 = vsel %vm677, %v252, 0
      %v3181 = vsel %vm677, %v253, 0
      %v3183 = vsel %vm677, %v254, 0
      %v3185 = vsel %vm677, %v255, 0
      %v3187 = vsel %vm677, %v256, 0
      %v3189 = vsel %vm677, %v257, 0
      %v3191 = vsel %vm677, %v258, 0
      %v3193 = vsel %vm677, %v259, 0
      %v3195 = vsel %vm677, %v260, 0
      %v3197 = vsel %vm677, %v261, 0
      %v3199 = vsel %vm677, %v262, 0
      %v3202 = vsel %vm771, %v3136, 0
      %3204 = vmatprep.subr.mxu0 0.0
      %3205 = vmatpush1.msra.mxu0 %v3202
      %3206 = vmatprep.subr.mxu0 0.0
      %3207 = vmatpush1.msra.mxu0 0.0
      %3208 = vmatprep.subr.mxu0 0.0
      %3209 = vmatpush1.msra.mxu0 0.0
      %3210 = vmatprep.subr.mxu0 0.0
      %3211 = vmatpush1.msra.mxu0 0.0
      %3212 = vmatprep.subr.mxu0 0.0
      %3213 = vmatpush1.msra.mxu0 0.0
      %3214 = vmatprep.subr.mxu0 0.0
      %3215 = vmatpush1.msra.mxu0 0.0
      %3216 = vmatprep.subr.mxu0 0.0
      %3217 = vmatpush1.msra.mxu0 0.0
      %3218 = vmatprep.subr.mxu0 0.0
      %3219 = vmatpush1.msra.mxu0 0.0
      %3220 = vmatprep.subr.mxu0 0.0
      %3221 = vmatpush1.msra.mxu0 0.0
      %3222 = vmatprep.subr.mxu0 0.0
      %3223 = vmatpush1.msra.mxu0 0.0
      %3224 = vmatprep.subr.mxu0 0.0
      %3225 = vmatpush1.msra.mxu0 0.0
      %3226 = vmatprep.subr.mxu0 0.0
      %3227 = vmatpush1.msra.mxu0 0.0
      %3228 = vmatprep.subr.mxu0 0.0
      %3229 = vmatpush1.msra.mxu0 0.0
      %3230 = vmatprep.subr.mxu0 0.0
      %3231 = vmatpush1.msra.mxu0 0.0
      %3232 = vmatprep.subr.mxu0 0.0
      %3233 = vmatpush1.msra.mxu0 0.0
      %3234 = vmatprep.subr.mxu0 0.0
      %3235 = vmatpush1.msra.mxu0 0.0
      %3236 = vmatprep.subr.mxu0 0.0
      %3237 = vmatpush1.msra.mxu0 0.0
      %3238 = vmatprep.subr.mxu0 0.0
      %3239 = vmatpush1.msra.mxu0 0.0
      %3240 = vmatprep.subr.mxu0 0.0
      %3241 = vmatpush1.msra.mxu0 0.0
      %3242 = vmatprep.subr.mxu0 0.0
      %3243 = vmatpush1.msra.mxu0 0.0
      %3244 = vmatprep.subr.mxu0 0.0
      %3245 = vmatpush1.msra.mxu0 0.0
      %3246 = vmatprep.subr.mxu0 0.0
      %3247 = vmatpush1.msra.mxu0 0.0
      %3248 = vmatprep.subr.mxu0 0.0
      %3249 = vmatpush1.msra.mxu0 0.0
      %3250 = vmatprep.subr.mxu0 0.0
      %3251 = vmatpush1.msra.mxu0 0.0
      %3252 = vmatprep.subr.mxu0 0.0
      %3253 = vmatpush1.msra.mxu0 0.0
      %3254 = vmatprep.subr.mxu0 0.0
      %3255 = vmatpush1.msra.mxu0 0.0
      %3256 = vmatprep.subr.mxu0 0.0
      %3257 = vmatpush1.msra.mxu0 0.0
      %3258 = vmatprep.subr.mxu0 0.0
      %3259 = vmatpush1.msra.mxu0 0.0
      %3260 = vmatprep.subr.mxu0 0.0
      %3261 = vmatpush1.msra.mxu0 0.0
      %3262 = vmatprep.subr.mxu0 0.0
      %3263 = vmatpush1.msra.mxu0 0.0
      %3264 = vmatprep.subr.mxu0 0.0
      %3265 = vmatpush1.msra.mxu0 0.0
      %3266 = vmatprep.subr.mxu0 0.0
      %3267 = vmatpush1.msra.mxu0 0.0
      %3268 = vmatprep.mubr.f32.mxu0 0.0
      %3269 = vmatmul.mubr.f32.gmra.mrb[0].mxu0 %v3137
      %v3270 = vpop.f32.mrb[0].mxu0
      %v3271 = vadd.f32 0.0, %v3270
      %v3272 = vpop.f32.mrb[0].mxu0
      %3273 = vmatprep.mubr.f32.mxu0 0.0
      %3274 = vmatmul.mubr.f32.gmra.mrb[0].mxu0 %v3139
      %v3275 = vpop.f32.mrb[0].mxu0
      %v3276 = vadd.f32 0.0, %v3275
      %v3277 = vpop.f32.mrb[0].mxu0
      %3278 = vmatprep.mubr.f32.mxu0 0.0
      %3279 = vmatmul.mubr.f32.gmra.mrb[0].mxu0 %v3141
      %v3280 = vpop.f32.mrb[0].mxu0
      %v3281 = vadd.f32 0.0, %v3280
      %v3282 = vpop.f32.mrb[0].mxu0
      %3283 = vmatprep.mubr.f32.mxu0 0.0
      %3284 = vmatmul.mubr.f32.gmra.mrb[0].mxu0 %v3143
      %v3285 = vpop.f32.mrb[0].mxu0
      %v3286 = vadd.f32 0.0, %v3285
      %v3287 = vpop.f32.mrb[0].mxu0
      %3288 = vmatprep.mubr.f32.mxu0 0.0
      %3289 = vmatmul.mubr.f32.gmra.mrb[0].mxu0 %v3145
      %v3290 = vpop.f32.mrb[0].mxu0
      %v3291 = vadd.f32 0.0, %v3290
      %v3292 = vpop.f32.mrb[0].mxu0
      %3293 = vmatprep.mubr.f32.mxu0 0.0
      %3294 = vmatmul.mubr.f32.gmra.mrb[0].mxu0 %v3147
      %v3295 = vpop.f32.mrb[0].mxu0
      %v3296 = vadd.f32 0.0, %v3295
      %v3297 = vpop.f32.mrb[0].mxu0
      %3298 = vmatprep.mubr.f32.mxu0 0.0
      %3299 = vmatmul.mubr.f32.gmra.mrb[0].mxu0 %v3149
      %v3300 = vpop.f32.mrb[0].mxu0
      %v3301 = vadd.f32 0.0, %v3300
      %v3302 = vpop.f32.mrb[0].mxu0
      %3303 = vmatprep.mubr.f32.mxu0 0.0
      %3304 = vmatmul.mubr.f32.gmra.mrb[0].mxu0 %v3151
      %v3305 = vpop.f32.mrb[0].mxu0
      %v3306 = vadd.f32 0.0, %v3305
      %v3307 = vpop.f32.mrb[0].mxu0
      %3308 = vmatprep.mubr.f32.mxu0 0.0
      %3309 = vmatmul.mubr.f32.gmra.mrb[0].mxu0 %v3153
      %v3310 = vpop.f32.mrb[0].mxu0
      %v3311 = vadd.f32 0.0, %v3310
      %v3312 = vpop.f32.mrb[0].mxu0
      %3313 = vmatprep.mubr.f32.mxu0 0.0
      %3314 = vmatmul.mubr.f32.gmra.mrb[0].mxu0 %v3155
      %v3315 = vpop.f32.mrb[0].mxu0
      %v3316 = vadd.f32 0.0, %v3315
      %v3317 = vpop.f32.mrb[0].mxu0
      %3318 = vmatprep.mubr.f32.mxu0 0.0
      %3319 = vmatmul.mubr.f32.gmra.mrb[0].mxu0 %v3157
      %v3320 = vpop.f32.mrb[0].mxu0
      %v3321 = vadd.f32 0.0, %v3320
      %v3322 = vpop.f32.mrb[0].mxu0
      %3323 = vmatprep.mubr.f32.mxu0 0.0
      %3324 = vmatmul.mubr.f32.gmra.mrb[0].mxu0 %v3159
      %v3325 = vpop.f32.mrb[0].mxu0
      %v3326 = vadd.f32 0.0, %v3325
      %v3327 = vpop.f32.mrb[0].mxu0
      %3328 = vmatprep.mubr.f32.mxu0 0.0
      %3329 = vmatmul.mubr.f32.gmra.mrb[0].mxu0 %v3161
      %v3330 = vpop.f32.mrb[0].mxu0
      %v3331 = vadd.f32 0.0, %v3330
      %v3332 = vpop.f32.mrb[0].mxu0
      %3333 = vmatprep.mubr.f32.mxu0 0.0
      %3334 = vmatmul.mubr.f32.gmra.mrb[0].mxu0 %v3163
      %v3335 = vpop.f32.mrb[0].mxu0
      %v3336 = vadd.f32 0.0, %v3335
      %v3337 = vpop.f32.mrb[0].mxu0
      %3338 = vmatprep.mubr.f32.mxu0 0.0
      %3339 = vmatmul.mubr.f32.gmra.mrb[0].mxu0 %v3165
      %v3340 = vpop.f32.mrb[0].mxu0
      %v3341 = vadd.f32 0.0, %v3340
      %v3342 = vpop.f32.mrb[0].mxu0
      %3343 = vmatprep.mubr.f32.mxu0 0.0
      %3344 = vmatmul.mubr.f32.gmra.mrb[0].mxu0 %v3167
      %v3345 = vpop.f32.mrb[0].mxu0
      %v3346 = vadd.f32 0.0, %v3345
      %v3347 = vpop.f32.mrb[0].mxu0
      %3348 = vmatprep.mubr.f32.mxu0 0.0
      %3349 = vmatmul.mubr.f32.gmra.mrb[0].mxu0 %v3169
      %v3350 = vpop.f32.mrb[0].mxu0
      %v3351 = vadd.f32 0.0, %v3350
      %v3352 = vpop.f32.mrb[0].mxu0
      %3353 = vmatprep.mubr.f32.mxu0 0.0
      %3354 = vmatmul.mubr.f32.gmra.mrb[0].mxu0 %v3171
      %v3355 = vpop.f32.mrb[0].mxu0
      %v3356 = vadd.f32 0.0, %v3355
      %v3357 = vpop.f32.mrb[0].mxu0
      %3358 = vmatprep.mubr.f32.mxu0 0.0
      %3359 = vmatmul.mubr.f32.gmra.mrb[0].mxu0 %v3173
      %v3360 = vpop.f32.mrb[0].mxu0
      %v3361 = vadd.f32 0.0, %v3360
      %v3362 = vpop.f32.mrb[0].mxu0
      %3363 = vmatprep.mubr.f32.mxu0 0.0
      %3364 = vmatmul.mubr.f32.gmra.mrb[0].mxu0 %v3175
      %v3365 = vpop.f32.mrb[0].mxu0
      %v3366 = vadd.f32 0.0, %v3365
      %v3367 = vpop.f32.mrb[0].mxu0
      %3368 = vmatprep.mubr.f32.mxu0 0.0
      %3369 = vmatmul.mubr.f32.gmra.mrb[0].mxu0 %v3177
      %v3370 = vpop.f32.mrb[0].mxu0
      %v3371 = vadd.f32 0.0, %v3370
      %v3372 = vpop.f32.mrb[0].mxu0
      %3373 = vmatprep.mubr.f32.mxu0 0.0
      %3374 = vmatmul.mubr.f32.gmra.mrb[0].mxu0 %v3179
      %v3375 = vpop.f32.mrb[0].mxu0
      %v3376 = vadd.f32 0.0, %v3375
      %v3377 = vpop.f32.mrb[0].mxu0
      %3378 = vmatprep.mubr.f32.mxu0 0.0
      %3379 = vmatmul.mubr.f32.gmra.mrb[0].mxu0 %v3181
      %v3380 = vpop.f32.mrb[0].mxu0
      %v3381 = vadd.f32 0.0, %v3380
      %v3382 = vpop.f32.mrb[0].mxu0
      %3383 = vmatprep.mubr.f32.mxu0 0.0
      %3384 = vmatmul.mubr.f32.gmra.mrb[0].mxu0 %v3183
      %v3385 = vpop.f32.mrb[0].mxu0
      %v3386 = vadd.f32 0.0, %v3385
      %v3387 = vpop.f32.mrb[0].mxu0
      %3388 = vmatprep.mubr.f32.mxu0 0.0
      %3389 = vmatmul.mubr.f32.gmra.mrb[0].mxu0 %v3185
      %v3390 = vpop.f32.mrb[0].mxu0
      %v3391 = vadd.f32 0.0, %v3390
      %v3392 = vpop.f32.mrb[0].mxu0
      %3393 = vmatprep.mubr.f32.mxu0 0.0
      %3394 = vmatmul.mubr.f32.gmra.mrb[0].mxu0 %v3187
      %v3395 = vpop.f32.mrb[0].mxu0
      %v3396 = vadd.f32 0.0, %v3395
      %v3397 = vpop.f32.mrb[0].mxu0
      %3398 = vmatprep.mubr.f32.mxu0 0.0
      %3399 = vmatmul.mubr.f32.gmra.mrb[0].mxu0 %v3189
      %v3400 = vpop.f32.mrb[0].mxu0
      %v3401 = vadd.f32 0.0, %v3400
      %v3402 = vpop.f32.mrb[0].mxu0
      %3403 = vmatprep.mubr.f32.mxu0 0.0
      %3404 = vmatmul.mubr.f32.gmra.mrb[0].mxu0 %v3191
      %v3405 = vpop.f32.mrb[0].mxu0
      %v3406 = vadd.f32 0.0, %v3405
      %v3407 = vpop.f32.mrb[0].mxu0
      %3408 = vmatprep.mubr.f32.mxu0 0.0
      %3409 = vmatmul.mubr.f32.gmra.mrb[0].mxu0 %v3193
      %v3410 = vpop.f32.mrb[0].mxu0
      %v3411 = vadd.f32 0.0, %v3410
      %v3412 = vpop.f32.mrb[0].mxu0
      %3413 = vmatprep.mubr.f32.mxu0 0.0
      %3414 = vmatmul.mubr.f32.gmra.mrb[0].mxu0 %v3195
      %v3415 = vpop.f32.mrb[0].mxu0
      %v3416 = vadd.f32 0.0, %v3415
      %v3417 = vpop.f32.mrb[0].mxu0
      %3418 = vmatprep.mubr.f32.mxu0 0.0
      %3419 = vmatmul.mubr.f32.gmra.mrb[0].mxu0 %v3197
      %v3420 = vpop.f32.mrb[0].mxu0
      %v3421 = vadd.f32 0.0, %v3420
      %v3422 = vpop.f32.mrb[0].mxu0
      %3423 = vmatprep.mubr.f32.mxu0 0.0
      %3424 = vmatmul.mubr.f32.gmra.mrb[0].mxu0 %v3199
      %v3425 = vpop.f32.mrb[0].mxu0
      %v3426 = vadd.f32 0.0, %v3425
      %v3427 = vpop.f32.mrb[0].mxu0
      %3428 = vdwg.mxu0
      %v3429 = vadd.f32 %v3103, %v3271
      %v3430 = vadd.f32 %v3104, %v3276
      %v3431 = vadd.f32 %v3105, %v3281
      %v3432 = vadd.f32 %v3106, %v3286
      %v3433 = vadd.f32 %v3107, %v3291
      %v3434 = vadd.f32 %v3108, %v3296
      %v3435 = vadd.f32 %v3109, %v3301
      %v3436 = vadd.f32 %v3110, %v3306
      %v3437 = vadd.f32 %v3111, %v3311
      %v3438 = vadd.f32 %v3112, %v3316
      %v3439 = vadd.f32 %v3113, %v3321
      %v3440 = vadd.f32 %v3114, %v3326
      %v3441 = vadd.f32 %v3115, %v3331
      %v3442 = vadd.f32 %v3116, %v3336
      %v3443 = vadd.f32 %v3117, %v3341
      %v3444 = vadd.f32 %v3118, %v3346
      %v3445 = vadd.f32 %v3119, %v3351
      %v3446 = vadd.f32 %v3120, %v3356
      %v3447 = vadd.f32 %v3121, %v3361
      %v3448 = vadd.f32 %v3122, %v3366
      %v3449 = vadd.f32 %v3123, %v3371
      %v3450 = vadd.f32 %v3124, %v3376
      %v3451 = vadd.f32 %v3125, %v3381
      %v3452 = vadd.f32 %v3126, %v3386
      %v3453 = vadd.f32 %v3127, %v3391
      %v3454 = vadd.f32 %v3128, %v3396
      %v3455 = vadd.f32 %v3129, %v3401
      %v3456 = vadd.f32 %v3130, %v3406
      %v3457 = vadd.f32 %v3131, %v3411
      %v3458 = vadd.f32 %v3132, %v3416
      %v3459 = vadd.f32 %v3133, %v3421
      %v3460 = vadd.f32 %v3134, %v3426
      %v3461 = vrot.slane %v198, 1
      %v3462 = vrot.slane %v199, 1
      %v3463 = vsel %vm1647, %v3461, %v3462
      %v3464 = vrot.slane %v200, 1
      %v3465 = vsel %vm1647, %v3462, %v3464
      %v3466 = vrot.slane %v201, 1
      %v3467 = vsel %vm1647, %v3464, %v3466
      %v3468 = vrot.slane %v202, 1
      %v3469 = vsel %vm1647, %v3466, %v3468
      %v3470 = vrot.slane %v203, 1
      %v3471 = vsel %vm1647, %v3468, %v3470
      %v3472 = vrot.slane %v204, 1
      %v3473 = vsel %vm1647, %v3470, %v3472
      %v3474 = vrot.slane %v205, 1
      %v3475 = vsel %vm1647, %v3472, %v3474
      %v3476 = vrot.slane %v206, 1
      %v3477 = vsel %vm1647, %v3474, %v3476
      %v3478 = vrot.slane %v207, 1
      %v3479 = vsel %vm1647, %v3476, %v3478
      %v3480 = vrot.slane %v208, 1
      %v3481 = vsel %vm1647, %v3478, %v3480
      %v3482 = vrot.slane %v209, 1
      %v3483 = vsel %vm1647, %v3480, %v3482
      %v3484 = vrot.slane %v210, 1
      %v3485 = vsel %vm1647, %v3482, %v3484
      %v3486 = vrot.slane %v211, 1
      %v3487 = vsel %vm1647, %v3484, %v3486
      %v3488 = vrot.slane %v212, 1
      %v3489 = vsel %vm1647, %v3486, %v3488
      %v3490 = vrot.slane %v213, 1
      %v3491 = vsel %vm1647, %v3488, %v3490
      %v3492 = vrot.slane %v214, 1
      %v3493 = vsel %vm1647, %v3490, %v3492
      %v3494 = vrot.slane %v215, 1
      %v3495 = vsel %vm1647, %v3492, %v3494
      %v3496 = vrot.slane %v216, 1
      %v3497 = vsel %vm1647, %v3494, %v3496
      %v3498 = vrot.slane %v217, 1
      %v3499 = vsel %vm1647, %v3496, %v3498
      %v3500 = vrot.slane %v218, 1
      %v3501 = vsel %vm1647, %v3498, %v3500
      %v3502 = vrot.slane %v219, 1
      %v3503 = vsel %vm1647, %v3500, %v3502
      %v3504 = vrot.slane %v220, 1
      %v3505 = vsel %vm1647, %v3502, %v3504
      %v3506 = vrot.slane %v221, 1
      %v3507 = vsel %vm1647, %v3504, %v3506
      %v3508 = vrot.slane %v222, 1
      %v3509 = vsel %vm1647, %v3506, %v3508
      %v3510 = vrot.slane %v223, 1
      %v3511 = vsel %vm1647, %v3508, %v3510
      %v3512 = vrot.slane %v224, 1
      %v3513 = vsel %vm1647, %v3510, %v3512
      %v3514 = vrot.slane %v225, 1
      %v3515 = vsel %vm1647, %v3512, %v3514
      %v3516 = vrot.slane %v226, 1
      %v3517 = vsel %vm1647, %v3514, %v3516
      %v3518 = vrot.slane %v227, 1
      %v3519 = vsel %vm1647, %v3516, %v3518
      %v3520 = vrot.slane %v228, 1
      %v3521 = vsel %vm1647, %v3518, %v3520
      %v3522 = vrot.slane %v229, 1
      %v3523 = vsel %vm1647, %v3520, %v3522
      %v3556 = vsel %vm1647, %v3522, 0.0
      %v3557 = vmul.f32 %v3463, %v1743
      %v3558 = vmul.f32 %v3465, %v1747
      %v3559 = vmul.f32 %v3467, %v1751
      %v3560 = vmul.f32 %v3469, %v1755
      %v3561 = vmul.f32 %v3471, %v1759
      %v3562 = vmul.f32 %v3473, %v1763
      %v3563 = vmul.f32 %v3475, %v1767
      %v3564 = vmul.f32 %v3477, %v1771
      %v3565 = vmul.f32 %v3479, %v1775
      %v3566 = vmul.f32 %v3481, %v1779
      %v3567 = vmul.f32 %v3483, %v1783
      %v3568 = vmul.f32 %v3485, %v1787
      %v3569 = vmul.f32 %v3487, %v1791
      %v3570 = vmul.f32 %v3489, %v1795
      %v3571 = vmul.f32 %v3491, %v1799
      %v3572 = vmul.f32 %v3493, %v1803
      %v3573 = vmul.f32 %v3495, %v1807
      %v3574 = vmul.f32 %v3497, %v1811
      %v3575 = vmul.f32 %v3499, %v1815
      %v3576 = vmul.f32 %v3501, %v1819
      %v3577 = vmul.f32 %v3503, %v1823
      %v3578 = vmul.f32 %v3505, %v1827
      %v3579 = vmul.f32 %v3507, %v1831
      %v3580 = vmul.f32 %v3509, %v1835
      %v3581 = vmul.f32 %v3511, %v1839
      %v3582 = vmul.f32 %v3513, %v1843
      %v3583 = vmul.f32 %v3515, %v1847
      %v3584 = vmul.f32 %v3517, %v1851
      %v3585 = vmul.f32 %v3519, %v1855
      %v3586 = vmul.f32 %v3521, %v1859
      %v3587 = vmul.f32 %v3523, %v1863
      %v3588 = vmul.f32 %v3556, %v1867
      %s3589 = scalar_lea.vmem %s1, 28
      %v3590 = vld [vmem:[%s3589] sm:$0x7]
      %v3592 = vsel %vm677, %v3557, 0
      %v3595 = vsel %vm677, %v3558, 0
      %v3598 = vsel %vm677, %v3559, 0
      %v3601 = vsel %vm677, %v3560, 0
      %v3604 = vsel %vm677, %v3561, 0
      %v3607 = vsel %vm677, %v3562, 0
      %v3610 = vsel %vm677, %v3563, 0
      %v3613 = vsel %vm677, %v3564, 0
      %v3616 = vsel %vm677, %v3565, 0
      %v3619 = vsel %vm677, %v3566, 0
      %v3622 = vsel %vm677, %v3567, 0
      %v3625 = vsel %vm677, %v3568, 0
      %v3628 = vsel %vm677, %v3569, 0
      %v3631 = vsel %vm677, %v3570, 0
      %v3634 = vsel %vm677, %v3571, 0
      %v3637 = vsel %vm677, %v3572, 0
      %v3640 = vsel %vm677, %v3573, 0
      %v3643 = vsel %vm677, %v3574, 0
      %v3646 = vsel %vm677, %v3575, 0
      %v3649 = vsel %vm677, %v3576, 0
      %v3652 = vsel %vm677, %v3577, 0
      %v3655 = vsel %vm677, %v3578, 0
      %v3658 = vsel %vm677, %v3579, 0
      %v3661 = vsel %vm677, %v3580, 0
      %v3664 = vsel %vm677, %v3581, 0
      %v3667 = vsel %vm677, %v3582, 0
      %v3670 = vsel %vm677, %v3583, 0
      %v3673 = vsel %vm677, %v3584, 0
      %v3676 = vsel %vm677, %v3585, 0
      %v3679 = vsel %vm677, %v3586, 0
      %v3682 = vsel %vm677, %v3587, 0
      %v3685 = vsel %vm677, %v3588, 0
      %v3688 = vsel %vm771, %v3590, 0
      %3690 = vmatprep.subr.mxu0 0.0
      %3691 = vmatpush1.msra.mxu0 %v3688
      %3692 = vmatprep.subr.mxu0 0.0
      %3693 = vmatpush1.msra.mxu0 0.0
      %3694 = vmatprep.subr.mxu0 0.0
      %3695 = vmatpush1.msra.mxu0 0.0
      %3696 = vmatprep.subr.mxu0 0.0
      %3697 = vmatpush1.msra.mxu0 0.0
      %3698 = vmatprep.subr.mxu0 0.0
      %3699 = vmatpush1.msra.mxu0 0.0
      %3700 = vmatprep.subr.mxu0 0.0
      %3701 = vmatpush1.msra.mxu0 0.0
      %3702 = vmatprep.subr.mxu0 0.0
      %3703 = vmatpush1.msra.mxu0 0.0
      %3704 = vmatprep.subr.mxu0 0.0
      %3705 = vmatpush1.msra.mxu0 0.0
      %3706 = vmatprep.subr.mxu0 0.0
      %3707 = vmatpush1.msra.mxu0 0.0
      %3708 = vmatprep.subr.mxu0 0.0
      %3709 = vmatpush1.msra.mxu0 0.0
      %3710 = vmatprep.subr.mxu0 0.0
      %3711 = vmatpush1.msra.mxu0 0.0
      %3712 = vmatprep.subr.mxu0 0.0
      %3713 = vmatpush1.msra.mxu0 0.0
      %3714 = vmatprep.subr.mxu0 0.0
      %3715 = vmatpush1.msra.mxu0 0.0
      %3716 = vmatprep.subr.mxu0 0.0
      %3717 = vmatpush1.msra.mxu0 0.0
      %3718 = vmatprep.subr.mxu0 0.0
      %3719 = vmatpush1.msra.mxu0 0.0
      %3720 = vmatprep.subr.mxu0 0.0
      %3721 = vmatpush1.msra.mxu0 0.0
      %3722 = vmatprep.subr.mxu0 0.0
      %3723 = vmatpush1.msra.mxu0 0.0
      %3724 = vmatprep.subr.mxu0 0.0
      %3725 = vmatpush1.msra.mxu0 0.0
      %3726 = vmatprep.subr.mxu0 0.0
      %3727 = vmatpush1.msra.mxu0 0.0
      %3728 = vmatprep.subr.mxu0 0.0
      %3729 = vmatpush1.msra.mxu0 0.0
      %3730 = vmatprep.subr.mxu0 0.0
      %3731 = vmatpush1.msra.mxu0 0.0
      %3732 = vmatprep.subr.mxu0 0.0
      %3733 = vmatpush1.msra.mxu0 0.0
      %3734 = vmatprep.subr.mxu0 0.0
      %3735 = vmatpush1.msra.mxu0 0.0
      %3736 = vmatprep.subr.mxu0 0.0
      %3737 = vmatpush1.msra.mxu0 0.0
      %3738 = vmatprep.subr.mxu0 0.0
      %3739 = vmatpush1.msra.mxu0 0.0
      %3740 = vmatprep.subr.mxu0 0.0
      %3741 = vmatpush1.msra.mxu0 0.0
      %3742 = vmatprep.subr.mxu0 0.0
      %3743 = vmatpush1.msra.mxu0 0.0
      %3744 = vmatprep.subr.mxu0 0.0
      %3745 = vmatpush1.msra.mxu0 0.0
      %3746 = vmatprep.subr.mxu0 0.0
      %3747 = vmatpush1.msra.mxu0 0.0
      %3748 = vmatprep.subr.mxu0 0.0
      %3749 = vmatpush1.msra.mxu0 0.0
      %3750 = vmatprep.subr.mxu0 0.0
      %3751 = vmatpush1.msra.mxu0 0.0
      %3752 = vmatprep.subr.mxu0 0.0
      %3753 = vmatpush1.msra.mxu0 0.0
      %3754 = vmatprep.mubr.f32.mxu0 0.0
      %3755 = vmatmul.mubr.f32.gmra.mrb[0].mxu0 %v3592
      %v3756 = vpop.f32.mrb[0].mxu0
      %v3757 = vadd.f32 0.0, %v3756
      %v3758 = vpop.f32.mrb[0].mxu0
      %3759 = vmatprep.mubr.f32.mxu0 0.0
      %3760 = vmatmul.mubr.f32.gmra.mrb[0].mxu0 %v3595
      %v3761 = vpop.f32.mrb[0].mxu0
      %v3762 = vadd.f32 0.0, %v3761
      %v3763 = vpop.f32.mrb[0].mxu0
      %3764 = vmatprep.mubr.f32.mxu0 0.0
      %3765 = vmatmul.mubr.f32.gmra.mrb[0].mxu0 %v3598
      %v3766 = vpop.f32.mrb[0].mxu0
      %v3767 = vadd.f32 0.0, %v3766
      %v3768 = vpop.f32.mrb[0].mxu0
      %3769 = vmatprep.mubr.f32.mxu0 0.0
      %3770 = vmatmul.mubr.f32.gmra.mrb[0].mxu0 %v3601
      %v3771 = vpop.f32.mrb[0].mxu0
      %v3772 = vadd.f32 0.0, %v3771
      %v3773 = vpop.f32.mrb[0].mxu0
      %3774 = vmatprep.mubr.f32.mxu0 0.0
      %3775 = vmatmul.mubr.f32.gmra.mrb[0].mxu0 %v3604
      %v3776 = vpop.f32.mrb[0].mxu0
      %v3777 = vadd.f32 0.0, %v3776
      %v3778 = vpop.f32.mrb[0].mxu0
      %3779 = vmatprep.mubr.f32.mxu0 0.0
      %3780 = vmatmul.mubr.f32.gmra.mrb[0].mxu0 %v3607
      %v3781 = vpop.f32.mrb[0].mxu0
      %v3782 = vadd.f32 0.0, %v3781
      %v3783 = vpop.f32.mrb[0].mxu0
      %3784 = vmatprep.mubr.f32.mxu0 0.0
      %3785 = vmatmul.mubr.f32.gmra.mrb[0].mxu0 %v3610
      %v3786 = vpop.f32.mrb[0].mxu0
      %v3787 = vadd.f32 0.0, %v3786
      %v3788 = vpop.f32.mrb[0].mxu0
      %3789 = vmatprep.mubr.f32.mxu0 0.0
      %3790 = vmatmul.mubr.f32.gmra.mrb[0].mxu0 %v3613
      %v3791 = vpop.f32.mrb[0].mxu0
      %v3792 = vadd.f32 0.0, %v3791
      %v3793 = vpop.f32.mrb[0].mxu0
      %3794 = vmatprep.mubr.f32.mxu0 0.0
      %3795 = vmatmul.mubr.f32.gmra.mrb[0].mxu0 %v3616
      %v3796 = vpop.f32.mrb[0].mxu0
      %v3797 = vadd.f32 0.0, %v3796
      %v3798 = vpop.f32.mrb[0].mxu0
      %3799 = vmatprep.mubr.f32.mxu0 0.0
      %3800 = vmatmul.mubr.f32.gmra.mrb[0].mxu0 %v3619
      %v3801 = vpop.f32.mrb[0].mxu0
      %v3802 = vadd.f32 0.0, %v3801
      %v3803 = vpop.f32.mrb[0].mxu0
      %3804 = vmatprep.mubr.f32.mxu0 0.0
      %3805 = vmatmul.mubr.f32.gmra.mrb[0].mxu0 %v3622
      %v3806 = vpop.f32.mrb[0].mxu0
      %v3807 = vadd.f32 0.0, %v3806
      %v3808 = vpop.f32.mrb[0].mxu0
      %3809 = vmatprep.mubr.f32.mxu0 0.0
      %3810 = vmatmul.mubr.f32.gmra.mrb[0].mxu0 %v3625
      %v3811 = vpop.f32.mrb[0].mxu0
      %v3812 = vadd.f32 0.0, %v3811
      %v3813 = vpop.f32.mrb[0].mxu0
      %3814 = vmatprep.mubr.f32.mxu0 0.0
      %3815 = vmatmul.mubr.f32.gmra.mrb[0].mxu0 %v3628
      %v3816 = vpop.f32.mrb[0].mxu0
      %v3817 = vadd.f32 0.0, %v3816
      %v3818 = vpop.f32.mrb[0].mxu0
      %3819 = vmatprep.mubr.f32.mxu0 0.0
      %3820 = vmatmul.mubr.f32.gmra.mrb[0].mxu0 %v3631
      %v3821 = vpop.f32.mrb[0].mxu0
      %v3822 = vadd.f32 0.0, %v3821
      %v3823 = vpop.f32.mrb[0].mxu0
      %3824 = vmatprep.mubr.f32.mxu0 0.0
      %3825 = vmatmul.mubr.f32.gmra.mrb[0].mxu0 %v3634
      %v3826 = vpop.f32.mrb[0].mxu0
      %v3827 = vadd.f32 0.0, %v3826
      %v3828 = vpop.f32.mrb[0].mxu0
      %3829 = vmatprep.mubr.f32.mxu0 0.0
      %3830 = vmatmul.mubr.f32.gmra.mrb[0].mxu0 %v3637
      %v3831 = vpop.f32.mrb[0].mxu0
      %v3832 = vadd.f32 0.0, %v3831
      %v3833 = vpop.f32.mrb[0].mxu0
      %3834 = vmatprep.mubr.f32.mxu0 0.0
      %3835 = vmatmul.mubr.f32.gmra.mrb[0].mxu0 %v3640
      %v3836 = vpop.f32.mrb[0].mxu0
      %v3837 = vadd.f32 0.0, %v3836
      %v3838 = vpop.f32.mrb[0].mxu0
      %3839 = vmatprep.mubr.f32.mxu0 0.0
      %3840 = vmatmul.mubr.f32.gmra.mrb[0].mxu0 %v3643
      %v3841 = vpop.f32.mrb[0].mxu0
      %v3842 = vadd.f32 0.0, %v3841
      %v3843 = vpop.f32.mrb[0].mxu0
      %3844 = vmatprep.mubr.f32.mxu0 0.0
      %3845 = vmatmul.mubr.f32.gmra.mrb[0].mxu0 %v3646
      %v3846 = vpop.f32.mrb[0].mxu0
      %v3847 = vadd.f32 0.0, %v3846
      %v3848 = vpop.f32.mrb[0].mxu0
      %3849 = vmatprep.mubr.f32.mxu0 0.0
      %3850 = vmatmul.mubr.f32.gmra.mrb[0].mxu0 %v3649
      %v3851 = vpop.f32.mrb[0].mxu0
      %v3852 = vadd.f32 0.0, %v3851
      %v3853 = vpop.f32.mrb[0].mxu0
      %3854 = vmatprep.mubr.f32.mxu0 0.0
      %3855 = vmatmul.mubr.f32.gmra.mrb[0].mxu0 %v3652
      %v3856 = vpop.f32.mrb[0].mxu0
      %v3857 = vadd.f32 0.0, %v3856
      %v3858 = vpop.f32.mrb[0].mxu0
      %3859 = vmatprep.mubr.f32.mxu0 0.0
      %3860 = vmatmul.mubr.f32.gmra.mrb[0].mxu0 %v3655
      %v3861 = vpop.f32.mrb[0].mxu0
      %v3862 = vadd.f32 0.0, %v3861
      %v3863 = vpop.f32.mrb[0].mxu0
      %3864 = vmatprep.mubr.f32.mxu0 0.0
      %3865 = vmatmul.mubr.f32.gmra.mrb[0].mxu0 %v3658
      %v3866 = vpop.f32.mrb[0].mxu0
      %v3867 = vadd.f32 0.0, %v3866
      %v3868 = vpop.f32.mrb[0].mxu0
      %3869 = vmatprep.mubr.f32.mxu0 0.0
      %3870 = vmatmul.mubr.f32.gmra.mrb[0].mxu0 %v3661
      %v3871 = vpop.f32.mrb[0].mxu0
      %v3872 = vadd.f32 0.0, %v3871
      %v3873 = vpop.f32.mrb[0].mxu0
      %3874 = vmatprep.mubr.f32.mxu0 0.0
      %3875 = vmatmul.mubr.f32.gmra.mrb[0].mxu0 %v3664
      %v3876 = vpop.f32.mrb[0].mxu0
      %v3877 = vadd.f32 0.0, %v3876
      %v3878 = vpop.f32.mrb[0].mxu0
      %3879 = vmatprep.mubr.f32.mxu0 0.0
      %3880 = vmatmul.mubr.f32.gmra.mrb[0].mxu0 %v3667
      %v3881 = vpop.f32.mrb[0].mxu0
      %v3882 = vadd.f32 0.0, %v3881
      %v3883 = vpop.f32.mrb[0].mxu0
      %3884 = vmatprep.mubr.f32.mxu0 0.0
      %3885 = vmatmul.mubr.f32.gmra.mrb[0].mxu0 %v3670
      %v3886 = vpop.f32.mrb[0].mxu0
      %v3887 = vadd.f32 0.0, %v3886
      %v3888 = vpop.f32.mrb[0].mxu0
      %3889 = vmatprep.mubr.f32.mxu0 0.0
      %3890 = vmatmul.mubr.f32.gmra.mrb[0].mxu0 %v3673
      %v3891 = vpop.f32.mrb[0].mxu0
      %v3892 = vadd.f32 0.0, %v3891
      %v3893 = vpop.f32.mrb[0].mxu0
      %3894 = vmatprep.mubr.f32.mxu0 0.0
      %3895 = vmatmul.mubr.f32.gmra.mrb[0].mxu0 %v3676
      %v3896 = vpop.f32.mrb[0].mxu0
      %v3897 = vadd.f32 0.0, %v3896
      %v3898 = vpop.f32.mrb[0].mxu0
      %3899 = vmatprep.mubr.f32.mxu0 0.0
      %3900 = vmatmul.mubr.f32.gmra.mrb[0].mxu0 %v3679
      %v3901 = vpop.f32.mrb[0].mxu0
      %v3902 = vadd.f32 0.0, %v3901
      %v3903 = vpop.f32.mrb[0].mxu0
      %3904 = vmatprep.mubr.f32.mxu0 0.0
      %3905 = vmatmul.mubr.f32.gmra.mrb[0].mxu0 %v3682
      %v3906 = vpop.f32.mrb[0].mxu0
      %v3907 = vadd.f32 0.0, %v3906
      %v3908 = vpop.f32.mrb[0].mxu0
      %3909 = vmatprep.mubr.f32.mxu0 0.0
      %3910 = vmatmul.mubr.f32.gmra.mrb[0].mxu0 %v3685
      %v3911 = vpop.f32.mrb[0].mxu0
      %v3912 = vadd.f32 0.0, %v3911
      %v3913 = vpop.f32.mrb[0].mxu0
      %3914 = vdwg.mxu0
      %v3915 = vadd.f32 %v3429, %v3757
      %v3916 = vadd.f32 %v3430, %v3762
      %v3917 = vadd.f32 %v3431, %v3767
      %v3918 = vadd.f32 %v3432, %v3772
      %v3919 = vadd.f32 %v3433, %v3777
      %v3920 = vadd.f32 %v3434, %v3782
      %v3921 = vadd.f32 %v3435, %v3787
      %v3922 = vadd.f32 %v3436, %v3792
      %v3923 = vadd.f32 %v3437, %v3797
      %v3924 = vadd.f32 %v3438, %v3802
      %v3925 = vadd.f32 %v3439, %v3807
      %v3926 = vadd.f32 %v3440, %v3812
      %v3927 = vadd.f32 %v3441, %v3817
      %v3928 = vadd.f32 %v3442, %v3822
      %v3929 = vadd.f32 %v3443, %v3827
      %v3930 = vadd.f32 %v3444, %v3832
      %v3931 = vadd.f32 %v3445, %v3837
      %v3932 = vadd.f32 %v3446, %v3842
      %v3933 = vadd.f32 %v3447, %v3847
      %v3934 = vadd.f32 %v3448, %v3852
      %v3935 = vadd.f32 %v3449, %v3857
      %v3936 = vadd.f32 %v3450, %v3862
      %v3937 = vadd.f32 %v3451, %v3867
      %v3938 = vadd.f32 %v3452, %v3872
      %v3939 = vadd.f32 %v3453, %v3877
      %v3940 = vadd.f32 %v3454, %v3882
      %v3941 = vadd.f32 %v3455, %v3887
      %v3942 = vadd.f32 %v3456, %v3892
      %v3943 = vadd.f32 %v3457, %v3897
      %v3944 = vadd.f32 %v3458, %v3902
      %v3945 = vadd.f32 %v3459, %v3907
      %v3946 = vadd.f32 %v3460, %v3912
      %v3949 = vrot.slane %v327, 7
      %v3950 = vsel %vm391, %v449, %v3949
      %v3951 = vrot.slane %v328, 7
      %v3952 = vsel %vm391, %v3949, %v3951
      %v3955 = vmul.f32 %v481, %v485
      %v3956 = vmul.f32 %v394, %v490
      %v3957 = vmul.f32 %v396, %v495
      %v3958 = vmul.f32 %v398, %v500
      %v3959 = vmul.f32 %v400, %v505
      %v3960 = vmul.f32 %v402, %v510
      %v3961 = vmul.f32 %v404, %v515
      %v3962 = vmul.f32 %v406, %v520
      %v3963 = vmul.f32 %v408, %v525
      %v3964 = vmul.f32 %v410, %v530
      %v3965 = vmul.f32 %v412, %v535
      %v3966 = vmul.f32 %v414, %v540
      %v3967 = vmul.f32 %v416, %v545
      %v3968 = vmul.f32 %v418, %v550
      %v3969 = vmul.f32 %v420, %v555
      %v3970 = vmul.f32 %v422, %v560
      %v3971 = vmul.f32 %v424, %v565
      %v3972 = vmul.f32 %v426, %v570
      %v3973 = vmul.f32 %v428, %v575
      %v3974 = vmul.f32 %v430, %v580
      %v3975 = vmul.f32 %v432, %v585
      %v3976 = vmul.f32 %v434, %v590
      %v3977 = vmul.f32 %v436, %v595
      %v3978 = vmul.f32 %v438, %v600
      %v3979 = vmul.f32 %v440, %v605
      %v3980 = vmul.f32 %v442, %v610
      %v3981 = vmul.f32 %v444, %v615
      %v3982 = vmul.f32 %v446, %v620
      %v3983 = vmul.f32 %v448, %v625
      %v3984 = vmul.f32 %v450, %v630
      %v3985 = vmul.f32 %v3950, %v635
      %v3986 = vmul.f32 %v3952, %v640
      %s3987 = scalar_lea.vmem %s1, 32
      %v3988 = vld [vmem:[%s3987] sm:$0x7]
      %v3990 = vsel %vm677, %v3955, 0
      %v3993 = vsel %vm677, %v3956, 0
      %v3996 = vsel %vm677, %v3957, 0
      %v3999 = vsel %vm677, %v3958, 0
      %v4002 = vsel %vm677, %v3959, 0
      %v4005 = vsel %vm677, %v3960, 0
      %v4008 = vsel %vm677, %v3961, 0
      %v4011 = vsel %vm677, %v3962, 0
      %v4014 = vsel %vm677, %v3963, 0
      %v4017 = vsel %vm677, %v3964, 0
      %v4020 = vsel %vm677, %v3965, 0
      %v4023 = vsel %vm677, %v3966, 0
      %v4026 = vsel %vm677, %v3967, 0
      %v4029 = vsel %vm677, %v3968, 0
      %v4032 = vsel %vm677, %v3969, 0
      %v4035 = vsel %vm677, %v3970, 0
      %v4038 = vsel %vm677, %v3971, 0
      %v4041 = vsel %vm677, %v3972, 0
      %v4044 = vsel %vm677, %v3973, 0
      %v4047 = vsel %vm677, %v3974, 0
      %v4050 = vsel %vm677, %v3975, 0
      %v4053 = vsel %vm677, %v3976, 0
      %v4056 = vsel %vm677, %v3977, 0
      %v4059 = vsel %vm677, %v3978, 0
      %v4062 = vsel %vm677, %v3979, 0
      %v4065 = vsel %vm677, %v3980, 0
      %v4068 = vsel %vm677, %v3981, 0
      %v4071 = vsel %vm677, %v3982, 0
      %v4074 = vsel %vm677, %v3983, 0
      %v4077 = vsel %vm677, %v3984, 0
      %v4080 = vsel %vm677, %v3985, 0
      %v4083 = vsel %vm677, %v3986, 0
      %v4086 = vsel %vm771, %v3988, 0
      %4088 = vmatprep.subr.mxu0 0.0
      %4089 = vmatpush1.msra.mxu0 %v4086
      %4090 = vmatprep.subr.mxu0 0.0
      %4091 = vmatpush1.msra.mxu0 0.0
      %4092 = vmatprep.subr.mxu0 0.0
      %4093 = vmatpush1.msra.mxu0 0.0
      %4094 = vmatprep.subr.mxu0 0.0
      %4095 = vmatpush1.msra.mxu0 0.0
      %4096 = vmatprep.subr.mxu0 0.0
      %4097 = vmatpush1.msra.mxu0 0.0
      %4098 = vmatprep.subr.mxu0 0.0
      %4099 = vmatpush1.msra.mxu0 0.0
      %4100 = vmatprep.subr.mxu0 0.0
      %4101 = vmatpush1.msra.mxu0 0.0
      %4102 = vmatprep.subr.mxu0 0.0
      %4103 = vmatpush1.msra.mxu0 0.0
      %4104 = vmatprep.subr.mxu0 0.0
      %4105 = vmatpush1.msra.mxu0 0.0
      %4106 = vmatprep.subr.mxu0 0.0
      %4107 = vmatpush1.msra.mxu0 0.0
      %4108 = vmatprep.subr.mxu0 0.0
      %4109 = vmatpush1.msra.mxu0 0.0
      %4110 = vmatprep.subr.mxu0 0.0
      %4111 = vmatpush1.msra.mxu0 0.0
      %4112 = vmatprep.subr.mxu0 0.0
      %4113 = vmatpush1.msra.mxu0 0.0
      %4114 = vmatprep.subr.mxu0 0.0
      %4115 = vmatpush1.msra.mxu0 0.0
      %4116 = vmatprep.subr.mxu0 0.0
      %4117 = vmatpush1.msra.mxu0 0.0
      %4118 = vmatprep.subr.mxu0 0.0
      %4119 = vmatpush1.msra.mxu0 0.0
      %4120 = vmatprep.subr.mxu0 0.0
      %4121 = vmatpush1.msra.mxu0 0.0
      %4122 = vmatprep.subr.mxu0 0.0
      %4123 = vmatpush1.msra.mxu0 0.0
      %4124 = vmatprep.subr.mxu0 0.0
      %4125 = vmatpush1.msra.mxu0 0.0
      %4126 = vmatprep.subr.mxu0 0.0
      %4127 = vmatpush1.msra.mxu0 0.0
      %4128 = vmatprep.subr.mxu0 0.0
      %4129 = vmatpush1.msra.mxu0 0.0
      %4130 = vmatprep.subr.mxu0 0.0
      %4131 = vmatpush1.msra.mxu0 0.0
      %4132 = vmatprep.subr.mxu0 0.0
      %4133 = vmatpush1.msra.mxu0 0.0
      %4134 = vmatprep.subr.mxu0 0.0
      %4135 = vmatpush1.msra.mxu0 0.0
      %4136 = vmatprep.subr.mxu0 0.0
      %4137 = vmatpush1.msra.mxu0 0.0
      %4138 = vmatprep.subr.mxu0 0.0
      %4139 = vmatpush1.msra.mxu0 0.0
      %4140 = vmatprep.subr.mxu0 0.0
      %4141 = vmatpush1.msra.mxu0 0.0
      %4142 = vmatprep.subr.mxu0 0.0
      %4143 = vmatpush1.msra.mxu0 0.0
      %4144 = vmatprep.subr.mxu0 0.0
      %4145 = vmatpush1.msra.mxu0 0.0
      %4146 = vmatprep.subr.mxu0 0.0
      %4147 = vmatpush1.msra.mxu0 0.0
      %4148 = vmatprep.subr.mxu0 0.0
      %4149 = vmatpush1.msra.mxu0 0.0
      %4150 = vmatprep.subr.mxu0 0.0
      %4151 = vmatpush1.msra.mxu0 0.0
      %4152 = vmatprep.mubr.f32.mxu0 0.0
      %4153 = vmatmul.mubr.f32.gmra.mrb[0].mxu0 %v3990
      %v4154 = vpop.f32.mrb[0].mxu0
      %v4155 = vadd.f32 0.0, %v4154
      %v4156 = vpop.f32.mrb[0].mxu0
      %4157 = vmatprep.mubr.f32.mxu0 0.0
      %4158 = vmatmul.mubr.f32.gmra.mrb[0].mxu0 %v3993
      %v4159 = vpop.f32.mrb[0].mxu0
      %v4160 = vadd.f32 0.0, %v4159
      %v4161 = vpop.f32.mrb[0].mxu0
      %4162 = vmatprep.mubr.f32.mxu0 0.0
      %4163 = vmatmul.mubr.f32.gmra.mrb[0].mxu0 %v3996
      %v4164 = vpop.f32.mrb[0].mxu0
      %v4165 = vadd.f32 0.0, %v4164
      %v4166 = vpop.f32.mrb[0].mxu0
      %4167 = vmatprep.mubr.f32.mxu0 0.0
      %4168 = vmatmul.mubr.f32.gmra.mrb[0].mxu0 %v3999
      %v4169 = vpop.f32.mrb[0].mxu0
      %v4170 = vadd.f32 0.0, %v4169
      %v4171 = vpop.f32.mrb[0].mxu0
      %4172 = vmatprep.mubr.f32.mxu0 0.0
      %4173 = vmatmul.mubr.f32.gmra.mrb[0].mxu0 %v4002
      %v4174 = vpop.f32.mrb[0].mxu0
      %v4175 = vadd.f32 0.0, %v4174
      %v4176 = vpop.f32.mrb[0].mxu0
      %4177 = vmatprep.mubr.f32.mxu0 0.0
      %4178 = vmatmul.mubr.f32.gmra.mrb[0].mxu0 %v4005
      %v4179 = vpop.f32.mrb[0].mxu0
      %v4180 = vadd.f32 0.0, %v4179
      %v4181 = vpop.f32.mrb[0].mxu0
      %4182 = vmatprep.mubr.f32.mxu0 0.0
      %4183 = vmatmul.mubr.f32.gmra.mrb[0].mxu0 %v4008
      %v4184 = vpop.f32.mrb[0].mxu0
      %v4185 = vadd.f32 0.0, %v4184
      %v4186 = vpop.f32.mrb[0].mxu0
      %4187 = vmatprep.mubr.f32.mxu0 0.0
      %4188 = vmatmul.mubr.f32.gmra.mrb[0].mxu0 %v4011
      %v4189 = vpop.f32.mrb[0].mxu0
      %v4190 = vadd.f32 0.0, %v4189
      %v4191 = vpop.f32.mrb[0].mxu0
      %4192 = vmatprep.mubr.f32.mxu0 0.0
      %4193 = vmatmul.mubr.f32.gmra.mrb[0].mxu0 %v4014
      %v4194 = vpop.f32.mrb[0].mxu0
      %v4195 = vadd.f32 0.0, %v4194
      %v4196 = vpop.f32.mrb[0].mxu0
      %4197 = vmatprep.mubr.f32.mxu0 0.0
      %4198 = vmatmul.mubr.f32.gmra.mrb[0].mxu0 %v4017
      %v4199 = vpop.f32.mrb[0].mxu0
      %v4200 = vadd.f32 0.0, %v4199
      %v4201 = vpop.f32.mrb[0].mxu0
      %4202 = vmatprep.mubr.f32.mxu0 0.0
      %4203 = vmatmul.mubr.f32.gmra.mrb[0].mxu0 %v4020
      %v4204 = vpop.f32.mrb[0].mxu0
      %v4205 = vadd.f32 0.0, %v4204
      %v4206 = vpop.f32.mrb[0].mxu0
      %4207 = vmatprep.mubr.f32.mxu0 0.0
      %4208 = vmatmul.mubr.f32.gmra.mrb[0].mxu0 %v4023
      %v4209 = vpop.f32.mrb[0].mxu0
      %v4210 = vadd.f32 0.0, %v4209
      %v4211 = vpop.f32.mrb[0].mxu0
      %4212 = vmatprep.mubr.f32.mxu0 0.0
      %4213 = vmatmul.mubr.f32.gmra.mrb[0].mxu0 %v4026
      %v4214 = vpop.f32.mrb[0].mxu0
      %v4215 = vadd.f32 0.0, %v4214
      %v4216 = vpop.f32.mrb[0].mxu0
      %4217 = vmatprep.mubr.f32.mxu0 0.0
      %4218 = vmatmul.mubr.f32.gmra.mrb[0].mxu0 %v4029
      %v4219 = vpop.f32.mrb[0].mxu0
      %v4220 = vadd.f32 0.0, %v4219
      %v4221 = vpop.f32.mrb[0].mxu0
      %4222 = vmatprep.mubr.f32.mxu0 0.0
      %4223 = vmatmul.mubr.f32.gmra.mrb[0].mxu0 %v4032
      %v4224 = vpop.f32.mrb[0].mxu0
      %v4225 = vadd.f32 0.0, %v4224
      %v4226 = vpop.f32.mrb[0].mxu0
      %4227 = vmatprep.mubr.f32.mxu0 0.0
      %4228 = vmatmul.mubr.f32.gmra.mrb[0].mxu0 %v4035
      %v4229 = vpop.f32.mrb[0].mxu0
      %v4230 = vadd.f32 0.0, %v4229
      %v4231 = vpop.f32.mrb[0].mxu0
      %4232 = vmatprep.mubr.f32.mxu0 0.0
      %4233 = vmatmul.mubr.f32.gmra.mrb[0].mxu0 %v4038
      %v4234 = vpop.f32.mrb[0].mxu0
      %v4235 = vadd.f32 0.0, %v4234
      %v4236 = vpop.f32.mrb[0].mxu0
      %4237 = vmatprep.mubr.f32.mxu0 0.0
      %4238 = vmatmul.mubr.f32.gmra.mrb[0].mxu0 %v4041
      %v4239 = vpop.f32.mrb[0].mxu0
      %v4240 = vadd.f32 0.0, %v4239
      %v4241 = vpop.f32.mrb[0].mxu0
      %4242 = vmatprep.mubr.f32.mxu0 0.0
      %4243 = vmatmul.mubr.f32.gmra.mrb[0].mxu0 %v4044
      %v4244 = vpop.f32.mrb[0].mxu0
      %v4245 = vadd.f32 0.0, %v4244
      %v4246 = vpop.f32.mrb[0].mxu0
      %4247 = vmatprep.mubr.f32.mxu0 0.0
      %4248 = vmatmul.mubr.f32.gmra.mrb[0].mxu0 %v4047
      %v4249 = vpop.f32.mrb[0].mxu0
      %v4250 = vadd.f32 0.0, %v4249
      %v4251 = vpop.f32.mrb[0].mxu0
      %4252 = vmatprep.mubr.f32.mxu0 0.0
      %4253 = vmatmul.mubr.f32.gmra.mrb[0].mxu0 %v4050
      %v4254 = vpop.f32.mrb[0].mxu0
      %v4255 = vadd.f32 0.0, %v4254
      %v4256 = vpop.f32.mrb[0].mxu0
      %4257 = vmatprep.mubr.f32.mxu0 0.0
      %4258 = vmatmul.mubr.f32.gmra.mrb[0].mxu0 %v4053
      %v4259 = vpop.f32.mrb[0].mxu0
      %v4260 = vadd.f32 0.0, %v4259
      %v4261 = vpop.f32.mrb[0].mxu0
      %4262 = vmatprep.mubr.f32.mxu0 0.0
      %4263 = vmatmul.mubr.f32.gmra.mrb[0].mxu0 %v4056
      %v4264 = vpop.f32.mrb[0].mxu0
      %v4265 = vadd.f32 0.0, %v4264
      %v4266 = vpop.f32.mrb[0].mxu0
      %4267 = vmatprep.mubr.f32.mxu0 0.0
      %4268 = vmatmul.mubr.f32.gmra.mrb[0].mxu0 %v4059
      %v4269 = vpop.f32.mrb[0].mxu0
      %v4270 = vadd.f32 0.0, %v4269
      %v4271 = vpop.f32.mrb[0].mxu0
      %4272 = vmatprep.mubr.f32.mxu0 0.0
      %4273 = vmatmul.mubr.f32.gmra.mrb[0].mxu0 %v4062
      %v4274 = vpop.f32.mrb[0].mxu0
      %v4275 = vadd.f32 0.0, %v4274
      %v4276 = vpop.f32.mrb[0].mxu0
      %4277 = vmatprep.mubr.f32.mxu0 0.0
      %4278 = vmatmul.mubr.f32.gmra.mrb[0].mxu0 %v4065
      %v4279 = vpop.f32.mrb[0].mxu0
      %v4280 = vadd.f32 0.0, %v4279
      %v4281 = vpop.f32.mrb[0].mxu0
      %4282 = vmatprep.mubr.f32.mxu0 0.0
      %4283 = vmatmul.mubr.f32.gmra.mrb[0].mxu0 %v4068
      %v4284 = vpop.f32.mrb[0].mxu0
      %v4285 = vadd.f32 0.0, %v4284
      %v4286 = vpop.f32.mrb[0].mxu0
      %4287 = vmatprep.mubr.f32.mxu0 0.0
      %4288 = vmatmul.mubr.f32.gmra.mrb[0].mxu0 %v4071
      %v4289 = vpop.f32.mrb[0].mxu0
      %v4290 = vadd.f32 0.0, %v4289
      %v4291 = vpop.f32.mrb[0].mxu0
      %4292 = vmatprep.mubr.f32.mxu0 0.0
      %4293 = vmatmul.mubr.f32.gmra.mrb[0].mxu0 %v4074
      %v4294 = vpop.f32.mrb[0].mxu0
      %v4295 = vadd.f32 0.0, %v4294
      %v4296 = vpop.f32.mrb[0].mxu0
      %4297 = vmatprep.mubr.f32.mxu0 0.0
      %4298 = vmatmul.mubr.f32.gmra.mrb[0].mxu0 %v4077
      %v4299 = vpop.f32.mrb[0].mxu0
      %v4300 = vadd.f32 0.0, %v4299
      %v4301 = vpop.f32.mrb[0].mxu0
      %4302 = vmatprep.mubr.f32.mxu0 0.0
      %4303 = vmatmul.mubr.f32.gmra.mrb[0].mxu0 %v4080
      %v4304 = vpop.f32.mrb[0].mxu0
      %v4305 = vadd.f32 0.0, %v4304
      %v4306 = vpop.f32.mrb[0].mxu0
      %4307 = vmatprep.mubr.f32.mxu0 0.0
      %4308 = vmatmul.mubr.f32.gmra.mrb[0].mxu0 %v4083
      %v4309 = vpop.f32.mrb[0].mxu0
      %v4310 = vadd.f32 0.0, %v4309
      %v4311 = vpop.f32.mrb[0].mxu0
      %4312 = vdwg.mxu0
      %v4313 = vadd.f32 %v3915, %v4155
      %v4314 = vadd.f32 %v3916, %v4160
      %v4315 = vadd.f32 %v3917, %v4165
      %v4316 = vadd.f32 %v3918, %v4170
      %v4317 = vadd.f32 %v3919, %v4175
      %v4318 = vadd.f32 %v3920, %v4180
      %v4319 = vadd.f32 %v3921, %v4185
      %v4320 = vadd.f32 %v3922, %v4190
      %v4321 = vadd.f32 %v3923, %v4195
      %v4322 = vadd.f32 %v3924, %v4200
      %v4323 = vadd.f32 %v3925, %v4205
      %v4324 = vadd.f32 %v3926, %v4210
      %v4325 = vadd.f32 %v3927, %v4215
      %v4326 = vadd.f32 %v3928, %v4220
      %v4327 = vadd.f32 %v3929, %v4225
      %v4328 = vadd.f32 %v3930, %v4230
      %v4329 = vadd.f32 %v3931, %v4235
      %v4330 = vadd.f32 %v3932, %v4240
      %v4331 = vadd.f32 %v3933, %v4245
      %v4332 = vadd.f32 %v3934, %v4250
      %v4333 = vadd.f32 %v3935, %v4255
      %v4334 = vadd.f32 %v3936, %v4260
      %v4335 = vadd.f32 %v3937, %v4265
      %v4336 = vadd.f32 %v3938, %v4270
      %v4337 = vadd.f32 %v3939, %v4275
      %v4338 = vadd.f32 %v3940, %v4280
      %v4339 = vadd.f32 %v3941, %v4285
      %v4340 = vadd.f32 %v3942, %v4290
      %v4341 = vadd.f32 %v3943, %v4295
      %v4342 = vadd.f32 %v3944, %v4300
      %v4343 = vadd.f32 %v3945, %v4305
      %v4344 = vadd.f32 %v3946, %v4310
      %s4345 = scalar_lea.vmem %s1, 36
      %v4346 = vld [vmem:[%s4345] sm:$0x7]
      %v4347 = vsel %vm677, %v294, 0
      %v4350 = vsel %vm677, %v295, 0
      %v4353 = vsel %vm771, %v4346, 0
      %4355 = vmatprep.subr.mxu0 0.0
      %4356 = vmatpush1.msra.mxu0 %v4353
      %4357 = vmatprep.subr.mxu0 0.0
      %4358 = vmatpush1.msra.mxu0 0.0
      %4359 = vmatprep.subr.mxu0 0.0
      %4360 = vmatpush1.msra.mxu0 0.0
      %4361 = vmatprep.subr.mxu0 0.0
      %4362 = vmatpush1.msra.mxu0 0.0
      %4363 = vmatprep.subr.mxu0 0.0
      %4364 = vmatpush1.msra.mxu0 0.0
      %4365 = vmatprep.subr.mxu0 0.0
      %4366 = vmatpush1.msra.mxu0 0.0
      %4367 = vmatprep.subr.mxu0 0.0
      %4368 = vmatpush1.msra.mxu0 0.0
      %4369 = vmatprep.subr.mxu0 0.0
      %4370 = vmatpush1.msra.mxu0 0.0
      %4371 = vmatprep.subr.mxu0 0.0
      %4372 = vmatpush1.msra.mxu0 0.0
      %4373 = vmatprep.subr.mxu0 0.0
      %4374 = vmatpush1.msra.mxu0 0.0
      %4375 = vmatprep.subr.mxu0 0.0
      %4376 = vmatpush1.msra.mxu0 0.0
      %4377 = vmatprep.subr.mxu0 0.0
      %4378 = vmatpush1.msra.mxu0 0.0
      %4379 = vmatprep.subr.mxu0 0.0
      %4380 = vmatpush1.msra.mxu0 0.0
      %4381 = vmatprep.subr.mxu0 0.0
      %4382 = vmatpush1.msra.mxu0 0.0
      %4383 = vmatprep.subr.mxu0 0.0
      %4384 = vmatpush1.msra.mxu0 0.0
      %4385 = vmatprep.subr.mxu0 0.0
      %4386 = vmatpush1.msra.mxu0 0.0
      %4387 = vmatprep.subr.mxu0 0.0
      %4388 = vmatpush1.msra.mxu0 0.0
      %4389 = vmatprep.subr.mxu0 0.0
      %4390 = vmatpush1.msra.mxu0 0.0
      %4391 = vmatprep.subr.mxu0 0.0
      %4392 = vmatpush1.msra.mxu0 0.0
      %4393 = vmatprep.subr.mxu0 0.0
      %4394 = vmatpush1.msra.mxu0 0.0
      %4395 = vmatprep.subr.mxu0 0.0
      %4396 = vmatpush1.msra.mxu0 0.0
      %4397 = vmatprep.subr.mxu0 0.0
      %4398 = vmatpush1.msra.mxu0 0.0
      %4399 = vmatprep.subr.mxu0 0.0
      %4400 = vmatpush1.msra.mxu0 0.0
      %4401 = vmatprep.subr.mxu0 0.0
      %4402 = vmatpush1.msra.mxu0 0.0
      %4403 = vmatprep.subr.mxu0 0.0
      %4404 = vmatpush1.msra.mxu0 0.0
      %4405 = vmatprep.subr.mxu0 0.0
      %4406 = vmatpush1.msra.mxu0 0.0
      %4407 = vmatprep.subr.mxu0 0.0
      %4408 = vmatpush1.msra.mxu0 0.0
      %4409 = vmatprep.subr.mxu0 0.0
      %4410 = vmatpush1.msra.mxu0 0.0
      %4411 = vmatprep.subr.mxu0 0.0
      %4412 = vmatpush1.msra.mxu0 0.0
      %4413 = vmatprep.subr.mxu0 0.0
      %4414 = vmatpush1.msra.mxu0 0.0
      %4415 = vmatprep.subr.mxu0 0.0
      %4416 = vmatpush1.msra.mxu0 0.0
      %4417 = vmatprep.subr.mxu0 0.0
      %4418 = vmatpush1.msra.mxu0 0.0
      %4419 = vmatprep.mubr.f32.mxu0 0.0
      %4420 = vmatmul.mubr.f32.gmra.mrb[0].mxu0 %v682
      %v4421 = vpop.f32.mrb[0].mxu0
      %v4422 = vadd.f32 0.0, %v4421
      %v4423 = vpop.f32.mrb[0].mxu0
      %4424 = vmatprep.mubr.f32.mxu0 0.0
      %4425 = vmatmul.mubr.f32.gmra.mrb[0].mxu0 %v685
      %v4426 = vpop.f32.mrb[0].mxu0
      %v4427 = vadd.f32 0.0, %v4426
      %v4428 = vpop.f32.mrb[0].mxu0
      %4429 = vmatprep.mubr.f32.mxu0 0.0
      %4430 = vmatmul.mubr.f32.gmra.mrb[0].mxu0 %v688
      %v4431 = vpop.f32.mrb[0].mxu0
      %v4432 = vadd.f32 0.0, %v4431
      %v4433 = vpop.f32.mrb[0].mxu0
      %4434 = vmatprep.mubr.f32.mxu0 0.0
      %4435 = vmatmul.mubr.f32.gmra.mrb[0].mxu0 %v691
      %v4436 = vpop.f32.mrb[0].mxu0
      %v4437 = vadd.f32 0.0, %v4436
      %v4438 = vpop.f32.mrb[0].mxu0
      %4439 = vmatprep.mubr.f32.mxu0 0.0
      %4440 = vmatmul.mubr.f32.gmra.mrb[0].mxu0 %v694
      %v4441 = vpop.f32.mrb[0].mxu0
      %v4442 = vadd.f32 0.0, %v4441
      %v4443 = vpop.f32.mrb[0].mxu0
      %4444 = vmatprep.mubr.f32.mxu0 0.0
      %4445 = vmatmul.mubr.f32.gmra.mrb[0].mxu0 %v697
      %v4446 = vpop.f32.mrb[0].mxu0
      %v4447 = vadd.f32 0.0, %v4446
      %v4448 = vpop.f32.mrb[0].mxu0
      %4449 = vmatprep.mubr.f32.mxu0 0.0
      %4450 = vmatmul.mubr.f32.gmra.mrb[0].mxu0 %v700
      %v4451 = vpop.f32.mrb[0].mxu0
      %v4452 = vadd.f32 0.0, %v4451
      %v4453 = vpop.f32.mrb[0].mxu0
      %4454 = vmatprep.mubr.f32.mxu0 0.0
      %4455 = vmatmul.mubr.f32.gmra.mrb[0].mxu0 %v703
      %v4456 = vpop.f32.mrb[0].mxu0
      %v4457 = vadd.f32 0.0, %v4456
      %v4458 = vpop.f32.mrb[0].mxu0
      %4459 = vmatprep.mubr.f32.mxu0 0.0
      %4460 = vmatmul.mubr.f32.gmra.mrb[0].mxu0 %v706
      %v4461 = vpop.f32.mrb[0].mxu0
      %v4462 = vadd.f32 0.0, %v4461
      %v4463 = vpop.f32.mrb[0].mxu0
      %4464 = vmatprep.mubr.f32.mxu0 0.0
      %4465 = vmatmul.mubr.f32.gmra.mrb[0].mxu0 %v709
      %v4466 = vpop.f32.mrb[0].mxu0
      %v4467 = vadd.f32 0.0, %v4466
      %v4468 = vpop.f32.mrb[0].mxu0
      %4469 = vmatprep.mubr.f32.mxu0 0.0
      %4470 = vmatmul.mubr.f32.gmra.mrb[0].mxu0 %v712
      %v4471 = vpop.f32.mrb[0].mxu0
      %v4472 = vadd.f32 0.0, %v4471
      %v4473 = vpop.f32.mrb[0].mxu0
      %4474 = vmatprep.mubr.f32.mxu0 0.0
      %4475 = vmatmul.mubr.f32.gmra.mrb[0].mxu0 %v715
      %v4476 = vpop.f32.mrb[0].mxu0
      %v4477 = vadd.f32 0.0, %v4476
      %v4478 = vpop.f32.mrb[0].mxu0
      %4479 = vmatprep.mubr.f32.mxu0 0.0
      %4480 = vmatmul.mubr.f32.gmra.mrb[0].mxu0 %v718
      %v4481 = vpop.f32.mrb[0].mxu0
      %v4482 = vadd.f32 0.0, %v4481
      %v4483 = vpop.f32.mrb[0].mxu0
      %4484 = vmatprep.mubr.f32.mxu0 0.0
      %4485 = vmatmul.mubr.f32.gmra.mrb[0].mxu0 %v721
      %v4486 = vpop.f32.mrb[0].mxu0
      %v4487 = vadd.f32 0.0, %v4486
      %v4488 = vpop.f32.mrb[0].mxu0
      %4489 = vmatprep.mubr.f32.mxu0 0.0
      %4490 = vmatmul.mubr.f32.gmra.mrb[0].mxu0 %v724
      %v4491 = vpop.f32.mrb[0].mxu0
      %v4492 = vadd.f32 0.0, %v4491
      %v4493 = vpop.f32.mrb[0].mxu0
      %4494 = vmatprep.mubr.f32.mxu0 0.0
      %4495 = vmatmul.mubr.f32.gmra.mrb[0].mxu0 %v727
      %v4496 = vpop.f32.mrb[0].mxu0
      %v4497 = vadd.f32 0.0, %v4496
      %v4498 = vpop.f32.mrb[0].mxu0
      %4499 = vmatprep.mubr.f32.mxu0 0.0
      %4500 = vmatmul.mubr.f32.gmra.mrb[0].mxu0 %v730
      %v4501 = vpop.f32.mrb[0].mxu0
      %v4502 = vadd.f32 0.0, %v4501
      %v4503 = vpop.f32.mrb[0].mxu0
      %4504 = vmatprep.mubr.f32.mxu0 0.0
      %4505 = vmatmul.mubr.f32.gmra.mrb[0].mxu0 %v733
      %v4506 = vpop.f32.mrb[0].mxu0
      %v4507 = vadd.f32 0.0, %v4506
      %v4508 = vpop.f32.mrb[0].mxu0
      %4509 = vmatprep.mubr.f32.mxu0 0.0
      %4510 = vmatmul.mubr.f32.gmra.mrb[0].mxu0 %v736
      %v4511 = vpop.f32.mrb[0].mxu0
      %v4512 = vadd.f32 0.0, %v4511
      %v4513 = vpop.f32.mrb[0].mxu0
      %4514 = vmatprep.mubr.f32.mxu0 0.0
      %4515 = vmatmul.mubr.f32.gmra.mrb[0].mxu0 %v739
      %v4516 = vpop.f32.mrb[0].mxu0
      %v4517 = vadd.f32 0.0, %v4516
      %v4518 = vpop.f32.mrb[0].mxu0
      %4519 = vmatprep.mubr.f32.mxu0 0.0
      %4520 = vmatmul.mubr.f32.gmra.mrb[0].mxu0 %v742
      %v4521 = vpop.f32.mrb[0].mxu0
      %v4522 = vadd.f32 0.0, %v4521
      %v4523 = vpop.f32.mrb[0].mxu0
      %4524 = vmatprep.mubr.f32.mxu0 0.0
      %4525 = vmatmul.mubr.f32.gmra.mrb[0].mxu0 %v745
      %v4526 = vpop.f32.mrb[0].mxu0
      %v4527 = vadd.f32 0.0, %v4526
      %v4528 = vpop.f32.mrb[0].mxu0
      %4529 = vmatprep.mubr.f32.mxu0 0.0
      %4530 = vmatmul.mubr.f32.gmra.mrb[0].mxu0 %v748
      %v4531 = vpop.f32.mrb[0].mxu0
      %v4532 = vadd.f32 0.0, %v4531
      %v4533 = vpop.f32.mrb[0].mxu0
      %4534 = vmatprep.mubr.f32.mxu0 0.0
      %4535 = vmatmul.mubr.f32.gmra.mrb[0].mxu0 %v751
      %v4536 = vpop.f32.mrb[0].mxu0
      %v4537 = vadd.f32 0.0, %v4536
      %v4538 = vpop.f32.mrb[0].mxu0
      %4539 = vmatprep.mubr.f32.mxu0 0.0
      %4540 = vmatmul.mubr.f32.gmra.mrb[0].mxu0 %v754
      %v4541 = vpop.f32.mrb[0].mxu0
      %v4542 = vadd.f32 0.0, %v4541
      %v4543 = vpop.f32.mrb[0].mxu0
      %4544 = vmatprep.mubr.f32.mxu0 0.0
      %4545 = vmatmul.mubr.f32.gmra.mrb[0].mxu0 %v757
      %v4546 = vpop.f32.mrb[0].mxu0
      %v4547 = vadd.f32 0.0, %v4546
      %v4548 = vpop.f32.mrb[0].mxu0
      %4549 = vmatprep.mubr.f32.mxu0 0.0
      %4550 = vmatmul.mubr.f32.gmra.mrb[0].mxu0 %v760
      %v4551 = vpop.f32.mrb[0].mxu0
      %v4552 = vadd.f32 0.0, %v4551
      %v4553 = vpop.f32.mrb[0].mxu0
      %4554 = vmatprep.mubr.f32.mxu0 0.0
      %4555 = vmatmul.mubr.f32.gmra.mrb[0].mxu0 %v763
      %v4556 = vpop.f32.mrb[0].mxu0
      %v4557 = vadd.f32 0.0, %v4556
      %v4558 = vpop.f32.mrb[0].mxu0
      %4559 = vmatprep.mubr.f32.mxu0 0.0
      %4560 = vmatmul.mubr.f32.gmra.mrb[0].mxu0 %v766
      %v4561 = vpop.f32.mrb[0].mxu0
      %v4562 = vadd.f32 0.0, %v4561
      %v4563 = vpop.f32.mrb[0].mxu0
      %4564 = vmatprep.mubr.f32.mxu0 0.0
      %4565 = vmatmul.mubr.f32.gmra.mrb[0].mxu0 %v769
      %v4566 = vpop.f32.mrb[0].mxu0
      %v4567 = vadd.f32 0.0, %v4566
      %v4568 = vpop.f32.mrb[0].mxu0
      %4569 = vmatprep.mubr.f32.mxu0 0.0
      %4570 = vmatmul.mubr.f32.gmra.mrb[0].mxu0 %v4347
      %v4571 = vpop.f32.mrb[0].mxu0
      %v4572 = vadd.f32 0.0, %v4571
      %v4573 = vpop.f32.mrb[0].mxu0
      %4574 = vmatprep.mubr.f32.mxu0 0.0
      %4575 = vmatmul.mubr.f32.gmra.mrb[0].mxu0 %v4350
      %v4576 = vpop.f32.mrb[0].mxu0
      %v4577 = vadd.f32 0.0, %v4576
      %v4578 = vpop.f32.mrb[0].mxu0
      %4579 = vdwg.mxu0
      %v4580 = vadd.f32 %v4313, %v4422
      %v4581 = vadd.f32 %v4314, %v4427
      %v4582 = vadd.f32 %v4315, %v4432
      %v4583 = vadd.f32 %v4316, %v4437
      %v4584 = vadd.f32 %v4317, %v4442
      %v4585 = vadd.f32 %v4318, %v4447
      %v4586 = vadd.f32 %v4319, %v4452
      %v4587 = vadd.f32 %v4320, %v4457
      %v4588 = vadd.f32 %v4321, %v4462
      %v4589 = vadd.f32 %v4322, %v4467
      %v4590 = vadd.f32 %v4323, %v4472
      %v4591 = vadd.f32 %v4324, %v4477
      %v4592 = vadd.f32 %v4325, %v4482
      %v4593 = vadd.f32 %v4326, %v4487
      %v4594 = vadd.f32 %v4327, %v4492
      %v4595 = vadd.f32 %v4328, %v4497
      %v4596 = vadd.f32 %v4329, %v4502
      %v4597 = vadd.f32 %v4330, %v4507
      %v4598 = vadd.f32 %v4331, %v4512
      %v4599 = vadd.f32 %v4332, %v4517
      %v4600 = vadd.f32 %v4333, %v4522
      %v4601 = vadd.f32 %v4334, %v4527
      %v4602 = vadd.f32 %v4335, %v4532
      %v4603 = vadd.f32 %v4336, %v4537
      %v4604 = vadd.f32 %v4337, %v4542
      %v4605 = vadd.f32 %v4338, %v4547
      %v4606 = vadd.f32 %v4339, %v4552
      %v4607 = vadd.f32 %v4340, %v4557
      %v4608 = vadd.f32 %v4341, %v4562
      %v4609 = vadd.f32 %v4342, %v4567
      %v4610 = vadd.f32 %v4343, %v4572
      %v4611 = vadd.f32 %v4344, %v4577
      %s4612 = scalar_lea.vmem %s1, 40
      %v4613 = vld [vmem:[%s4612] sm:$0x7]
      %v4614 = vsel %vm677, %v327, 0
      %v4616 = vsel %vm677, %v328, 0
      %v4619 = vsel %vm771, %v4613, 0
      %4621 = vmatprep.subr.mxu0 0.0
      %4622 = vmatpush1.msra.mxu0 %v4619
      %4623 = vmatprep.subr.mxu0 0.0
      %4624 = vmatpush1.msra.mxu0 0.0
      %4625 = vmatprep.subr.mxu0 0.0
      %4626 = vmatpush1.msra.mxu0 0.0
      %4627 = vmatprep.subr.mxu0 0.0
      %4628 = vmatpush1.msra.mxu0 0.0
      %4629 = vmatprep.subr.mxu0 0.0
      %4630 = vmatpush1.msra.mxu0 0.0
      %4631 = vmatprep.subr.mxu0 0.0
      %4632 = vmatpush1.msra.mxu0 0.0
      %4633 = vmatprep.subr.mxu0 0.0
      %4634 = vmatpush1.msra.mxu0 0.0
      %4635 = vmatprep.subr.mxu0 0.0
      %4636 = vmatpush1.msra.mxu0 0.0
      %4637 = vmatprep.subr.mxu0 0.0
      %4638 = vmatpush1.msra.mxu0 0.0
      %4639 = vmatprep.subr.mxu0 0.0
      %4640 = vmatpush1.msra.mxu0 0.0
      %4641 = vmatprep.subr.mxu0 0.0
      %4642 = vmatpush1.msra.mxu0 0.0
      %4643 = vmatprep.subr.mxu0 0.0
      %4644 = vmatpush1.msra.mxu0 0.0
      %4645 = vmatprep.subr.mxu0 0.0
      %4646 = vmatpush1.msra.mxu0 0.0
      %4647 = vmatprep.subr.mxu0 0.0
      %4648 = vmatpush1.msra.mxu0 0.0
      %4649 = vmatprep.subr.mxu0 0.0
      %4650 = vmatpush1.msra.mxu0 0.0
      %4651 = vmatprep.subr.mxu0 0.0
      %4652 = vmatpush1.msra.mxu0 0.0
      %4653 = vmatprep.subr.mxu0 0.0
      %4654 = vmatpush1.msra.mxu0 0.0
      %4655 = vmatprep.subr.mxu0 0.0
      %4656 = vmatpush1.msra.mxu0 0.0
      %4657 = vmatprep.subr.mxu0 0.0
      %4658 = vmatpush1.msra.mxu0 0.0
      %4659 = vmatprep.subr.mxu0 0.0
      %4660 = vmatpush1.msra.mxu0 0.0
      %4661 = vmatprep.subr.mxu0 0.0
      %4662 = vmatpush1.msra.mxu0 0.0
      %4663 = vmatprep.subr.mxu0 0.0
      %4664 = vmatpush1.msra.mxu0 0.0
      %4665 = vmatprep.subr.mxu0 0.0
      %4666 = vmatpush1.msra.mxu0 0.0
      %4667 = vmatprep.subr.mxu0 0.0
      %4668 = vmatpush1.msra.mxu0 0.0
      %4669 = vmatprep.subr.mxu0 0.0
      %4670 = vmatpush1.msra.mxu0 0.0
      %4671 = vmatprep.subr.mxu0 0.0
      %4672 = vmatpush1.msra.mxu0 0.0
      %4673 = vmatprep.subr.mxu0 0.0
      %4674 = vmatpush1.msra.mxu0 0.0
      %4675 = vmatprep.subr.mxu0 0.0
      %4676 = vmatpush1.msra.mxu0 0.0
      %4677 = vmatprep.subr.mxu0 0.0
      %4678 = vmatpush1.msra.mxu0 0.0
      %4679 = vmatprep.subr.mxu0 0.0
      %4680 = vmatpush1.msra.mxu0 0.0
      %4681 = vmatprep.subr.mxu0 0.0
      %4682 = vmatpush1.msra.mxu0 0.0
      %4683 = vmatprep.subr.mxu0 0.0
      %4684 = vmatpush1.msra.mxu0 0.0
      %4685 = vmatprep.mubr.f32.mxu0 0.0
      %4686 = vmatmul.mubr.f32.gmra.mrb[0].mxu0 %v1326
      %v4687 = vpop.f32.mrb[0].mxu0
      %v4688 = vadd.f32 0.0, %v4687
      %v4689 = vpop.f32.mrb[0].mxu0
      %4690 = vmatprep.mubr.f32.mxu0 0.0
      %4691 = vmatmul.mubr.f32.gmra.mrb[0].mxu0 %v1328
      %v4692 = vpop.f32.mrb[0].mxu0
      %v4693 = vadd.f32 0.0, %v4692
      %v4694 = vpop.f32.mrb[0].mxu0
      %4695 = vmatprep.mubr.f32.mxu0 0.0
      %4696 = vmatmul.mubr.f32.gmra.mrb[0].mxu0 %v1330
      %v4697 = vpop.f32.mrb[0].mxu0
      %v4698 = vadd.f32 0.0, %v4697
      %v4699 = vpop.f32.mrb[0].mxu0
      %4700 = vmatprep.mubr.f32.mxu0 0.0
      %4701 = vmatmul.mubr.f32.gmra.mrb[0].mxu0 %v1332
      %v4702 = vpop.f32.mrb[0].mxu0
      %v4703 = vadd.f32 0.0, %v4702
      %v4704 = vpop.f32.mrb[0].mxu0
      %4705 = vmatprep.mubr.f32.mxu0 0.0
      %4706 = vmatmul.mubr.f32.gmra.mrb[0].mxu0 %v1334
      %v4707 = vpop.f32.mrb[0].mxu0
      %v4708 = vadd.f32 0.0, %v4707
      %v4709 = vpop.f32.mrb[0].mxu0
      %4710 = vmatprep.mubr.f32.mxu0 0.0
      %4711 = vmatmul.mubr.f32.gmra.mrb[0].mxu0 %v1336
      %v4712 = vpop.f32.mrb[0].mxu0
      %v4713 = vadd.f32 0.0, %v4712
      %v4714 = vpop.f32.mrb[0].mxu0
      %4715 = vmatprep.mubr.f32.mxu0 0.0
      %4716 = vmatmul.mubr.f32.gmra.mrb[0].mxu0 %v1338
      %v4717 = vpop.f32.mrb[0].mxu0
      %v4718 = vadd.f32 0.0, %v4717
      %v4719 = vpop.f32.mrb[0].mxu0
      %4720 = vmatprep.mubr.f32.mxu0 0.0
      %4721 = vmatmul.mubr.f32.gmra.mrb[0].mxu0 %v1340
      %v4722 = vpop.f32.mrb[0].mxu0
      %v4723 = vadd.f32 0.0, %v4722
      %v4724 = vpop.f32.mrb[0].mxu0
      %4725 = vmatprep.mubr.f32.mxu0 0.0
      %4726 = vmatmul.mubr.f32.gmra.mrb[0].mxu0 %v1342
      %v4727 = vpop.f32.mrb[0].mxu0
      %v4728 = vadd.f32 0.0, %v4727
      %v4729 = vpop.f32.mrb[0].mxu0
      %4730 = vmatprep.mubr.f32.mxu0 0.0
      %4731 = vmatmul.mubr.f32.gmra.mrb[0].mxu0 %v1344
      %v4732 = vpop.f32.mrb[0].mxu0
      %v4733 = vadd.f32 0.0, %v4732
      %v4734 = vpop.f32.mrb[0].mxu0
      %4735 = vmatprep.mubr.f32.mxu0 0.0
      %4736 = vmatmul.mubr.f32.gmra.mrb[0].mxu0 %v1346
      %v4737 = vpop.f32.mrb[0].mxu0
      %v4738 = vadd.f32 0.0, %v4737
      %v4739 = vpop.f32.mrb[0].mxu0
      %4740 = vmatprep.mubr.f32.mxu0 0.0
      %4741 = vmatmul.mubr.f32.gmra.mrb[0].mxu0 %v1348
      %v4742 = vpop.f32.mrb[0].mxu0
      %v4743 = vadd.f32 0.0, %v4742
      %v4744 = vpop.f32.mrb[0].mxu0
      %4745 = vmatprep.mubr.f32.mxu0 0.0
      %4746 = vmatmul.mubr.f32.gmra.mrb[0].mxu0 %v1350
      %v4747 = vpop.f32.mrb[0].mxu0
      %v4748 = vadd.f32 0.0, %v4747
      %v4749 = vpop.f32.mrb[0].mxu0
      %4750 = vmatprep.mubr.f32.mxu0 0.0
      %4751 = vmatmul.mubr.f32.gmra.mrb[0].mxu0 %v1352
      %v4752 = vpop.f32.mrb[0].mxu0
      %v4753 = vadd.f32 0.0, %v4752
      %v4754 = vpop.f32.mrb[0].mxu0
      %4755 = vmatprep.mubr.f32.mxu0 0.0
      %4756 = vmatmul.mubr.f32.gmra.mrb[0].mxu0 %v1354
      %v4757 = vpop.f32.mrb[0].mxu0
      %v4758 = vadd.f32 0.0, %v4757
      %v4759 = vpop.f32.mrb[0].mxu0
      %4760 = vmatprep.mubr.f32.mxu0 0.0
      %4761 = vmatmul.mubr.f32.gmra.mrb[0].mxu0 %v1356
      %v4762 = vpop.f32.mrb[0].mxu0
      %v4763 = vadd.f32 0.0, %v4762
      %v4764 = vpop.f32.mrb[0].mxu0
      %4765 = vmatprep.mubr.f32.mxu0 0.0
      %4766 = vmatmul.mubr.f32.gmra.mrb[0].mxu0 %v1358
      %v4767 = vpop.f32.mrb[0].mxu0
      %v4768 = vadd.f32 0.0, %v4767
      %v4769 = vpop.f32.mrb[0].mxu0
      %4770 = vmatprep.mubr.f32.mxu0 0.0
      %4771 = vmatmul.mubr.f32.gmra.mrb[0].mxu0 %v1360
      %v4772 = vpop.f32.mrb[0].mxu0
      %v4773 = vadd.f32 0.0, %v4772
      %v4774 = vpop.f32.mrb[0].mxu0
      %4775 = vmatprep.mubr.f32.mxu0 0.0
      %4776 = vmatmul.mubr.f32.gmra.mrb[0].mxu0 %v1362
      %v4777 = vpop.f32.mrb[0].mxu0
      %v4778 = vadd.f32 0.0, %v4777
      %v4779 = vpop.f32.mrb[0].mxu0
      %4780 = vmatprep.mubr.f32.mxu0 0.0
      %4781 = vmatmul.mubr.f32.gmra.mrb[0].mxu0 %v1364
      %v4782 = vpop.f32.mrb[0].mxu0
      %v4783 = vadd.f32 0.0, %v4782
      %v4784 = vpop.f32.mrb[0].mxu0
      %4785 = vmatprep.mubr.f32.mxu0 0.0
      %4786 = vmatmul.mubr.f32.gmra.mrb[0].mxu0 %v1366
      %v4787 = vpop.f32.mrb[0].mxu0
      %v4788 = vadd.f32 0.0, %v4787
      %v4789 = vpop.f32.mrb[0].mxu0
      %4790 = vmatprep.mubr.f32.mxu0 0.0
      %4791 = vmatmul.mubr.f32.gmra.mrb[0].mxu0 %v1368
      %v4792 = vpop.f32.mrb[0].mxu0
      %v4793 = vadd.f32 0.0, %v4792
      %v4794 = vpop.f32.mrb[0].mxu0
      %4795 = vmatprep.mubr.f32.mxu0 0.0
      %4796 = vmatmul.mubr.f32.gmra.mrb[0].mxu0 %v1370
      %v4797 = vpop.f32.mrb[0].mxu0
      %v4798 = vadd.f32 0.0, %v4797
      %v4799 = vpop.f32.mrb[0].mxu0
      %4800 = vmatprep.mubr.f32.mxu0 0.0
      %4801 = vmatmul.mubr.f32.gmra.mrb[0].mxu0 %v1372
      %v4802 = vpop.f32.mrb[0].mxu0
      %v4803 = vadd.f32 0.0, %v4802
      %v4804 = vpop.f32.mrb[0].mxu0
      %4805 = vmatprep.mubr.f32.mxu0 0.0
      %4806 = vmatmul.mubr.f32.gmra.mrb[0].mxu0 %v1374
      %v4807 = vpop.f32.mrb[0].mxu0
      %v4808 = vadd.f32 0.0, %v4807
      %v4809 = vpop.f32.mrb[0].mxu0
      %4810 = vmatprep.mubr.f32.mxu0 0.0
      %4811 = vmatmul.mubr.f32.gmra.mrb[0].mxu0 %v1376
      %v4812 = vpop.f32.mrb[0].mxu0
      %v4813 = vadd.f32 0.0, %v4812
      %v4814 = vpop.f32.mrb[0].mxu0
      %4815 = vmatprep.mubr.f32.mxu0 0.0
      %4816 = vmatmul.mubr.f32.gmra.mrb[0].mxu0 %v1378
      %v4817 = vpop.f32.mrb[0].mxu0
      %v4818 = vadd.f32 0.0, %v4817
      %v4819 = vpop.f32.mrb[0].mxu0
      %4820 = vmatprep.mubr.f32.mxu0 0.0
      %4821 = vmatmul.mubr.f32.gmra.mrb[0].mxu0 %v1380
      %v4822 = vpop.f32.mrb[0].mxu0
      %v4823 = vadd.f32 0.0, %v4822
      %v4824 = vpop.f32.mrb[0].mxu0
      %4825 = vmatprep.mubr.f32.mxu0 0.0
      %4826 = vmatmul.mubr.f32.gmra.mrb[0].mxu0 %v1382
      %v4827 = vpop.f32.mrb[0].mxu0
      %v4828 = vadd.f32 0.0, %v4827
      %v4829 = vpop.f32.mrb[0].mxu0
      %4830 = vmatprep.mubr.f32.mxu0 0.0
      %4831 = vmatmul.mubr.f32.gmra.mrb[0].mxu0 %v1384
      %v4832 = vpop.f32.mrb[0].mxu0
      %v4833 = vadd.f32 0.0, %v4832
      %v4834 = vpop.f32.mrb[0].mxu0
      %4835 = vmatprep.mubr.f32.mxu0 0.0
      %4836 = vmatmul.mubr.f32.gmra.mrb[0].mxu0 %v4614
      %v4837 = vpop.f32.mrb[0].mxu0
      %v4838 = vadd.f32 0.0, %v4837
      %v4839 = vpop.f32.mrb[0].mxu0
      %4840 = vmatprep.mubr.f32.mxu0 0.0
      %4841 = vmatmul.mubr.f32.gmra.mrb[0].mxu0 %v4616
      %v4842 = vpop.f32.mrb[0].mxu0
      %v4843 = vadd.f32 0.0, %v4842
      %v4844 = vpop.f32.mrb[0].mxu0
      %4845 = vdwg.mxu0
      %v4846 = vadd.f32 %v4580, %v4688
      %v4847 = vadd.f32 %v4581, %v4693
      %v4848 = vadd.f32 %v4582, %v4698
      %v4849 = vadd.f32 %v4583, %v4703
      %v4850 = vadd.f32 %v4584, %v4708
      %v4851 = vadd.f32 %v4585, %v4713
      %v4852 = vadd.f32 %v4586, %v4718
      %v4853 = vadd.f32 %v4587, %v4723
      %v4854 = vadd.f32 %v4588, %v4728
      %v4855 = vadd.f32 %v4589, %v4733
      %v4856 = vadd.f32 %v4590, %v4738
      %v4857 = vadd.f32 %v4591, %v4743
      %v4858 = vadd.f32 %v4592, %v4748
      %v4859 = vadd.f32 %v4593, %v4753
      %v4860 = vadd.f32 %v4594, %v4758
      %v4861 = vadd.f32 %v4595, %v4763
      %v4862 = vadd.f32 %v4596, %v4768
      %v4863 = vadd.f32 %v4597, %v4773
      %v4864 = vadd.f32 %v4598, %v4778
      %v4865 = vadd.f32 %v4599, %v4783
      %v4866 = vadd.f32 %v4600, %v4788
      %v4867 = vadd.f32 %v4601, %v4793
      %v4868 = vadd.f32 %v4602, %v4798
      %v4869 = vadd.f32 %v4603, %v4803
      %v4870 = vadd.f32 %v4604, %v4808
      %v4871 = vadd.f32 %v4605, %v4813
      %v4872 = vadd.f32 %v4606, %v4818
      %v4873 = vadd.f32 %v4607, %v4823
      %v4874 = vadd.f32 %v4608, %v4828
      %v4875 = vadd.f32 %v4609, %v4833
      %v4876 = vadd.f32 %v4610, %v4838
      %v4877 = vadd.f32 %v4611, %v4843
      %v4878 = vrot.slane %v295, 1
      %v4879 = vsel %vm1647, %v1707, %v4878
      %v4882 = vsel %vm1647, %v4878, 0.0
      %v4883 = vmul.f32 %v1650, %v1743
      %v4884 = vmul.f32 %v1652, %v1747
      %v4885 = vmul.f32 %v1654, %v1751
      %v4886 = vmul.f32 %v1656, %v1755
      %v4887 = vmul.f32 %v1658, %v1759
      %v4888 = vmul.f32 %v1660, %v1763
      %v4889 = vmul.f32 %v1662, %v1767
      %v4890 = vmul.f32 %v1664, %v1771
      %v4891 = vmul.f32 %v1666, %v1775
      %v4892 = vmul.f32 %v1668, %v1779
      %v4893 = vmul.f32 %v1670, %v1783
      %v4894 = vmul.f32 %v1672, %v1787
      %v4895 = vmul.f32 %v1674, %v1791
      %v4896 = vmul.f32 %v1676, %v1795
      %v4897 = vmul.f32 %v1678, %v1799
      %v4898 = vmul.f32 %v1680, %v1803
      %v4899 = vmul.f32 %v1682, %v1807
      %v4900 = vmul.f32 %v1684, %v1811
      %v4901 = vmul.f32 %v1686, %v1815
      %v4902 = vmul.f32 %v1688, %v1819
      %v4903 = vmul.f32 %v1690, %v1823
      %v4904 = vmul.f32 %v1692, %v1827
      %v4905 = vmul.f32 %v1694, %v1831
      %v4906 = vmul.f32 %v1696, %v1835
      %v4907 = vmul.f32 %v1698, %v1839
      %v4908 = vmul.f32 %v1700, %v1843
      %v4909 = vmul.f32 %v1702, %v1847
      %v4910 = vmul.f32 %v1704, %v1851
      %v4911 = vmul.f32 %v1706, %v1855
      %v4912 = vmul.f32 %v1708, %v1859
      %v4913 = vmul.f32 %v4879, %v1863
      %v4914 = vmul.f32 %v4882, %v1867
      %s4915 = scalar_lea.vmem %s1, 44
      %v4916 = vld [vmem:[%s4915] sm:$0x7]
      %v4918 = vsel %vm677, %v4883, 0
      %v4921 = vsel %vm677, %v4884, 0
      %v4924 = vsel %vm677, %v4885, 0
      %v4927 = vsel %vm677, %v4886, 0
      %v4930 = vsel %vm677, %v4887, 0
      %v4933 = vsel %vm677, %v4888, 0
      %v4936 = vsel %vm677, %v4889, 0
      %v4939 = vsel %vm677, %v4890, 0
      %v4942 = vsel %vm677, %v4891, 0
      %v4945 = vsel %vm677, %v4892, 0
      %v4948 = vsel %vm677, %v4893, 0
      %v4951 = vsel %vm677, %v4894, 0
      %v4954 = vsel %vm677, %v4895, 0
      %v4957 = vsel %vm677, %v4896, 0
      %v4960 = vsel %vm677, %v4897, 0
      %v4963 = vsel %vm677, %v4898, 0
      %v4966 = vsel %vm677, %v4899, 0
      %v4969 = vsel %vm677, %v4900, 0
      %v4972 = vsel %vm677, %v4901, 0
      %v4975 = vsel %vm677, %v4902, 0
      %v4978 = vsel %vm677, %v4903, 0
      %v4981 = vsel %vm677, %v4904, 0
      %v4984 = vsel %vm677, %v4905, 0
      %v4987 = vsel %vm677, %v4906, 0
      %v4990 = vsel %vm677, %v4907, 0
      %v4993 = vsel %vm677, %v4908, 0
      %v4996 = vsel %vm677, %v4909, 0
      %v4999 = vsel %vm677, %v4910, 0
      %v5002 = vsel %vm677, %v4911, 0
      %v5005 = vsel %vm677, %v4912, 0
      %v5008 = vsel %vm677, %v4913, 0
      %v5011 = vsel %vm677, %v4914, 0
      %v5014 = vsel %vm771, %v4916, 0
      %5016 = vmatprep.subr.mxu0 0.0
      %5017 = vmatpush1.msra.mxu0 %v5014
      %5018 = vmatprep.subr.mxu0 0.0
      %5019 = vmatpush1.msra.mxu0 0.0
      %5020 = vmatprep.subr.mxu0 0.0
      %5021 = vmatpush1.msra.mxu0 0.0
      %5022 = vmatprep.subr.mxu0 0.0
      %5023 = vmatpush1.msra.mxu0 0.0
      %5024 = vmatprep.subr.mxu0 0.0
      %5025 = vmatpush1.msra.mxu0 0.0
      %5026 = vmatprep.subr.mxu0 0.0
      %5027 = vmatpush1.msra.mxu0 0.0
      %5028 = vmatprep.subr.mxu0 0.0
      %5029 = vmatpush1.msra.mxu0 0.0
      %5030 = vmatprep.subr.mxu0 0.0
      %5031 = vmatpush1.msra.mxu0 0.0
      %5032 = vmatprep.subr.mxu0 0.0
      %5033 = vmatpush1.msra.mxu0 0.0
      %5034 = vmatprep.subr.mxu0 0.0
      %5035 = vmatpush1.msra.mxu0 0.0
      %5036 = vmatprep.subr.mxu0 0.0
      %5037 = vmatpush1.msra.mxu0 0.0
      %5038 = vmatprep.subr.mxu0 0.0
      %5039 = vmatpush1.msra.mxu0 0.0
      %5040 = vmatprep.subr.mxu0 0.0
      %5041 = vmatpush1.msra.mxu0 0.0
      %5042 = vmatprep.subr.mxu0 0.0
      %5043 = vmatpush1.msra.mxu0 0.0
      %5044 = vmatprep.subr.mxu0 0.0
      %5045 = vmatpush1.msra.mxu0 0.0
      %5046 = vmatprep.subr.mxu0 0.0
      %5047 = vmatpush1.msra.mxu0 0.0
      %5048 = vmatprep.subr.mxu0 0.0
      %5049 = vmatpush1.msra.mxu0 0.0
      %5050 = vmatprep.subr.mxu0 0.0
      %5051 = vmatpush1.msra.mxu0 0.0
      %5052 = vmatprep.subr.mxu0 0.0
      %5053 = vmatpush1.msra.mxu0 0.0
      %5054 = vmatprep.subr.mxu0 0.0
      %5055 = vmatpush1.msra.mxu0 0.0
      %5056 = vmatprep.subr.mxu0 0.0
      %5057 = vmatpush1.msra.mxu0 0.0
      %5058 = vmatprep.subr.mxu0 0.0
      %5059 = vmatpush1.msra.mxu0 0.0
      %5060 = vmatprep.subr.mxu0 0.0
      %5061 = vmatpush1.msra.mxu0 0.0
      %5062 = vmatprep.subr.mxu0 0.0
      %5063 = vmatpush1.msra.mxu0 0.0
      %5064 = vmatprep.subr.mxu0 0.0
      %5065 = vmatpush1.msra.mxu0 0.0
      %5066 = vmatprep.subr.mxu0 0.0
      %5067 = vmatpush1.msra.mxu0 0.0
      %5068 = vmatprep.subr.mxu0 0.0
      %5069 = vmatpush1.msra.mxu0 0.0
      %5070 = vmatprep.subr.mxu0 0.0
      %5071 = vmatpush1.msra.mxu0 0.0
      %5072 = vmatprep.subr.mxu0 0.0
      %5073 = vmatpush1.msra.mxu0 0.0
      %5074 = vmatprep.subr.mxu0 0.0
      %5075 = vmatpush1.msra.mxu0 0.0
      %5076 = vmatprep.subr.mxu0 0.0
      %5077 = vmatpush1.msra.mxu0 0.0
      %5078 = vmatprep.subr.mxu0 0.0
      %5079 = vmatpush1.msra.mxu0 0.0
      %5080 = vmatprep.mubr.f32.mxu0 0.0
      %5081 = vmatmul.mubr.f32.gmra.mrb[0].mxu0 %v4918
      %v5082 = vpop.f32.mrb[0].mxu0
      %v5083 = vadd.f32 0.0, %v5082
      %v5084 = vpop.f32.mrb[0].mxu0
      %5085 = vmatprep.mubr.f32.mxu0 0.0
      %5086 = vmatmul.mubr.f32.gmra.mrb[0].mxu0 %v4921
      %v5087 = vpop.f32.mrb[0].mxu0
      %v5088 = vadd.f32 0.0, %v5087
      %v5089 = vpop.f32.mrb[0].mxu0
      %5090 = vmatprep.mubr.f32.mxu0 0.0
      %5091 = vmatmul.mubr.f32.gmra.mrb[0].mxu0 %v4924
      %v5092 = vpop.f32.mrb[0].mxu0
      %v5093 = vadd.f32 0.0, %v5092
      %v5094 = vpop.f32.mrb[0].mxu0
      %5095 = vmatprep.mubr.f32.mxu0 0.0
      %5096 = vmatmul.mubr.f32.gmra.mrb[0].mxu0 %v4927
      %v5097 = vpop.f32.mrb[0].mxu0
      %v5098 = vadd.f32 0.0, %v5097
      %v5099 = vpop.f32.mrb[0].mxu0
      %5100 = vmatprep.mubr.f32.mxu0 0.0
      %5101 = vmatmul.mubr.f32.gmra.mrb[0].mxu0 %v4930
      %v5102 = vpop.f32.mrb[0].mxu0
      %v5103 = vadd.f32 0.0, %v5102
      %v5104 = vpop.f32.mrb[0].mxu0
      %5105 = vmatprep.mubr.f32.mxu0 0.0
      %5106 = vmatmul.mubr.f32.gmra.mrb[0].mxu0 %v4933
      %v5107 = vpop.f32.mrb[0].mxu0
      %v5108 = vadd.f32 0.0, %v5107
      %v5109 = vpop.f32.mrb[0].mxu0
      %5110 = vmatprep.mubr.f32.mxu0 0.0
      %5111 = vmatmul.mubr.f32.gmra.mrb[0].mxu0 %v4936
      %v5112 = vpop.f32.mrb[0].mxu0
      %v5113 = vadd.f32 0.0, %v5112
      %v5114 = vpop.f32.mrb[0].mxu0
      %5115 = vmatprep.mubr.f32.mxu0 0.0
      %5116 = vmatmul.mubr.f32.gmra.mrb[0].mxu0 %v4939
      %v5117 = vpop.f32.mrb[0].mxu0
      %v5118 = vadd.f32 0.0, %v5117
      %v5119 = vpop.f32.mrb[0].mxu0
      %5120 = vmatprep.mubr.f32.mxu0 0.0
      %5121 = vmatmul.mubr.f32.gmra.mrb[0].mxu0 %v4942
      %v5122 = vpop.f32.mrb[0].mxu0
      %v5123 = vadd.f32 0.0, %v5122
      %v5124 = vpop.f32.mrb[0].mxu0
      %5125 = vmatprep.mubr.f32.mxu0 0.0
      %5126 = vmatmul.mubr.f32.gmra.mrb[0].mxu0 %v4945
      %v5127 = vpop.f32.mrb[0].mxu0
      %v5128 = vadd.f32 0.0, %v5127
      %v5129 = vpop.f32.mrb[0].mxu0
      %5130 = vmatprep.mubr.f32.mxu0 0.0
      %5131 = vmatmul.mubr.f32.gmra.mrb[0].mxu0 %v4948
      %v5132 = vpop.f32.mrb[0].mxu0
      %v5133 = vadd.f32 0.0, %v5132
      %v5134 = vpop.f32.mrb[0].mxu0
      %5135 = vmatprep.mubr.f32.mxu0 0.0
      %5136 = vmatmul.mubr.f32.gmra.mrb[0].mxu0 %v4951
      %v5137 = vpop.f32.mrb[0].mxu0
      %v5138 = vadd.f32 0.0, %v5137
      %v5139 = vpop.f32.mrb[0].mxu0
      %5140 = vmatprep.mubr.f32.mxu0 0.0
      %5141 = vmatmul.mubr.f32.gmra.mrb[0].mxu0 %v4954
      %v5142 = vpop.f32.mrb[0].mxu0
      %v5143 = vadd.f32 0.0, %v5142
      %v5144 = vpop.f32.mrb[0].mxu0
      %5145 = vmatprep.mubr.f32.mxu0 0.0
      %5146 = vmatmul.mubr.f32.gmra.mrb[0].mxu0 %v4957
      %v5147 = vpop.f32.mrb[0].mxu0
      %v5148 = vadd.f32 0.0, %v5147
      %v5149 = vpop.f32.mrb[0].mxu0
      %5150 = vmatprep.mubr.f32.mxu0 0.0
      %5151 = vmatmul.mubr.f32.gmra.mrb[0].mxu0 %v4960
      %v5152 = vpop.f32.mrb[0].mxu0
      %v5153 = vadd.f32 0.0, %v5152
      %v5154 = vpop.f32.mrb[0].mxu0
      %5155 = vmatprep.mubr.f32.mxu0 0.0
      %5156 = vmatmul.mubr.f32.gmra.mrb[0].mxu0 %v4963
      %v5157 = vpop.f32.mrb[0].mxu0
      %v5158 = vadd.f32 0.0, %v5157
      %v5159 = vpop.f32.mrb[0].mxu0
      %5160 = vmatprep.mubr.f32.mxu0 0.0
      %5161 = vmatmul.mubr.f32.gmra.mrb[0].mxu0 %v4966
      %v5162 = vpop.f32.mrb[0].mxu0
      %v5163 = vadd.f32 0.0, %v5162
      %v5164 = vpop.f32.mrb[0].mxu0
      %5165 = vmatprep.mubr.f32.mxu0 0.0
      %5166 = vmatmul.mubr.f32.gmra.mrb[0].mxu0 %v4969
      %v5167 = vpop.f32.mrb[0].mxu0
      %v5168 = vadd.f32 0.0, %v5167
      %v5169 = vpop.f32.mrb[0].mxu0
      %5170 = vmatprep.mubr.f32.mxu0 0.0
      %5171 = vmatmul.mubr.f32.gmra.mrb[0].mxu0 %v4972
      %v5172 = vpop.f32.mrb[0].mxu0
      %v5173 = vadd.f32 0.0, %v5172
      %v5174 = vpop.f32.mrb[0].mxu0
      %5175 = vmatprep.mubr.f32.mxu0 0.0
      %5176 = vmatmul.mubr.f32.gmra.mrb[0].mxu0 %v4975
      %v5177 = vpop.f32.mrb[0].mxu0
      %v5178 = vadd.f32 0.0, %v5177
      %v5179 = vpop.f32.mrb[0].mxu0
      %5180 = vmatprep.mubr.f32.mxu0 0.0
      %5181 = vmatmul.mubr.f32.gmra.mrb[0].mxu0 %v4978
      %v5182 = vpop.f32.mrb[0].mxu0
      %v5183 = vadd.f32 0.0, %v5182
      %v5184 = vpop.f32.mrb[0].mxu0
      %5185 = vmatprep.mubr.f32.mxu0 0.0
      %5186 = vmatmul.mubr.f32.gmra.mrb[0].mxu0 %v4981
      %v5187 = vpop.f32.mrb[0].mxu0
      %v5188 = vadd.f32 0.0, %v5187
      %v5189 = vpop.f32.mrb[0].mxu0
      %5190 = vmatprep.mubr.f32.mxu0 0.0
      %5191 = vmatmul.mubr.f32.gmra.mrb[0].mxu0 %v4984
      %v5192 = vpop.f32.mrb[0].mxu0
      %v5193 = vadd.f32 0.0, %v5192
      %v5194 = vpop.f32.mrb[0].mxu0
      %5195 = vmatprep.mubr.f32.mxu0 0.0
      %5196 = vmatmul.mubr.f32.gmra.mrb[0].mxu0 %v4987
      %v5197 = vpop.f32.mrb[0].mxu0
      %v5198 = vadd.f32 0.0, %v5197
      %v5199 = vpop.f32.mrb[0].mxu0
      %5200 = vmatprep.mubr.f32.mxu0 0.0
      %5201 = vmatmul.mubr.f32.gmra.mrb[0].mxu0 %v4990
      %v5202 = vpop.f32.mrb[0].mxu0
      %v5203 = vadd.f32 0.0, %v5202
      %v5204 = vpop.f32.mrb[0].mxu0
      %5205 = vmatprep.mubr.f32.mxu0 0.0
      %5206 = vmatmul.mubr.f32.gmra.mrb[0].mxu0 %v4993
      %v5207 = vpop.f32.mrb[0].mxu0
      %v5208 = vadd.f32 0.0, %v5207
      %v5209 = vpop.f32.mrb[0].mxu0
      %5210 = vmatprep.mubr.f32.mxu0 0.0
      %5211 = vmatmul.mubr.f32.gmra.mrb[0].mxu0 %v4996
      %v5212 = vpop.f32.mrb[0].mxu0
      %v5213 = vadd.f32 0.0, %v5212
      %v5214 = vpop.f32.mrb[0].mxu0
      %5215 = vmatprep.mubr.f32.mxu0 0.0
      %5216 = vmatmul.mubr.f32.gmra.mrb[0].mxu0 %v4999
      %v5217 = vpop.f32.mrb[0].mxu0
      %v5218 = vadd.f32 0.0, %v5217
      %v5219 = vpop.f32.mrb[0].mxu0
      %5220 = vmatprep.mubr.f32.mxu0 0.0
      %5221 = vmatmul.mubr.f32.gmra.mrb[0].mxu0 %v5002
      %v5222 = vpop.f32.mrb[0].mxu0
      %v5223 = vadd.f32 0.0, %v5222
      %v5224 = vpop.f32.mrb[0].mxu0
      %5225 = vmatprep.mubr.f32.mxu0 0.0
      %5226 = vmatmul.mubr.f32.gmra.mrb[0].mxu0 %v5005
      %v5227 = vpop.f32.mrb[0].mxu0
      %v5228 = vadd.f32 0.0, %v5227
      %v5229 = vpop.f32.mrb[0].mxu0
      %5230 = vmatprep.mubr.f32.mxu0 0.0
      %5231 = vmatmul.mubr.f32.gmra.mrb[0].mxu0 %v5008
      %v5232 = vpop.f32.mrb[0].mxu0
      %v5233 = vadd.f32 0.0, %v5232
      %v5234 = vpop.f32.mrb[0].mxu0
      %5235 = vmatprep.mubr.f32.mxu0 0.0
      %5236 = vmatmul.mubr.f32.gmra.mrb[0].mxu0 %v5011
      %v5237 = vpop.f32.mrb[0].mxu0
      %v5238 = vadd.f32 0.0, %v5237
      %v5239 = vpop.f32.mrb[0].mxu0
      %5240 = vdwg.mxu0
      %v5241 = vadd.f32 %v4846, %v5083
      %v5242 = vadd.f32 %v4847, %v5088
      %v5243 = vadd.f32 %v4848, %v5093
      %v5244 = vadd.f32 %v4849, %v5098
      %v5245 = vadd.f32 %v4850, %v5103
      %v5246 = vadd.f32 %v4851, %v5108
      %v5247 = vadd.f32 %v4852, %v5113
      %v5248 = vadd.f32 %v4853, %v5118
      %v5249 = vadd.f32 %v4854, %v5123
      %v5250 = vadd.f32 %v4855, %v5128
      %v5251 = vadd.f32 %v4856, %v5133
      %v5252 = vadd.f32 %v4857, %v5138
      %v5253 = vadd.f32 %v4858, %v5143
      %v5254 = vadd.f32 %v4859, %v5148
      %v5255 = vadd.f32 %v4860, %v5153
      %v5256 = vadd.f32 %v4861, %v5158
      %v5257 = vadd.f32 %v4862, %v5163
      %v5258 = vadd.f32 %v4863, %v5168
      %v5259 = vadd.f32 %v4864, %v5173
      %v5260 = vadd.f32 %v4865, %v5178
      %v5261 = vadd.f32 %v4866, %v5183
      %v5262 = vadd.f32 %v4867, %v5188
      %v5263 = vadd.f32 %v4868, %v5193
      %v5264 = vadd.f32 %v4869, %v5198
      %v5265 = vadd.f32 %v4870, %v5203
      %v5266 = vadd.f32 %v4871, %v5208
      %v5267 = vadd.f32 %v4872, %v5213
      %v5268 = vadd.f32 %v4873, %v5218
      %v5269 = vadd.f32 %v4874, %v5223
      %v5270 = vadd.f32 %v4875, %v5228
      %v5271 = vadd.f32 %v4876, %v5233
      %v5272 = vadd.f32 %v4877, %v5238
      %v5274 = vsel %vm391, %v2352, 0.0
      %v5275 = vmul.f32 %v2295, %v485
      %v5276 = vmul.f32 %v2297, %v490
      %v5277 = vmul.f32 %v2299, %v495
      %v5278 = vmul.f32 %v2301, %v500
      %v5279 = vmul.f32 %v2303, %v505
      %v5280 = vmul.f32 %v2305, %v510
      %v5281 = vmul.f32 %v2307, %v515
      %v5282 = vmul.f32 %v2309, %v520
      %v5283 = vmul.f32 %v2311, %v525
      %v5284 = vmul.f32 %v2313, %v530
      %v5285 = vmul.f32 %v2315, %v535
      %v5286 = vmul.f32 %v2317, %v540
      %v5287 = vmul.f32 %v2319, %v545
      %v5288 = vmul.f32 %v2321, %v550
      %v5289 = vmul.f32 %v2323, %v555
      %v5290 = vmul.f32 %v2325, %v560
      %v5291 = vmul.f32 %v2327, %v565
      %v5292 = vmul.f32 %v2329, %v570
      %v5293 = vmul.f32 %v2331, %v575
      %v5294 = vmul.f32 %v2333, %v580
      %v5295 = vmul.f32 %v2335, %v585
      %v5296 = vmul.f32 %v2337, %v590
      %v5297 = vmul.f32 %v2339, %v595
      %v5298 = vmul.f32 %v2341, %v600
      %v5299 = vmul.f32 %v2343, %v605
      %v5300 = vmul.f32 %v2345, %v610
      %v5301 = vmul.f32 %v2347, %v615
      %v5302 = vmul.f32 %v2349, %v620
      %v5303 = vmul.f32 %v2351, %v625
      %v5304 = vmul.f32 %v2353, %v630
      %v5305 = vmul.f32 %v5274, %v635
      %v5306 = vmul.f32 %v640, 0.0
      %s5307 = scalar_lea.vmem %s1, 48
      %v5308 = vld [vmem:[%s5307] sm:$0x7]
      %v5310 = vsel %vm677, %v5275, 0
      %v5313 = vsel %vm677, %v5276, 0
      %v5316 = vsel %vm677, %v5277, 0
      %v5319 = vsel %vm677, %v5278, 0
      %v5322 = vsel %vm677, %v5279, 0
      %v5325 = vsel %vm677, %v5280, 0
      %v5328 = vsel %vm677, %v5281, 0
      %v5331 = vsel %vm677, %v5282, 0
      %v5334 = vsel %vm677, %v5283, 0
      %v5337 = vsel %vm677, %v5284, 0
      %v5340 = vsel %vm677, %v5285, 0
      %v5343 = vsel %vm677, %v5286, 0
      %v5346 = vsel %vm677, %v5287, 0
      %v5349 = vsel %vm677, %v5288, 0
      %v5352 = vsel %vm677, %v5289, 0
      %v5355 = vsel %vm677, %v5290, 0
      %v5358 = vsel %vm677, %v5291, 0
      %v5361 = vsel %vm677, %v5292, 0
      %v5364 = vsel %vm677, %v5293, 0
      %v5367 = vsel %vm677, %v5294, 0
      %v5370 = vsel %vm677, %v5295, 0
      %v5373 = vsel %vm677, %v5296, 0
      %v5376 = vsel %vm677, %v5297, 0
      %v5379 = vsel %vm677, %v5298, 0
      %v5382 = vsel %vm677, %v5299, 0
      %v5385 = vsel %vm677, %v5300, 0
      %v5388 = vsel %vm677, %v5301, 0
      %v5391 = vsel %vm677, %v5302, 0
      %v5394 = vsel %vm677, %v5303, 0
      %v5397 = vsel %vm677, %v5304, 0
      %v5400 = vsel %vm677, %v5305, 0
      %v5403 = vsel %vm677, %v5306, 0
      %v5406 = vsel %vm771, %v5308, 0
      %5408 = vmatprep.subr.mxu0 0.0
      %5409 = vmatpush1.msra.mxu0 %v5406
      %5410 = vmatprep.subr.mxu0 0.0
      %5411 = vmatpush1.msra.mxu0 0.0
      %5412 = vmatprep.subr.mxu0 0.0
      %5413 = vmatpush1.msra.mxu0 0.0
      %5414 = vmatprep.subr.mxu0 0.0
      %5415 = vmatpush1.msra.mxu0 0.0
      %5416 = vmatprep.subr.mxu0 0.0
      %5417 = vmatpush1.msra.mxu0 0.0
      %5418 = vmatprep.subr.mxu0 0.0
      %5419 = vmatpush1.msra.mxu0 0.0
      %5420 = vmatprep.subr.mxu0 0.0
      %5421 = vmatpush1.msra.mxu0 0.0
      %5422 = vmatprep.subr.mxu0 0.0
      %5423 = vmatpush1.msra.mxu0 0.0
      %5424 = vmatprep.subr.mxu0 0.0
      %5425 = vmatpush1.msra.mxu0 0.0
      %5426 = vmatprep.subr.mxu0 0.0
      %5427 = vmatpush1.msra.mxu0 0.0
      %5428 = vmatprep.subr.mxu0 0.0
      %5429 = vmatpush1.msra.mxu0 0.0
      %5430 = vmatprep.subr.mxu0 0.0
      %5431 = vmatpush1.msra.mxu0 0.0
      %5432 = vmatprep.subr.mxu0 0.0
      %5433 = vmatpush1.msra.mxu0 0.0
      %5434 = vmatprep.subr.mxu0 0.0
      %5435 = vmatpush1.msra.mxu0 0.0
      %5436 = vmatprep.subr.mxu0 0.0
      %5437 = vmatpush1.msra.mxu0 0.0
      %5438 = vmatprep.subr.mxu0 0.0
      %5439 = vmatpush1.msra.mxu0 0.0
      %5440 = vmatprep.subr.mxu0 0.0
      %5441 = vmatpush1.msra.mxu0 0.0
      %5442 = vmatprep.subr.mxu0 0.0
      %5443 = vmatpush1.msra.mxu0 0.0
      %5444 = vmatprep.subr.mxu0 0.0
      %5445 = vmatpush1.msra.mxu0 0.0
      %5446 = vmatprep.subr.mxu0 0.0
      %5447 = vmatpush1.msra.mxu0 0.0
      %5448 = vmatprep.subr.mxu0 0.0
      %5449 = vmatpush1.msra.mxu0 0.0
      %5450 = vmatprep.subr.mxu0 0.0
      %5451 = vmatpush1.msra.mxu0 0.0
      %5452 = vmatprep.subr.mxu0 0.0
      %5453 = vmatpush1.msra.mxu0 0.0
      %5454 = vmatprep.subr.mxu0 0.0
      %5455 = vmatpush1.msra.mxu0 0.0
      %5456 = vmatprep.subr.mxu0 0.0
      %5457 = vmatpush1.msra.mxu0 0.0
      %5458 = vmatprep.subr.mxu0 0.0
      %5459 = vmatpush1.msra.mxu0 0.0
      %5460 = vmatprep.subr.mxu0 0.0
      %5461 = vmatpush1.msra.mxu0 0.0
      %5462 = vmatprep.subr.mxu0 0.0
      %5463 = vmatpush1.msra.mxu0 0.0
      %5464 = vmatprep.subr.mxu0 0.0
      %5465 = vmatpush1.msra.mxu0 0.0
      %5466 = vmatprep.subr.mxu0 0.0
      %5467 = vmatpush1.msra.mxu0 0.0
      %5468 = vmatprep.subr.mxu0 0.0
      %5469 = vmatpush1.msra.mxu0 0.0
      %5470 = vmatprep.subr.mxu0 0.0
      %5471 = vmatpush1.msra.mxu0 0.0
      %5472 = vmatprep.mubr.f32.mxu0 0.0
      %5473 = vmatmul.mubr.f32.gmra.mrb[0].mxu0 %v5310
      %v5474 = vpop.f32.mrb[0].mxu0
      %v5475 = vadd.f32 0.0, %v5474
      %v5476 = vpop.f32.mrb[0].mxu0
      %5477 = vmatprep.mubr.f32.mxu0 0.0
      %5478 = vmatmul.mubr.f32.gmra.mrb[0].mxu0 %v5313
      %v5479 = vpop.f32.mrb[0].mxu0
      %v5480 = vadd.f32 0.0, %v5479
      %v5481 = vpop.f32.mrb[0].mxu0
      %5482 = vmatprep.mubr.f32.mxu0 0.0
      %5483 = vmatmul.mubr.f32.gmra.mrb[0].mxu0 %v5316
      %v5484 = vpop.f32.mrb[0].mxu0
      %v5485 = vadd.f32 0.0, %v5484
      %v5486 = vpop.f32.mrb[0].mxu0
      %5487 = vmatprep.mubr.f32.mxu0 0.0
      %5488 = vmatmul.mubr.f32.gmra.mrb[0].mxu0 %v5319
      %v5489 = vpop.f32.mrb[0].mxu0
      %v5490 = vadd.f32 0.0, %v5489
      %v5491 = vpop.f32.mrb[0].mxu0
      %5492 = vmatprep.mubr.f32.mxu0 0.0
      %5493 = vmatmul.mubr.f32.gmra.mrb[0].mxu0 %v5322
      %v5494 = vpop.f32.mrb[0].mxu0
      %v5495 = vadd.f32 0.0, %v5494
      %v5496 = vpop.f32.mrb[0].mxu0
      %5497 = vmatprep.mubr.f32.mxu0 0.0
      %5498 = vmatmul.mubr.f32.gmra.mrb[0].mxu0 %v5325
      %v5499 = vpop.f32.mrb[0].mxu0
      %v5500 = vadd.f32 0.0, %v5499
      %v5501 = vpop.f32.mrb[0].mxu0
      %5502 = vmatprep.mubr.f32.mxu0 0.0
      %5503 = vmatmul.mubr.f32.gmra.mrb[0].mxu0 %v5328
      %v5504 = vpop.f32.mrb[0].mxu0
      %v5505 = vadd.f32 0.0, %v5504
      %v5506 = vpop.f32.mrb[0].mxu0
      %5507 = vmatprep.mubr.f32.mxu0 0.0
      %5508 = vmatmul.mubr.f32.gmra.mrb[0].mxu0 %v5331
      %v5509 = vpop.f32.mrb[0].mxu0
      %v5510 = vadd.f32 0.0, %v5509
      %v5511 = vpop.f32.mrb[0].mxu0
      %5512 = vmatprep.mubr.f32.mxu0 0.0
      %5513 = vmatmul.mubr.f32.gmra.mrb[0].mxu0 %v5334
      %v5514 = vpop.f32.mrb[0].mxu0
      %v5515 = vadd.f32 0.0, %v5514
      %v5516 = vpop.f32.mrb[0].mxu0
      %5517 = vmatprep.mubr.f32.mxu0 0.0
      %5518 = vmatmul.mubr.f32.gmra.mrb[0].mxu0 %v5337
      %v5519 = vpop.f32.mrb[0].mxu0
      %v5520 = vadd.f32 0.0, %v5519
      %v5521 = vpop.f32.mrb[0].mxu0
      %5522 = vmatprep.mubr.f32.mxu0 0.0
      %5523 = vmatmul.mubr.f32.gmra.mrb[0].mxu0 %v5340
      %v5524 = vpop.f32.mrb[0].mxu0
      %v5525 = vadd.f32 0.0, %v5524
      %v5526 = vpop.f32.mrb[0].mxu0
      %5527 = vmatprep.mubr.f32.mxu0 0.0
      %5528 = vmatmul.mubr.f32.gmra.mrb[0].mxu0 %v5343
      %v5529 = vpop.f32.mrb[0].mxu0
      %v5530 = vadd.f32 0.0, %v5529
      %v5531 = vpop.f32.mrb[0].mxu0
      %5532 = vmatprep.mubr.f32.mxu0 0.0
      %5533 = vmatmul.mubr.f32.gmra.mrb[0].mxu0 %v5346
      %v5534 = vpop.f32.mrb[0].mxu0
      %v5535 = vadd.f32 0.0, %v5534
      %v5536 = vpop.f32.mrb[0].mxu0
      %5537 = vmatprep.mubr.f32.mxu0 0.0
      %5538 = vmatmul.mubr.f32.gmra.mrb[0].mxu0 %v5349
      %v5539 = vpop.f32.mrb[0].mxu0
      %v5540 = vadd.f32 0.0, %v5539
      %v5541 = vpop.f32.mrb[0].mxu0
      %5542 = vmatprep.mubr.f32.mxu0 0.0
      %5543 = vmatmul.mubr.f32.gmra.mrb[0].mxu0 %v5352
      %v5544 = vpop.f32.mrb[0].mxu0
      %v5545 = vadd.f32 0.0, %v5544
      %v5546 = vpop.f32.mrb[0].mxu0
      %5547 = vmatprep.mubr.f32.mxu0 0.0
      %5548 = vmatmul.mubr.f32.gmra.mrb[0].mxu0 %v5355
      %v5549 = vpop.f32.mrb[0].mxu0
      %v5550 = vadd.f32 0.0, %v5549
      %v5551 = vpop.f32.mrb[0].mxu0
      %5552 = vmatprep.mubr.f32.mxu0 0.0
      %5553 = vmatmul.mubr.f32.gmra.mrb[0].mxu0 %v5358
      %v5554 = vpop.f32.mrb[0].mxu0
      %v5555 = vadd.f32 0.0, %v5554
      %v5556 = vpop.f32.mrb[0].mxu0
      %5557 = vmatprep.mubr.f32.mxu0 0.0
      %5558 = vmatmul.mubr.f32.gmra.mrb[0].mxu0 %v5361
      %v5559 = vpop.f32.mrb[0].mxu0
      %v5560 = vadd.f32 0.0, %v5559
      %v5561 = vpop.f32.mrb[0].mxu0
      %5562 = vmatprep.mubr.f32.mxu0 0.0
      %5563 = vmatmul.mubr.f32.gmra.mrb[0].mxu0 %v5364
      %v5564 = vpop.f32.mrb[0].mxu0
      %v5565 = vadd.f32 0.0, %v5564
      %v5566 = vpop.f32.mrb[0].mxu0
      %5567 = vmatprep.mubr.f32.mxu0 0.0
      %5568 = vmatmul.mubr.f32.gmra.mrb[0].mxu0 %v5367
      %v5569 = vpop.f32.mrb[0].mxu0
      %v5570 = vadd.f32 0.0, %v5569
      %v5571 = vpop.f32.mrb[0].mxu0
      %5572 = vmatprep.mubr.f32.mxu0 0.0
      %5573 = vmatmul.mubr.f32.gmra.mrb[0].mxu0 %v5370
      %v5574 = vpop.f32.mrb[0].mxu0
      %v5575 = vadd.f32 0.0, %v5574
      %v5576 = vpop.f32.mrb[0].mxu0
      %5577 = vmatprep.mubr.f32.mxu0 0.0
      %5578 = vmatmul.mubr.f32.gmra.mrb[0].mxu0 %v5373
      %v5579 = vpop.f32.mrb[0].mxu0
      %v5580 = vadd.f32 0.0, %v5579
      %v5581 = vpop.f32.mrb[0].mxu0
      %5582 = vmatprep.mubr.f32.mxu0 0.0
      %5583 = vmatmul.mubr.f32.gmra.mrb[0].mxu0 %v5376
      %v5584 = vpop.f32.mrb[0].mxu0
      %v5585 = vadd.f32 0.0, %v5584
      %v5586 = vpop.f32.mrb[0].mxu0
      %5587 = vmatprep.mubr.f32.mxu0 0.0
      %5588 = vmatmul.mubr.f32.gmra.mrb[0].mxu0 %v5379
      %v5589 = vpop.f32.mrb[0].mxu0
      %v5590 = vadd.f32 0.0, %v5589
      %v5591 = vpop.f32.mrb[0].mxu0
      %5592 = vmatprep.mubr.f32.mxu0 0.0
      %5593 = vmatmul.mubr.f32.gmra.mrb[0].mxu0 %v5382
      %v5594 = vpop.f32.mrb[0].mxu0
      %v5595 = vadd.f32 0.0, %v5594
      %v5596 = vpop.f32.mrb[0].mxu0
      %5597 = vmatprep.mubr.f32.mxu0 0.0
      %5598 = vmatmul.mubr.f32.gmra.mrb[0].mxu0 %v5385
      %v5599 = vpop.f32.mrb[0].mxu0
      %v5600 = vadd.f32 0.0, %v5599
      %v5601 = vpop.f32.mrb[0].mxu0
      %5602 = vmatprep.mubr.f32.mxu0 0.0
      %5603 = vmatmul.mubr.f32.gmra.mrb[0].mxu0 %v5388
      %v5604 = vpop.f32.mrb[0].mxu0
      %v5605 = vadd.f32 0.0, %v5604
      %v5606 = vpop.f32.mrb[0].mxu0
      %5607 = vmatprep.mubr.f32.mxu0 0.0
      %5608 = vmatmul.mubr.f32.gmra.mrb[0].mxu0 %v5391
      %v5609 = vpop.f32.mrb[0].mxu0
      %v5610 = vadd.f32 0.0, %v5609
      %v5611 = vpop.f32.mrb[0].mxu0
      %5612 = vmatprep.mubr.f32.mxu0 0.0
      %5613 = vmatmul.mubr.f32.gmra.mrb[0].mxu0 %v5394
      %v5614 = vpop.f32.mrb[0].mxu0
      %v5615 = vadd.f32 0.0, %v5614
      %v5616 = vpop.f32.mrb[0].mxu0
      %5617 = vmatprep.mubr.f32.mxu0 0.0
      %5618 = vmatmul.mubr.f32.gmra.mrb[0].mxu0 %v5397
      %v5619 = vpop.f32.mrb[0].mxu0
      %v5620 = vadd.f32 0.0, %v5619
      %v5621 = vpop.f32.mrb[0].mxu0
      %5622 = vmatprep.mubr.f32.mxu0 0.0
      %5623 = vmatmul.mubr.f32.gmra.mrb[0].mxu0 %v5400
      %v5624 = vpop.f32.mrb[0].mxu0
      %v5625 = vadd.f32 0.0, %v5624
      %v5626 = vpop.f32.mrb[0].mxu0
      %5627 = vmatprep.mubr.f32.mxu0 0.0
      %5628 = vmatmul.mubr.f32.gmra.mrb[0].mxu0 %v5403
      %v5629 = vpop.f32.mrb[0].mxu0
      %v5630 = vadd.f32 0.0, %v5629
      %v5631 = vpop.f32.mrb[0].mxu0
      %5632 = vdwg.mxu0
      %v5633 = vadd.f32 %v5241, %v5475
      %v5634 = vadd.f32 %v5242, %v5480
      %v5635 = vadd.f32 %v5243, %v5485
      %v5636 = vadd.f32 %v5244, %v5490
      %v5637 = vadd.f32 %v5245, %v5495
      %v5638 = vadd.f32 %v5246, %v5500
      %v5639 = vadd.f32 %v5247, %v5505
      %v5640 = vadd.f32 %v5248, %v5510
      %v5641 = vadd.f32 %v5249, %v5515
      %v5642 = vadd.f32 %v5250, %v5520
      %v5643 = vadd.f32 %v5251, %v5525
      %v5644 = vadd.f32 %v5252, %v5530
      %v5645 = vadd.f32 %v5253, %v5535
      %v5646 = vadd.f32 %v5254, %v5540
      %v5647 = vadd.f32 %v5255, %v5545
      %v5648 = vadd.f32 %v5256, %v5550
      %v5649 = vadd.f32 %v5257, %v5555
      %v5650 = vadd.f32 %v5258, %v5560
      %v5651 = vadd.f32 %v5259, %v5565
      %v5652 = vadd.f32 %v5260, %v5570
      %v5653 = vadd.f32 %v5261, %v5575
      %v5654 = vadd.f32 %v5262, %v5580
      %v5655 = vadd.f32 %v5263, %v5585
      %v5656 = vadd.f32 %v5264, %v5590
      %v5657 = vadd.f32 %v5265, %v5595
      %v5658 = vadd.f32 %v5266, %v5600
      %v5659 = vadd.f32 %v5267, %v5605
      %v5660 = vadd.f32 %v5268, %v5610
      %v5661 = vadd.f32 %v5269, %v5615
      %v5662 = vadd.f32 %v5270, %v5620
      %v5663 = vadd.f32 %v5271, %v5625
      %v5664 = vadd.f32 %v5272, %v5630
      %s5665 = scalar_lea.vmem %s1, 52
      %v5666 = vld [vmem:[%s5665] sm:$0x7]
      %v5668 = vsel %vm771, %v5666, 0
      %5670 = vmatprep.subr.mxu0 0.0
      %5671 = vmatpush1.msra.mxu0 %v5668
      %5672 = vmatprep.subr.mxu0 0.0
      %5673 = vmatpush1.msra.mxu0 0.0
      %5674 = vmatprep.subr.mxu0 0.0
      %5675 = vmatpush1.msra.mxu0 0.0
      %5676 = vmatprep.subr.mxu0 0.0
      %5677 = vmatpush1.msra.mxu0 0.0
      %5678 = vmatprep.subr.mxu0 0.0
      %5679 = vmatpush1.msra.mxu0 0.0
      %5680 = vmatprep.subr.mxu0 0.0
      %5681 = vmatpush1.msra.mxu0 0.0
      %5682 = vmatprep.subr.mxu0 0.0
      %5683 = vmatpush1.msra.mxu0 0.0
      %5684 = vmatprep.subr.mxu0 0.0
      %5685 = vmatpush1.msra.mxu0 0.0
      %5686 = vmatprep.subr.mxu0 0.0
      %5687 = vmatpush1.msra.mxu0 0.0
      %5688 = vmatprep.subr.mxu0 0.0
      %5689 = vmatpush1.msra.mxu0 0.0
      %5690 = vmatprep.subr.mxu0 0.0
      %5691 = vmatpush1.msra.mxu0 0.0
      %5692 = vmatprep.subr.mxu0 0.0
      %5693 = vmatpush1.msra.mxu0 0.0
      %5694 = vmatprep.subr.mxu0 0.0
      %5695 = vmatpush1.msra.mxu0 0.0
      %5696 = vmatprep.subr.mxu0 0.0
      %5697 = vmatpush1.msra.mxu0 0.0
      %5698 = vmatprep.subr.mxu0 0.0
      %5699 = vmatpush1.msra.mxu0 0.0
      %5700 = vmatprep.subr.mxu0 0.0
      %5701 = vmatpush1.msra.mxu0 0.0
      %5702 = vmatprep.subr.mxu0 0.0
      %5703 = vmatpush1.msra.mxu0 0.0
      %5704 = vmatprep.subr.mxu0 0.0
      %5705 = vmatpush1.msra.mxu0 0.0
      %5706 = vmatprep.subr.mxu0 0.0
      %5707 = vmatpush1.msra.mxu0 0.0
      %5708 = vmatprep.subr.mxu0 0.0
      %5709 = vmatpush1.msra.mxu0 0.0
      %5710 = vmatprep.subr.mxu0 0.0
      %5711 = vmatpush1.msra.mxu0 0.0
      %5712 = vmatprep.subr.mxu0 0.0
      %5713 = vmatpush1.msra.mxu0 0.0
      %5714 = vmatprep.subr.mxu0 0.0
      %5715 = vmatpush1.msra.mxu0 0.0
      %5716 = vmatprep.subr.mxu0 0.0
      %5717 = vmatpush1.msra.mxu0 0.0
      %5718 = vmatprep.subr.mxu0 0.0
      %5719 = vmatpush1.msra.mxu0 0.0
      %5720 = vmatprep.subr.mxu0 0.0
      %5721 = vmatpush1.msra.mxu0 0.0
      %5722 = vmatprep.subr.mxu0 0.0
      %5723 = vmatpush1.msra.mxu0 0.0
      %5724 = vmatprep.subr.mxu0 0.0
      %5725 = vmatpush1.msra.mxu0 0.0
      %5726 = vmatprep.subr.mxu0 0.0
      %5727 = vmatpush1.msra.mxu0 0.0
      %5728 = vmatprep.subr.mxu0 0.0
      %5729 = vmatpush1.msra.mxu0 0.0
      %5730 = vmatprep.subr.mxu0 0.0
      %5731 = vmatpush1.msra.mxu0 0.0
      %5732 = vmatprep.subr.mxu0 0.0
      %5733 = vmatpush1.msra.mxu0 0.0
      %5734 = vmatprep.mubr.f32.mxu0 0.0
      %5735 = vmatmul.mubr.f32.gmra.mrb[0].mxu0 %v2786
      %v5736 = vpop.f32.mrb[0].mxu0
      %v5737 = vadd.f32 0.0, %v5736
      %v5738 = vpop.f32.mrb[0].mxu0
      %5739 = vmatprep.mubr.f32.mxu0 0.0
      %5740 = vmatmul.mubr.f32.gmra.mrb[0].mxu0 %v2789
      %v5741 = vpop.f32.mrb[0].mxu0
      %v5742 = vadd.f32 0.0, %v5741
      %v5743 = vpop.f32.mrb[0].mxu0
      %5744 = vmatprep.mubr.f32.mxu0 0.0
      %5745 = vmatmul.mubr.f32.gmra.mrb[0].mxu0 %v2792
      %v5746 = vpop.f32.mrb[0].mxu0
      %v5747 = vadd.f32 0.0, %v5746
      %v5748 = vpop.f32.mrb[0].mxu0
      %5749 = vmatprep.mubr.f32.mxu0 0.0
      %5750 = vmatmul.mubr.f32.gmra.mrb[0].mxu0 %v2795
      %v5751 = vpop.f32.mrb[0].mxu0
      %v5752 = vadd.f32 0.0, %v5751
      %v5753 = vpop.f32.mrb[0].mxu0
      %5754 = vmatprep.mubr.f32.mxu0 0.0
      %5755 = vmatmul.mubr.f32.gmra.mrb[0].mxu0 %v2798
      %v5756 = vpop.f32.mrb[0].mxu0
      %v5757 = vadd.f32 0.0, %v5756
      %v5758 = vpop.f32.mrb[0].mxu0
      %5759 = vmatprep.mubr.f32.mxu0 0.0
      %5760 = vmatmul.mubr.f32.gmra.mrb[0].mxu0 %v2801
      %v5761 = vpop.f32.mrb[0].mxu0
      %v5762 = vadd.f32 0.0, %v5761
      %v5763 = vpop.f32.mrb[0].mxu0
      %5764 = vmatprep.mubr.f32.mxu0 0.0
      %5765 = vmatmul.mubr.f32.gmra.mrb[0].mxu0 %v2804
      %v5766 = vpop.f32.mrb[0].mxu0
      %v5767 = vadd.f32 0.0, %v5766
      %v5768 = vpop.f32.mrb[0].mxu0
      %5769 = vmatprep.mubr.f32.mxu0 0.0
      %5770 = vmatmul.mubr.f32.gmra.mrb[0].mxu0 %v2807
      %v5771 = vpop.f32.mrb[0].mxu0
      %v5772 = vadd.f32 0.0, %v5771
      %v5773 = vpop.f32.mrb[0].mxu0
      %5774 = vmatprep.mubr.f32.mxu0 0.0
      %5775 = vmatmul.mubr.f32.gmra.mrb[0].mxu0 %v2810
      %v5776 = vpop.f32.mrb[0].mxu0
      %v5777 = vadd.f32 0.0, %v5776
      %v5778 = vpop.f32.mrb[0].mxu0
      %5779 = vmatprep.mubr.f32.mxu0 0.0
      %5780 = vmatmul.mubr.f32.gmra.mrb[0].mxu0 %v2813
      %v5781 = vpop.f32.mrb[0].mxu0
      %v5782 = vadd.f32 0.0, %v5781
      %v5783 = vpop.f32.mrb[0].mxu0
      %5784 = vmatprep.mubr.f32.mxu0 0.0
      %5785 = vmatmul.mubr.f32.gmra.mrb[0].mxu0 %v2816
      %v5786 = vpop.f32.mrb[0].mxu0
      %v5787 = vadd.f32 0.0, %v5786
      %v5788 = vpop.f32.mrb[0].mxu0
      %5789 = vmatprep.mubr.f32.mxu0 0.0
      %5790 = vmatmul.mubr.f32.gmra.mrb[0].mxu0 %v2819
      %v5791 = vpop.f32.mrb[0].mxu0
      %v5792 = vadd.f32 0.0, %v5791
      %v5793 = vpop.f32.mrb[0].mxu0
      %5794 = vmatprep.mubr.f32.mxu0 0.0
      %5795 = vmatmul.mubr.f32.gmra.mrb[0].mxu0 %v2822
      %v5796 = vpop.f32.mrb[0].mxu0
      %v5797 = vadd.f32 0.0, %v5796
      %v5798 = vpop.f32.mrb[0].mxu0
      %5799 = vmatprep.mubr.f32.mxu0 0.0
      %5800 = vmatmul.mubr.f32.gmra.mrb[0].mxu0 %v2825
      %v5801 = vpop.f32.mrb[0].mxu0
      %v5802 = vadd.f32 0.0, %v5801
      %v5803 = vpop.f32.mrb[0].mxu0
      %5804 = vmatprep.mubr.f32.mxu0 0.0
      %5805 = vmatmul.mubr.f32.gmra.mrb[0].mxu0 %v2828
      %v5806 = vpop.f32.mrb[0].mxu0
      %v5807 = vadd.f32 0.0, %v5806
      %v5808 = vpop.f32.mrb[0].mxu0
      %5809 = vmatprep.mubr.f32.mxu0 0.0
      %5810 = vmatmul.mubr.f32.gmra.mrb[0].mxu0 %v2831
      %v5811 = vpop.f32.mrb[0].mxu0
      %v5812 = vadd.f32 0.0, %v5811
      %v5813 = vpop.f32.mrb[0].mxu0
      %5814 = vmatprep.mubr.f32.mxu0 0.0
      %5815 = vmatmul.mubr.f32.gmra.mrb[0].mxu0 %v2834
      %v5816 = vpop.f32.mrb[0].mxu0
      %v5817 = vadd.f32 0.0, %v5816
      %v5818 = vpop.f32.mrb[0].mxu0
      %5819 = vmatprep.mubr.f32.mxu0 0.0
      %5820 = vmatmul.mubr.f32.gmra.mrb[0].mxu0 %v2837
      %v5821 = vpop.f32.mrb[0].mxu0
      %v5822 = vadd.f32 0.0, %v5821
      %v5823 = vpop.f32.mrb[0].mxu0
      %5824 = vmatprep.mubr.f32.mxu0 0.0
      %5825 = vmatmul.mubr.f32.gmra.mrb[0].mxu0 %v2840
      %v5826 = vpop.f32.mrb[0].mxu0
      %v5827 = vadd.f32 0.0, %v5826
      %v5828 = vpop.f32.mrb[0].mxu0
      %5829 = vmatprep.mubr.f32.mxu0 0.0
      %5830 = vmatmul.mubr.f32.gmra.mrb[0].mxu0 %v2843
      %v5831 = vpop.f32.mrb[0].mxu0
      %v5832 = vadd.f32 0.0, %v5831
      %v5833 = vpop.f32.mrb[0].mxu0
      %5834 = vmatprep.mubr.f32.mxu0 0.0
      %5835 = vmatmul.mubr.f32.gmra.mrb[0].mxu0 %v2846
      %v5836 = vpop.f32.mrb[0].mxu0
      %v5837 = vadd.f32 0.0, %v5836
      %v5838 = vpop.f32.mrb[0].mxu0
      %5839 = vmatprep.mubr.f32.mxu0 0.0
      %5840 = vmatmul.mubr.f32.gmra.mrb[0].mxu0 %v2849
      %v5841 = vpop.f32.mrb[0].mxu0
      %v5842 = vadd.f32 0.0, %v5841
      %v5843 = vpop.f32.mrb[0].mxu0
      %5844 = vmatprep.mubr.f32.mxu0 0.0
      %5845 = vmatmul.mubr.f32.gmra.mrb[0].mxu0 %v2852
      %v5846 = vpop.f32.mrb[0].mxu0
      %v5847 = vadd.f32 0.0, %v5846
      %v5848 = vpop.f32.mrb[0].mxu0
      %5849 = vmatprep.mubr.f32.mxu0 0.0
      %5850 = vmatmul.mubr.f32.gmra.mrb[0].mxu0 %v2855
      %v5851 = vpop.f32.mrb[0].mxu0
      %v5852 = vadd.f32 0.0, %v5851
      %v5853 = vpop.f32.mrb[0].mxu0
      %5854 = vmatprep.mubr.f32.mxu0 0.0
      %5855 = vmatmul.mubr.f32.gmra.mrb[0].mxu0 %v2858
      %v5856 = vpop.f32.mrb[0].mxu0
      %v5857 = vadd.f32 0.0, %v5856
      %v5858 = vpop.f32.mrb[0].mxu0
      %5859 = vmatprep.mubr.f32.mxu0 0.0
      %5860 = vmatmul.mubr.f32.gmra.mrb[0].mxu0 %v2861
      %v5861 = vpop.f32.mrb[0].mxu0
      %v5862 = vadd.f32 0.0, %v5861
      %v5863 = vpop.f32.mrb[0].mxu0
      %5864 = vmatprep.mubr.f32.mxu0 0.0
      %5865 = vmatmul.mubr.f32.gmra.mrb[0].mxu0 %v2864
      %v5866 = vpop.f32.mrb[0].mxu0
      %v5867 = vadd.f32 0.0, %v5866
      %v5868 = vpop.f32.mrb[0].mxu0
      %5869 = vmatprep.mubr.f32.mxu0 0.0
      %5870 = vmatmul.mubr.f32.gmra.mrb[0].mxu0 %v2867
      %v5871 = vpop.f32.mrb[0].mxu0
      %v5872 = vadd.f32 0.0, %v5871
      %v5873 = vpop.f32.mrb[0].mxu0
      %5874 = vmatprep.mubr.f32.mxu0 0.0
      %5875 = vmatmul.mubr.f32.gmra.mrb[0].mxu0 %v2870
      %v5876 = vpop.f32.mrb[0].mxu0
      %v5877 = vadd.f32 0.0, %v5876
      %v5878 = vpop.f32.mrb[0].mxu0
      %5879 = vmatprep.mubr.f32.mxu0 0.0
      %5880 = vmatmul.mubr.f32.gmra.mrb[0].mxu0 %v2873
      %v5881 = vpop.f32.mrb[0].mxu0
      %v5882 = vadd.f32 0.0, %v5881
      %v5883 = vpop.f32.mrb[0].mxu0
      %5884 = vmatprep.mubr.f32.mxu0 0.0
      %5885 = vmatmul.mubr.f32.gmra.mrb[0].mxu0 %v679
      %v5886 = vpop.f32.mrb[0].mxu0
      %v5887 = vadd.f32 0.0, %v5886
      %v5888 = vpop.f32.mrb[0].mxu0
      %5889 = vmatprep.mubr.f32.mxu0 0.0
      %5890 = vmatmul.mubr.f32.gmra.mrb[0].mxu0 %v679
      %v5891 = vpop.f32.mrb[0].mxu0
      %v5892 = vadd.f32 0.0, %v5891
      %v5893 = vpop.f32.mrb[0].mxu0
      %5894 = vdwg.mxu0
      %v5895 = vadd.f32 %v5633, %v5737
      %v5896 = vadd.f32 %v5634, %v5742
      %v5897 = vadd.f32 %v5635, %v5747
      %v5898 = vadd.f32 %v5636, %v5752
      %v5899 = vadd.f32 %v5637, %v5757
      %v5900 = vadd.f32 %v5638, %v5762
      %v5901 = vadd.f32 %v5639, %v5767
      %v5902 = vadd.f32 %v5640, %v5772
      %v5903 = vadd.f32 %v5641, %v5777
      %v5904 = vadd.f32 %v5642, %v5782
      %v5905 = vadd.f32 %v5643, %v5787
      %v5906 = vadd.f32 %v5644, %v5792
      %v5907 = vadd.f32 %v5645, %v5797
      %v5908 = vadd.f32 %v5646, %v5802
      %v5909 = vadd.f32 %v5647, %v5807
      %v5910 = vadd.f32 %v5648, %v5812
      %v5911 = vadd.f32 %v5649, %v5817
      %v5912 = vadd.f32 %v5650, %v5822
      %v5913 = vadd.f32 %v5651, %v5827
      %v5914 = vadd.f32 %v5652, %v5832
      %v5915 = vadd.f32 %v5653, %v5837
      %v5916 = vadd.f32 %v5654, %v5842
      %v5917 = vadd.f32 %v5655, %v5847
      %v5918 = vadd.f32 %v5656, %v5852
      %v5919 = vadd.f32 %v5657, %v5857
      %v5920 = vadd.f32 %v5658, %v5862
      %v5921 = vadd.f32 %v5659, %v5867
      %v5922 = vadd.f32 %v5660, %v5872
      %v5923 = vadd.f32 %v5661, %v5877
      %v5924 = vadd.f32 %v5662, %v5882
      %v5925 = vadd.f32 %v5663, %v5887
      %v5926 = vadd.f32 %v5664, %v5892
      %s5927 = scalar_lea.vmem %s1, 56
      %v5928 = vld [vmem:[%s5927] sm:$0x7]
      %v5930 = vsel %vm771, %v5928, 0
      %5932 = vmatprep.subr.mxu0 0.0
      %5933 = vmatpush1.msra.mxu0 %v5930
      %5934 = vmatprep.subr.mxu0 0.0
      %5935 = vmatpush1.msra.mxu0 0.0
      %5936 = vmatprep.subr.mxu0 0.0
      %5937 = vmatpush1.msra.mxu0 0.0
      %5938 = vmatprep.subr.mxu0 0.0
      %5939 = vmatpush1.msra.mxu0 0.0
      %5940 = vmatprep.subr.mxu0 0.0
      %5941 = vmatpush1.msra.mxu0 0.0
      %5942 = vmatprep.subr.mxu0 0.0
      %5943 = vmatpush1.msra.mxu0 0.0
      %5944 = vmatprep.subr.mxu0 0.0
      %5945 = vmatpush1.msra.mxu0 0.0
      %5946 = vmatprep.subr.mxu0 0.0
      %5947 = vmatpush1.msra.mxu0 0.0
      %5948 = vmatprep.subr.mxu0 0.0
      %5949 = vmatpush1.msra.mxu0 0.0
      %5950 = vmatprep.subr.mxu0 0.0
      %5951 = vmatpush1.msra.mxu0 0.0
      %5952 = vmatprep.subr.mxu0 0.0
      %5953 = vmatpush1.msra.mxu0 0.0
      %5954 = vmatprep.subr.mxu0 0.0
      %5955 = vmatpush1.msra.mxu0 0.0
      %5956 = vmatprep.subr.mxu0 0.0
      %5957 = vmatpush1.msra.mxu0 0.0
      %5958 = vmatprep.subr.mxu0 0.0
      %5959 = vmatpush1.msra.mxu0 0.0
      %5960 = vmatprep.subr.mxu0 0.0
      %5961 = vmatpush1.msra.mxu0 0.0
      %5962 = vmatprep.subr.mxu0 0.0
      %5963 = vmatpush1.msra.mxu0 0.0
      %5964 = vmatprep.subr.mxu0 0.0
      %5965 = vmatpush1.msra.mxu0 0.0
      %5966 = vmatprep.subr.mxu0 0.0
      %5967 = vmatpush1.msra.mxu0 0.0
      %5968 = vmatprep.subr.mxu0 0.0
      %5969 = vmatpush1.msra.mxu0 0.0
      %5970 = vmatprep.subr.mxu0 0.0
      %5971 = vmatpush1.msra.mxu0 0.0
      %5972 = vmatprep.subr.mxu0 0.0
      %5973 = vmatpush1.msra.mxu0 0.0
      %5974 = vmatprep.subr.mxu0 0.0
      %5975 = vmatpush1.msra.mxu0 0.0
      %5976 = vmatprep.subr.mxu0 0.0
      %5977 = vmatpush1.msra.mxu0 0.0
      %5978 = vmatprep.subr.mxu0 0.0
      %5979 = vmatpush1.msra.mxu0 0.0
      %5980 = vmatprep.subr.mxu0 0.0
      %5981 = vmatpush1.msra.mxu0 0.0
      %5982 = vmatprep.subr.mxu0 0.0
      %5983 = vmatpush1.msra.mxu0 0.0
      %5984 = vmatprep.subr.mxu0 0.0
      %5985 = vmatpush1.msra.mxu0 0.0
      %5986 = vmatprep.subr.mxu0 0.0
      %5987 = vmatpush1.msra.mxu0 0.0
      %5988 = vmatprep.subr.mxu0 0.0
      %5989 = vmatpush1.msra.mxu0 0.0
      %5990 = vmatprep.subr.mxu0 0.0
      %5991 = vmatpush1.msra.mxu0 0.0
      %5992 = vmatprep.subr.mxu0 0.0
      %5993 = vmatpush1.msra.mxu0 0.0
      %5994 = vmatprep.subr.mxu0 0.0
      %5995 = vmatpush1.msra.mxu0 0.0
      %5996 = vmatprep.mubr.f32.mxu0 0.0
      %5997 = vmatmul.mubr.f32.gmra.mrb[0].mxu0 %v3141
      %v5998 = vpop.f32.mrb[0].mxu0
      %v5999 = vadd.f32 0.0, %v5998
      %v6000 = vpop.f32.mrb[0].mxu0
      %6001 = vmatprep.mubr.f32.mxu0 0.0
      %6002 = vmatmul.mubr.f32.gmra.mrb[0].mxu0 %v3143
      %v6003 = vpop.f32.mrb[0].mxu0
      %v6004 = vadd.f32 0.0, %v6003
      %v6005 = vpop.f32.mrb[0].mxu0
      %6006 = vmatprep.mubr.f32.mxu0 0.0
      %6007 = vmatmul.mubr.f32.gmra.mrb[0].mxu0 %v3145
      %v6008 = vpop.f32.mrb[0].mxu0
      %v6009 = vadd.f32 0.0, %v6008
      %v6010 = vpop.f32.mrb[0].mxu0
      %6011 = vmatprep.mubr.f32.mxu0 0.0
      %6012 = vmatmul.mubr.f32.gmra.mrb[0].mxu0 %v3147
      %v6013 = vpop.f32.mrb[0].mxu0
      %v6014 = vadd.f32 0.0, %v6013
      %v6015 = vpop.f32.mrb[0].mxu0
      %6016 = vmatprep.mubr.f32.mxu0 0.0
      %6017 = vmatmul.mubr.f32.gmra.mrb[0].mxu0 %v3149
      %v6018 = vpop.f32.mrb[0].mxu0
      %v6019 = vadd.f32 0.0, %v6018
      %v6020 = vpop.f32.mrb[0].mxu0
      %6021 = vmatprep.mubr.f32.mxu0 0.0
      %6022 = vmatmul.mubr.f32.gmra.mrb[0].mxu0 %v3151
      %v6023 = vpop.f32.mrb[0].mxu0
      %v6024 = vadd.f32 0.0, %v6023
      %v6025 = vpop.f32.mrb[0].mxu0
      %6026 = vmatprep.mubr.f32.mxu0 0.0
      %6027 = vmatmul.mubr.f32.gmra.mrb[0].mxu0 %v3153
      %v6028 = vpop.f32.mrb[0].mxu0
      %v6029 = vadd.f32 0.0, %v6028
      %v6030 = vpop.f32.mrb[0].mxu0
      %6031 = vmatprep.mubr.f32.mxu0 0.0
      %6032 = vmatmul.mubr.f32.gmra.mrb[0].mxu0 %v3155
      %v6033 = vpop.f32.mrb[0].mxu0
      %v6034 = vadd.f32 0.0, %v6033
      %v6035 = vpop.f32.mrb[0].mxu0
      %6036 = vmatprep.mubr.f32.mxu0 0.0
      %6037 = vmatmul.mubr.f32.gmra.mrb[0].mxu0 %v3157
      %v6038 = vpop.f32.mrb[0].mxu0
      %v6039 = vadd.f32 0.0, %v6038
      %v6040 = vpop.f32.mrb[0].mxu0
      %6041 = vmatprep.mubr.f32.mxu0 0.0
      %6042 = vmatmul.mubr.f32.gmra.mrb[0].mxu0 %v3159
      %v6043 = vpop.f32.mrb[0].mxu0
      %v6044 = vadd.f32 0.0, %v6043
      %v6045 = vpop.f32.mrb[0].mxu0
      %6046 = vmatprep.mubr.f32.mxu0 0.0
      %6047 = vmatmul.mubr.f32.gmra.mrb[0].mxu0 %v3161
      %v6048 = vpop.f32.mrb[0].mxu0
      %v6049 = vadd.f32 0.0, %v6048
      %v6050 = vpop.f32.mrb[0].mxu0
      %6051 = vmatprep.mubr.f32.mxu0 0.0
      %6052 = vmatmul.mubr.f32.gmra.mrb[0].mxu0 %v3163
      %v6053 = vpop.f32.mrb[0].mxu0
      %v6054 = vadd.f32 0.0, %v6053
      %v6055 = vpop.f32.mrb[0].mxu0
      %6056 = vmatprep.mubr.f32.mxu0 0.0
      %6057 = vmatmul.mubr.f32.gmra.mrb[0].mxu0 %v3165
      %v6058 = vpop.f32.mrb[0].mxu0
      %v6059 = vadd.f32 0.0, %v6058
      %v6060 = vpop.f32.mrb[0].mxu0
      %6061 = vmatprep.mubr.f32.mxu0 0.0
      %6062 = vmatmul.mubr.f32.gmra.mrb[0].mxu0 %v3167
      %v6063 = vpop.f32.mrb[0].mxu0
      %v6064 = vadd.f32 0.0, %v6063
      %v6065 = vpop.f32.mrb[0].mxu0
      %6066 = vmatprep.mubr.f32.mxu0 0.0
      %6067 = vmatmul.mubr.f32.gmra.mrb[0].mxu0 %v3169
      %v6068 = vpop.f32.mrb[0].mxu0
      %v6069 = vadd.f32 0.0, %v6068
      %v6070 = vpop.f32.mrb[0].mxu0
      %6071 = vmatprep.mubr.f32.mxu0 0.0
      %6072 = vmatmul.mubr.f32.gmra.mrb[0].mxu0 %v3171
      %v6073 = vpop.f32.mrb[0].mxu0
      %v6074 = vadd.f32 0.0, %v6073
      %v6075 = vpop.f32.mrb[0].mxu0
      %6076 = vmatprep.mubr.f32.mxu0 0.0
      %6077 = vmatmul.mubr.f32.gmra.mrb[0].mxu0 %v3173
      %v6078 = vpop.f32.mrb[0].mxu0
      %v6079 = vadd.f32 0.0, %v6078
      %v6080 = vpop.f32.mrb[0].mxu0
      %6081 = vmatprep.mubr.f32.mxu0 0.0
      %6082 = vmatmul.mubr.f32.gmra.mrb[0].mxu0 %v3175
      %v6083 = vpop.f32.mrb[0].mxu0
      %v6084 = vadd.f32 0.0, %v6083
      %v6085 = vpop.f32.mrb[0].mxu0
      %6086 = vmatprep.mubr.f32.mxu0 0.0
      %6087 = vmatmul.mubr.f32.gmra.mrb[0].mxu0 %v3177
      %v6088 = vpop.f32.mrb[0].mxu0
      %v6089 = vadd.f32 0.0, %v6088
      %v6090 = vpop.f32.mrb[0].mxu0
      %6091 = vmatprep.mubr.f32.mxu0 0.0
      %6092 = vmatmul.mubr.f32.gmra.mrb[0].mxu0 %v3179
      %v6093 = vpop.f32.mrb[0].mxu0
      %v6094 = vadd.f32 0.0, %v6093
      %v6095 = vpop.f32.mrb[0].mxu0
      %6096 = vmatprep.mubr.f32.mxu0 0.0
      %6097 = vmatmul.mubr.f32.gmra.mrb[0].mxu0 %v3181
      %v6098 = vpop.f32.mrb[0].mxu0
      %v6099 = vadd.f32 0.0, %v6098
      %v6100 = vpop.f32.mrb[0].mxu0
      %6101 = vmatprep.mubr.f32.mxu0 0.0
      %6102 = vmatmul.mubr.f32.gmra.mrb[0].mxu0 %v3183
      %v6103 = vpop.f32.mrb[0].mxu0
      %v6104 = vadd.f32 0.0, %v6103
      %v6105 = vpop.f32.mrb[0].mxu0
      %6106 = vmatprep.mubr.f32.mxu0 0.0
      %6107 = vmatmul.mubr.f32.gmra.mrb[0].mxu0 %v3185
      %v6108 = vpop.f32.mrb[0].mxu0
      %v6109 = vadd.f32 0.0, %v6108
      %v6110 = vpop.f32.mrb[0].mxu0
      %6111 = vmatprep.mubr.f32.mxu0 0.0
      %6112 = vmatmul.mubr.f32.gmra.mrb[0].mxu0 %v3187
      %v6113 = vpop.f32.mrb[0].mxu0
      %v6114 = vadd.f32 0.0, %v6113
      %v6115 = vpop.f32.mrb[0].mxu0
      %6116 = vmatprep.mubr.f32.mxu0 0.0
      %6117 = vmatmul.mubr.f32.gmra.mrb[0].mxu0 %v3189
      %v6118 = vpop.f32.mrb[0].mxu0
      %v6119 = vadd.f32 0.0, %v6118
      %v6120 = vpop.f32.mrb[0].mxu0
      %6121 = vmatprep.mubr.f32.mxu0 0.0
      %6122 = vmatmul.mubr.f32.gmra.mrb[0].mxu0 %v3191
      %v6123 = vpop.f32.mrb[0].mxu0
      %v6124 = vadd.f32 0.0, %v6123
      %v6125 = vpop.f32.mrb[0].mxu0
      %6126 = vmatprep.mubr.f32.mxu0 0.0
      %6127 = vmatmul.mubr.f32.gmra.mrb[0].mxu0 %v3193
      %v6128 = vpop.f32.mrb[0].mxu0
      %v6129 = vadd.f32 0.0, %v6128
      %v6130 = vpop.f32.mrb[0].mxu0
      %6131 = vmatprep.mubr.f32.mxu0 0.0
      %6132 = vmatmul.mubr.f32.gmra.mrb[0].mxu0 %v3195
      %v6133 = vpop.f32.mrb[0].mxu0
      %v6134 = vadd.f32 0.0, %v6133
      %v6135 = vpop.f32.mrb[0].mxu0
      %6136 = vmatprep.mubr.f32.mxu0 0.0
      %6137 = vmatmul.mubr.f32.gmra.mrb[0].mxu0 %v3197
      %v6138 = vpop.f32.mrb[0].mxu0
      %v6139 = vadd.f32 0.0, %v6138
      %v6140 = vpop.f32.mrb[0].mxu0
      %6141 = vmatprep.mubr.f32.mxu0 0.0
      %6142 = vmatmul.mubr.f32.gmra.mrb[0].mxu0 %v3199
      %v6143 = vpop.f32.mrb[0].mxu0
      %v6144 = vadd.f32 0.0, %v6143
      %v6145 = vpop.f32.mrb[0].mxu0
      %6146 = vmatprep.mubr.f32.mxu0 0.0
      %6147 = vmatmul.mubr.f32.gmra.mrb[0].mxu0 %v679
      %v6148 = vpop.f32.mrb[0].mxu0
      %v6149 = vadd.f32 0.0, %v6148
      %v6150 = vpop.f32.mrb[0].mxu0
      %6151 = vmatprep.mubr.f32.mxu0 0.0
      %6152 = vmatmul.mubr.f32.gmra.mrb[0].mxu0 %v679
      %v6153 = vpop.f32.mrb[0].mxu0
      %v6154 = vadd.f32 0.0, %v6153
      %v6155 = vpop.f32.mrb[0].mxu0
      %6156 = vdwg.mxu0
      %v6157 = vadd.f32 %v5895, %v5999
      %v6158 = vadd.f32 %v5896, %v6004
      %v6159 = vadd.f32 %v5897, %v6009
      %v6160 = vadd.f32 %v5898, %v6014
      %v6161 = vadd.f32 %v5899, %v6019
      %v6162 = vadd.f32 %v5900, %v6024
      %v6163 = vadd.f32 %v5901, %v6029
      %v6164 = vadd.f32 %v5902, %v6034
      %v6165 = vadd.f32 %v5903, %v6039
      %v6166 = vadd.f32 %v5904, %v6044
      %v6167 = vadd.f32 %v5905, %v6049
      %v6168 = vadd.f32 %v5906, %v6054
      %v6169 = vadd.f32 %v5907, %v6059
      %v6170 = vadd.f32 %v5908, %v6064
      %v6171 = vadd.f32 %v5909, %v6069
      %v6172 = vadd.f32 %v5910, %v6074
      %v6173 = vadd.f32 %v5911, %v6079
      %v6174 = vadd.f32 %v5912, %v6084
      %v6175 = vadd.f32 %v5913, %v6089
      %v6176 = vadd.f32 %v5914, %v6094
      %v6177 = vadd.f32 %v5915, %v6099
      %v6178 = vadd.f32 %v5916, %v6104
      %v6179 = vadd.f32 %v5917, %v6109
      %v6180 = vadd.f32 %v5918, %v6114
      %v6181 = vadd.f32 %v5919, %v6119
      %v6182 = vadd.f32 %v5920, %v6124
      %v6183 = vadd.f32 %v5921, %v6129
      %v6184 = vadd.f32 %v5922, %v6134
      %v6185 = vadd.f32 %v5923, %v6139
      %v6186 = vadd.f32 %v5924, %v6144
      %v6187 = vadd.f32 %v5925, %v6149
      %v6188 = vadd.f32 %v5926, %v6154
      %v6189 = vmul.f32 %v3467, %v1743
      %v6190 = vmul.f32 %v3469, %v1747
      %v6191 = vmul.f32 %v3471, %v1751
      %v6192 = vmul.f32 %v3473, %v1755
      %v6193 = vmul.f32 %v3475, %v1759
      %v6194 = vmul.f32 %v3477, %v1763
      %v6195 = vmul.f32 %v3479, %v1767
      %v6196 = vmul.f32 %v3481, %v1771
      %v6197 = vmul.f32 %v3483, %v1775
      %v6198 = vmul.f32 %v3485, %v1779
      %v6199 = vmul.f32 %v3487, %v1783
      %v6200 = vmul.f32 %v3489, %v1787
      %v6201 = vmul.f32 %v3491, %v1791
      %v6202 = vmul.f32 %v3493, %v1795
      %v6203 = vmul.f32 %v3495, %v1799
      %v6204 = vmul.f32 %v3497, %v1803
      %v6205 = vmul.f32 %v3499, %v1807
      %v6206 = vmul.f32 %v3501, %v1811
      %v6207 = vmul.f32 %v3503, %v1815
      %v6208 = vmul.f32 %v3505, %v1819
      %v6209 = vmul.f32 %v3507, %v1823
      %v6210 = vmul.f32 %v3509, %v1827
      %v6211 = vmul.f32 %v3511, %v1831
      %v6212 = vmul.f32 %v3513, %v1835
      %v6213 = vmul.f32 %v3515, %v1839
      %v6214 = vmul.f32 %v3517, %v1843
      %v6215 = vmul.f32 %v3519, %v1847
      %v6216 = vmul.f32 %v3521, %v1851
      %v6217 = vmul.f32 %v3523, %v1855
      %v6218 = vmul.f32 %v3556, %v1859
      %v6219 = vmul.f32 %v1863, 0.0
      %v6220 = vmul.f32 %v1867, 0.0
      %s6221 = scalar_lea.vmem %s1, 60
      %v6222 = vld [vmem:[%s6221] sm:$0x7]
      %v6224 = vsel %vm677, %v6189, 0
      %v6227 = vsel %vm677, %v6190, 0
      %v6230 = vsel %vm677, %v6191, 0
      %v6233 = vsel %vm677, %v6192, 0
      %v6236 = vsel %vm677, %v6193, 0
      %v6239 = vsel %vm677, %v6194, 0
      %v6242 = vsel %vm677, %v6195, 0
      %v6245 = vsel %vm677, %v6196, 0
      %v6248 = vsel %vm677, %v6197, 0
      %v6251 = vsel %vm677, %v6198, 0
      %v6254 = vsel %vm677, %v6199, 0
      %v6257 = vsel %vm677, %v6200, 0
      %v6260 = vsel %vm677, %v6201, 0
      %v6263 = vsel %vm677, %v6202, 0
      %v6266 = vsel %vm677, %v6203, 0
      %v6269 = vsel %vm677, %v6204, 0
      %v6272 = vsel %vm677, %v6205, 0
      %v6275 = vsel %vm677, %v6206, 0
      %v6278 = vsel %vm677, %v6207, 0
      %v6281 = vsel %vm677, %v6208, 0
      %v6284 = vsel %vm677, %v6209, 0
      %v6287 = vsel %vm677, %v6210, 0
      %v6290 = vsel %vm677, %v6211, 0
      %v6293 = vsel %vm677, %v6212, 0
      %v6296 = vsel %vm677, %v6213, 0
      %v6299 = vsel %vm677, %v6214, 0
      %v6302 = vsel %vm677, %v6215, 0
      %v6305 = vsel %vm677, %v6216, 0
      %v6308 = vsel %vm677, %v6217, 0
      %v6311 = vsel %vm677, %v6218, 0
      %v6314 = vsel %vm677, %v6219, 0
      %v6317 = vsel %vm677, %v6220, 0
      %v6320 = vsel %vm771, %v6222, 0
      %6322 = vmatprep.subr.mxu0 0.0
      %6323 = vmatpush1.msra.mxu0 %v6320
      %6324 = vmatprep.subr.mxu0 0.0
      %6325 = vmatpush1.msra.mxu0 0.0
      %6326 = vmatprep.subr.mxu0 0.0
      %6327 = vmatpush1.msra.mxu0 0.0
      %6328 = vmatprep.subr.mxu0 0.0
      %6329 = vmatpush1.msra.mxu0 0.0
      %6330 = vmatprep.subr.mxu0 0.0
      %6331 = vmatpush1.msra.mxu0 0.0
      %6332 = vmatprep.subr.mxu0 0.0
      %6333 = vmatpush1.msra.mxu0 0.0
      %6334 = vmatprep.subr.mxu0 0.0
      %6335 = vmatpush1.msra.mxu0 0.0
      %6336 = vmatprep.subr.mxu0 0.0
      %6337 = vmatpush1.msra.mxu0 0.0
      %6338 = vmatprep.subr.mxu0 0.0
      %6339 = vmatpush1.msra.mxu0 0.0
      %6340 = vmatprep.subr.mxu0 0.0
      %6341 = vmatpush1.msra.mxu0 0.0
      %6342 = vmatprep.subr.mxu0 0.0
      %6343 = vmatpush1.msra.mxu0 0.0
      %6344 = vmatprep.subr.mxu0 0.0
      %6345 = vmatpush1.msra.mxu0 0.0
      %6346 = vmatprep.subr.mxu0 0.0
      %6347 = vmatpush1.msra.mxu0 0.0
      %6348 = vmatprep.subr.mxu0 0.0
      %6349 = vmatpush1.msra.mxu0 0.0
      %6350 = vmatprep.subr.mxu0 0.0
      %6351 = vmatpush1.msra.mxu0 0.0
      %6352 = vmatprep.subr.mxu0 0.0
      %6353 = vmatpush1.msra.mxu0 0.0
      %6354 = vmatprep.subr.mxu0 0.0
      %6355 = vmatpush1.msra.mxu0 0.0
      %6356 = vmatprep.subr.mxu0 0.0
      %6357 = vmatpush1.msra.mxu0 0.0
      %6358 = vmatprep.subr.mxu0 0.0
      %6359 = vmatpush1.msra.mxu0 0.0
      %6360 = vmatprep.subr.mxu0 0.0
      %6361 = vmatpush1.msra.mxu0 0.0
      %6362 = vmatprep.subr.mxu0 0.0
      %6363 = vmatpush1.msra.mxu0 0.0
      %6364 = vmatprep.subr.mxu0 0.0
      %6365 = vmatpush1.msra.mxu0 0.0
      %6366 = vmatprep.subr.mxu0 0.0
      %6367 = vmatpush1.msra.mxu0 0.0
      %6368 = vmatprep.subr.mxu0 0.0
      %6369 = vmatpush1.msra.mxu0 0.0
      %6370 = vmatprep.subr.mxu0 0.0
      %6371 = vmatpush1.msra.mxu0 0.0
      %6372 = vmatprep.subr.mxu0 0.0
      %6373 = vmatpush1.msra.mxu0 0.0
      %6374 = vmatprep.subr.mxu0 0.0
      %6375 = vmatpush1.msra.mxu0 0.0
      %6376 = vmatprep.subr.mxu0 0.0
      %6377 = vmatpush1.msra.mxu0 0.0
      %6378 = vmatprep.subr.mxu0 0.0
      %6379 = vmatpush1.msra.mxu0 0.0
      %6380 = vmatprep.subr.mxu0 0.0
      %6381 = vmatpush1.msra.mxu0 0.0
      %6382 = vmatprep.subr.mxu0 0.0
      %6383 = vmatpush1.msra.mxu0 0.0
      %6384 = vmatprep.subr.mxu0 0.0
      %6385 = vmatpush1.msra.mxu0 0.0
      %6386 = vmatprep.mubr.f32.mxu0 0.0
      %6387 = vmatmul.mubr.f32.gmra.mrb[0].mxu0 %v6224
      %v6388 = vpop.f32.mrb[0].mxu0
      %v6389 = vadd.f32 0.0, %v6388
      %v6390 = vpop.f32.mrb[0].mxu0
      %6391 = vmatprep.mubr.f32.mxu0 0.0
      %6392 = vmatmul.mubr.f32.gmra.mrb[0].mxu0 %v6227
      %v6393 = vpop.f32.mrb[0].mxu0
      %v6394 = vadd.f32 0.0, %v6393
      %v6395 = vpop.f32.mrb[0].mxu0
      %6396 = vmatprep.mubr.f32.mxu0 0.0
      %6397 = vmatmul.mubr.f32.gmra.mrb[0].mxu0 %v6230
      %v6398 = vpop.f32.mrb[0].mxu0
      %v6399 = vadd.f32 0.0, %v6398
      %v6400 = vpop.f32.mrb[0].mxu0
      %6401 = vmatprep.mubr.f32.mxu0 0.0
      %6402 = vmatmul.mubr.f32.gmra.mrb[0].mxu0 %v6233
      %v6403 = vpop.f32.mrb[0].mxu0
      %v6404 = vadd.f32 0.0, %v6403
      %v6405 = vpop.f32.mrb[0].mxu0
      %6406 = vmatprep.mubr.f32.mxu0 0.0
      %6407 = vmatmul.mubr.f32.gmra.mrb[0].mxu0 %v6236
      %v6408 = vpop.f32.mrb[0].mxu0
      %v6409 = vadd.f32 0.0, %v6408
      %v6410 = vpop.f32.mrb[0].mxu0
      %6411 = vmatprep.mubr.f32.mxu0 0.0
      %6412 = vmatmul.mubr.f32.gmra.mrb[0].mxu0 %v6239
      %v6413 = vpop.f32.mrb[0].mxu0
      %v6414 = vadd.f32 0.0, %v6413
      %v6415 = vpop.f32.mrb[0].mxu0
      %6416 = vmatprep.mubr.f32.mxu0 0.0
      %6417 = vmatmul.mubr.f32.gmra.mrb[0].mxu0 %v6242
      %v6418 = vpop.f32.mrb[0].mxu0
      %v6419 = vadd.f32 0.0, %v6418
      %v6420 = vpop.f32.mrb[0].mxu0
      %6421 = vmatprep.mubr.f32.mxu0 0.0
      %6422 = vmatmul.mubr.f32.gmra.mrb[0].mxu0 %v6245
      %v6423 = vpop.f32.mrb[0].mxu0
      %v6424 = vadd.f32 0.0, %v6423
      %v6425 = vpop.f32.mrb[0].mxu0
      %6426 = vmatprep.mubr.f32.mxu0 0.0
      %6427 = vmatmul.mubr.f32.gmra.mrb[0].mxu0 %v6248
      %v6428 = vpop.f32.mrb[0].mxu0
      %v6429 = vadd.f32 0.0, %v6428
      %v6430 = vpop.f32.mrb[0].mxu0
      %6431 = vmatprep.mubr.f32.mxu0 0.0
      %6432 = vmatmul.mubr.f32.gmra.mrb[0].mxu0 %v6251
      %v6433 = vpop.f32.mrb[0].mxu0
      %v6434 = vadd.f32 0.0, %v6433
      %v6435 = vpop.f32.mrb[0].mxu0
      %6436 = vmatprep.mubr.f32.mxu0 0.0
      %6437 = vmatmul.mubr.f32.gmra.mrb[0].mxu0 %v6254
      %v6438 = vpop.f32.mrb[0].mxu0
      %v6439 = vadd.f32 0.0, %v6438
      %v6440 = vpop.f32.mrb[0].mxu0
      %6441 = vmatprep.mubr.f32.mxu0 0.0
      %6442 = vmatmul.mubr.f32.gmra.mrb[0].mxu0 %v6257
      %v6443 = vpop.f32.mrb[0].mxu0
      %v6444 = vadd.f32 0.0, %v6443
      %v6445 = vpop.f32.mrb[0].mxu0
      %6446 = vmatprep.mubr.f32.mxu0 0.0
      %6447 = vmatmul.mubr.f32.gmra.mrb[0].mxu0 %v6260
      %v6448 = vpop.f32.mrb[0].mxu0
      %v6449 = vadd.f32 0.0, %v6448
      %v6450 = vpop.f32.mrb[0].mxu0
      %6451 = vmatprep.mubr.f32.mxu0 0.0
      %6452 = vmatmul.mubr.f32.gmra.mrb[0].mxu0 %v6263
      %v6453 = vpop.f32.mrb[0].mxu0
      %v6454 = vadd.f32 0.0, %v6453
      %v6455 = vpop.f32.mrb[0].mxu0
      %6456 = vmatprep.mubr.f32.mxu0 0.0
      %6457 = vmatmul.mubr.f32.gmra.mrb[0].mxu0 %v6266
      %v6458 = vpop.f32.mrb[0].mxu0
      %v6459 = vadd.f32 0.0, %v6458
      %v6460 = vpop.f32.mrb[0].mxu0
      %6461 = vmatprep.mubr.f32.mxu0 0.0
      %6462 = vmatmul.mubr.f32.gmra.mrb[0].mxu0 %v6269
      %v6463 = vpop.f32.mrb[0].mxu0
      %v6464 = vadd.f32 0.0, %v6463
      %v6465 = vpop.f32.mrb[0].mxu0
      %6466 = vmatprep.mubr.f32.mxu0 0.0
      %6467 = vmatmul.mubr.f32.gmra.mrb[0].mxu0 %v6272
      %v6468 = vpop.f32.mrb[0].mxu0
      %v6469 = vadd.f32 0.0, %v6468
      %v6470 = vpop.f32.mrb[0].mxu0
      %6471 = vmatprep.mubr.f32.mxu0 0.0
      %6472 = vmatmul.mubr.f32.gmra.mrb[0].mxu0 %v6275
      %v6473 = vpop.f32.mrb[0].mxu0
      %v6474 = vadd.f32 0.0, %v6473
      %v6475 = vpop.f32.mrb[0].mxu0
      %6476 = vmatprep.mubr.f32.mxu0 0.0
      %6477 = vmatmul.mubr.f32.gmra.mrb[0].mxu0 %v6278
      %v6478 = vpop.f32.mrb[0].mxu0
      %v6479 = vadd.f32 0.0, %v6478
      %v6480 = vpop.f32.mrb[0].mxu0
      %6481 = vmatprep.mubr.f32.mxu0 0.0
      %6482 = vmatmul.mubr.f32.gmra.mrb[0].mxu0 %v6281
      %v6483 = vpop.f32.mrb[0].mxu0
      %v6484 = vadd.f32 0.0, %v6483
      %v6485 = vpop.f32.mrb[0].mxu0
      %6486 = vmatprep.mubr.f32.mxu0 0.0
      %6487 = vmatmul.mubr.f32.gmra.mrb[0].mxu0 %v6284
      %v6488 = vpop.f32.mrb[0].mxu0
      %v6489 = vadd.f32 0.0, %v6488
      %v6490 = vpop.f32.mrb[0].mxu0
      %6491 = vmatprep.mubr.f32.mxu0 0.0
      %6492 = vmatmul.mubr.f32.gmra.mrb[0].mxu0 %v6287
      %v6493 = vpop.f32.mrb[0].mxu0
      %v6494 = vadd.f32 0.0, %v6493
      %v6495 = vpop.f32.mrb[0].mxu0
      %6496 = vmatprep.mubr.f32.mxu0 0.0
      %6497 = vmatmul.mubr.f32.gmra.mrb[0].mxu0 %v6290
      %v6498 = vpop.f32.mrb[0].mxu0
      %v6499 = vadd.f32 0.0, %v6498
      %v6500 = vpop.f32.mrb[0].mxu0
      %6501 = vmatprep.mubr.f32.mxu0 0.0
      %6502 = vmatmul.mubr.f32.gmra.mrb[0].mxu0 %v6293
      %v6503 = vpop.f32.mrb[0].mxu0
      %v6504 = vadd.f32 0.0, %v6503
      %v6505 = vpop.f32.mrb[0].mxu0
      %6506 = vmatprep.mubr.f32.mxu0 0.0
      %6507 = vmatmul.mubr.f32.gmra.mrb[0].mxu0 %v6296
      %v6508 = vpop.f32.mrb[0].mxu0
      %v6509 = vadd.f32 0.0, %v6508
      %v6510 = vpop.f32.mrb[0].mxu0
      %6511 = vmatprep.mubr.f32.mxu0 0.0
      %6512 = vmatmul.mubr.f32.gmra.mrb[0].mxu0 %v6299
      %v6513 = vpop.f32.mrb[0].mxu0
      %v6514 = vadd.f32 0.0, %v6513
      %v6515 = vpop.f32.mrb[0].mxu0
      %6516 = vmatprep.mubr.f32.mxu0 0.0
      %6517 = vmatmul.mubr.f32.gmra.mrb[0].mxu0 %v6302
      %v6518 = vpop.f32.mrb[0].mxu0
      %v6519 = vadd.f32 0.0, %v6518
      %v6520 = vpop.f32.mrb[0].mxu0
      %6521 = vmatprep.mubr.f32.mxu0 0.0
      %6522 = vmatmul.mubr.f32.gmra.mrb[0].mxu0 %v6305
      %v6523 = vpop.f32.mrb[0].mxu0
      %v6524 = vadd.f32 0.0, %v6523
      %v6525 = vpop.f32.mrb[0].mxu0
      %6526 = vmatprep.mubr.f32.mxu0 0.0
      %6527 = vmatmul.mubr.f32.gmra.mrb[0].mxu0 %v6308
      %v6528 = vpop.f32.mrb[0].mxu0
      %v6529 = vadd.f32 0.0, %v6528
      %v6530 = vpop.f32.mrb[0].mxu0
      %6531 = vmatprep.mubr.f32.mxu0 0.0
      %6532 = vmatmul.mubr.f32.gmra.mrb[0].mxu0 %v6311
      %v6533 = vpop.f32.mrb[0].mxu0
      %v6534 = vadd.f32 0.0, %v6533
      %v6535 = vpop.f32.mrb[0].mxu0
      %6536 = vmatprep.mubr.f32.mxu0 0.0
      %6537 = vmatmul.mubr.f32.gmra.mrb[0].mxu0 %v6314
      %v6538 = vpop.f32.mrb[0].mxu0
      %v6539 = vadd.f32 0.0, %v6538
      %v6540 = vpop.f32.mrb[0].mxu0
      %6541 = vmatprep.mubr.f32.mxu0 0.0
      %6542 = vmatmul.mubr.f32.gmra.mrb[0].mxu0 %v6317
      %v6543 = vpop.f32.mrb[0].mxu0
      %v6544 = vadd.f32 0.0, %v6543
      %v6545 = vpop.f32.mrb[0].mxu0
      %6546 = vdwg.mxu0
      %v6547 = vadd.f32 %v6157, %v6389
      %v6548 = vadd.f32 %v6158, %v6394
      %v6549 = vadd.f32 %v6159, %v6399
      %v6550 = vadd.f32 %v6160, %v6404
      %v6551 = vadd.f32 %v6161, %v6409
      %v6552 = vadd.f32 %v6162, %v6414
      %v6553 = vadd.f32 %v6163, %v6419
      %v6554 = vadd.f32 %v6164, %v6424
      %v6555 = vadd.f32 %v6165, %v6429
      %v6556 = vadd.f32 %v6166, %v6434
      %v6557 = vadd.f32 %v6167, %v6439
      %v6558 = vadd.f32 %v6168, %v6444
      %v6559 = vadd.f32 %v6169, %v6449
      %v6560 = vadd.f32 %v6170, %v6454
      %v6561 = vadd.f32 %v6171, %v6459
      %v6562 = vadd.f32 %v6172, %v6464
      %v6563 = vadd.f32 %v6173, %v6469
      %v6564 = vadd.f32 %v6174, %v6474
      %v6565 = vadd.f32 %v6175, %v6479
      %v6566 = vadd.f32 %v6176, %v6484
      %v6567 = vadd.f32 %v6177, %v6489
      %v6568 = vadd.f32 %v6178, %v6494
      %v6569 = vadd.f32 %v6179, %v6499
      %v6570 = vadd.f32 %v6180, %v6504
      %v6571 = vadd.f32 %v6181, %v6509
      %v6572 = vadd.f32 %v6182, %v6514
      %v6573 = vadd.f32 %v6183, %v6519
      %v6574 = vadd.f32 %v6184, %v6524
      %v6575 = vadd.f32 %v6185, %v6529
      %v6576 = vadd.f32 %v6186, %v6534
      %v6577 = vadd.f32 %v6187, %v6539
      %v6578 = vadd.f32 %v6188, %v6544
      %v6579 = vld [vmem:[%s2] sm:$0x1]
      %v6581 = vlaneseq
      %v6582 = vshrl.u32 %v6581, 7
      %v6583 = vsub.s32 0, %v6582
      %v6584 = vrot.slane %v6579, %v6583
      %v6586 = vadd.f32 %v6547, %v6584
      %v6587 = vadd.f32 %v6548, %v6584
      %v6588 = vadd.f32 %v6549, %v6584
      %v6589 = vadd.f32 %v6550, %v6584
      %v6590 = vadd.f32 %v6551, %v6584
      %v6591 = vadd.f32 %v6552, %v6584
      %v6592 = vadd.f32 %v6553, %v6584
      %v6593 = vadd.f32 %v6554, %v6584
      %v6594 = vadd.f32 %v6555, %v6584
      %v6595 = vadd.f32 %v6556, %v6584
      %v6596 = vadd.f32 %v6557, %v6584
      %v6597 = vadd.f32 %v6558, %v6584
      %v6598 = vadd.f32 %v6559, %v6584
      %v6599 = vadd.f32 %v6560, %v6584
      %v6600 = vadd.f32 %v6561, %v6584
      %v6601 = vadd.f32 %v6562, %v6584
      %v6602 = vadd.f32 %v6563, %v6584
      %v6603 = vadd.f32 %v6564, %v6584
      %v6604 = vadd.f32 %v6565, %v6584
      %v6605 = vadd.f32 %v6566, %v6584
      %v6606 = vadd.f32 %v6567, %v6584
      %v6607 = vadd.f32 %v6568, %v6584
      %v6608 = vadd.f32 %v6569, %v6584
      %v6609 = vadd.f32 %v6570, %v6584
      %v6610 = vadd.f32 %v6571, %v6584
      %v6611 = vadd.f32 %v6572, %v6584
      %v6612 = vadd.f32 %v6573, %v6584
      %v6613 = vadd.f32 %v6574, %v6584
      %v6614 = vadd.f32 %v6575, %v6584
      %v6615 = vadd.f32 %v6576, %v6584
      %v6616 = vadd.f32 %v6577, %v6584
      %v6617 = vadd.f32 %v6578, %v6584
      %vm6618 = vcmp.gt.f32.partialorder %v6586, 0.0
      %vm6619 = vcmp.gt.f32.partialorder %v6587, 0.0
      %vm6620 = vcmp.gt.f32.partialorder %v6588, 0.0
      %vm6621 = vcmp.gt.f32.partialorder %v6589, 0.0
      %vm6622 = vcmp.gt.f32.partialorder %v6590, 0.0
      %vm6623 = vcmp.gt.f32.partialorder %v6591, 0.0
      %vm6624 = vcmp.gt.f32.partialorder %v6592, 0.0
      %vm6625 = vcmp.gt.f32.partialorder %v6593, 0.0
      %vm6626 = vcmp.gt.f32.partialorder %v6594, 0.0
      %vm6627 = vcmp.gt.f32.partialorder %v6595, 0.0
      %vm6628 = vcmp.gt.f32.partialorder %v6596, 0.0
      %vm6629 = vcmp.gt.f32.partialorder %v6597, 0.0
      %vm6630 = vcmp.gt.f32.partialorder %v6598, 0.0
      %vm6631 = vcmp.gt.f32.partialorder %v6599, 0.0
      %vm6632 = vcmp.gt.f32.partialorder %v6600, 0.0
      %vm6633 = vcmp.gt.f32.partialorder %v6601, 0.0
      %vm6634 = vcmp.gt.f32.partialorder %v6602, 0.0
      %vm6635 = vcmp.gt.f32.partialorder %v6603, 0.0
      %vm6636 = vcmp.gt.f32.partialorder %v6604, 0.0
      %vm6637 = vcmp.gt.f32.partialorder %v6605, 0.0
      %vm6638 = vcmp.gt.f32.partialorder %v6606, 0.0
      %vm6639 = vcmp.gt.f32.partialorder %v6607, 0.0
      %vm6640 = vcmp.gt.f32.partialorder %v6608, 0.0
      %vm6641 = vcmp.gt.f32.partialorder %v6609, 0.0
      %vm6642 = vcmp.gt.f32.partialorder %v6610, 0.0
      %vm6643 = vcmp.gt.f32.partialorder %v6611, 0.0
      %vm6644 = vcmp.gt.f32.partialorder %v6612, 0.0
      %vm6645 = vcmp.gt.f32.partialorder %v6613, 0.0
      %vm6646 = vcmp.gt.f32.partialorder %v6614, 0.0
      %vm6647 = vcmp.gt.f32.partialorder %v6615, 0.0
      %vm6648 = vcmp.gt.f32.partialorder %v6616, 0.0
      %vm6649 = vcmp.gt.f32.partialorder %v6617, 0.0
      %v6650 = vmul.f32 %v6586, 0.01
      %v6651 = vmul.f32 %v6587, 0.01
      %v6652 = vmul.f32 %v6588, 0.01
      %v6653 = vmul.f32 %v6589, 0.01
      %v6654 = vmul.f32 %v6590, 0.01
      %v6655 = vmul.f32 %v6591, 0.01
      %v6656 = vmul.f32 %v6592, 0.01
      %v6657 = vmul.f32 %v6593, 0.01
      %v6658 = vmul.f32 %v6594, 0.01
      %v6659 = vmul.f32 %v6595, 0.01
      %v6660 = vmul.f32 %v6596, 0.01
      %v6661 = vmul.f32 %v6597, 0.01
      %v6662 = vmul.f32 %v6598, 0.01
      %v6663 = vmul.f32 %v6599, 0.01
      %v6664 = vmul.f32 %v6600, 0.01
      %v6665 = vmul.f32 %v6601, 0.01
      %v6666 = vmul.f32 %v6602, 0.01
      %v6667 = vmul.f32 %v6603, 0.01
      %v6668 = vmul.f32 %v6604, 0.01
      %v6669 = vmul.f32 %v6605, 0.01
      %v6670 = vmul.f32 %v6606, 0.01
      %v6671 = vmul.f32 %v6607, 0.01
      %v6672 = vmul.f32 %v6608, 0.01
      %v6673 = vmul.f32 %v6609, 0.01
      %v6674 = vmul.f32 %v6610, 0.01
      %v6675 = vmul.f32 %v6611, 0.01
      %v6676 = vmul.f32 %v6612, 0.01
      %v6677 = vmul.f32 %v6613, 0.01
      %v6678 = vmul.f32 %v6614, 0.01
      %v6679 = vmul.f32 %v6615, 0.01
      %v6680 = vmul.f32 %v6616, 0.01
      %v6681 = vmul.f32 %v6617, 0.01
      %v6682 = vsel %vm6618, %v6586, %v6650
      %v6683 = vsel %vm6619, %v6587, %v6651
      %v6684 = vsel %vm6620, %v6588, %v6652
      %v6685 = vsel %vm6621, %v6589, %v6653
      %v6686 = vsel %vm6622, %v6590, %v6654
      %v6687 = vsel %vm6623, %v6591, %v6655
      %v6688 = vsel %vm6624, %v6592, %v6656
      %v6689 = vsel %vm6625, %v6593, %v6657
      %v6690 = vsel %vm6626, %v6594, %v6658
      %v6691 = vsel %vm6627, %v6595, %v6659
      %v6692 = vsel %vm6628, %v6596, %v6660
      %v6693 = vsel %vm6629, %v6597, %v6661
      %v6694 = vsel %vm6630, %v6598, %v6662
      %v6695 = vsel %vm6631, %v6599, %v6663
      %v6696 = vsel %vm6632, %v6600, %v6664
      %v6697 = vsel %vm6633, %v6601, %v6665
      %v6698 = vsel %vm6634, %v6602, %v6666
      %v6699 = vsel %vm6635, %v6603, %v6667
      %v6700 = vsel %vm6636, %v6604, %v6668
      %v6701 = vsel %vm6637, %v6605, %v6669
      %v6702 = vsel %vm6638, %v6606, %v6670
      %v6703 = vsel %vm6639, %v6607, %v6671
      %v6704 = vsel %vm6640, %v6608, %v6672
      %v6705 = vsel %vm6641, %v6609, %v6673
      %v6706 = vsel %vm6642, %v6610, %v6674
      %v6707 = vsel %vm6643, %v6611, %v6675
      %v6708 = vsel %vm6644, %v6612, %v6676
      %v6709 = vsel %vm6645, %v6613, %v6677
      %v6710 = vsel %vm6646, %v6614, %v6678
      %v6711 = vsel %vm6647, %v6615, %v6679
      %v6712 = vsel %vm6648, %v6616, %v6680
      %v6713 = vsel %vm6649, %v6617, %v6681
      %vm6714 = vcmask 130048
      %6715 = vst.msk [vmem:[%s197] sm:$0xff] %vm6714, %v6682
      %6716 = vst.msk [vmem:[%s197 + $0x8] sm:$0xff] %vm6714, %v6683
      %6717 = vst.msk [vmem:[%s197 + $0x10] sm:$0xff] %vm6714, %v6684
      %6718 = vst.msk [vmem:[%s197 + $0x18] sm:$0xff] %vm6714, %v6685
      %6719 = vst.msk [vmem:[%s197 + $0x20] sm:$0xff] %vm6714, %v6686
      %6720 = vst.msk [vmem:[%s197 + $0x28] sm:$0xff] %vm6714, %v6687
      %6721 = vst.msk [vmem:[%s197 + $0x30] sm:$0xff] %vm6714, %v6688
      %6722 = vst.msk [vmem:[%s197 + $0x38] sm:$0xff] %vm6714, %v6689
      %6723 = vst.msk [vmem:[%s197 + $0x40] sm:$0xff] %vm6714, %v6690
      %6724 = vst.msk [vmem:[%s197 + $0x48] sm:$0xff] %vm6714, %v6691
      %6725 = vst.msk [vmem:[%s197 + $0x50] sm:$0xff] %vm6714, %v6692
      %6726 = vst.msk [vmem:[%s197 + $0x58] sm:$0xff] %vm6714, %v6693
      %6727 = vst.msk [vmem:[%s197 + $0x60] sm:$0xff] %vm6714, %v6694
      %6728 = vst.msk [vmem:[%s197 + $0x68] sm:$0xff] %vm6714, %v6695
      %6729 = vst.msk [vmem:[%s197 + $0x70] sm:$0xff] %vm6714, %v6696
      %6730 = vst.msk [vmem:[%s197 + $0x78] sm:$0xff] %vm6714, %v6697
      %6731 = vst.msk [vmem:[%s197 + $0x80] sm:$0xff] %vm6714, %v6698
      %6732 = vst.msk [vmem:[%s197 + $0x88] sm:$0xff] %vm6714, %v6699
      %6733 = vst.msk [vmem:[%s197 + $0x90] sm:$0xff] %vm6714, %v6700
      %6734 = vst.msk [vmem:[%s197 + $0x98] sm:$0xff] %vm6714, %v6701
      %6735 = vst.msk [vmem:[%s197 + $0xa0] sm:$0xff] %vm6714, %v6702
      %6736 = vst.msk [vmem:[%s197 + $0xa8] sm:$0xff] %vm6714, %v6703
      %6737 = vst.msk [vmem:[%s197 + $0xb0] sm:$0xff] %vm6714, %v6704
      %6738 = vst.msk [vmem:[%s197 + $0xb8] sm:$0xff] %vm6714, %v6705
      %6739 = vst.msk [vmem:[%s197 + $0xc0] sm:$0xff] %vm6714, %v6706
      %6740 = vst.msk [vmem:[%s197 + $0xc8] sm:$0xff] %vm6714, %v6707
      %6741 = vst.msk [vmem:[%s197 + $0xd0] sm:$0xff] %vm6714, %v6708
      %6742 = vst.msk [vmem:[%s197 + $0xd8] sm:$0xff] %vm6714, %v6709
      %6743 = vst.msk [vmem:[%s197 + $0xe0] sm:$0xff] %vm6714, %v6710
      %6744 = vst.msk [vmem:[%s197 + $0xe8] sm:$0xff] %vm6714, %v6711
      %6745 = vst.msk [vmem:[%s197 + $0xf0] sm:$0xff] %vm6714, %v6712
      %6746 = vst.msk [vmem:[%s197 + $0xf8] sm:$0xff] %vm6714, %v6713
      %p6747 = scmp.lt.s32.totalorder %s15, 1
      %s6748 = scalar_select %p6747, %s15, 1
      %s6749 = smul.addr %s6748, 32
      %s6750 = smul.addr %s6749, 8
      %s6751 = scalar_lea.vmem %s4, %s6750
      // Predicated region
      $region37: #{discriminator_forward.3} parent=35 // pred_check
        %p6752 = pneg %p122
      $region38: #{discriminator_forward.3} parent=35 // pred_check_branch
        %6754 = sbr.rel (%p6752) target = $region40
      $region39: #{discriminator_forward.3} parent=35 // pred_region
        _
      $region40: #{discriminator_forward.3} parent=35 // pred_fallthru
        _
    $region36: #{discriminator_forward.3} parent=5 // pred_fallthru
      _
    %p6755 = scmp.le.s32.totalorder 2, %s10
    // Predicated region
    $region41: #{discriminator_forward.3} parent=5 // pred_check
      %p6756 = pneg %p6755
    $region42: #{discriminator_forward.3} parent=5 // pred_check_branch
      %6758 = sbr.rel (%p6756) target = $region44
    $region43: #{discriminator_forward.3} parent=5 // pred_region
      %s6759 = ssub.s32 %s10, 2
      // Predicated region
      $region45: #{discriminator_forward.3} parent=43 // pred_check
        %p6760 = pneg %p128
      $region46: #{discriminator_forward.3} parent=43 // pred_check_branch
        %6762 = sbr.rel (%p6760) target = $region48
      $region47: #{discriminator_forward.3} parent=43 // pred_region
        %p6763 = scmp.lt.s32.totalorder %s16, 1
        %s6764 = scalar_select %p6763, %s16, 1
        %s6765 = smul.addr %s6764, 32
        %s6766 = smul.addr %s6765, 8
        %s6767 = scalar_lea.vmem %s4, %s6766
      $region48: #{discriminator_forward.3} parent=43 // pred_fallthru
        _
    $region44: #{discriminator_forward.3} parent=5 // pred_fallthru
      _
  $region6: #{discriminator_forward.3} parent=0 // loop_footer
    %s14 = sadd.s32 1, %s10
  $region7: #{discriminator_forward.3} parent=0 // loop_footer_branch
    %9 = sbr.rel target = $region3
  $region8: #{discriminator_forward.3} parent=0 // loop_exit
    _

// kernel: discriminator_forward.5
$region0: #{discriminator_forward.5}
  #allocation0 [shape = 'u32[]', space=smem, size = 0x4, offset = 0x4, fixed_abs, tag = 'smem constant byte address 0x4 - core index']
  #allocation1 [shape = 'u32[144,128]{1,0:T(1,128)}', space=vmem, size = 0x12000, scoped, tag = 'internal scratch']
  %s0 = inlined_call_operand.vmem [shape: f32[2,4,16,32], index: 0, kind: input, shape index: {}]
  %s1 = inlined_call_operand.vmem [shape: f32[16,32,64], index: 1, kind: input, shape index: {}]
  %s2 = inlined_call_operand.vmem [shape: f32[1,64], index: 2, kind: input, shape index: {}]
  %s3 = inlined_call_operand.vmem [shape: f32[16,2], index: 3, kind: input, shape index: {}]
  %s4 = inlined_call_operand.vmem [shape: f32[16,64], index: 4, kind: input, shape index: {}]
  %s5 = inlined_call_operand.vmem [shape: f32[2,1,1], index: 5, kind: output, shape index: {}]
  %s6 = sld [smem:[#allocation0]]
  $region53: #{discriminator_forward.5} parent=0
    _
  %s8 = ssub.s32 1, %s6
  %s9 = scalar_select 0, %s8, %s6
  loop: start=0, step=1, limit=4
  $region2: #{discriminator_forward.5} parent=0 // loop_pre_header
    _
  $region3: #{discriminator_forward.5} parent=0 // loop_header
    %s11 = sphi 0, %s15
    %p12 = scmp.ge.s32.totalorder %s11, 4
    %s21 = sphi 0, %s23
    %s24 = sphi 0, %s21
    %s25 = sphi 0, %s24
    %s41 = sphi 0, %s25
    %s45 = sphi 0, %s45
    %s47 = sphi 0, %s45
    %s48 = sphi 0, %s47
    %s62 = sphi 0, %s48
    %s66 = sphi 0, %s66
    %s68 = sphi 0, %s66
    %s69 = sphi 0, %s68
    %s83 = sphi 0, %s69
    %s87 = sphi 0, %s87
    %s89 = sphi 0, %s87
    %s90 = sphi 0, %s89
    %s104 = sphi 0, %s90
    %s108 = sphi 0, %s108
    %s110 = sphi 0, %s108
    %s111 = sphi 0, %s110
    %s125 = sphi 0, %s111
    %s131 = sphi 0, %s133
    %s134 = sphi 0, %s131
    %s135 = sphi 0, %s134
    %s151 = sphi 0, %s135
  $region4: #{discriminator_forward.5} parent=0 // loop_header_branch
    %14 = sbr.rel (%p12) target = $region8
  $region5: #{discriminator_forward.5} parent=0 // loop_body
    %s16 = ssub.s32 %s11, 1
    %s17 = ssub.s32 %s11, 2
    %s18 = sadd.s32 %s11, 1
    %s19 = ssub.s32 %s11, %s18
    %p20 = scmp.eq.s32.totalorder %s19, 0
    %s22 = sadd.s32 %s21, 1
    %s23 = scalar_select %p20, %s21, %s22
    %p26 = pneg %p20
    %p27 = scmp.eq.s32.totalorder %s11, 1
    %p28 = por %p26, %p27
    %p29 = scmp.ne.s32.totalorder %s21, %s24
    %p30 = scmp.eq.s32.totalorder %s11, 0
    %p31 = por %p29, %p30
    %p32 = scmp.ne.s32.totalorder %s21, %s24
    %p33 = scmp.eq.s32.totalorder %s16, 1
    %p34 = por %p32, %p33
    %p35 = scmp.ne.s32.totalorder %s24, %s25
    %p36 = scmp.eq.s32.totalorder %s16, 0
    %p37 = por %p35, %p36
    %p38 = scmp.ne.s32.totalorder %s24, %s25
    %p39 = scmp.eq.s32.totalorder %s17, 1
    %p40 = por %p38, %p39
    %p42 = scmp.ne.s32.totalorder %s25, %s41
    %p43 = scmp.eq.s32.totalorder %s17, 0
    %p44 = por %p42, %p43
    %s46 = sadd.s32 %s45, 1
    %p49 = scmp.eq.s32.totalorder %s11, 1
    %p50 = scmp.ne.s32.totalorder %s45, %s47
    %p51 = scmp.eq.s32.totalorder %s11, 0
    %p52 = por %p50, %p51
    %p53 = scmp.ne.s32.totalorder %s45, %s47
    %p54 = scmp.eq.s32.totalorder %s16, 1
    %p55 = por %p53, %p54
    %p56 = scmp.ne.s32.totalorder %s47, %s48
    %p57 = scmp.eq.s32.totalorder %s16, 0
    %p58 = por %p56, %p57
    %p59 = scmp.ne.s32.totalorder %s47, %s48
    %p60 = scmp.eq.s32.totalorder %s17, 1
    %p61 = por %p59, %p60
    %p63 = scmp.ne.s32.totalorder %s48, %s62
    %p64 = scmp.eq.s32.totalorder %s17, 0
    %p65 = por %p63, %p64
    %s67 = sadd.s32 %s66, 1
    %p70 = scmp.eq.s32.totalorder %s11, 1
    %p71 = scmp.ne.s32.totalorder %s66, %s68
    %p72 = scmp.eq.s32.totalorder %s11, 0
    %p73 = por %p71, %p72
    %p74 = scmp.ne.s32.totalorder %s66, %s68
    %p75 = scmp.eq.s32.totalorder %s16, 1
    %p76 = por %p74, %p75
    %p77 = scmp.ne.s32.totalorder %s68, %s69
    %p78 = scmp.eq.s32.totalorder %s16, 0
    %p79 = por %p77, %p78
    %p80 = scmp.ne.s32.totalorder %s68, %s69
    %p81 = scmp.eq.s32.totalorder %s17, 1
    %p82 = por %p80, %p81
    %p84 = scmp.ne.s32.totalorder %s69, %s83
    %p85 = scmp.eq.s32.totalorder %s17, 0
    %p86 = por %p84, %p85
    %s88 = sadd.s32 %s87, 1
    %p91 = scmp.eq.s32.totalorder %s11, 1
    %p92 = scmp.ne.s32.totalorder %s87, %s89
    %p93 = scmp.eq.s32.totalorder %s11, 0
    %p94 = por %p92, %p93
    %p95 = scmp.ne.s32.totalorder %s87, %s89
    %p96 = scmp.eq.s32.totalorder %s16, 1
    %p97 = por %p95, %p96
    %p98 = scmp.ne.s32.totalorder %s89, %s90
    %p99 = scmp.eq.s32.totalorder %s16, 0
    %p100 = por %p98, %p99
    %p101 = scmp.ne.s32.totalorder %s89, %s90
    %p102 = scmp.eq.s32.totalorder %s17, 1
    %p103 = por %p101, %p102
    %p105 = scmp.ne.s32.totalorder %s90, %s104
    %p106 = scmp.eq.s32.totalorder %s17, 0
    %p107 = por %p105, %p106
    %s109 = sadd.s32 %s108, 1
    %p112 = scmp.eq.s32.totalorder %s11, 1
    %p113 = scmp.ne.s32.totalorder %s108, %s110
    %p114 = scmp.eq.s32.totalorder %s11, 0
    %p115 = por %p113, %p114
    %p116 = scmp.ne.s32.totalorder %s108, %s110
    %p117 = scmp.eq.s32.totalorder %s16, 1
    %p118 = por %p116, %p117
    %p119 = scmp.ne.s32.totalorder %s110, %s111
    %p120 = scmp.eq.s32.totalorder %s16, 0
    %p121 = por %p119, %p120
    %p122 = scmp.ne.s32.totalorder %s110, %s111
    %p123 = scmp.eq.s32.totalorder %s17, 1
    %p124 = por %p122, %p123
    %p126 = scmp.ne.s32.totalorder %s111, %s125
    %p127 = scmp.eq.s32.totalorder %s17, 0
    %p128 = por %p126, %p127
    %s129 = ssub.s32 %s11, %s18
    %p130 = scmp.eq.s32.totalorder %s129, 0
    %s132 = sadd.s32 %s131, 1
    %s133 = scalar_select %p130, %s131, %s132
    %p136 = pneg %p130
    %p137 = scmp.eq.s32.totalorder %s11, 1
    %p138 = por %p136, %p137
    %p139 = scmp.ne.s32.totalorder %s131, %s134
    %p140 = scmp.eq.s32.totalorder %s11, 0
    %p141 = por %p139, %p140
    %p142 = scmp.ne.s32.totalorder %s131, %s134
    %p143 = scmp.eq.s32.totalorder %s16, 1
    %p144 = por %p142, %p143
    %p145 = scmp.ne.s32.totalorder %s134, %s135
    %p146 = scmp.eq.s32.totalorder %s16, 0
    %p147 = por %p145, %p146
    %p148 = scmp.ne.s32.totalorder %s134, %s135
    %p149 = scmp.eq.s32.totalorder %s17, 1
    %p150 = por %p148, %p149
    %p152 = scmp.ne.s32.totalorder %s135, %s151
    %p153 = scmp.eq.s32.totalorder %s17, 0
    %p154 = por %p152, %p153
    %p155 = scmp.le.s32.totalorder 1, %s11
    %p156 = scmp.lt.s32.totalorder %s11, 3
    %p157 = pnand %p155, %p156
    %p158 = pneg %p157
    // Predicated region
    $region9: #{discriminator_forward.5} parent=5 // pred_check
      _
    $region10: #{discriminator_forward.5} parent=5 // pred_check_branch
      %160 = sbr.rel (%p157) target = $region12
    $region11: #{discriminator_forward.5} parent=5 // pred_region
      %s161 = ssub.s32 %s11, 1
      // Predicated region
      $region13: #{discriminator_forward.5} parent=11 // pred_check
        %p162 = pneg %p58
      $region14: #{discriminator_forward.5} parent=11 // pred_check_branch
        %164 = sbr.rel (%p162) target = $region16
      $region15: #{discriminator_forward.5} parent=11 // pred_region
        _
      $region16: #{discriminator_forward.5} parent=11 // pred_fallthru
        _
      // Predicated region
      $region17: #{discriminator_forward.5} parent=11 // pred_check
        %p165 = pneg %p79
      $region18: #{discriminator_forward.5} parent=11 // pred_check_branch
        %167 = sbr.rel (%p165) target = $region20
      $region19: #{discriminator_forward.5} parent=11 // pred_region
        _
      $region20: #{discriminator_forward.5} parent=11 // pred_fallthru
        _
      // Predicated region
      $region21: #{discriminator_forward.5} parent=11 // pred_check
        %p168 = pneg %p100
      $region22: #{discriminator_forward.5} parent=11 // pred_check_branch
        %170 = sbr.rel (%p168) target = $region24
      $region23: #{discriminator_forward.5} parent=11 // pred_region
        _
      $region24: #{discriminator_forward.5} parent=11 // pred_fallthru
        _
      // Predicated region
      $region25: #{discriminator_forward.5} parent=11 // pred_check
        %p171 = pneg %p121
      $region26: #{discriminator_forward.5} parent=11 // pred_check_branch
        %173 = sbr.rel (%p171) target = $region28
      $region27: #{discriminator_forward.5} parent=11 // pred_region
        _
      $region28: #{discriminator_forward.5} parent=11 // pred_fallthru
        _
    $region12: #{discriminator_forward.5} parent=5 // pred_fallthru
      _
    %p174 = scmp.lt.s32.totalorder %s11, 2
    // Predicated region
    $region29: #{discriminator_forward.5} parent=5 // pred_check
      %p175 = pneg %p174
    $region30: #{discriminator_forward.5} parent=5 // pred_check_branch
      %177 = sbr.rel (%p175) target = $region32
    $region31: #{discriminator_forward.5} parent=5 // pred_region
      // Predicated region
      $region33: #{discriminator_forward.5} parent=31 // pred_check
        %p178 = pneg %p31
      $region34: #{discriminator_forward.5} parent=31 // pred_check_branch
        %180 = sbr.rel (%p178) target = $region36
      $region35: #{discriminator_forward.5} parent=31 // pred_region
        %p181 = scmp.lt.s32.totalorder %s11, 1
        %s182 = scalar_select %p181, %s11, 1
        %s183 = smul.addr %s182, 8
        %s184 = smul.addr %s183, 8
        %s185 = scalar_lea.vmem %s0, %s184
      $region36: #{discriminator_forward.5} parent=31 // pred_fallthru
        _
    $region32: #{discriminator_forward.5} parent=5 // pred_fallthru
      _
    %p186 = scmp.le.s32.totalorder 1, %s11
    %p187 = scmp.lt.s32.totalorder %s11, 3
    %p188 = pnand %p186, %p187
    %p189 = pneg %p188
    // Predicated region
    $region37: #{discriminator_forward.5} parent=5 // pred_check
      _
    $region38: #{discriminator_forward.5} parent=5 // pred_check_branch
      %191 = sbr.rel (%p188) target = $region40
    $region39: #{discriminator_forward.5} parent=5 // pred_region
      %s192 = ssub.s32 %s11, 1
      %p193 = scmp.lt.s32.totalorder %s16, 1
      %s194 = scalar_select %p193, %s16, 1
      %s195 = smul.addr %s194, 8
      %s196 = smul.addr %s195, 8
      %s197 = scalar_lea.vmem %s0, %s196
      %p198 = pneg %p37
      %p199 = pneg %p34
      %p200 = pneg %p58
      %p201 = pneg %p55
      %p202 = pneg %p79
      %p203 = pneg %p76
      %p204 = pneg %p100
      %p205 = pneg %p97
      %p206 = pneg %p121
      %p207 = pneg %p118
      %p208 = pneg %p147
      %p209 = pneg %p144
      %p210 = scmp.lt.s32.totalorder %s16, 1
      %s211 = scalar_select %p210, %s16, 1
      %s212 = scalar_lea.vmem %s5, %s211
      %p213 = scmp.lt.s32.totalorder %s16, 1
      %s214 = scalar_select %p213, %s16, 1
      %s215 = smul.addr %s214, 8
      %s216 = smul.addr %s215, 8
      %s217 = scalar_lea.vmem %s0, %s216
      %p218 = scmp.lt.s32.totalorder %s16, 1
      %s219 = scalar_select %p218, %s16, 1
      %s220 = scalar_lea.vmem %s5, %s219
      %v221 = vld [vmem:[%s217] sm:$0xff]
      %v222 = vld [vmem:[%s217 + $0x8] sm:$0xff]
      %s223 = scalar_lea.vmem %s217, 16
      %v224 = vld [vmem:[%s223] sm:$0xff]
      %v225 = vld [vmem:[%s223 + $0x8] sm:$0xff]
      %s226 = scalar_lea.vmem %s217, 32
      %v227 = vld [vmem:[%s226] sm:$0xff]
      %v228 = vld [vmem:[%s226 + $0x8] sm:$0xff]
      %s229 = scalar_lea.vmem %s217, 48
      %v230 = vld [vmem:[%s229] sm:$0xff]
      %v231 = vld [vmem:[%s229 + $0x8] sm:$0xff]
      %v232 = vld [vmem:[%s3] sm:$0xff]
      %v233 = vld [vmem:[%s3 + $0x8] sm:$0xff]
      %vm236 = vcmask 1044480
      %v237 = vrot.slane %v230, 3
      %v238 = vrot.slane %v231, 3
      %v239 = vsel %vm236, %v237, %v238
      %v242 = vsel %vm236, 0.0, %v237
      %244 = vset.pattern.permute.xlu0 0
      %245 = vperm.xlu0 %244, %v232
      %v246 = vpop.permute.xlu0 %245
      %249 = vset.pattern.permute.xlu0 0
      %250 = vperm.xlu0 %249, %v233
      %v251 = vpop.permute.xlu0 %250
      %v253 = vmul.f32 %v242, %v246
      %v254 = vmul.f32 %v239, %v251
      %v255 = vld [vmem:[%s1] sm:$0xff]
      %v256 = vld [vmem:[%s1 + $0x8] sm:$0xff]
      %v257 = vld [vmem:[%s1 + $0x10] sm:$0xff]
      %v258 = vld [vmem:[%s1 + $0x18] sm:$0xff]
      %vm261 = vcmask 1043456
      %v262 = vrot.slane %v227, 4
      %v263 = vrot.slane %v228, 4
      %v264 = vsel %vm261, %v262, %v263
      %v266 = vsel %vm261, 0.0, %v262
      %s267 = scalar_lea.vmem %s1, 32
      %v268 = vld [vmem:[%s267] sm:$0xff]
      %v269 = vld [vmem:[%s267 + $0x8] sm:$0xff]
      %v270 = vld [vmem:[%s267 + $0x10] sm:$0xff]
      %v271 = vld [vmem:[%s267 + $0x18] sm:$0xff]
      %vm272 = vcmask 261120
      %v274 = vsel %vm272, %v266, 0
      %v276 = vsel %vm272, %v264, 0
      %278 = vmatprep.subr.mxu0 0.0
      %279 = vmatpush1.msra.mxu0 %v268
      %280 = vmatprep.subr.mxu0 0.0
      %281 = vmatpush1.msra.mxu0 %v269
      %282 = vmatprep.subr.mxu0 0.0
      %283 = vmatpush1.msra.mxu0 %v270
      %284 = vmatprep.subr.mxu0 0.0
      %285 = vmatpush1.msra.mxu0 %v271
      %286 = vmatprep.subr.mxu0 0.0
      %287 = vmatpush1.msra.mxu0 0.0
      %288 = vmatprep.subr.mxu0 0.0
      %289 = vmatpush1.msra.mxu0 0.0
      %290 = vmatprep.subr.mxu0 0.0
      %291 = vmatpush1.msra.mxu0 0.0
      %292 = vmatprep.subr.mxu0 0.0
      %293 = vmatpush1.msra.mxu0 0.0
      %294 = vmatprep.subr.mxu0 0.0
      %295 = vmatpush1.msra.mxu0 0.0
      %296 = vmatprep.subr.mxu0 0.0
      %297 = vmatpush1.msra.mxu0 0.0
      %298 = vmatprep.subr.mxu0 0.0
      %299 = vmatpush1.msra.mxu0 0.0
      %300 = vmatprep.subr.mxu0 0.0
      %301 = vmatpush1.msra.mxu0 0.0
      %302 = vmatprep.subr.mxu0 0.0
      %303 = vmatpush1.msra.mxu0 0.0
      %304 = vmatprep.subr.mxu0 0.0
      %305 = vmatpush1.msra.mxu0 0.0
      %306 = vmatprep.subr.mxu0 0.0
      %307 = vmatpush1.msra.mxu0 0.0
      %308 = vmatprep.subr.mxu0 0.0
      %309 = vmatpush1.msra.mxu0 0.0
      %310 = vmatprep.subr.mxu0 0.0
      %311 = vmatpush1.msra.mxu0 0.0
      %312 = vmatprep.subr.mxu0 0.0
      %313 = vmatpush1.msra.mxu0 0.0
      %314 = vmatprep.subr.mxu0 0.0
      %315 = vmatpush1.msra.mxu0 0.0
      %316 = vmatprep.subr.mxu0 0.0
      %317 = vmatpush1.msra.mxu0 0.0
      %318 = vmatprep.subr.mxu0 0.0
      %319 = vmatpush1.msra.mxu0 0.0
      %320 = vmatprep.subr.mxu0 0.0
      %321 = vmatpush1.msra.mxu0 0.0
      %322 = vmatprep.subr.mxu0 0.0
      %323 = vmatpush1.msra.mxu0 0.0
      %324 = vmatprep.subr.mxu0 0.0
      %325 = vmatpush1.msra.mxu0 0.0
      %326 = vmatprep.subr.mxu0 0.0
      %327 = vmatpush1.msra.mxu0 0.0
      %328 = vmatprep.subr.mxu0 0.0
      %329 = vmatpush1.msra.mxu0 0.0
      %330 = vmatprep.subr.mxu0 0.0
      %331 = vmatpush1.msra.mxu0 0.0
      %332 = vmatprep.subr.mxu0 0.0
      %333 = vmatpush1.msra.mxu0 0.0
      %334 = vmatprep.subr.mxu0 0.0
      %335 = vmatpush1.msra.mxu0 0.0
      %336 = vmatprep.subr.mxu0 0.0
      %337 = vmatpush1.msra.mxu0 0.0
      %338 = vmatprep.subr.mxu0 0.0
      %339 = vmatpush1.msra.mxu0 0.0
      %340 = vmatprep.subr.mxu0 0.0
      %341 = vmatpush1.msra.mxu0 0.0
      %342 = vmatprep.mubr.f32.mxu0 0.0
      %343 = vmatmul.mubr.f32.gmra.mrb[0].mxu0 %v274
      %v344 = vpop.f32.mrb[0].mxu0
      %v345 = vadd.f32 0.0, %v344
      %v346 = vpop.f32.mrb[0].mxu0
      %347 = vmatprep.mubr.f32.mxu0 0.0
      %348 = vmatmul.mubr.f32.gmra.mrb[0].mxu0 %v276
      %v349 = vpop.f32.mrb[0].mxu0
      %v350 = vadd.f32 0.0, %v349
      %v351 = vpop.f32.mrb[0].mxu0
      %352 = vdwg.mxu0
      %v354 = vsel %vm272, %v253, 0
      %v357 = vsel %vm272, %v254, 0
      %359 = vmatprep.subr.mxu0 0.0
      %360 = vmatpush1.msra.mxu0 %v255
      %361 = vmatprep.subr.mxu0 0.0
      %362 = vmatpush1.msra.mxu0 %v256
      %363 = vmatprep.subr.mxu0 0.0
      %364 = vmatpush1.msra.mxu0 %v257
      %365 = vmatprep.subr.mxu0 0.0
      %366 = vmatpush1.msra.mxu0 %v258
      %367 = vmatprep.subr.mxu0 0.0
      %368 = vmatpush1.msra.mxu0 0.0
      %369 = vmatprep.subr.mxu0 0.0
      %370 = vmatpush1.msra.mxu0 0.0
      %371 = vmatprep.subr.mxu0 0.0
      %372 = vmatpush1.msra.mxu0 0.0
      %373 = vmatprep.subr.mxu0 0.0
      %374 = vmatpush1.msra.mxu0 0.0
      %375 = vmatprep.subr.mxu0 0.0
      %376 = vmatpush1.msra.mxu0 0.0
      %377 = vmatprep.subr.mxu0 0.0
      %378 = vmatpush1.msra.mxu0 0.0
      %379 = vmatprep.subr.mxu0 0.0
      %380 = vmatpush1.msra.mxu0 0.0
      %381 = vmatprep.subr.mxu0 0.0
      %382 = vmatpush1.msra.mxu0 0.0
      %383 = vmatprep.subr.mxu0 0.0
      %384 = vmatpush1.msra.mxu0 0.0
      %385 = vmatprep.subr.mxu0 0.0
      %386 = vmatpush1.msra.mxu0 0.0
      %387 = vmatprep.subr.mxu0 0.0
      %388 = vmatpush1.msra.mxu0 0.0
      %389 = vmatprep.subr.mxu0 0.0
      %390 = vmatpush1.msra.mxu0 0.0
      %391 = vmatprep.subr.mxu0 0.0
      %392 = vmatpush1.msra.mxu0 0.0
      %393 = vmatprep.subr.mxu0 0.0
      %394 = vmatpush1.msra.mxu0 0.0
      %395 = vmatprep.subr.mxu0 0.0
      %396 = vmatpush1.msra.mxu0 0.0
      %397 = vmatprep.subr.mxu0 0.0
      %398 = vmatpush1.msra.mxu0 0.0
      %399 = vmatprep.subr.mxu0 0.0
      %400 = vmatpush1.msra.mxu0 0.0
      %401 = vmatprep.subr.mxu0 0.0
      %402 = vmatpush1.msra.mxu0 0.0
      %403 = vmatprep.subr.mxu0 0.0
      %404 = vmatpush1.msra.mxu0 0.0
      %405 = vmatprep.subr.mxu0 0.0
      %406 = vmatpush1.msra.mxu0 0.0
      %407 = vmatprep.subr.mxu0 0.0
      %408 = vmatpush1.msra.mxu0 0.0
      %409 = vmatprep.subr.mxu0 0.0
      %410 = vmatpush1.msra.mxu0 0.0
      %411 = vmatprep.subr.mxu0 0.0
      %412 = vmatpush1.msra.mxu0 0.0
      %413 = vmatprep.subr.mxu0 0.0
      %414 = vmatpush1.msra.mxu0 0.0
      %415 = vmatprep.subr.mxu0 0.0
      %416 = vmatpush1.msra.mxu0 0.0
      %417 = vmatprep.subr.mxu0 0.0
      %418 = vmatpush1.msra.mxu0 0.0
      %419 = vmatprep.subr.mxu0 0.0
      %420 = vmatpush1.msra.mxu0 0.0
      %421 = vmatprep.subr.mxu0 0.0
      %422 = vmatpush1.msra.mxu0 0.0
      %423 = vmatprep.mubr.f32.mxu0 0.0
      %424 = vmatmul.mubr.f32.gmra.mrb[0].mxu0 %v354
      %v425 = vpop.f32.mrb[0].mxu0
      %v426 = vadd.f32 %v345, %v425
      %v427 = vpop.f32.mrb[0].mxu0
      %428 = vmatprep.mubr.f32.mxu0 0.0
      %429 = vmatmul.mubr.f32.gmra.mrb[0].mxu0 %v357
      %v430 = vpop.f32.mrb[0].mxu0
      %v431 = vadd.f32 %v350, %v430
      %v432 = vpop.f32.mrb[0].mxu0
      %433 = vdwg.mxu0
      %v434 = vrot.slane %v230, 4
      %v435 = vrot.slane %v231, 4
      %v436 = vsel %vm261, %v434, %v435
      %v438 = vsel %vm261, 0.0, %v434
      %s439 = scalar_lea.vmem %s1, 64
      %v440 = vld [vmem:[%s439] sm:$0xff]
      %v441 = vld [vmem:[%s439 + $0x8] sm:$0xff]
      %v442 = vld [vmem:[%s439 + $0x10] sm:$0xff]
      %v443 = vld [vmem:[%s439 + $0x18] sm:$0xff]
      %v445 = vsel %vm272, %v438, 0
      %v447 = vsel %vm272, %v436, 0
      %449 = vmatprep.subr.mxu0 0.0
      %450 = vmatpush1.msra.mxu0 %v440
      %451 = vmatprep.subr.mxu0 0.0
      %452 = vmatpush1.msra.mxu0 %v441
      %453 = vmatprep.subr.mxu0 0.0
      %454 = vmatpush1.msra.mxu0 %v442
      %455 = vmatprep.subr.mxu0 0.0
      %456 = vmatpush1.msra.mxu0 %v443
      %457 = vmatprep.subr.mxu0 0.0
      %458 = vmatpush1.msra.mxu0 0.0
      %459 = vmatprep.subr.mxu0 0.0
      %460 = vmatpush1.msra.mxu0 0.0
      %461 = vmatprep.subr.mxu0 0.0
      %462 = vmatpush1.msra.mxu0 0.0
      %463 = vmatprep.subr.mxu0 0.0
      %464 = vmatpush1.msra.mxu0 0.0
      %465 = vmatprep.subr.mxu0 0.0
      %466 = vmatpush1.msra.mxu0 0.0
      %467 = vmatprep.subr.mxu0 0.0
      %468 = vmatpush1.msra.mxu0 0.0
      %469 = vmatprep.subr.mxu0 0.0
      %470 = vmatpush1.msra.mxu0 0.0
      %471 = vmatprep.subr.mxu0 0.0
      %472 = vmatpush1.msra.mxu0 0.0
      %473 = vmatprep.subr.mxu0 0.0
      %474 = vmatpush1.msra.mxu0 0.0
      %475 = vmatprep.subr.mxu0 0.0
      %476 = vmatpush1.msra.mxu0 0.0
      %477 = vmatprep.subr.mxu0 0.0
      %478 = vmatpush1.msra.mxu0 0.0
      %479 = vmatprep.subr.mxu0 0.0
      %480 = vmatpush1.msra.mxu0 0.0
      %481 = vmatprep.subr.mxu0 0.0
      %482 = vmatpush1.msra.mxu0 0.0
      %483 = vmatprep.subr.mxu0 0.0
      %484 = vmatpush1.msra.mxu0 0.0
      %485 = vmatprep.subr.mxu0 0.0
      %486 = vmatpush1.msra.mxu0 0.0
      %487 = vmatprep.subr.mxu0 0.0
      %488 = vmatpush1.msra.mxu0 0.0
      %489 = vmatprep.subr.mxu0 0.0
      %490 = vmatpush1.msra.mxu0 0.0
      %491 = vmatprep.subr.mxu0 0.0
      %492 = vmatpush1.msra.mxu0 0.0
      %493 = vmatprep.subr.mxu0 0.0
      %494 = vmatpush1.msra.mxu0 0.0
      %495 = vmatprep.subr.mxu0 0.0
      %496 = vmatpush1.msra.mxu0 0.0
      %497 = vmatprep.subr.mxu0 0.0
      %498 = vmatpush1.msra.mxu0 0.0
      %499 = vmatprep.subr.mxu0 0.0
      %500 = vmatpush1.msra.mxu0 0.0
      %501 = vmatprep.subr.mxu0 0.0
      %502 = vmatpush1.msra.mxu0 0.0
      %503 = vmatprep.subr.mxu0 0.0
      %504 = vmatpush1.msra.mxu0 0.0
      %505 = vmatprep.subr.mxu0 0.0
      %506 = vmatpush1.msra.mxu0 0.0
      %507 = vmatprep.subr.mxu0 0.0
      %508 = vmatpush1.msra.mxu0 0.0
      %509 = vmatprep.subr.mxu0 0.0
      %510 = vmatpush1.msra.mxu0 0.0
      %511 = vmatprep.subr.mxu0 0.0
      %512 = vmatpush1.msra.mxu0 0.0
      %513 = vmatprep.mubr.f32.mxu0 0.0
      %514 = vmatmul.mubr.f32.gmra.mrb[0].mxu0 %v445
      %v515 = vpop.f32.mrb[0].mxu0
      %v516 = vadd.f32 0.0, %v515
      %v517 = vpop.f32.mrb[0].mxu0
      %518 = vmatprep.mubr.f32.mxu0 0.0
      %519 = vmatmul.mubr.f32.gmra.mrb[0].mxu0 %v447
      %v520 = vpop.f32.mrb[0].mxu0
      %v521 = vadd.f32 0.0, %v520
      %v522 = vpop.f32.mrb[0].mxu0
      %523 = vdwg.mxu0
      %v524 = vadd.f32 %v426, %v516
      %v525 = vadd.f32 %v431, %v521
      %vm526 = vcmask 1042432
      %v527 = vrot.slane %v227, 5
      %v528 = vrot.slane %v228, 5
      %v529 = vsel %vm526, %v527, %v528
      %v532 = vsel %vm526, 0.0, %v527
      %533 = vset.pattern.permute.xlu0 1
      %534 = vperm.xlu0 %533, %v232
      %v535 = vpop.permute.xlu0 %534
      %537 = vset.pattern.permute.xlu0 1
      %538 = vperm.xlu0 %537, %v233
      %v539 = vpop.permute.xlu0 %538
      %v541 = vmul.f32 %v532, %v535
      %v542 = vmul.f32 %v529, %v539
      %s543 = scalar_lea.vmem %s1, 96
      %v544 = vld [vmem:[%s543] sm:$0xff]
      %v545 = vld [vmem:[%s543 + $0x8] sm:$0xff]
      %v546 = vld [vmem:[%s543 + $0x10] sm:$0xff]
      %v547 = vld [vmem:[%s543 + $0x18] sm:$0xff]
      %v549 = vsel %vm272, %v541, 0
      %v552 = vsel %vm272, %v542, 0
      %554 = vmatprep.subr.mxu0 0.0
      %555 = vmatpush1.msra.mxu0 %v544
      %556 = vmatprep.subr.mxu0 0.0
      %557 = vmatpush1.msra.mxu0 %v545
      %558 = vmatprep.subr.mxu0 0.0
      %559 = vmatpush1.msra.mxu0 %v546
      %560 = vmatprep.subr.mxu0 0.0
      %561 = vmatpush1.msra.mxu0 %v547
      %562 = vmatprep.subr.mxu0 0.0
      %563 = vmatpush1.msra.mxu0 0.0
      %564 = vmatprep.subr.mxu0 0.0
      %565 = vmatpush1.msra.mxu0 0.0
      %566 = vmatprep.subr.mxu0 0.0
      %567 = vmatpush1.msra.mxu0 0.0
      %568 = vmatprep.subr.mxu0 0.0
      %569 = vmatpush1.msra.mxu0 0.0
      %570 = vmatprep.subr.mxu0 0.0
      %571 = vmatpush1.msra.mxu0 0.0
      %572 = vmatprep.subr.mxu0 0.0
      %573 = vmatpush1.msra.mxu0 0.0
      %574 = vmatprep.subr.mxu0 0.0
      %575 = vmatpush1.msra.mxu0 0.0
      %576 = vmatprep.subr.mxu0 0.0
      %577 = vmatpush1.msra.mxu0 0.0
      %578 = vmatprep.subr.mxu0 0.0
      %579 = vmatpush1.msra.mxu0 0.0
      %580 = vmatprep.subr.mxu0 0.0
      %581 = vmatpush1.msra.mxu0 0.0
      %582 = vmatprep.subr.mxu0 0.0
      %583 = vmatpush1.msra.mxu0 0.0
      %584 = vmatprep.subr.mxu0 0.0
      %585 = vmatpush1.msra.mxu0 0.0
      %586 = vmatprep.subr.mxu0 0.0
      %587 = vmatpush1.msra.mxu0 0.0
      %588 = vmatprep.subr.mxu0 0.0
      %589 = vmatpush1.msra.mxu0 0.0
      %590 = vmatprep.subr.mxu0 0.0
      %591 = vmatpush1.msra.mxu0 0.0
      %592 = vmatprep.subr.mxu0 0.0
      %593 = vmatpush1.msra.mxu0 0.0
      %594 = vmatprep.subr.mxu0 0.0
      %595 = vmatpush1.msra.mxu0 0.0
      %596 = vmatprep.subr.mxu0 0.0
      %597 = vmatpush1.msra.mxu0 0.0
      %598 = vmatprep.subr.mxu0 0.0
      %599 = vmatpush1.msra.mxu0 0.0
      %600 = vmatprep.subr.mxu0 0.0
      %601 = vmatpush1.msra.mxu0 0.0
      %602 = vmatprep.subr.mxu0 0.0
      %603 = vmatpush1.msra.mxu0 0.0
      %604 = vmatprep.subr.mxu0 0.0
      %605 = vmatpush1.msra.mxu0 0.0
      %606 = vmatprep.subr.mxu0 0.0
      %607 = vmatpush1.msra.mxu0 0.0
      %608 = vmatprep.subr.mxu0 0.0
      %609 = vmatpush1.msra.mxu0 0.0
      %610 = vmatprep.subr.mxu0 0.0
      %611 = vmatpush1.msra.mxu0 0.0
      %612 = vmatprep.subr.mxu0 0.0
      %613 = vmatpush1.msra.mxu0 0.0
      %614 = vmatprep.subr.mxu0 0.0
      %615 = vmatpush1.msra.mxu0 0.0
      %616 = vmatprep.subr.mxu0 0.0
      %617 = vmatpush1.msra.mxu0 0.0
      %618 = vmatprep.mubr.f32.mxu0 0.0
      %619 = vmatmul.mubr.f32.gmra.mrb[0].mxu0 %v549
      %v620 = vpop.f32.mrb[0].mxu0
      %v621 = vadd.f32 0.0, %v620
      %v622 = vpop.f32.mrb[0].mxu0
      %623 = vmatprep.mubr.f32.mxu0 0.0
      %624 = vmatmul.mubr.f32.gmra.mrb[0].mxu0 %v552
      %v625 = vpop.f32.mrb[0].mxu0
      %v626 = vadd.f32 0.0, %v625
      %v627 = vpop.f32.mrb[0].mxu0
      %628 = vdwg.mxu0
      %v629 = vadd.f32 %v524, %v621
      %v630 = vadd.f32 %v525, %v626
      %vm633 = vcmask 1040384
      %v634 = vrot.slane %v224, 7
      %v635 = vrot.slane %v225, 7
      %v636 = vsel %vm633, %v634, %v635
      %v639 = vsel %vm633, 0.0, %v634
      %v640 = vmul.f32 %v639, %v246
      %v641 = vmul.f32 %v636, %v251
      %s642 = scalar_lea.vmem %s1, 128
      %v643 = vld [vmem:[%s642] sm:$0xff]
      %v644 = vld [vmem:[%s642 + $0x8] sm:$0xff]
      %v645 = vld [vmem:[%s642 + $0x10] sm:$0xff]
      %v646 = vld [vmem:[%s642 + $0x18] sm:$0xff]
      %v648 = vsel %vm272, %v640, 0
      %v651 = vsel %vm272, %v641, 0
      %653 = vmatprep.subr.mxu0 0.0
      %654 = vmatpush1.msra.mxu0 %v643
      %655 = vmatprep.subr.mxu0 0.0
      %656 = vmatpush1.msra.mxu0 %v644
      %657 = vmatprep.subr.mxu0 0.0
      %658 = vmatpush1.msra.mxu0 %v645
      %659 = vmatprep.subr.mxu0 0.0
      %660 = vmatpush1.msra.mxu0 %v646
      %661 = vmatprep.subr.mxu0 0.0
      %662 = vmatpush1.msra.mxu0 0.0
      %663 = vmatprep.subr.mxu0 0.0
      %664 = vmatpush1.msra.mxu0 0.0
      %665 = vmatprep.subr.mxu0 0.0
      %666 = vmatpush1.msra.mxu0 0.0
      %667 = vmatprep.subr.mxu0 0.0
      %668 = vmatpush1.msra.mxu0 0.0
      %669 = vmatprep.subr.mxu0 0.0
      %670 = vmatpush1.msra.mxu0 0.0
      %671 = vmatprep.subr.mxu0 0.0
      %672 = vmatpush1.msra.mxu0 0.0
      %673 = vmatprep.subr.mxu0 0.0
      %674 = vmatpush1.msra.mxu0 0.0
      %675 = vmatprep.subr.mxu0 0.0
      %676 = vmatpush1.msra.mxu0 0.0
      %677 = vmatprep.subr.mxu0 0.0
      %678 = vmatpush1.msra.mxu0 0.0
      %679 = vmatprep.subr.mxu0 0.0
      %680 = vmatpush1.msra.mxu0 0.0
      %681 = vmatprep.subr.mxu0 0.0
      %682 = vmatpush1.msra.mxu0 0.0
      %683 = vmatprep.subr.mxu0 0.0
      %684 = vmatpush1.msra.mxu0 0.0
      %685 = vmatprep.subr.mxu0 0.0
      %686 = vmatpush1.msra.mxu0 0.0
      %687 = vmatprep.subr.mxu0 0.0
      %688 = vmatpush1.msra.mxu0 0.0
      %689 = vmatprep.subr.mxu0 0.0
      %690 = vmatpush1.msra.mxu0 0.0
      %691 = vmatprep.subr.mxu0 0.0
      %692 = vmatpush1.msra.mxu0 0.0
      %693 = vmatprep.subr.mxu0 0.0
      %694 = vmatpush1.msra.mxu0 0.0
      %695 = vmatprep.subr.mxu0 0.0
      %696 = vmatpush1.msra.mxu0 0.0
      %697 = vmatprep.subr.mxu0 0.0
      %698 = vmatpush1.msra.mxu0 0.0
      %699 = vmatprep.subr.mxu0 0.0
      %700 = vmatpush1.msra.mxu0 0.0
      %701 = vmatprep.subr.mxu0 0.0
      %702 = vmatpush1.msra.mxu0 0.0
      %703 = vmatprep.subr.mxu0 0.0
      %704 = vmatpush1.msra.mxu0 0.0
      %705 = vmatprep.subr.mxu0 0.0
      %706 = vmatpush1.msra.mxu0 0.0
      %707 = vmatprep.subr.mxu0 0.0
      %708 = vmatpush1.msra.mxu0 0.0
      %709 = vmatprep.subr.mxu0 0.0
      %710 = vmatpush1.msra.mxu0 0.0
      %711 = vmatprep.subr.mxu0 0.0
      %712 = vmatpush1.msra.mxu0 0.0
      %713 = vmatprep.subr.mxu0 0.0
      %714 = vmatpush1.msra.mxu0 0.0
      %715 = vmatprep.subr.mxu0 0.0
      %716 = vmatpush1.msra.mxu0 0.0
      %717 = vmatprep.mubr.f32.mxu0 0.0
      %718 = vmatmul.mubr.f32.gmra.mrb[0].mxu0 %v648
      %v719 = vpop.f32.mrb[0].mxu0
      %v720 = vadd.f32 0.0, %v719
      %v721 = vpop.f32.mrb[0].mxu0
      %722 = vmatprep.mubr.f32.mxu0 0.0
      %723 = vmatmul.mubr.f32.gmra.mrb[0].mxu0 %v651
      %v724 = vpop.f32.mrb[0].mxu0
      %v725 = vadd.f32 0.0, %v724
      %v726 = vpop.f32.mrb[0].mxu0
      %727 = vdwg.mxu0
      %v728 = vadd.f32 %v629, %v720
      %v729 = vadd.f32 %v630, %v725
      %s730 = scalar_lea.vmem %s1, 160
      %v731 = vld [vmem:[%s730] sm:$0xff]
      %v732 = vld [vmem:[%s730 + $0x8] sm:$0xff]
      %v733 = vld [vmem:[%s730 + $0x10] sm:$0xff]
      %v734 = vld [vmem:[%s730 + $0x18] sm:$0xff]
      %v736 = vsel %vm272, %v221, 0
      %v739 = vsel %vm272, %v222, 0
      %741 = vmatprep.subr.mxu0 0.0
      %742 = vmatpush1.msra.mxu0 %v731
      %743 = vmatprep.subr.mxu0 0.0
      %744 = vmatpush1.msra.mxu0 %v732
      %745 = vmatprep.subr.mxu0 0.0
      %746 = vmatpush1.msra.mxu0 %v733
      %747 = vmatprep.subr.mxu0 0.0
      %748 = vmatpush1.msra.mxu0 %v734
      %749 = vmatprep.subr.mxu0 0.0
      %750 = vmatpush1.msra.mxu0 0.0
      %751 = vmatprep.subr.mxu0 0.0
      %752 = vmatpush1.msra.mxu0 0.0
      %753 = vmatprep.subr.mxu0 0.0
      %754 = vmatpush1.msra.mxu0 0.0
      %755 = vmatprep.subr.mxu0 0.0
      %756 = vmatpush1.msra.mxu0 0.0
      %757 = vmatprep.subr.mxu0 0.0
      %758 = vmatpush1.msra.mxu0 0.0
      %759 = vmatprep.subr.mxu0 0.0
      %760 = vmatpush1.msra.mxu0 0.0
      %761 = vmatprep.subr.mxu0 0.0
      %762 = vmatpush1.msra.mxu0 0.0
      %763 = vmatprep.subr.mxu0 0.0
      %764 = vmatpush1.msra.mxu0 0.0
      %765 = vmatprep.subr.mxu0 0.0
      %766 = vmatpush1.msra.mxu0 0.0
      %767 = vmatprep.subr.mxu0 0.0
      %768 = vmatpush1.msra.mxu0 0.0
      %769 = vmatprep.subr.mxu0 0.0
      %770 = vmatpush1.msra.mxu0 0.0
      %771 = vmatprep.subr.mxu0 0.0
      %772 = vmatpush1.msra.mxu0 0.0
      %773 = vmatprep.subr.mxu0 0.0
      %774 = vmatpush1.msra.mxu0 0.0
      %775 = vmatprep.subr.mxu0 0.0
      %776 = vmatpush1.msra.mxu0 0.0
      %777 = vmatprep.subr.mxu0 0.0
      %778 = vmatpush1.msra.mxu0 0.0
      %779 = vmatprep.subr.mxu0 0.0
      %780 = vmatpush1.msra.mxu0 0.0
      %781 = vmatprep.subr.mxu0 0.0
      %782 = vmatpush1.msra.mxu0 0.0
      %783 = vmatprep.subr.mxu0 0.0
      %784 = vmatpush1.msra.mxu0 0.0
      %785 = vmatprep.subr.mxu0 0.0
      %786 = vmatpush1.msra.mxu0 0.0
      %787 = vmatprep.subr.mxu0 0.0
      %788 = vmatpush1.msra.mxu0 0.0
      %789 = vmatprep.subr.mxu0 0.0
      %790 = vmatpush1.msra.mxu0 0.0
      %791 = vmatprep.subr.mxu0 0.0
      %792 = vmatpush1.msra.mxu0 0.0
      %793 = vmatprep.subr.mxu0 0.0
      %794 = vmatpush1.msra.mxu0 0.0
      %795 = vmatprep.subr.mxu0 0.0
      %796 = vmatpush1.msra.mxu0 0.0
      %797 = vmatprep.subr.mxu0 0.0
      %798 = vmatpush1.msra.mxu0 0.0
      %799 = vmatprep.subr.mxu0 0.0
      %800 = vmatpush1.msra.mxu0 0.0
      %801 = vmatprep.subr.mxu0 0.0
      %802 = vmatpush1.msra.mxu0 0.0
      %803 = vmatprep.subr.mxu0 0.0
      %804 = vmatpush1.msra.mxu0 0.0
      %805 = vmatprep.mubr.f32.mxu0 0.0
      %806 = vmatmul.mubr.f32.gmra.mrb[0].mxu0 %v736
      %v807 = vpop.f32.mrb[0].mxu0
      %v808 = vadd.f32 0.0, %v807
      %v809 = vpop.f32.mrb[0].mxu0
      %810 = vmatprep.mubr.f32.mxu0 0.0
      %811 = vmatmul.mubr.f32.gmra.mrb[0].mxu0 %v739
      %v812 = vpop.f32.mrb[0].mxu0
      %v813 = vadd.f32 0.0, %v812
      %v814 = vpop.f32.mrb[0].mxu0
      %815 = vdwg.mxu0
      %v816 = vadd.f32 %v728, %v808
      %v817 = vadd.f32 %v729, %v813
      %s818 = scalar_lea.vmem %s1, 192
      %v819 = vld [vmem:[%s818] sm:$0xff]
      %v820 = vld [vmem:[%s818 + $0x8] sm:$0xff]
      %v821 = vld [vmem:[%s818 + $0x10] sm:$0xff]
      %v822 = vld [vmem:[%s818 + $0x18] sm:$0xff]
      %v823 = vsel %vm272, %v224, 0
      %v825 = vsel %vm272, %v225, 0
      %827 = vmatprep.subr.mxu0 0.0
      %828 = vmatpush1.msra.mxu0 %v819
      %829 = vmatprep.subr.mxu0 0.0
      %830 = vmatpush1.msra.mxu0 %v820
      %831 = vmatprep.subr.mxu0 0.0
      %832 = vmatpush1.msra.mxu0 %v821
      %833 = vmatprep.subr.mxu0 0.0
      %834 = vmatpush1.msra.mxu0 %v822
      %835 = vmatprep.subr.mxu0 0.0
      %836 = vmatpush1.msra.mxu0 0.0
      %837 = vmatprep.subr.mxu0 0.0
      %838 = vmatpush1.msra.mxu0 0.0
      %839 = vmatprep.subr.mxu0 0.0
      %840 = vmatpush1.msra.mxu0 0.0
      %841 = vmatprep.subr.mxu0 0.0
      %842 = vmatpush1.msra.mxu0 0.0
      %843 = vmatprep.subr.mxu0 0.0
      %844 = vmatpush1.msra.mxu0 0.0
      %845 = vmatprep.subr.mxu0 0.0
      %846 = vmatpush1.msra.mxu0 0.0
      %847 = vmatprep.subr.mxu0 0.0
      %848 = vmatpush1.msra.mxu0 0.0
      %849 = vmatprep.subr.mxu0 0.0
      %850 = vmatpush1.msra.mxu0 0.0
      %851 = vmatprep.subr.mxu0 0.0
      %852 = vmatpush1.msra.mxu0 0.0
      %853 = vmatprep.subr.mxu0 0.0
      %854 = vmatpush1.msra.mxu0 0.0
      %855 = vmatprep.subr.mxu0 0.0
      %856 = vmatpush1.msra.mxu0 0.0
      %857 = vmatprep.subr.mxu0 0.0
      %858 = vmatpush1.msra.mxu0 0.0
      %859 = vmatprep.subr.mxu0 0.0
      %860 = vmatpush1.msra.mxu0 0.0
      %861 = vmatprep.subr.mxu0 0.0
      %862 = vmatpush1.msra.mxu0 0.0
      %863 = vmatprep.subr.mxu0 0.0
      %864 = vmatpush1.msra.mxu0 0.0
      %865 = vmatprep.subr.mxu0 0.0
      %866 = vmatpush1.msra.mxu0 0.0
      %867 = vmatprep.subr.mxu0 0.0
      %868 = vmatpush1.msra.mxu0 0.0
      %869 = vmatprep.subr.mxu0 0.0
      %870 = vmatpush1.msra.mxu0 0.0
      %871 = vmatprep.subr.mxu0 0.0
      %872 = vmatpush1.msra.mxu0 0.0
      %873 = vmatprep.subr.mxu0 0.0
      %874 = vmatpush1.msra.mxu0 0.0
      %875 = vmatprep.subr.mxu0 0.0
      %876 = vmatpush1.msra.mxu0 0.0
      %877 = vmatprep.subr.mxu0 0.0
      %878 = vmatpush1.msra.mxu0 0.0
      %879 = vmatprep.subr.mxu0 0.0
      %880 = vmatpush1.msra.mxu0 0.0
      %881 = vmatprep.subr.mxu0 0.0
      %882 = vmatpush1.msra.mxu0 0.0
      %883 = vmatprep.subr.mxu0 0.0
      %884 = vmatpush1.msra.mxu0 0.0
      %885 = vmatprep.subr.mxu0 0.0
      %886 = vmatpush1.msra.mxu0 0.0
      %887 = vmatprep.subr.mxu0 0.0
      %888 = vmatpush1.msra.mxu0 0.0
      %889 = vmatprep.subr.mxu0 0.0
      %890 = vmatpush1.msra.mxu0 0.0
      %891 = vmatprep.mubr.f32.mxu0 0.0
      %892 = vmatmul.mubr.f32.gmra.mrb[0].mxu0 %v823
      %v893 = vpop.f32.mrb[0].mxu0
      %v894 = vadd.f32 0.0, %v893
      %v895 = vpop.f32.mrb[0].mxu0
      %896 = vmatprep.mubr.f32.mxu0 0.0
      %897 = vmatmul.mubr.f32.gmra.mrb[0].mxu0 %v825
      %v898 = vpop.f32.mrb[0].mxu0
      %v899 = vadd.f32 0.0, %v898
      %v900 = vpop.f32.mrb[0].mxu0
      %901 = vdwg.mxu0
      %v902 = vadd.f32 %v816, %v894
      %v903 = vadd.f32 %v817, %v899
      %vm904 = vcmask 1046528
      %v905 = vrot.slane %v221, 1
      %v906 = vrot.slane %v222, 1
      %v907 = vsel %vm904, %v905, %v906
      %v910 = vsel %vm904, %v906, 0.0
      %v911 = vmul.f32 %v907, %v535
      %v912 = vmul.f32 %v910, %v539
      %s913 = scalar_lea.vmem %s1, 224
      %v914 = vld [vmem:[%s913] sm:$0xff]
      %v915 = vld [vmem:[%s913 + $0x8] sm:$0xff]
      %v916 = vld [vmem:[%s913 + $0x10] sm:$0xff]
      %v917 = vld [vmem:[%s913 + $0x18] sm:$0xff]
      %v919 = vsel %vm272, %v911, 0
      %v922 = vsel %vm272, %v912, 0
      %924 = vmatprep.subr.mxu0 0.0
      %925 = vmatpush1.msra.mxu0 %v914
      %926 = vmatprep.subr.mxu0 0.0
      %927 = vmatpush1.msra.mxu0 %v915
      %928 = vmatprep.subr.mxu0 0.0
      %929 = vmatpush1.msra.mxu0 %v916
      %930 = vmatprep.subr.mxu0 0.0
      %931 = vmatpush1.msra.mxu0 %v917
      %932 = vmatprep.subr.mxu0 0.0
      %933 = vmatpush1.msra.mxu0 0.0
      %934 = vmatprep.subr.mxu0 0.0
      %935 = vmatpush1.msra.mxu0 0.0
      %936 = vmatprep.subr.mxu0 0.0
      %937 = vmatpush1.msra.mxu0 0.0
      %938 = vmatprep.subr.mxu0 0.0
      %939 = vmatpush1.msra.mxu0 0.0
      %940 = vmatprep.subr.mxu0 0.0
      %941 = vmatpush1.msra.mxu0 0.0
      %942 = vmatprep.subr.mxu0 0.0
      %943 = vmatpush1.msra.mxu0 0.0
      %944 = vmatprep.subr.mxu0 0.0
      %945 = vmatpush1.msra.mxu0 0.0
      %946 = vmatprep.subr.mxu0 0.0
      %947 = vmatpush1.msra.mxu0 0.0
      %948 = vmatprep.subr.mxu0 0.0
      %949 = vmatpush1.msra.mxu0 0.0
      %950 = vmatprep.subr.mxu0 0.0
      %951 = vmatpush1.msra.mxu0 0.0
      %952 = vmatprep.subr.mxu0 0.0
      %953 = vmatpush1.msra.mxu0 0.0
      %954 = vmatprep.subr.mxu0 0.0
      %955 = vmatpush1.msra.mxu0 0.0
      %956 = vmatprep.subr.mxu0 0.0
      %957 = vmatpush1.msra.mxu0 0.0
      %958 = vmatprep.subr.mxu0 0.0
      %959 = vmatpush1.msra.mxu0 0.0
      %960 = vmatprep.subr.mxu0 0.0
      %961 = vmatpush1.msra.mxu0 0.0
      %962 = vmatprep.subr.mxu0 0.0
      %963 = vmatpush1.msra.mxu0 0.0
      %964 = vmatprep.subr.mxu0 0.0
      %965 = vmatpush1.msra.mxu0 0.0
      %966 = vmatprep.subr.mxu0 0.0
      %967 = vmatpush1.msra.mxu0 0.0
      %968 = vmatprep.subr.mxu0 0.0
      %969 = vmatpush1.msra.mxu0 0.0
      %970 = vmatprep.subr.mxu0 0.0
      %971 = vmatpush1.msra.mxu0 0.0
      %972 = vmatprep.subr.mxu0 0.0
      %973 = vmatpush1.msra.mxu0 0.0
      %974 = vmatprep.subr.mxu0 0.0
      %975 = vmatpush1.msra.mxu0 0.0
      %976 = vmatprep.subr.mxu0 0.0
      %977 = vmatpush1.msra.mxu0 0.0
      %978 = vmatprep.subr.mxu0 0.0
      %979 = vmatpush1.msra.mxu0 0.0
      %980 = vmatprep.subr.mxu0 0.0
      %981 = vmatpush1.msra.mxu0 0.0
      %982 = vmatprep.subr.mxu0 0.0
      %983 = vmatpush1.msra.mxu0 0.0
      %984 = vmatprep.subr.mxu0 0.0
      %985 = vmatpush1.msra.mxu0 0.0
      %986 = vmatprep.subr.mxu0 0.0
      %987 = vmatpush1.msra.mxu0 0.0
      %988 = vmatprep.mubr.f32.mxu0 0.0
      %989 = vmatmul.mubr.f32.gmra.mrb[0].mxu0 %v919
      %v990 = vpop.f32.mrb[0].mxu0
      %v991 = vadd.f32 0.0, %v990
      %v992 = vpop.f32.mrb[0].mxu0
      %993 = vmatprep.mubr.f32.mxu0 0.0
      %994 = vmatmul.mubr.f32.gmra.mrb[0].mxu0 %v922
      %v995 = vpop.f32.mrb[0].mxu0
      %v996 = vadd.f32 0.0, %v995
      %v997 = vpop.f32.mrb[0].mxu0
      %998 = vdwg.mxu0
      %v999 = vadd.f32 %v902, %v991
      %v1000 = vadd.f32 %v903, %v996
      %v1001 = vrot.slane %v230, 7
      %v1002 = vrot.slane %v231, 7
      %v1003 = vsel %vm633, %v1001, %v1002
      %v1006 = vsel %vm633, 0.0, %v1001
      %v1007 = vmul.f32 %v1006, %v246
      %v1008 = vmul.f32 %v1003, %v251
      %s1009 = scalar_lea.vmem %s1, 256
      %v1010 = vld [vmem:[%s1009] sm:$0xff]
      %v1011 = vld [vmem:[%s1009 + $0x8] sm:$0xff]
      %v1012 = vld [vmem:[%s1009 + $0x10] sm:$0xff]
      %v1013 = vld [vmem:[%s1009 + $0x18] sm:$0xff]
      %v1015 = vsel %vm272, %v1007, 0
      %v1018 = vsel %vm272, %v1008, 0
      %1020 = vmatprep.subr.mxu0 0.0
      %1021 = vmatpush1.msra.mxu0 %v1010
      %1022 = vmatprep.subr.mxu0 0.0
      %1023 = vmatpush1.msra.mxu0 %v1011
      %1024 = vmatprep.subr.mxu0 0.0
      %1025 = vmatpush1.msra.mxu0 %v1012
      %1026 = vmatprep.subr.mxu0 0.0
      %1027 = vmatpush1.msra.mxu0 %v1013
      %1028 = vmatprep.subr.mxu0 0.0
      %1029 = vmatpush1.msra.mxu0 0.0
      %1030 = vmatprep.subr.mxu0 0.0
      %1031 = vmatpush1.msra.mxu0 0.0
      %1032 = vmatprep.subr.mxu0 0.0
      %1033 = vmatpush1.msra.mxu0 0.0
      %1034 = vmatprep.subr.mxu0 0.0
      %1035 = vmatpush1.msra.mxu0 0.0
      %1036 = vmatprep.subr.mxu0 0.0
      %1037 = vmatpush1.msra.mxu0 0.0
      %1038 = vmatprep.subr.mxu0 0.0
      %1039 = vmatpush1.msra.mxu0 0.0
      %1040 = vmatprep.subr.mxu0 0.0
      %1041 = vmatpush1.msra.mxu0 0.0
      %1042 = vmatprep.subr.mxu0 0.0
      %1043 = vmatpush1.msra.mxu0 0.0
      %1044 = vmatprep.subr.mxu0 0.0
      %1045 = vmatpush1.msra.mxu0 0.0
      %1046 = vmatprep.subr.mxu0 0.0
      %1047 = vmatpush1.msra.mxu0 0.0
      %1048 = vmatprep.subr.mxu0 0.0
      %1049 = vmatpush1.msra.mxu0 0.0
      %1050 = vmatprep.subr.mxu0 0.0
      %1051 = vmatpush1.msra.mxu0 0.0
      %1052 = vmatprep.subr.mxu0 0.0
      %1053 = vmatpush1.msra.mxu0 0.0
      %1054 = vmatprep.subr.mxu0 0.0
      %1055 = vmatpush1.msra.mxu0 0.0
      %1056 = vmatprep.subr.mxu0 0.0
      %1057 = vmatpush1.msra.mxu0 0.0
      %1058 = vmatprep.subr.mxu0 0.0
      %1059 = vmatpush1.msra.mxu0 0.0
      %1060 = vmatprep.subr.mxu0 0.0
      %1061 = vmatpush1.msra.mxu0 0.0
      %1062 = vmatprep.subr.mxu0 0.0
      %1063 = vmatpush1.msra.mxu0 0.0
      %1064 = vmatprep.subr.mxu0 0.0
      %1065 = vmatpush1.msra.mxu0 0.0
      %1066 = vmatprep.subr.mxu0 0.0
      %1067 = vmatpush1.msra.mxu0 0.0
      %1068 = vmatprep.subr.mxu0 0.0
      %1069 = vmatpush1.msra.mxu0 0.0
      %1070 = vmatprep.subr.mxu0 0.0
      %1071 = vmatpush1.msra.mxu0 0.0
      %1072 = vmatprep.subr.mxu0 0.0
      %1073 = vmatpush1.msra.mxu0 0.0
      %1074 = vmatprep.subr.mxu0 0.0
      %1075 = vmatpush1.msra.mxu0 0.0
      %1076 = vmatprep.subr.mxu0 0.0
      %1077 = vmatpush1.msra.mxu0 0.0
      %1078 = vmatprep.subr.mxu0 0.0
      %1079 = vmatpush1.msra.mxu0 0.0
      %1080 = vmatprep.subr.mxu0 0.0
      %1081 = vmatpush1.msra.mxu0 0.0
      %1082 = vmatprep.subr.mxu0 0.0
      %1083 = vmatpush1.msra.mxu0 0.0
      %1084 = vmatprep.mubr.f32.mxu0 0.0
      %1085 = vmatmul.mubr.f32.gmra.mrb[0].mxu0 %v1015
      %v1086 = vpop.f32.mrb[0].mxu0
      %v1087 = vadd.f32 0.0, %v1086
      %v1088 = vpop.f32.mrb[0].mxu0
      %1089 = vmatprep.mubr.f32.mxu0 0.0
      %1090 = vmatmul.mubr.f32.gmra.mrb[0].mxu0 %v1018
      %v1091 = vpop.f32.mrb[0].mxu0
      %v1092 = vadd.f32 0.0, %v1091
      %v1093 = vpop.f32.mrb[0].mxu0
      %1094 = vdwg.mxu0
      %v1095 = vadd.f32 %v999, %v1087
      %v1096 = vadd.f32 %v1000, %v1092
      %s1097 = scalar_lea.vmem %s1, 288
      %v1098 = vld [vmem:[%s1097] sm:$0xff]
      %v1099 = vld [vmem:[%s1097 + $0x8] sm:$0xff]
      %v1100 = vld [vmem:[%s1097 + $0x10] sm:$0xff]
      %v1101 = vld [vmem:[%s1097 + $0x18] sm:$0xff]
      %v1102 = vsel %vm272, %v227, 0
      %v1104 = vsel %vm272, %v228, 0
      %1106 = vmatprep.subr.mxu0 0.0
      %1107 = vmatpush1.msra.mxu0 %v1098
      %1108 = vmatprep.subr.mxu0 0.0
      %1109 = vmatpush1.msra.mxu0 %v1099
      %1110 = vmatprep.subr.mxu0 0.0
      %1111 = vmatpush1.msra.mxu0 %v1100
      %1112 = vmatprep.subr.mxu0 0.0
      %1113 = vmatpush1.msra.mxu0 %v1101
      %1114 = vmatprep.subr.mxu0 0.0
      %1115 = vmatpush1.msra.mxu0 0.0
      %1116 = vmatprep.subr.mxu0 0.0
      %1117 = vmatpush1.msra.mxu0 0.0
      %1118 = vmatprep.subr.mxu0 0.0
      %1119 = vmatpush1.msra.mxu0 0.0
      %1120 = vmatprep.subr.mxu0 0.0
      %1121 = vmatpush1.msra.mxu0 0.0
      %1122 = vmatprep.subr.mxu0 0.0
      %1123 = vmatpush1.msra.mxu0 0.0
      %1124 = vmatprep.subr.mxu0 0.0
      %1125 = vmatpush1.msra.mxu0 0.0
      %1126 = vmatprep.subr.mxu0 0.0
      %1127 = vmatpush1.msra.mxu0 0.0
      %1128 = vmatprep.subr.mxu0 0.0
      %1129 = vmatpush1.msra.mxu0 0.0
      %1130 = vmatprep.subr.mxu0 0.0
      %1131 = vmatpush1.msra.mxu0 0.0
      %1132 = vmatprep.subr.mxu0 0.0
      %1133 = vmatpush1.msra.mxu0 0.0
      %1134 = vmatprep.subr.mxu0 0.0
      %1135 = vmatpush1.msra.mxu0 0.0
      %1136 = vmatprep.subr.mxu0 0.0
      %1137 = vmatpush1.msra.mxu0 0.0
      %1138 = vmatprep.subr.mxu0 0.0
      %1139 = vmatpush1.msra.mxu0 0.0
      %1140 = vmatprep.subr.mxu0 0.0
      %1141 = vmatpush1.msra.mxu0 0.0
      %1142 = vmatprep.subr.mxu0 0.0
      %1143 = vmatpush1.msra.mxu0 0.0
      %1144 = vmatprep.subr.mxu0 0.0
      %1145 = vmatpush1.msra.mxu0 0.0
      %1146 = vmatprep.subr.mxu0 0.0
      %1147 = vmatpush1.msra.mxu0 0.0
      %1148 = vmatprep.subr.mxu0 0.0
      %1149 = vmatpush1.msra.mxu0 0.0
      %1150 = vmatprep.subr.mxu0 0.0
      %1151 = vmatpush1.msra.mxu0 0.0
      %1152 = vmatprep.subr.mxu0 0.0
      %1153 = vmatpush1.msra.mxu0 0.0
      %1154 = vmatprep.subr.mxu0 0.0
      %1155 = vmatpush1.msra.mxu0 0.0
      %1156 = vmatprep.subr.mxu0 0.0
      %1157 = vmatpush1.msra.mxu0 0.0
      %1158 = vmatprep.subr.mxu0 0.0
      %1159 = vmatpush1.msra.mxu0 0.0
      %1160 = vmatprep.subr.mxu0 0.0
      %1161 = vmatpush1.msra.mxu0 0.0
      %1162 = vmatprep.subr.mxu0 0.0
      %1163 = vmatpush1.msra.mxu0 0.0
      %1164 = vmatprep.subr.mxu0 0.0
      %1165 = vmatpush1.msra.mxu0 0.0
      %1166 = vmatprep.subr.mxu0 0.0
      %1167 = vmatpush1.msra.mxu0 0.0
      %1168 = vmatprep.subr.mxu0 0.0
      %1169 = vmatpush1.msra.mxu0 0.0
      %1170 = vmatprep.mubr.f32.mxu0 0.0
      %1171 = vmatmul.mubr.f32.gmra.mrb[0].mxu0 %v1102
      %v1172 = vpop.f32.mrb[0].mxu0
      %v1173 = vadd.f32 0.0, %v1172
      %v1174 = vpop.f32.mrb[0].mxu0
      %1175 = vmatprep.mubr.f32.mxu0 0.0
      %1176 = vmatmul.mubr.f32.gmra.mrb[0].mxu0 %v1104
      %v1177 = vpop.f32.mrb[0].mxu0
      %v1178 = vadd.f32 0.0, %v1177
      %v1179 = vpop.f32.mrb[0].mxu0
      %1180 = vdwg.mxu0
      %v1181 = vadd.f32 %v1095, %v1173
      %v1182 = vadd.f32 %v1096, %v1178
      %s1183 = scalar_lea.vmem %s1, 320
      %v1184 = vld [vmem:[%s1183] sm:$0xff]
      %v1185 = vld [vmem:[%s1183 + $0x8] sm:$0xff]
      %v1186 = vld [vmem:[%s1183 + $0x10] sm:$0xff]
      %v1187 = vld [vmem:[%s1183 + $0x18] sm:$0xff]
      %v1188 = vsel %vm272, %v230, 0
      %v1190 = vsel %vm272, %v231, 0
      %1192 = vmatprep.subr.mxu0 0.0
      %1193 = vmatpush1.msra.mxu0 %v1184
      %1194 = vmatprep.subr.mxu0 0.0
      %1195 = vmatpush1.msra.mxu0 %v1185
      %1196 = vmatprep.subr.mxu0 0.0
      %1197 = vmatpush1.msra.mxu0 %v1186
      %1198 = vmatprep.subr.mxu0 0.0
      %1199 = vmatpush1.msra.mxu0 %v1187
      %1200 = vmatprep.subr.mxu0 0.0
      %1201 = vmatpush1.msra.mxu0 0.0
      %1202 = vmatprep.subr.mxu0 0.0
      %1203 = vmatpush1.msra.mxu0 0.0
      %1204 = vmatprep.subr.mxu0 0.0
      %1205 = vmatpush1.msra.mxu0 0.0
      %1206 = vmatprep.subr.mxu0 0.0
      %1207 = vmatpush1.msra.mxu0 0.0
      %1208 = vmatprep.subr.mxu0 0.0
      %1209 = vmatpush1.msra.mxu0 0.0
      %1210 = vmatprep.subr.mxu0 0.0
      %1211 = vmatpush1.msra.mxu0 0.0
      %1212 = vmatprep.subr.mxu0 0.0
      %1213 = vmatpush1.msra.mxu0 0.0
      %1214 = vmatprep.subr.mxu0 0.0
      %1215 = vmatpush1.msra.mxu0 0.0
      %1216 = vmatprep.subr.mxu0 0.0
      %1217 = vmatpush1.msra.mxu0 0.0
      %1218 = vmatprep.subr.mxu0 0.0
      %1219 = vmatpush1.msra.mxu0 0.0
      %1220 = vmatprep.subr.mxu0 0.0
      %1221 = vmatpush1.msra.mxu0 0.0
      %1222 = vmatprep.subr.mxu0 0.0
      %1223 = vmatpush1.msra.mxu0 0.0
      %1224 = vmatprep.subr.mxu0 0.0
      %1225 = vmatpush1.msra.mxu0 0.0
      %1226 = vmatprep.subr.mxu0 0.0
      %1227 = vmatpush1.msra.mxu0 0.0
      %1228 = vmatprep.subr.mxu0 0.0
      %1229 = vmatpush1.msra.mxu0 0.0
      %1230 = vmatprep.subr.mxu0 0.0
      %1231 = vmatpush1.msra.mxu0 0.0
      %1232 = vmatprep.subr.mxu0 0.0
      %1233 = vmatpush1.msra.mxu0 0.0
      %1234 = vmatprep.subr.mxu0 0.0
      %1235 = vmatpush1.msra.mxu0 0.0
      %1236 = vmatprep.subr.mxu0 0.0
      %1237 = vmatpush1.msra.mxu0 0.0
      %1238 = vmatprep.subr.mxu0 0.0
      %1239 = vmatpush1.msra.mxu0 0.0
      %1240 = vmatprep.subr.mxu0 0.0
      %1241 = vmatpush1.msra.mxu0 0.0
      %1242 = vmatprep.subr.mxu0 0.0
      %1243 = vmatpush1.msra.mxu0 0.0
      %1244 = vmatprep.subr.mxu0 0.0
      %1245 = vmatpush1.msra.mxu0 0.0
      %1246 = vmatprep.subr.mxu0 0.0
      %1247 = vmatpush1.msra.mxu0 0.0
      %1248 = vmatprep.subr.mxu0 0.0
      %1249 = vmatpush1.msra.mxu0 0.0
      %1250 = vmatprep.subr.mxu0 0.0
      %1251 = vmatpush1.msra.mxu0 0.0
      %1252 = vmatprep.subr.mxu0 0.0
      %1253 = vmatpush1.msra.mxu0 0.0
      %1254 = vmatprep.subr.mxu0 0.0
      %1255 = vmatpush1.msra.mxu0 0.0
      %1256 = vmatprep.mubr.f32.mxu0 0.0
      %1257 = vmatmul.mubr.f32.gmra.mrb[0].mxu0 %v1188
      %v1258 = vpop.f32.mrb[0].mxu0
      %v1259 = vadd.f32 0.0, %v1258
      %v1260 = vpop.f32.mrb[0].mxu0
      %1261 = vmatprep.mubr.f32.mxu0 0.0
      %1262 = vmatmul.mubr.f32.gmra.mrb[0].mxu0 %v1190
      %v1263 = vpop.f32.mrb[0].mxu0
      %v1264 = vadd.f32 0.0, %v1263
      %v1265 = vpop.f32.mrb[0].mxu0
      %1266 = vdwg.mxu0
      %v1267 = vadd.f32 %v1181, %v1259
      %v1268 = vadd.f32 %v1182, %v1264
      %v1269 = vrot.slane %v227, 1
      %v1270 = vrot.slane %v228, 1
      %v1271 = vsel %vm904, %v1269, %v1270
      %v1274 = vsel %vm904, %v1270, 0.0
      %v1275 = vmul.f32 %v1271, %v535
      %v1276 = vmul.f32 %v1274, %v539
      %s1277 = scalar_lea.vmem %s1, 352
      %v1278 = vld [vmem:[%s1277] sm:$0xff]
      %v1279 = vld [vmem:[%s1277 + $0x8] sm:$0xff]
      %v1280 = vld [vmem:[%s1277 + $0x10] sm:$0xff]
      %v1281 = vld [vmem:[%s1277 + $0x18] sm:$0xff]
      %v1283 = vsel %vm272, %v1275, 0
      %v1286 = vsel %vm272, %v1276, 0
      %1288 = vmatprep.subr.mxu0 0.0
      %1289 = vmatpush1.msra.mxu0 %v1278
      %1290 = vmatprep.subr.mxu0 0.0
      %1291 = vmatpush1.msra.mxu0 %v1279
      %1292 = vmatprep.subr.mxu0 0.0
      %1293 = vmatpush1.msra.mxu0 %v1280
      %1294 = vmatprep.subr.mxu0 0.0
      %1295 = vmatpush1.msra.mxu0 %v1281
      %1296 = vmatprep.subr.mxu0 0.0
      %1297 = vmatpush1.msra.mxu0 0.0
      %1298 = vmatprep.subr.mxu0 0.0
      %1299 = vmatpush1.msra.mxu0 0.0
      %1300 = vmatprep.subr.mxu0 0.0
      %1301 = vmatpush1.msra.mxu0 0.0
      %1302 = vmatprep.subr.mxu0 0.0
      %1303 = vmatpush1.msra.mxu0 0.0
      %1304 = vmatprep.subr.mxu0 0.0
      %1305 = vmatpush1.msra.mxu0 0.0
      %1306 = vmatprep.subr.mxu0 0.0
      %1307 = vmatpush1.msra.mxu0 0.0
      %1308 = vmatprep.subr.mxu0 0.0
      %1309 = vmatpush1.msra.mxu0 0.0
      %1310 = vmatprep.subr.mxu0 0.0
      %1311 = vmatpush1.msra.mxu0 0.0
      %1312 = vmatprep.subr.mxu0 0.0
      %1313 = vmatpush1.msra.mxu0 0.0
      %1314 = vmatprep.subr.mxu0 0.0
      %1315 = vmatpush1.msra.mxu0 0.0
      %1316 = vmatprep.subr.mxu0 0.0
      %1317 = vmatpush1.msra.mxu0 0.0
      %1318 = vmatprep.subr.mxu0 0.0
      %1319 = vmatpush1.msra.mxu0 0.0
      %1320 = vmatprep.subr.mxu0 0.0
      %1321 = vmatpush1.msra.mxu0 0.0
      %1322 = vmatprep.subr.mxu0 0.0
      %1323 = vmatpush1.msra.mxu0 0.0
      %1324 = vmatprep.subr.mxu0 0.0
      %1325 = vmatpush1.msra.mxu0 0.0
      %1326 = vmatprep.subr.mxu0 0.0
      %1327 = vmatpush1.msra.mxu0 0.0
      %1328 = vmatprep.subr.mxu0 0.0
      %1329 = vmatpush1.msra.mxu0 0.0
      %1330 = vmatprep.subr.mxu0 0.0
      %1331 = vmatpush1.msra.mxu0 0.0
      %1332 = vmatprep.subr.mxu0 0.0
      %1333 = vmatpush1.msra.mxu0 0.0
      %1334 = vmatprep.subr.mxu0 0.0
      %1335 = vmatpush1.msra.mxu0 0.0
      %1336 = vmatprep.subr.mxu0 0.0
      %1337 = vmatpush1.msra.mxu0 0.0
      %1338 = vmatprep.subr.mxu0 0.0
      %1339 = vmatpush1.msra.mxu0 0.0
      %1340 = vmatprep.subr.mxu0 0.0
      %1341 = vmatpush1.msra.mxu0 0.0
      %1342 = vmatprep.subr.mxu0 0.0
      %1343 = vmatpush1.msra.mxu0 0.0
      %1344 = vmatprep.subr.mxu0 0.0
      %1345 = vmatpush1.msra.mxu0 0.0
      %1346 = vmatprep.subr.mxu0 0.0
      %1347 = vmatpush1.msra.mxu0 0.0
      %1348 = vmatprep.subr.mxu0 0.0
      %1349 = vmatpush1.msra.mxu0 0.0
      %1350 = vmatprep.subr.mxu0 0.0
      %1351 = vmatpush1.msra.mxu0 0.0
      %1352 = vmatprep.mubr.f32.mxu0 0.0
      %1353 = vmatmul.mubr.f32.gmra.mrb[0].mxu0 %v1283
      %v1354 = vpop.f32.mrb[0].mxu0
      %v1355 = vadd.f32 0.0, %v1354
      %v1356 = vpop.f32.mrb[0].mxu0
      %1357 = vmatprep.mubr.f32.mxu0 0.0
      %1358 = vmatmul.mubr.f32.gmra.mrb[0].mxu0 %v1286
      %v1359 = vpop.f32.mrb[0].mxu0
      %v1360 = vadd.f32 0.0, %v1359
      %v1361 = vpop.f32.mrb[0].mxu0
      %1362 = vdwg.mxu0
      %v1363 = vadd.f32 %v1267, %v1355
      %v1364 = vadd.f32 %v1268, %v1360
      %v1365 = vrot.slane %v224, 3
      %v1366 = vrot.slane %v225, 3
      %v1367 = vsel %vm236, %v1365, %v1366
      %v1370 = vsel %vm236, %v1366, 0.0
      %v1371 = vmul.f32 %v1367, %v246
      %v1372 = vmul.f32 %v1370, %v251
      %s1373 = scalar_lea.vmem %s1, 384
      %v1374 = vld [vmem:[%s1373] sm:$0xff]
      %v1375 = vld [vmem:[%s1373 + $0x8] sm:$0xff]
      %v1376 = vld [vmem:[%s1373 + $0x10] sm:$0xff]
      %v1377 = vld [vmem:[%s1373 + $0x18] sm:$0xff]
      %v1379 = vsel %vm272, %v1371, 0
      %v1382 = vsel %vm272, %v1372, 0
      %1384 = vmatprep.subr.mxu0 0.0
      %1385 = vmatpush1.msra.mxu0 %v1374
      %1386 = vmatprep.subr.mxu0 0.0
      %1387 = vmatpush1.msra.mxu0 %v1375
      %1388 = vmatprep.subr.mxu0 0.0
      %1389 = vmatpush1.msra.mxu0 %v1376
      %1390 = vmatprep.subr.mxu0 0.0
      %1391 = vmatpush1.msra.mxu0 %v1377
      %1392 = vmatprep.subr.mxu0 0.0
      %1393 = vmatpush1.msra.mxu0 0.0
      %1394 = vmatprep.subr.mxu0 0.0
      %1395 = vmatpush1.msra.mxu0 0.0
      %1396 = vmatprep.subr.mxu0 0.0
      %1397 = vmatpush1.msra.mxu0 0.0
      %1398 = vmatprep.subr.mxu0 0.0
      %1399 = vmatpush1.msra.mxu0 0.0
      %1400 = vmatprep.subr.mxu0 0.0
      %1401 = vmatpush1.msra.mxu0 0.0
      %1402 = vmatprep.subr.mxu0 0.0
      %1403 = vmatpush1.msra.mxu0 0.0
      %1404 = vmatprep.subr.mxu0 0.0
      %1405 = vmatpush1.msra.mxu0 0.0
      %1406 = vmatprep.subr.mxu0 0.0
      %1407 = vmatpush1.msra.mxu0 0.0
      %1408 = vmatprep.subr.mxu0 0.0
      %1409 = vmatpush1.msra.mxu0 0.0
      %1410 = vmatprep.subr.mxu0 0.0
      %1411 = vmatpush1.msra.mxu0 0.0
      %1412 = vmatprep.subr.mxu0 0.0
      %1413 = vmatpush1.msra.mxu0 0.0
      %1414 = vmatprep.subr.mxu0 0.0
      %1415 = vmatpush1.msra.mxu0 0.0
      %1416 = vmatprep.subr.mxu0 0.0
      %1417 = vmatpush1.msra.mxu0 0.0
      %1418 = vmatprep.subr.mxu0 0.0
      %1419 = vmatpush1.msra.mxu0 0.0
      %1420 = vmatprep.subr.mxu0 0.0
      %1421 = vmatpush1.msra.mxu0 0.0
      %1422 = vmatprep.subr.mxu0 0.0
      %1423 = vmatpush1.msra.mxu0 0.0
      %1424 = vmatprep.subr.mxu0 0.0
      %1425 = vmatpush1.msra.mxu0 0.0
      %1426 = vmatprep.subr.mxu0 0.0
      %1427 = vmatpush1.msra.mxu0 0.0
      %1428 = vmatprep.subr.mxu0 0.0
      %1429 = vmatpush1.msra.mxu0 0.0
      %1430 = vmatprep.subr.mxu0 0.0
      %1431 = vmatpush1.msra.mxu0 0.0
      %1432 = vmatprep.subr.mxu0 0.0
      %1433 = vmatpush1.msra.mxu0 0.0
      %1434 = vmatprep.subr.mxu0 0.0
      %1435 = vmatpush1.msra.mxu0 0.0
      %1436 = vmatprep.subr.mxu0 0.0
      %1437 = vmatpush1.msra.mxu0 0.0
      %1438 = vmatprep.subr.mxu0 0.0
      %1439 = vmatpush1.msra.mxu0 0.0
      %1440 = vmatprep.subr.mxu0 0.0
      %1441 = vmatpush1.msra.mxu0 0.0
      %1442 = vmatprep.subr.mxu0 0.0
      %1443 = vmatpush1.msra.mxu0 0.0
      %1444 = vmatprep.subr.mxu0 0.0
      %1445 = vmatpush1.msra.mxu0 0.0
      %1446 = vmatprep.subr.mxu0 0.0
      %1447 = vmatpush1.msra.mxu0 0.0
      %1448 = vmatprep.mubr.f32.mxu0 0.0
      %1449 = vmatmul.mubr.f32.gmra.mrb[0].mxu0 %v1379
      %v1450 = vpop.f32.mrb[0].mxu0
      %v1451 = vadd.f32 0.0, %v1450
      %v1452 = vpop.f32.mrb[0].mxu0
      %1453 = vmatprep.mubr.f32.mxu0 0.0
      %1454 = vmatmul.mubr.f32.gmra.mrb[0].mxu0 %v1382
      %v1455 = vpop.f32.mrb[0].mxu0
      %v1456 = vadd.f32 0.0, %v1455
      %v1457 = vpop.f32.mrb[0].mxu0
      %1458 = vdwg.mxu0
      %v1459 = vadd.f32 %v1363, %v1451
      %v1460 = vadd.f32 %v1364, %v1456
      %v1461 = vrot.slane %v221, 4
      %v1462 = vrot.slane %v222, 4
      %v1463 = vsel %vm261, %v1461, %v1462
      %v1465 = vsel %vm261, %v1462, 0.0
      %s1466 = scalar_lea.vmem %s1, 416
      %v1467 = vld [vmem:[%s1466] sm:$0xff]
      %v1468 = vld [vmem:[%s1466 + $0x8] sm:$0xff]
      %v1469 = vld [vmem:[%s1466 + $0x10] sm:$0xff]
      %v1470 = vld [vmem:[%s1466 + $0x18] sm:$0xff]
      %v1471 = vsel %vm272, %v1463, 0
      %v1474 = vsel %vm272, %v1465, 0
      %1476 = vmatprep.subr.mxu0 0.0
      %1477 = vmatpush1.msra.mxu0 %v1467
      %1478 = vmatprep.subr.mxu0 0.0
      %1479 = vmatpush1.msra.mxu0 %v1468
      %1480 = vmatprep.subr.mxu0 0.0
      %1481 = vmatpush1.msra.mxu0 %v1469
      %1482 = vmatprep.subr.mxu0 0.0
      %1483 = vmatpush1.msra.mxu0 %v1470
      %1484 = vmatprep.subr.mxu0 0.0
      %1485 = vmatpush1.msra.mxu0 0.0
      %1486 = vmatprep.subr.mxu0 0.0
      %1487 = vmatpush1.msra.mxu0 0.0
      %1488 = vmatprep.subr.mxu0 0.0
      %1489 = vmatpush1.msra.mxu0 0.0
      %1490 = vmatprep.subr.mxu0 0.0
      %1491 = vmatpush1.msra.mxu0 0.0
      %1492 = vmatprep.subr.mxu0 0.0
      %1493 = vmatpush1.msra.mxu0 0.0
      %1494 = vmatprep.subr.mxu0 0.0
      %1495 = vmatpush1.msra.mxu0 0.0
      %1496 = vmatprep.subr.mxu0 0.0
      %1497 = vmatpush1.msra.mxu0 0.0
      %1498 = vmatprep.subr.mxu0 0.0
      %1499 = vmatpush1.msra.mxu0 0.0
      %1500 = vmatprep.subr.mxu0 0.0
      %1501 = vmatpush1.msra.mxu0 0.0
      %1502 = vmatprep.subr.mxu0 0.0
      %1503 = vmatpush1.msra.mxu0 0.0
      %1504 = vmatprep.subr.mxu0 0.0
      %1505 = vmatpush1.msra.mxu0 0.0
      %1506 = vmatprep.subr.mxu0 0.0
      %1507 = vmatpush1.msra.mxu0 0.0
      %1508 = vmatprep.subr.mxu0 0.0
      %1509 = vmatpush1.msra.mxu0 0.0
      %1510 = vmatprep.subr.mxu0 0.0
      %1511 = vmatpush1.msra.mxu0 0.0
      %1512 = vmatprep.subr.mxu0 0.0
      %1513 = vmatpush1.msra.mxu0 0.0
      %1514 = vmatprep.subr.mxu0 0.0
      %1515 = vmatpush1.msra.mxu0 0.0
      %1516 = vmatprep.subr.mxu0 0.0
      %1517 = vmatpush1.msra.mxu0 0.0
      %1518 = vmatprep.subr.mxu0 0.0
      %1519 = vmatpush1.msra.mxu0 0.0
      %1520 = vmatprep.subr.mxu0 0.0
      %1521 = vmatpush1.msra.mxu0 0.0
      %1522 = vmatprep.subr.mxu0 0.0
      %1523 = vmatpush1.msra.mxu0 0.0
      %1524 = vmatprep.subr.mxu0 0.0
      %1525 = vmatpush1.msra.mxu0 0.0
      %1526 = vmatprep.subr.mxu0 0.0
      %1527 = vmatpush1.msra.mxu0 0.0
      %1528 = vmatprep.subr.mxu0 0.0
      %1529 = vmatpush1.msra.mxu0 0.0
      %1530 = vmatprep.subr.mxu0 0.0
      %1531 = vmatpush1.msra.mxu0 0.0
      %1532 = vmatprep.subr.mxu0 0.0
      %1533 = vmatpush1.msra.mxu0 0.0
      %1534 = vmatprep.subr.mxu0 0.0
      %1535 = vmatpush1.msra.mxu0 0.0
      %1536 = vmatprep.subr.mxu0 0.0
      %1537 = vmatpush1.msra.mxu0 0.0
      %1538 = vmatprep.subr.mxu0 0.0
      %1539 = vmatpush1.msra.mxu0 0.0
      %1540 = vmatprep.mubr.f32.mxu0 0.0
      %1541 = vmatmul.mubr.f32.gmra.mrb[0].mxu0 %v1471
      %v1542 = vpop.f32.mrb[0].mxu0
      %v1543 = vadd.f32 0.0, %v1542
      %v1544 = vpop.f32.mrb[0].mxu0
      %1545 = vmatprep.mubr.f32.mxu0 0.0
      %1546 = vmatmul.mubr.f32.gmra.mrb[0].mxu0 %v1474
      %v1547 = vpop.f32.mrb[0].mxu0
      %v1548 = vadd.f32 0.0, %v1547
      %v1549 = vpop.f32.mrb[0].mxu0
      %1550 = vdwg.mxu0
      %v1551 = vadd.f32 %v1459, %v1543
      %v1552 = vadd.f32 %v1460, %v1548
      %v1553 = vrot.slane %v224, 4
      %v1554 = vrot.slane %v225, 4
      %v1555 = vsel %vm261, %v1553, %v1554
      %v1557 = vsel %vm261, %v1554, 0.0
      %s1558 = scalar_lea.vmem %s1, 448
      %v1559 = vld [vmem:[%s1558] sm:$0xff]
      %v1560 = vld [vmem:[%s1558 + $0x8] sm:$0xff]
      %v1561 = vld [vmem:[%s1558 + $0x10] sm:$0xff]
      %v1562 = vld [vmem:[%s1558 + $0x18] sm:$0xff]
      %v1563 = vsel %vm272, %v1555, 0
      %v1566 = vsel %vm272, %v1557, 0
      %1568 = vmatprep.subr.mxu0 0.0
      %1569 = vmatpush1.msra.mxu0 %v1559
      %1570 = vmatprep.subr.mxu0 0.0
      %1571 = vmatpush1.msra.mxu0 %v1560
      %1572 = vmatprep.subr.mxu0 0.0
      %1573 = vmatpush1.msra.mxu0 %v1561
      %1574 = vmatprep.subr.mxu0 0.0
      %1575 = vmatpush1.msra.mxu0 %v1562
      %1576 = vmatprep.subr.mxu0 0.0
      %1577 = vmatpush1.msra.mxu0 0.0
      %1578 = vmatprep.subr.mxu0 0.0
      %1579 = vmatpush1.msra.mxu0 0.0
      %1580 = vmatprep.subr.mxu0 0.0
      %1581 = vmatpush1.msra.mxu0 0.0
      %1582 = vmatprep.subr.mxu0 0.0
      %1583 = vmatpush1.msra.mxu0 0.0
      %1584 = vmatprep.subr.mxu0 0.0
      %1585 = vmatpush1.msra.mxu0 0.0
      %1586 = vmatprep.subr.mxu0 0.0
      %1587 = vmatpush1.msra.mxu0 0.0
      %1588 = vmatprep.subr.mxu0 0.0
      %1589 = vmatpush1.msra.mxu0 0.0
      %1590 = vmatprep.subr.mxu0 0.0
      %1591 = vmatpush1.msra.mxu0 0.0
      %1592 = vmatprep.subr.mxu0 0.0
      %1593 = vmatpush1.msra.mxu0 0.0
      %1594 = vmatprep.subr.mxu0 0.0
      %1595 = vmatpush1.msra.mxu0 0.0
      %1596 = vmatprep.subr.mxu0 0.0
      %1597 = vmatpush1.msra.mxu0 0.0
      %1598 = vmatprep.subr.mxu0 0.0
      %1599 = vmatpush1.msra.mxu0 0.0
      %1600 = vmatprep.subr.mxu0 0.0
      %1601 = vmatpush1.msra.mxu0 0.0
      %1602 = vmatprep.subr.mxu0 0.0
      %1603 = vmatpush1.msra.mxu0 0.0
      %1604 = vmatprep.subr.mxu0 0.0
      %1605 = vmatpush1.msra.mxu0 0.0
      %1606 = vmatprep.subr.mxu0 0.0
      %1607 = vmatpush1.msra.mxu0 0.0
      %1608 = vmatprep.subr.mxu0 0.0
      %1609 = vmatpush1.msra.mxu0 0.0
      %1610 = vmatprep.subr.mxu0 0.0
      %1611 = vmatpush1.msra.mxu0 0.0
      %1612 = vmatprep.subr.mxu0 0.0
      %1613 = vmatpush1.msra.mxu0 0.0
      %1614 = vmatprep.subr.mxu0 0.0
      %1615 = vmatpush1.msra.mxu0 0.0
      %1616 = vmatprep.subr.mxu0 0.0
      %1617 = vmatpush1.msra.mxu0 0.0
      %1618 = vmatprep.subr.mxu0 0.0
      %1619 = vmatpush1.msra.mxu0 0.0
      %1620 = vmatprep.subr.mxu0 0.0
      %1621 = vmatpush1.msra.mxu0 0.0
      %1622 = vmatprep.subr.mxu0 0.0
      %1623 = vmatpush1.msra.mxu0 0.0
      %1624 = vmatprep.subr.mxu0 0.0
      %1625 = vmatpush1.msra.mxu0 0.0
      %1626 = vmatprep.subr.mxu0 0.0
      %1627 = vmatpush1.msra.mxu0 0.0
      %1628 = vmatprep.subr.mxu0 0.0
      %1629 = vmatpush1.msra.mxu0 0.0
      %1630 = vmatprep.subr.mxu0 0.0
      %1631 = vmatpush1.msra.mxu0 0.0
      %1632 = vmatprep.mubr.f32.mxu0 0.0
      %1633 = vmatmul.mubr.f32.gmra.mrb[0].mxu0 %v1563
      %v1634 = vpop.f32.mrb[0].mxu0
      %v1635 = vadd.f32 0.0, %v1634
      %v1636 = vpop.f32.mrb[0].mxu0
      %1637 = vmatprep.mubr.f32.mxu0 0.0
      %1638 = vmatmul.mubr.f32.gmra.mrb[0].mxu0 %v1566
      %v1639 = vpop.f32.mrb[0].mxu0
      %v1640 = vadd.f32 0.0, %v1639
      %v1641 = vpop.f32.mrb[0].mxu0
      %1642 = vdwg.mxu0
      %v1643 = vadd.f32 %v1551, %v1635
      %v1644 = vadd.f32 %v1552, %v1640
      %v1645 = vrot.slane %v221, 5
      %v1646 = vrot.slane %v222, 5
      %v1647 = vsel %vm526, %v1645, %v1646
      %v1650 = vsel %vm526, %v1646, 0.0
      %v1651 = vmul.f32 %v1647, %v535
      %v1652 = vmul.f32 %v1650, %v539
      %s1653 = scalar_lea.vmem %s1, 480
      %v1654 = vld [vmem:[%s1653] sm:$0xff]
      %v1655 = vld [vmem:[%s1653 + $0x8] sm:$0xff]
      %v1656 = vld [vmem:[%s1653 + $0x10] sm:$0xff]
      %v1657 = vld [vmem:[%s1653 + $0x18] sm:$0xff]
      %v1659 = vsel %vm272, %v1651, 0
      %v1662 = vsel %vm272, %v1652, 0
      %1664 = vmatprep.subr.mxu0 0.0
      %1665 = vmatpush1.msra.mxu0 %v1654
      %1666 = vmatprep.subr.mxu0 0.0
      %1667 = vmatpush1.msra.mxu0 %v1655
      %1668 = vmatprep.subr.mxu0 0.0
      %1669 = vmatpush1.msra.mxu0 %v1656
      %1670 = vmatprep.subr.mxu0 0.0
      %1671 = vmatpush1.msra.mxu0 %v1657
      %1672 = vmatprep.subr.mxu0 0.0
      %1673 = vmatpush1.msra.mxu0 0.0
      %1674 = vmatprep.subr.mxu0 0.0
      %1675 = vmatpush1.msra.mxu0 0.0
      %1676 = vmatprep.subr.mxu0 0.0
      %1677 = vmatpush1.msra.mxu0 0.0
      %1678 = vmatprep.subr.mxu0 0.0
      %1679 = vmatpush1.msra.mxu0 0.0
      %1680 = vmatprep.subr.mxu0 0.0
      %1681 = vmatpush1.msra.mxu0 0.0
      %1682 = vmatprep.subr.mxu0 0.0
      %1683 = vmatpush1.msra.mxu0 0.0
      %1684 = vmatprep.subr.mxu0 0.0
      %1685 = vmatpush1.msra.mxu0 0.0
      %1686 = vmatprep.subr.mxu0 0.0
      %1687 = vmatpush1.msra.mxu0 0.0
      %1688 = vmatprep.subr.mxu0 0.0
      %1689 = vmatpush1.msra.mxu0 0.0
      %1690 = vmatprep.subr.mxu0 0.0
      %1691 = vmatpush1.msra.mxu0 0.0
      %1692 = vmatprep.subr.mxu0 0.0
      %1693 = vmatpush1.msra.mxu0 0.0
      %1694 = vmatprep.subr.mxu0 0.0
      %1695 = vmatpush1.msra.mxu0 0.0
      %1696 = vmatprep.subr.mxu0 0.0
      %1697 = vmatpush1.msra.mxu0 0.0
      %1698 = vmatprep.subr.mxu0 0.0
      %1699 = vmatpush1.msra.mxu0 0.0
      %1700 = vmatprep.subr.mxu0 0.0
      %1701 = vmatpush1.msra.mxu0 0.0
      %1702 = vmatprep.subr.mxu0 0.0
      %1703 = vmatpush1.msra.mxu0 0.0
      %1704 = vmatprep.subr.mxu0 0.0
      %1705 = vmatpush1.msra.mxu0 0.0
      %1706 = vmatprep.subr.mxu0 0.0
      %1707 = vmatpush1.msra.mxu0 0.0
      %1708 = vmatprep.subr.mxu0 0.0
      %1709 = vmatpush1.msra.mxu0 0.0
      %1710 = vmatprep.subr.mxu0 0.0
      %1711 = vmatpush1.msra.mxu0 0.0
      %1712 = vmatprep.subr.mxu0 0.0
      %1713 = vmatpush1.msra.mxu0 0.0
      %1714 = vmatprep.subr.mxu0 0.0
      %1715 = vmatpush1.msra.mxu0 0.0
      %1716 = vmatprep.subr.mxu0 0.0
      %1717 = vmatpush1.msra.mxu0 0.0
      %1718 = vmatprep.subr.mxu0 0.0
      %1719 = vmatpush1.msra.mxu0 0.0
      %1720 = vmatprep.subr.mxu0 0.0
      %1721 = vmatpush1.msra.mxu0 0.0
      %1722 = vmatprep.subr.mxu0 0.0
      %1723 = vmatpush1.msra.mxu0 0.0
      %1724 = vmatprep.subr.mxu0 0.0
      %1725 = vmatpush1.msra.mxu0 0.0
      %1726 = vmatprep.subr.mxu0 0.0
      %1727 = vmatpush1.msra.mxu0 0.0
      %1728 = vmatprep.mubr.f32.mxu0 0.0
      %1729 = vmatmul.mubr.f32.gmra.mrb[0].mxu0 %v1659
      %v1730 = vpop.f32.mrb[0].mxu0
      %v1731 = vadd.f32 0.0, %v1730
      %v1732 = vpop.f32.mrb[0].mxu0
      %1733 = vmatprep.mubr.f32.mxu0 0.0
      %1734 = vmatmul.mubr.f32.gmra.mrb[0].mxu0 %v1662
      %v1735 = vpop.f32.mrb[0].mxu0
      %v1736 = vadd.f32 0.0, %v1735
      %v1737 = vpop.f32.mrb[0].mxu0
      %1738 = vdwg.mxu0
      %v1739 = vadd.f32 %v1643, %v1731
      %v1740 = vadd.f32 %v1644, %v1736
      %v1741 = vld [vmem:[%s2] sm:$0x1]
      %v1743 = vlaneseq
      %v1744 = vshrl.u32 %v1743, 7
      %v1745 = vsub.s32 0, %v1744
      %v1746 = vrot.slane %v1741, %v1745
      %v1748 = vadd.f32 %v1739, %v1746
      %v1749 = vadd.f32 %v1740, %v1746
      %vm1750 = vcmp.gt.f32.partialorder %v1748, 0.0
      %vm1751 = vcmp.gt.f32.partialorder %v1749, 0.0
      %v1752 = vmul.f32 %v1748, 0.01
      %v1753 = vmul.f32 %v1749, 0.01
      %v1754 = vsel %vm1750, %v1748, %v1752
      %v1755 = vsel %vm1751, %v1749, %v1753
      %v1756 = vld [vmem:[%s4] sm:$0xff]
      %v1757 = vld [vmem:[%s4 + $0x8] sm:$0xff]
      %v1758 = vmul.f32 %v1754, %v1756
      %v1759 = vmul.f32 %v1755, %v1757
      %vm1760 = vcmask 523264
      %v1761 = vsel %vm1760, %v1758, 0.0
      %v1762 = vsel %vm1760, %v1759, 0.0
      %v1763 = vadd.f32 %v1761, %v1762
      %v1764 = vrot.slane %v1763, 4
      %v1765 = vadd.f32 %v1763, %v1764
      %v1766 = vrot.slane %v1765, 2
      %v1767 = vadd.f32 %v1765, %v1766
      %v1768 = vrot.slane %v1767, 1
      %v1769 = vadd.f32 %v1767, %v1768
      %v1770 = vsel %vm1760, %v1769, 0.0
      %1771 = vadd.xlane.f32.xlu0 %v1770
      %v1772 = vpop.xlane.xlu0 %1771
      %vm1773 = vcmask 0
      %1774 = vst.msk [vmem:[%s220] sm:$0x1] %vm1773, %v1772
      %p1775 = scmp.lt.s32.totalorder %s16, 1
      %s1776 = scalar_select %p1775, %s16, 1
      %s1777 = scalar_lea.vmem %s5, %s1776
      // Predicated region
      $region41: #{discriminator_forward.5} parent=39 // pred_check
        %p1778 = pneg %p144
      $region42: #{discriminator_forward.5} parent=39 // pred_check_branch
        %1780 = sbr.rel (%p1778) target = $region44
      $region43: #{discriminator_forward.5} parent=39 // pred_region
        _
      $region44: #{discriminator_forward.5} parent=39 // pred_fallthru
        _
    $region40: #{discriminator_forward.5} parent=5 // pred_fallthru
      _
    %p1781 = scmp.le.s32.totalorder 2, %s11
    // Predicated region
    $region45: #{discriminator_forward.5} parent=5 // pred_check
      %p1782 = pneg %p1781
    $region46: #{discriminator_forward.5} parent=5 // pred_check_branch
      %1784 = sbr.rel (%p1782) target = $region48
    $region47: #{discriminator_forward.5} parent=5 // pred_region
      %s1785 = ssub.s32 %s11, 2
      // Predicated region
      $region49: #{discriminator_forward.5} parent=47 // pred_check
        %p1786 = pneg %p150
      $region50: #{discriminator_forward.5} parent=47 // pred_check_branch
        %1788 = sbr.rel (%p1786) target = $region52
      $region51: #{discriminator_forward.5} parent=47 // pred_region
        %p1789 = scmp.lt.s32.totalorder %s17, 1
        %s1790 = scalar_select %p1789, %s17, 1
        %s1791 = scalar_lea.vmem %s5, %s1790
      $region52: #{discriminator_forward.5} parent=47 // pred_fallthru
        _
    $region48: #{discriminator_forward.5} parent=5 // pred_fallthru
      _
  $region6: #{discriminator_forward.5} parent=0 // loop_footer
    %s15 = sadd.s32 1, %s11
  $region7: #{discriminator_forward.5} parent=0 // loop_footer_branch
    %10 = sbr.rel target = $region3
  $region8: #{discriminator_forward.5} parent=0 // loop_exit
    _

</llo_original>
